<compile_context>
chip_gen: v7x
topology: tpu7x:2x2x1
jax: 0.10.0
libtpu: 0.0.40
codegen_flags: <defaults>
</compile_context>

<pallas_src>
import functools
import math

import jax
import jax.numpy as jnp
from jax.experimental import pallas as pl
from jax.experimental.pallas import tpu as pltpu

_SCALE_CLAMP = math.log(1000.0 / 16.0)


# ----------------------------------------------------------------------------
# Fused Pallas kernel: backbone conv3x3 + RPN conv3x3 + fused [obj|delta] head
# ----------------------------------------------------------------------------
def _fused_rpn_kernel(x_ref, w1_ref, b1_ref, w2_ref, b2_ref, w3_ref, b3_ref,
                      out_ref, f_ref, *, H, W, WROW, CF):
    HWR = H * WROW  # flattened output rows (includes the WROW-W zero pad columns per row)

    # 3x3 conv on the flattened row-padded layout: per dy one aligned tap load; the dx=+-1
    # taps become rolls of the f32 matmul result (rolling the output rows is equivalent to
    # rolling the input rows).  The wrapped rows land on zero pad columns / pad rows, so no
    # boundary masking is needed anywhere.
    def conv3x3(tap_of_dy, w_ref):
        acc = jnp.zeros((HWR, CF), jnp.float32)
        for dy in range(3):
            tap = tap_of_dy(dy)  # (HWR, Cin) bf16, sublane-aligned load
            y0 = jnp.dot(tap, w_ref[3 * dy + 0], preferred_element_type=jnp.float32)
            y1 = jnp.dot(tap, w_ref[3 * dy + 1], preferred_element_type=jnp.float32)
            y2 = jnp.dot(tap, w_ref[3 * dy + 2], preferred_element_type=jnp.float32)
            acc = (acc
                   + pltpu.roll(y0, 1, axis=0)          # dx = 0  (column w-1)
                   + y1                                  # dx = 1  (column w)
                   + pltpu.roll(y2, HWR - 1, axis=0))    # dx = 2  (column w+1)  == roll by -1
        return acc

    # ---- conv1: backbone 3x3 conv (stride 1, pad 1) + ReLU ----
    acc1 = conv3x3(lambda dy: x_ref[pl.ds(dy * WROW, HWR), :], w1_ref)
    feats = jnp.maximum(acc1 + b1_ref[...], 0.0)                     # (HWR, CF) f32
    # zero the pad columns so they act as conv2's zero padding (single cheap select)
    col = jax.lax.broadcasted_iota(jnp.int32, (HWR, 1), 0) % WROW
    feats = jnp.where(col < W, feats, 0.0)

    # ---- stage features in the persistent bf16 VMEM scratch (never written to HBM) ----
    # Only the two pad-row regions are cleared; the interior is fully overwritten each step.
    # Cleared every step (not under program_id==0): with a "parallel" grid each TensorCore
    # owns its own scratch instance, so a step-0 guard would leave one core uninitialized.
    zpad = jnp.zeros((WROW, CF), jnp.bfloat16)
    f_ref[pl.ds(0, WROW), :] = zpad                                  # feature row -1
    f_ref[pl.ds(WROW + HWR, WROW), :] = zpad                         # feature row H
    f_ref[pl.ds(WROW, HWR), :] = feats.astype(jnp.bfloat16)          # aligned interior store

    # ---- conv2: RPN shared 3x3 conv + ReLU, taps sliced straight from VMEM scratch ----
    acc2 = conv3x3(lambda dy: f_ref[pl.ds(dy * WROW, HWR), :], w2_ref)
    t = jnp.maximum(acc2 + b2_ref[...], 0.0)                         # (HWR, CF) f32

    # ---- fused 1x1 heads [objectness | anchor deltas], lane-dense 128-wide bf16 store ----
    head = jnp.dot(t.astype(jnp.bfloat16), w3_ref[...], preferred_element_type=jnp.float32)
    out_ref[...] = (head + b3_ref[...]).astype(out_ref.dtype)


def _vmem_limit_bytes(FLAT, C, CF, HWR, NOUT):
    """Generous VMEM budget: 2x input block + scratch + 2x output block + weights + live f32."""
    def padded(rows, cols, itemsize):
        pack = 4 // itemsize                      # rows packed per sublane for this dtype
        sub = 8 * pack * (-(-rows // (8 * pack)))
        lanes = 128 * (-(-cols // 128))
        return sub * lanes * itemsize
    total = (2 * padded(FLAT, C, 2)               # double-buffered bf16 input block
             + padded(FLAT, CF, 2)                # persistent bf16 feature scratch
             + 2 * padded(HWR, NOUT, 2)           # double-buffered bf16 output block
             + 2 * (padded(9 * C, CF, 2) + padded(9 * CF, CF, 2) + padded(CF, NOUT, 2)
                    + 2 * padded(1, CF, 4) + padded(1, NOUT, 4))
             + 5 * padded(HWR, CF, 4)             # live f32 accumulators / feats / t
             + padded(HWR, NOUT, 4))              # f32 head before the bf16 store
    return int(min(max(2 * total, 16 * 1024 * 1024), 64 * 1024 * 1024))


def _run_fused_rpn(x_flat, w1, b1, w2, b2, w3, b3, *, H, W, WROW):
    N, FLAT, C = x_flat.shape
    CF = w1.shape[-1]
    NOUT = w3.shape[-1]
    HWR = H * WROW
    kernel = functools.partial(_fused_rpn_kernel, H=H, W=W, WROW=WROW, CF=CF)
    return pl.pallas_call(
        kernel,
        out_shape=jax.ShapeDtypeStruct((N, HWR, NOUT), jnp.bfloat16),
        grid=(N,),
        in_specs=[
            pl.BlockSpec((None, FLAT, C), lambda n: (n, 0, 0)),   # row-padded bf16 image
            pl.BlockSpec((9, C, CF), lambda n: (0, 0, 0)),        # conv1 per-tap weights (bf16)
            pl.BlockSpec((1, CF), lambda n: (0, 0)),
            pl.BlockSpec((9, CF, CF), lambda n: (0, 0, 0)),       # conv2 per-tap weights (bf16)
            pl.BlockSpec((1, CF), lambda n: (0, 0)),
            pl.BlockSpec((CF, NOUT), lambda n: (0, 0)),           # fused [obj|delta] head (bf16)
            pl.BlockSpec((1, NOUT), lambda n: (0, 0)),
        ],
        out_specs=pl.BlockSpec((None, HWR, NOUT), lambda n: (n, 0, 0)),
        scratch_shapes=[pltpu.VMEM((FLAT, CF), jnp.bfloat16)],    # padded features, VMEM-resident
        compiler_params=pltpu.CompilerParams(
            dimension_semantics=("parallel",),
            vmem_limit_bytes=_vmem_limit_bytes(FLAT, C, CF, HWR, NOUT)),
    )(x_flat, w1, b1, w2, b2, w3, b3)


# ----------------------------------------------------------------------------
# Parameter / input layout prep (wrapper-side, runs once under jit)
# ----------------------------------------------------------------------------
def _prepare_params(params):
    wb = params["backbone_w"]                                       # (CF, C, 3, 3) OIHW
    CF, C = wb.shape[0], wb.shape[1]
    w1 = jnp.transpose(wb, (2, 3, 1, 0)).reshape(9, C, CF).astype(jnp.bfloat16)
    b1 = params["backbone_b"].reshape(1, CF).astype(jnp.float32)

    w2 = jnp.transpose(params["rpn_conv_w"], (2, 3, 1, 0)).reshape(9, CF, CF).astype(jnp.bfloat16)
    b2 = params["rpn_conv_b"].reshape(1, CF).astype(jnp.float32)

    A = params["rpn_obj_w"].shape[0]
    w_head = jnp.concatenate([params["rpn_obj_w"].reshape(A, CF).T,
                              params["rpn_delta_w"].reshape(4 * A, CF).T], axis=1)   # (CF, 5A)
    b_head = jnp.concatenate([params["rpn_obj_b"], params["rpn_delta_b"]])            # (5A,)
    NOUT = 128 * pl.cdiv(5 * A, 128)        # pad head width to a lane-dense multiple of 128
    w3 = jnp.zeros((CF, NOUT), jnp.float32).at[:, :5 * A].set(w_head).astype(jnp.bfloat16)
    b3 = jnp.zeros((1, NOUT), jnp.float32).at[0, :5 * A].set(b_head)
    return w1, b1, w2, b2, w3, b3, A


def _build_padded_input(images_nchw, pixel_mean, pixel_std, H, W, WROW):
    """NCHW image -> normalized bf16, row-padded & flattened: (N, (H+2)*WROW, C).
    Pad rows / pad columns are zero, which implements the 3x3 conv's zero padding."""
    N, C = images_nchw.shape[0], images_nchw.shape[1]
    x = jnp.transpose(images_nchw, (0, 2, 3, 1)).astype(jnp.float32)
    x = (x - pixel_mean.reshape(1, 1, 1, C)) / pixel_std.reshape(1, 1, 1, C)
    xp = jnp.zeros((N, H + 2, WROW, C), jnp.bfloat16)
    xp = xp.at[:, 1:H + 1, :W, :].set(x.astype(jnp.bfloat16))
    return xp.reshape(N, (H + 2) * WROW, C)


# ----------------------------------------------------------------------------
# Anchors + Box2BoxTransform decode (plain-JAX glue)
# ----------------------------------------------------------------------------
def generate_anchors(H, W, stride, sizes):
    ys = jnp.arange(H, dtype=jnp.float32) * stride
    xs = jnp.arange(W, dtype=jnp.float32) * stride
    cy, cx = jnp.meshgrid(ys, xs, indexing="ij")                    # (H, W)
    half = sizes.astype(jnp.float32) / 2.0                          # (A,)
    cx = cx[:, :, None]
    cy = cy[:, :, None]
    boxes = jnp.stack([cx - half, cy - half, cx + half, cy + half], axis=-1)  # (H, W, A, 4)
    return boxes.reshape(-1, 4)


def apply_deltas(deltas, anchors, weights=(1.0, 1.0, 1.0, 1.0)):
    wx, wy, ww, wh = weights
    widths = anchors[:, 2] - anchors[:, 0]
    heights = anchors[:, 3] - anchors[:, 1]
    ctr_x = anchors[:, 0] + 0.5 * widths
    ctr_y = anchors[:, 1] + 0.5 * heights
    dx = deltas[:, 0] / wx
    dy = deltas[:, 1] / wy
    dw = jnp.minimum(deltas[:, 2] / ww, _SCALE_CLAMP)
    dh = jnp.minimum(deltas[:, 3] / wh, _SCALE_CLAMP)
    pred_ctr_x = dx * widths + ctr_x
    pred_ctr_y = dy * heights + ctr_y
    pred_w = jnp.exp(dw) * widths
    pred_h = jnp.exp(dh) * heights
    return jnp.stack([pred_ctr_x - 0.5 * pred_w, pred_ctr_y - 0.5 * pred_h,
                      pred_ctr_x + 0.5 * pred_w, pred_ctr_y + 0.5 * pred_h], axis=-1)


# ----------------------------------------------------------------------------
# ProposalNetwork.forward (inference path)
# ----------------------------------------------------------------------------
@functools.partial(jax.jit, static_argnames=("H", "W", "topk", "stride"))
def _proposal_forward(images_nchw, params, out_wh, *, H, W, topk, stride):
    WROW = 16 * pl.cdiv(W + 2, 16)   # zero-padded row width: >= W+2 and bf16 sublane-aligned

    w1, b1, w2, b2, w3, b3, A = _prepare_params(params)
    x_flat = _build_padded_input(images_nchw, params["pixel_mean"], params["pixel_std"],
                                 H, W, WROW)

    head = _run_fused_rpn(x_flat, w1, b1, w2, b2, w3, b3, H=H, W=W, WROW=WROW)  # (N,H*WROW,128) bf16
    # strip pad columns and unused lanes; decode in f32
    head = head.astype(jnp.float32).reshape(-1, H, WROW, head.shape[-1])[:, :, :W, :5 * A]
    head = head.reshape(head.shape[0], H * W, 5 * A)

    anchors = generate_anchors(H, W, stride, params["anchor_sizes"])            # (H*W*A, 4)
    feat_wh = jnp.array([float(W * stride), float(H * stride)], jnp.float32)

    def postprocess_one(head_i, out_wh_i):
        obj = head_i[:, :A].reshape(-1)                             # (H*W*A,)
        deltas = head_i[:, A:5 * A].reshape(-1, 4)                  # (H*W*A, 4)
        boxes = apply_deltas(deltas, anchors)
        hi = jnp.concatenate([feat_wh, feat_wh])                    # [W, H, W, H]
        boxes = jnp.clip(boxes, 0.0, hi[None, :])
        scores, idx = jax.lax.top_k(obj, topk)
        boxes = boxes[idx]
        # TODO(synk): detectron2's RPN applies NMS after the pre-NMS top-k; NMS has no clean
        # Pallas equivalent, so proposals here are plain top-k.
        scale = jnp.concatenate([out_wh_i / feat_wh, out_wh_i / feat_wh])   # detector_postprocess
        out_hi = jnp.concatenate([out_wh_i, out_wh_i])
        boxes = jnp.clip(boxes * scale[None, :], 0.0, out_hi[None, :])
        return boxes, scores

    return jax.vmap(postprocess_one)(head, out_wh)


def proposal_network_forward(batched_inputs, params, topk=32):
    images = jnp.stack([bi["image"] for bi in batched_inputs], axis=0)  # (N, 3, H, W) NCHW
    N, C, H, W = images.shape
    A = int(params["anchor_sizes"].shape[0])
    out_wh = jnp.array(
        [[float(bi.get("width", W)), float(bi.get("height", H))] for bi in batched_inputs],
        jnp.float32)
    # ImageList.from_tensors: all images same size here (size_divisibility satisfied), no padding.
    boxes, scores = _proposal_forward(images, params, out_wh,
                                      H=H, W=W, topk=min(topk, H * W * A), stride=1)
    return [{"proposals": {"proposal_boxes": boxes[i], "objectness_logits": scores[i]}}
            for i in range(N)]


# ----------------------------------------------------------------------------
if __name__ == "__main__":
    key = jax.random.PRNGKey(0)
    k_img, k_bw, k_rw, k_ow, k_dw = jax.random.split(key, 5)

    N, C, H, W = 2, 3, 16, 16
    C_feat, A = 32, 3

    imgs = jax.random.uniform(k_img, (N, C, H, W), jnp.float32, 0.0, 255.0)
    batched_inputs = [{"image": imgs[i], "height": H, "width": W} for i in range(N)]

    params = {
        # detectron2 default BGR pixel statistics
        "pixel_mean": jnp.array([103.530, 116.280, 123.675], jnp.float32),
        "pixel_std": jnp.array([57.375, 57.120, 58.395], jnp.float32),
        # synthetic backbone: 3x3 conv C->C_feat (PyTorch OIHW weight layout), stride 1
        "backbone_w": 0.1 * jax.random.normal(k_bw, (C_feat, C, 3, 3), jnp.float32),
        "backbone_b": jnp.zeros((C_feat,), jnp.float32),
        # RPN head: shared 3x3 conv, 1x1 objectness (A), 1x1 anchor deltas (4A)
        "rpn_conv_w": 0.1 * jax.random.normal(k_rw, (C_feat, C_feat, 3, 3), jnp.float32),
        "rpn_conv_b": jnp.zeros((C_feat,), jnp.float32),
        "rpn_obj_w": 0.1 * jax.random.normal(k_ow, (A, C_feat, 1, 1), jnp.float32),
        "rpn_obj_b": jnp.zeros((A,), jnp.float32),
        "rpn_delta_w": 0.05 * jax.random.normal(k_dw, (4 * A, C_feat, 1, 1), jnp.float32),
        "rpn_delta_b": jnp.zeros((4 * A,), jnp.float32),
        "anchor_sizes": jnp.array([4.0, 8.0, 16.0], jnp.float32),
    }

    results = proposal_network_forward(batched_inputs, params, topk=32)
    for r in results:
        boxes = r["proposals"]["proposal_boxes"]
        scores = r["proposals"]["objectness_logits"]
        jax.block_until_ready(boxes)
        jax.block_until_ready(scores)
        assert boxes.shape == (32, 4) and scores.shape == (32,)
        assert bool(jnp.all(jnp.isfinite(boxes))) and bool(jnp.all(jnp.isfinite(scores)))
    print("KERNEL_OK")
</pallas_src>

<mosaic_0001>
module attributes {stable_mosaic.version = 11 : i64} {
  func.func @_fused_rpn_kernel(%arg0: i32, %arg1: memref<1x576x3xbf16, #tpu.memory_space<vmem>>, %arg2: memref<9x3x32xbf16, #tpu.memory_space<vmem>>, %arg3: memref<1x32xf32, #tpu.memory_space<vmem>>, %arg4: memref<9x32x32xbf16, #tpu.memory_space<vmem>>, %arg5: memref<1x32xf32, #tpu.memory_space<vmem>>, %arg6: memref<32x128xbf16, #tpu.memory_space<vmem>>, %arg7: memref<1x128xf32, #tpu.memory_space<vmem>>, %arg8: memref<1x512x128xbf16, #tpu.memory_space<vmem>>, %arg9: memref<576x32xbf16, #tpu.memory_space<vmem>>) attributes {dimension_semantics = [#tpu.dimension_semantics<parallel>], iteration_bounds = array<i64: 2>, scalar_prefetch = 0 : i64, scratch_operands = 1 : i64, tpu.core_type = #tpu.core_type<tc>, window_params = [{transform_indices = @transform_0, window_bounds = array<i64: 1, 576, 3>}, {pipeline_mode = #tpu.pipeline_mode<synchronous>, transform_indices = @transform_1, window_bounds = array<i64: 9, 3, 32>}, {pipeline_mode = #tpu.pipeline_mode<synchronous>, transform_indices = @transform_2, window_bounds = array<i64: 1, 32>}, {pipeline_mode = #tpu.pipeline_mode<synchronous>, transform_indices = @transform_3, window_bounds = array<i64: 9, 32, 32>}, {pipeline_mode = #tpu.pipeline_mode<synchronous>, transform_indices = @transform_4, window_bounds = array<i64: 1, 32>}, {pipeline_mode = #tpu.pipeline_mode<synchronous>, transform_indices = @transform_5, window_bounds = array<i64: 32, 128>}, {pipeline_mode = #tpu.pipeline_mode<synchronous>, transform_indices = @transform_6, window_bounds = array<i64: 1, 128>}, {transform_indices = @transform_7, window_bounds = array<i64: 1, 512, 128>}]} {
    %cst = arith.constant 0.000000e+00 : f32
    %0 = vector.broadcast %cst : f32 to vector<512x32xf32>
    %c0 = arith.constant 0 : index
    %c0_0 = arith.constant 0 : index
    %c0_1 = arith.constant 0 : index
    %1 = vector.load %arg1[%c0, %c0_0, %c0_1] : memref<1x576x3xbf16, #tpu.memory_space<vmem>>, vector<1x512x3xbf16>
    %2 = vector.shape_cast %1 : vector<1x512x3xbf16> to vector<512x3xbf16>
    %c0_2 = arith.constant 0 : index
    %c0_3 = arith.constant 0 : index
    %c0_4 = arith.constant 0 : index
    %3 = vector.load %arg2[%c0_2, %c0_3, %c0_4] : memref<9x3x32xbf16, #tpu.memory_space<vmem>>, vector<1x3x32xbf16>
    %4 = vector.shape_cast %3 : vector<1x3x32xbf16> to vector<3x32xbf16>
    %cst_5 = arith.constant dense<0.000000e+00> : vector<512x32xf32>
    %5 = tpu.matmul %2, %4, %cst_5 {dimension_numbers = #tpu.dot_dimension_numbers<[1], [0], [0], [1], [0, 0, 1, 1], [], []>} : vector<512x3xbf16>, vector<3x32xbf16>, vector<512x32xf32> -> vector<512x32xf32>
    %c1 = arith.constant 1 : index
    %c0_6 = arith.constant 0 : index
    %c0_7 = arith.constant 0 : index
    %6 = vector.load %arg2[%c1, %c0_6, %c0_7] : memref<9x3x32xbf16, #tpu.memory_space<vmem>>, vector<1x3x32xbf16>
    %7 = vector.shape_cast %6 : vector<1x3x32xbf16> to vector<3x32xbf16>
    %cst_8 = arith.constant dense<0.000000e+00> : vector<512x32xf32>
    %8 = tpu.matmul %2, %7, %cst_8 {dimension_numbers = #tpu.dot_dimension_numbers<[1], [0], [0], [1], [0, 0, 1, 1], [], []>} : vector<512x3xbf16>, vector<3x32xbf16>, vector<512x32xf32> -> vector<512x32xf32>
    %c2 = arith.constant 2 : index
    %c0_9 = arith.constant 0 : index
    %c0_10 = arith.constant 0 : index
    %9 = vector.load %arg2[%c2, %c0_9, %c0_10] : memref<9x3x32xbf16, #tpu.memory_space<vmem>>, vector<1x3x32xbf16>
    %10 = vector.shape_cast %9 : vector<1x3x32xbf16> to vector<3x32xbf16>
    %cst_11 = arith.constant dense<0.000000e+00> : vector<512x32xf32>
    %11 = tpu.matmul %2, %10, %cst_11 {dimension_numbers = #tpu.dot_dimension_numbers<[1], [0], [0], [1], [0, 0, 1, 1], [], []>} : vector<512x3xbf16>, vector<3x32xbf16>, vector<512x32xf32> -> vector<512x32xf32>
    %c1_i32 = arith.constant 1 : i32
    %12 = tpu.dynamic_rotate %5 by %c1_i32 dim 0 : vector<512x32xf32>, i32 -> vector<512x32xf32>
    %13 = arith.addf %0, %12 : vector<512x32xf32>
    %14 = arith.addf %13, %8 : vector<512x32xf32>
    %c511_i32 = arith.constant 511 : i32
    %15 = tpu.dynamic_rotate %11 by %c511_i32 dim 0 : vector<512x32xf32>, i32 -> vector<512x32xf32>
    %16 = arith.addf %14, %15 : vector<512x32xf32>
    %c0_12 = arith.constant 0 : index
    %c32 = arith.constant 32 : index
    %c0_13 = arith.constant 0 : index
    %17 = vector.load %arg1[%c0_12, %c32, %c0_13] : memref<1x576x3xbf16, #tpu.memory_space<vmem>>, vector<1x512x3xbf16>
    %18 = vector.shape_cast %17 : vector<1x512x3xbf16> to vector<512x3xbf16>
    %c3 = arith.constant 3 : index
    %c0_14 = arith.constant 0 : index
    %c0_15 = arith.constant 0 : index
    %19 = vector.load %arg2[%c3, %c0_14, %c0_15] : memref<9x3x32xbf16, #tpu.memory_space<vmem>>, vector<1x3x32xbf16>
    %20 = vector.shape_cast %19 : vector<1x3x32xbf16> to vector<3x32xbf16>
    %cst_16 = arith.constant dense<0.000000e+00> : vector<512x32xf32>
    %21 = tpu.matmul %18, %20, %cst_16 {dimension_numbers = #tpu.dot_dimension_numbers<[1], [0], [0], [1], [0, 0, 1, 1], [], []>} : vector<512x3xbf16>, vector<3x32xbf16>, vector<512x32xf32> -> vector<512x32xf32>
    %c4 = arith.constant 4 : index
    %c0_17 = arith.constant 0 : index
    %c0_18 = arith.constant 0 : index
    %22 = vector.load %arg2[%c4, %c0_17, %c0_18] : memref<9x3x32xbf16, #tpu.memory_space<vmem>>, vector<1x3x32xbf16>
    %23 = vector.shape_cast %22 : vector<1x3x32xbf16> to vector<3x32xbf16>
    %cst_19 = arith.constant dense<0.000000e+00> : vector<512x32xf32>
    %24 = tpu.matmul %18, %23, %cst_19 {dimension_numbers = #tpu.dot_dimension_numbers<[1], [0], [0], [1], [0, 0, 1, 1], [], []>} : vector<512x3xbf16>, vector<3x32xbf16>, vector<512x32xf32> -> vector<512x32xf32>
    %c5 = arith.constant 5 : index
    %c0_20 = arith.constant 0 : index
    %c0_21 = arith.constant 0 : index
    %25 = vector.load %arg2[%c5, %c0_20, %c0_21] : memref<9x3x32xbf16, #tpu.memory_space<vmem>>, vector<1x3x32xbf16>
    %26 = vector.shape_cast %25 : vector<1x3x32xbf16> to vector<3x32xbf16>
    %cst_22 = arith.constant dense<0.000000e+00> : vector<512x32xf32>
    %27 = tpu.matmul %18, %26, %cst_22 {dimension_numbers = #tpu.dot_dimension_numbers<[1], [0], [0], [1], [0, 0, 1, 1], [], []>} : vector<512x3xbf16>, vector<3x32xbf16>, vector<512x32xf32> -> vector<512x32xf32>
    %c1_i32_23 = arith.constant 1 : i32
    %28 = tpu.dynamic_rotate %21 by %c1_i32_23 dim 0 : vector<512x32xf32>, i32 -> vector<512x32xf32>
    %29 = arith.addf %16, %28 : vector<512x32xf32>
    %30 = arith.addf %29, %24 : vector<512x32xf32>
    %c511_i32_24 = arith.constant 511 : i32
    %31 = tpu.dynamic_rotate %27 by %c511_i32_24 dim 0 : vector<512x32xf32>, i32 -> vector<512x32xf32>
    %32 = arith.addf %30, %31 : vector<512x32xf32>
    %c0_25 = arith.constant 0 : index
    %c64 = arith.constant 64 : index
    %c0_26 = arith.constant 0 : index
    %33 = vector.load %arg1[%c0_25, %c64, %c0_26] : memref<1x576x3xbf16, #tpu.memory_space<vmem>>, vector<1x512x3xbf16>
    %34 = vector.shape_cast %33 : vector<1x512x3xbf16> to vector<512x3xbf16>
    %c6 = arith.constant 6 : index
    %c0_27 = arith.constant 0 : index
    %c0_28 = arith.constant 0 : index
    %35 = vector.load %arg2[%c6, %c0_27, %c0_28] : memref<9x3x32xbf16, #tpu.memory_space<vmem>>, vector<1x3x32xbf16>
    %36 = vector.shape_cast %35 : vector<1x3x32xbf16> to vector<3x32xbf16>
    %cst_29 = arith.constant dense<0.000000e+00> : vector<512x32xf32>
    %37 = tpu.matmul %34, %36, %cst_29 {dimension_numbers = #tpu.dot_dimension_numbers<[1], [0], [0], [1], [0, 0, 1, 1], [], []>} : vector<512x3xbf16>, vector<3x32xbf16>, vector<512x32xf32> -> vector<512x32xf32>
    %c7 = arith.constant 7 : index
    %c0_30 = arith.constant 0 : index
    %c0_31 = arith.constant 0 : index
    %38 = vector.load %arg2[%c7, %c0_30, %c0_31] : memref<9x3x32xbf16, #tpu.memory_space<vmem>>, vector<1x3x32xbf16>
    %39 = vector.shape_cast %38 : vector<1x3x32xbf16> to vector<3x32xbf16>
    %cst_32 = arith.constant dense<0.000000e+00> : vector<512x32xf32>
    %40 = tpu.matmul %34, %39, %cst_32 {dimension_numbers = #tpu.dot_dimension_numbers<[1], [0], [0], [1], [0, 0, 1, 1], [], []>} : vector<512x3xbf16>, vector<3x32xbf16>, vector<512x32xf32> -> vector<512x32xf32>
    %c8 = arith.constant 8 : index
    %c0_33 = arith.constant 0 : index
    %c0_34 = arith.constant 0 : index
    %41 = vector.load %arg2[%c8, %c0_33, %c0_34] : memref<9x3x32xbf16, #tpu.memory_space<vmem>>, vector<1x3x32xbf16>
    %42 = vector.shape_cast %41 : vector<1x3x32xbf16> to vector<3x32xbf16>
    %cst_35 = arith.constant dense<0.000000e+00> : vector<512x32xf32>
    %43 = tpu.matmul %34, %42, %cst_35 {dimension_numbers = #tpu.dot_dimension_numbers<[1], [0], [0], [1], [0, 0, 1, 1], [], []>} : vector<512x3xbf16>, vector<3x32xbf16>, vector<512x32xf32> -> vector<512x32xf32>
    %c1_i32_36 = arith.constant 1 : i32
    %44 = tpu.dynamic_rotate %37 by %c1_i32_36 dim 0 : vector<512x32xf32>, i32 -> vector<512x32xf32>
    %45 = arith.addf %32, %44 : vector<512x32xf32>
    %46 = arith.addf %45, %40 : vector<512x32xf32>
    %c511_i32_37 = arith.constant 511 : i32
    %47 = tpu.dynamic_rotate %43 by %c511_i32_37 dim 0 : vector<512x32xf32>, i32 -> vector<512x32xf32>
    %48 = arith.addf %46, %47 : vector<512x32xf32>
    %c0_38 = arith.constant 0 : index
    %c0_39 = arith.constant 0 : index
    %49 = vector.load %arg3[%c0_38, %c0_39] : memref<1x32xf32, #tpu.memory_space<vmem>>, vector<1x32xf32>
    %50 = vector.broadcast %49 : vector<1x32xf32> to vector<512x32xf32>
    %51 = arith.addf %48, %50 : vector<512x32xf32>
    %cst_40 = arith.constant 0.000000e+00 : f32
    %52 = vector.broadcast %cst_40 : f32 to vector<512x32xf32>
    %53 = arith.maximumf %51, %52 : vector<512x32xf32>
    %54 = tpu.iota {dimensions = array<i32: 0>} : vector<512x1xi32>
    %c32_i32 = arith.constant 32 : i32
    %c0_i32 = arith.constant 0 : i32
    %55 = arith.cmpi eq, %c32_i32, %c0_i32 : i32
    %c1_i32_41 = arith.constant 1 : i32
    %56 = arith.select %55, %c1_i32_41, %c32_i32 : i32
    %57 = vector.broadcast %56 : i32 to vector<512x1xi32>
    %58 = arith.remsi %54, %57 : vector<512x1xi32>
    %c0_i32_42 = arith.constant 0 : i32
    %59 = vector.broadcast %c0_i32_42 : i32 to vector<512x1xi32>
    %60 = arith.cmpi ne, %58, %59 : vector<512x1xi32>
    %c0_i32_43 = arith.constant 0 : i32
    %61 = vector.broadcast %c0_i32_43 : i32 to vector<512x1xi32>
    %62 = arith.cmpi slt, %58, %61 : vector<512x1xi32>
    %c0_i32_44 = arith.constant 0 : i32
    %63 = arith.cmpi slt, %56, %c0_i32_44 : i32
    %64 = vector.broadcast %63 : i1 to vector<512x1xi1>
    %65 = vector.broadcast %64 : vector<512x1xi1> to vector<512x1xi1>
    %66 = arith.xori %62, %65 : vector<512x1xi1>
    %67 = arith.andi %66, %60 : vector<512x1xi1>
    %68 = vector.broadcast %56 : i32 to vector<512x1xi32>
    %69 = arith.addi %58, %68 : vector<512x1xi32>
    %70 = arith.select %67, %69, %58 : vector<512x1xi1>, vector<512x1xi32>
    %c16_i32 = arith.constant 16 : i32
    %71 = vector.broadcast %c16_i32 : i32 to vector<512x1xi32>
    %72 = arith.cmpi slt, %70, %71 : vector<512x1xi32>
    %cst_45 = arith.constant 0.000000e+00 : f32
    %73 = vector.shape_cast %72 : vector<512x1xi1> to vector<512x1xi1>
    %74 = vector.broadcast %73 : vector<512x1xi1> to vector<512x32xi1>
    %75 = vector.broadcast %cst_45 : f32 to vector<512x32xf32>
    %76 = arith.select %74, %53, %75 : vector<512x32xi1>, vector<512x32xf32>
    %cst_46 = arith.constant 0.000000e+00 : bf16
    %77 = vector.broadcast %cst_46 : bf16 to vector<32x32xbf16>
    %c0_47 = arith.constant 0 : index
    %c0_48 = arith.constant 0 : index
    %78 = vector.load %arg9[%c0_47, %c0_48] : memref<576x32xbf16, #tpu.memory_space<vmem>>, vector<32x32xbf16>
    tpu.vector_store %arg9[%c0_47, %c0_48], %77 {strides = array<i32>} : memref<576x32xbf16, #tpu.memory_space<vmem>>, vector<32x32xbf16>,
    %c544 = arith.constant 544 : index
    %c0_49 = arith.constant 0 : index
    %79 = vector.load %arg9[%c544, %c0_49] : memref<576x32xbf16, #tpu.memory_space<vmem>>, vector<32x32xbf16>
    tpu.vector_store %arg9[%c544, %c0_49], %77 {strides = array<i32>} : memref<576x32xbf16, #tpu.memory_space<vmem>>, vector<32x32xbf16>,
    %80 = arith.truncf %76 : vector<512x32xf32> to vector<512x32xbf16>
    %c32_50 = arith.constant 32 : index
    %c0_51 = arith.constant 0 : index
    %81 = vector.load %arg9[%c32_50, %c0_51] : memref<576x32xbf16, #tpu.memory_space<vmem>>, vector<512x32xbf16>
    tpu.vector_store %arg9[%c32_50, %c0_51], %80 {strides = array<i32>} : memref<576x32xbf16, #tpu.memory_space<vmem>>, vector<512x32xbf16>,
    %cst_52 = arith.constant 0.000000e+00 : f32
    %82 = vector.broadcast %cst_52 : f32 to vector<512x32xf32>
    %c0_53 = arith.constant 0 : index
    %c0_54 = arith.constant 0 : index
    %83 = vector.load %arg9[%c0_53, %c0_54] : memref<576x32xbf16, #tpu.memory_space<vmem>>, vector<512x32xbf16>
    %c0_55 = arith.constant 0 : index
    %c0_56 = arith.constant 0 : index
    %c0_57 = arith.constant 0 : index
    %84 = vector.load %arg4[%c0_55, %c0_56, %c0_57] : memref<9x32x32xbf16, #tpu.memory_space<vmem>>, vector<1x32x32xbf16>
    %85 = vector.shape_cast %84 : vector<1x32x32xbf16> to vector<32x32xbf16>
    %cst_58 = arith.constant dense<0.000000e+00> : vector<512x32xf32>
    %86 = tpu.matmul %83, %85, %cst_58 {dimension_numbers = #tpu.dot_dimension_numbers<[1], [0], [0], [1], [0, 0, 1, 1], [], []>} : vector<512x32xbf16>, vector<32x32xbf16>, vector<512x32xf32> -> vector<512x32xf32>
    %c1_59 = arith.constant 1 : index
    %c0_60 = arith.constant 0 : index
    %c0_61 = arith.constant 0 : index
    %87 = vector.load %arg4[%c1_59, %c0_60, %c0_61] : memref<9x32x32xbf16, #tpu.memory_space<vmem>>, vector<1x32x32xbf16>
    %88 = vector.shape_cast %87 : vector<1x32x32xbf16> to vector<32x32xbf16>
    %cst_62 = arith.constant dense<0.000000e+00> : vector<512x32xf32>
    %89 = tpu.matmul %83, %88, %cst_62 {dimension_numbers = #tpu.dot_dimension_numbers<[1], [0], [0], [1], [0, 0, 1, 1], [], []>} : vector<512x32xbf16>, vector<32x32xbf16>, vector<512x32xf32> -> vector<512x32xf32>
    %c2_63 = arith.constant 2 : index
    %c0_64 = arith.constant 0 : index
    %c0_65 = arith.constant 0 : index
    %90 = vector.load %arg4[%c2_63, %c0_64, %c0_65] : memref<9x32x32xbf16, #tpu.memory_space<vmem>>, vector<1x32x32xbf16>
    %91 = vector.shape_cast %90 : vector<1x32x32xbf16> to vector<32x32xbf16>
    %cst_66 = arith.constant dense<0.000000e+00> : vector<512x32xf32>
    %92 = tpu.matmul %83, %91, %cst_66 {dimension_numbers = #tpu.dot_dimension_numbers<[1], [0], [0], [1], [0, 0, 1, 1], [], []>} : vector<512x32xbf16>, vector<32x32xbf16>, vector<512x32xf32> -> vector<512x32xf32>
    %c1_i32_67 = arith.constant 1 : i32
    %93 = tpu.dynamic_rotate %86 by %c1_i32_67 dim 0 : vector<512x32xf32>, i32 -> vector<512x32xf32>
    %94 = arith.addf %82, %93 : vector<512x32xf32>
    %95 = arith.addf %94, %89 : vector<512x32xf32>
    %c511_i32_68 = arith.constant 511 : i32
    %96 = tpu.dynamic_rotate %92 by %c511_i32_68 dim 0 : vector<512x32xf32>, i32 -> vector<512x32xf32>
    %97 = arith.addf %95, %96 : vector<512x32xf32>
    %c32_69 = arith.constant 32 : index
    %c0_70 = arith.constant 0 : index
    %98 = vector.load %arg9[%c32_69, %c0_70] : memref<576x32xbf16, #tpu.memory_space<vmem>>, vector<512x32xbf16>
    %c3_71 = arith.constant 3 : index
    %c0_72 = arith.constant 0 : index
    %c0_73 = arith.constant 0 : index
    %99 = vector.load %arg4[%c3_71, %c0_72, %c0_73] : memref<9x32x32xbf16, #tpu.memory_space<vmem>>, vector<1x32x32xbf16>
    %100 = vector.shape_cast %99 : vector<1x32x32xbf16> to vector<32x32xbf16>
    %cst_74 = arith.constant dense<0.000000e+00> : vector<512x32xf32>
    %101 = tpu.matmul %98, %100, %cst_74 {dimension_numbers = #tpu.dot_dimension_numbers<[1], [0], [0], [1], [0, 0, 1, 1], [], []>} : vector<512x32xbf16>, vector<32x32xbf16>, vector<512x32xf32> -> vector<512x32xf32>
    %c4_75 = arith.constant 4 : index
    %c0_76 = arith.constant 0 : index
    %c0_77 = arith.constant 0 : index
    %102 = vector.load %arg4[%c4_75, %c0_76, %c0_77] : memref<9x32x32xbf16, #tpu.memory_space<vmem>>, vector<1x32x32xbf16>
    %103 = vector.shape_cast %102 : vector<1x32x32xbf16> to vector<32x32xbf16>
    %cst_78 = arith.constant dense<0.000000e+00> : vector<512x32xf32>
    %104 = tpu.matmul %98, %103, %cst_78 {dimension_numbers = #tpu.dot_dimension_numbers<[1], [0], [0], [1], [0, 0, 1, 1], [], []>} : vector<512x32xbf16>, vector<32x32xbf16>, vector<512x32xf32> -> vector<512x32xf32>
    %c5_79 = arith.constant 5 : index
    %c0_80 = arith.constant 0 : index
    %c0_81 = arith.constant 0 : index
    %105 = vector.load %arg4[%c5_79, %c0_80, %c0_81] : memref<9x32x32xbf16, #tpu.memory_space<vmem>>, vector<1x32x32xbf16>
    %106 = vector.shape_cast %105 : vector<1x32x32xbf16> to vector<32x32xbf16>
    %cst_82 = arith.constant dense<0.000000e+00> : vector<512x32xf32>
    %107 = tpu.matmul %98, %106, %cst_82 {dimension_numbers = #tpu.dot_dimension_numbers<[1], [0], [0], [1], [0, 0, 1, 1], [], []>} : vector<512x32xbf16>, vector<32x32xbf16>, vector<512x32xf32> -> vector<512x32xf32>
    %c1_i32_83 = arith.constant 1 : i32
    %108 = tpu.dynamic_rotate %101 by %c1_i32_83 dim 0 : vector<512x32xf32>, i32 -> vector<512x32xf32>
    %109 = arith.addf %97, %108 : vector<512x32xf32>
    %110 = arith.addf %109, %104 : vector<512x32xf32>
    %c511_i32_84 = arith.constant 511 : i32
    %111 = tpu.dynamic_rotate %107 by %c511_i32_84 dim 0 : vector<512x32xf32>, i32 -> vector<512x32xf32>
    %112 = arith.addf %110, %111 : vector<512x32xf32>
    %c64_85 = arith.constant 64 : index
    %c0_86 = arith.constant 0 : index
    %113 = vector.load %arg9[%c64_85, %c0_86] : memref<576x32xbf16, #tpu.memory_space<vmem>>, vector<512x32xbf16>
    %c6_87 = arith.constant 6 : index
    %c0_88 = arith.constant 0 : index
    %c0_89 = arith.constant 0 : index
    %114 = vector.load %arg4[%c6_87, %c0_88, %c0_89] : memref<9x32x32xbf16, #tpu.memory_space<vmem>>, vector<1x32x32xbf16>
    %115 = vector.shape_cast %114 : vector<1x32x32xbf16> to vector<32x32xbf16>
    %cst_90 = arith.constant dense<0.000000e+00> : vector<512x32xf32>
    %116 = tpu.matmul %113, %115, %cst_90 {dimension_numbers = #tpu.dot_dimension_numbers<[1], [0], [0], [1], [0, 0, 1, 1], [], []>} : vector<512x32xbf16>, vector<32x32xbf16>, vector<512x32xf32> -> vector<512x32xf32>
    %c7_91 = arith.constant 7 : index
    %c0_92 = arith.constant 0 : index
    %c0_93 = arith.constant 0 : index
    %117 = vector.load %arg4[%c7_91, %c0_92, %c0_93] : memref<9x32x32xbf16, #tpu.memory_space<vmem>>, vector<1x32x32xbf16>
    %118 = vector.shape_cast %117 : vector<1x32x32xbf16> to vector<32x32xbf16>
    %cst_94 = arith.constant dense<0.000000e+00> : vector<512x32xf32>
    %119 = tpu.matmul %113, %118, %cst_94 {dimension_numbers = #tpu.dot_dimension_numbers<[1], [0], [0], [1], [0, 0, 1, 1], [], []>} : vector<512x32xbf16>, vector<32x32xbf16>, vector<512x32xf32> -> vector<512x32xf32>
    %c8_95 = arith.constant 8 : index
    %c0_96 = arith.constant 0 : index
    %c0_97 = arith.constant 0 : index
    %120 = vector.load %arg4[%c8_95, %c0_96, %c0_97] : memref<9x32x32xbf16, #tpu.memory_space<vmem>>, vector<1x32x32xbf16>
    %121 = vector.shape_cast %120 : vector<1x32x32xbf16> to vector<32x32xbf16>
    %cst_98 = arith.constant dense<0.000000e+00> : vector<512x32xf32>
    %122 = tpu.matmul %113, %121, %cst_98 {dimension_numbers = #tpu.dot_dimension_numbers<[1], [0], [0], [1], [0, 0, 1, 1], [], []>} : vector<512x32xbf16>, vector<32x32xbf16>, vector<512x32xf32> -> vector<512x32xf32>
    %c1_i32_99 = arith.constant 1 : i32
    %123 = tpu.dynamic_rotate %116 by %c1_i32_99 dim 0 : vector<512x32xf32>, i32 -> vector<512x32xf32>
    %124 = arith.addf %112, %123 : vector<512x32xf32>
    %125 = arith.addf %124, %119 : vector<512x32xf32>
    %c511_i32_100 = arith.constant 511 : i32
    %126 = tpu.dynamic_rotate %122 by %c511_i32_100 dim 0 : vector<512x32xf32>, i32 -> vector<512x32xf32>
    %127 = arith.addf %125, %126 : vector<512x32xf32>
    %c0_101 = arith.constant 0 : index
    %c0_102 = arith.constant 0 : index
    %128 = vector.load %arg5[%c0_101, %c0_102] : memref<1x32xf32, #tpu.memory_space<vmem>>, vector<1x32xf32>
    %129 = vector.broadcast %128 : vector<1x32xf32> to vector<512x32xf32>
    %130 = arith.addf %127, %129 : vector<512x32xf32>
    %cst_103 = arith.constant 0.000000e+00 : f32
    %131 = vector.broadcast %cst_103 : f32 to vector<512x32xf32>
    %132 = arith.maximumf %130, %131 : vector<512x32xf32>
    %133 = arith.truncf %132 : vector<512x32xf32> to vector<512x32xbf16>
    %c0_104 = arith.constant 0 : index
    %c0_105 = arith.constant 0 : index
    %134 = vector.load %arg6[%c0_104, %c0_105] : memref<32x128xbf16, #tpu.memory_space<vmem>>, vector<32x128xbf16>
    %cst_106 = arith.constant dense<0.000000e+00> : vector<512x128xf32>
    %135 = tpu.matmul %133, %134, %cst_106 {dimension_numbers = #tpu.dot_dimension_numbers<[1], [0], [0], [1], [0, 0, 1, 1], [], []>} : vector<512x32xbf16>, vector<32x128xbf16>, vector<512x128xf32> -> vector<512x128xf32>
    %c0_107 = arith.constant 0 : index
    %c0_108 = arith.constant 0 : index
    %136 = vector.load %arg7[%c0_107, %c0_108] : memref<1x128xf32, #tpu.memory_space<vmem>>, vector<1x128xf32>
    %137 = vector.broadcast %136 : vector<1x128xf32> to vector<512x128xf32>
    %138 = arith.addf %135, %137 : vector<512x128xf32>
    %139 = arith.truncf %138 : vector<512x128xf32> to vector<512x128xbf16>
    %c0_109 = arith.constant 0 : index
    %c0_110 = arith.constant 0 : index
    %c0_111 = arith.constant 0 : index
    %140 = vector.load %arg8[%c0_109, %c0_110, %c0_111] : memref<1x512x128xbf16, #tpu.memory_space<vmem>>, vector<1x512x128xbf16>
    %141 = vector.shape_cast %140 : vector<1x512x128xbf16> to vector<512x128xbf16>
    %142 = vector.shape_cast %139 : vector<512x128xbf16> to vector<1x512x128xbf16>
    tpu.vector_store %arg8[%c0_109, %c0_110, %c0_111], %142 {strides = array<i32>} : memref<1x512x128xbf16, #tpu.memory_space<vmem>>, vector<1x512x128xbf16>,
    return
  }
  func.func @transform_0(%arg0: i32) -> (i32, i32, i32) {
    %c0_i32 = arith.constant 0 : i32
    %c0_i32_0 = arith.constant 0 : i32
    %c0_i32_1 = arith.constant 0 : i32
    return %arg0, %c0_i32, %c0_i32_0 : i32, i32, i32
  }
  func.func @transform_1(%arg0: i32) -> (i32, i32, i32) {
    %c0_i32 = arith.constant 0 : i32
    %c0_i32_0 = arith.constant 0 : i32
    %c0_i32_1 = arith.constant 0 : i32
    %c0_i32_2 = arith.constant 0 : i32
    return %c0_i32, %c0_i32_0, %c0_i32_1 : i32, i32, i32
  }
  func.func @transform_2(%arg0: i32) -> (i32, i32) {
    %c0_i32 = arith.constant 0 : i32
    %c0_i32_0 = arith.constant 0 : i32
    %c0_i32_1 = arith.constant 0 : i32
    return %c0_i32, %c0_i32_0 : i32, i32
  }
  func.func @transform_3(%arg0: i32) -> (i32, i32, i32) {
    %c0_i32 = arith.constant 0 : i32
    %c0_i32_0 = arith.constant 0 : i32
    %c0_i32_1 = arith.constant 0 : i32
    %c0_i32_2 = arith.constant 0 : i32
    return %c0_i32, %c0_i32_0, %c0_i32_1 : i32, i32, i32
  }
  func.func @transform_4(%arg0: i32) -> (i32, i32) {
    %c0_i32 = arith.constant 0 : i32
    %c0_i32_0 = arith.constant 0 : i32
    %c0_i32_1 = arith.constant 0 : i32
    return %c0_i32, %c0_i32_0 : i32, i32
  }
  func.func @transform_5(%arg0: i32) -> (i32, i32) {
    %c0_i32 = arith.constant 0 : i32
    %c0_i32_0 = arith.constant 0 : i32
    %c0_i32_1 = arith.constant 0 : i32
    return %c0_i32, %c0_i32_0 : i32, i32
  }
  func.func @transform_6(%arg0: i32) -> (i32, i32) {
    %c0_i32 = arith.constant 0 : i32
    %c0_i32_0 = arith.constant 0 : i32
    %c0_i32_1 = arith.constant 0 : i32
    return %c0_i32, %c0_i32_0 : i32, i32
  }
  func.func @transform_7(%arg0: i32) -> (i32, i32, i32) {
    %c0_i32 = arith.constant 0 : i32
    %c0_i32_0 = arith.constant 0 : i32
    %c0_i32_1 = arith.constant 0 : i32
    return %arg0, %c0_i32, %c0_i32_0 : i32, i32, i32
  }
}

</mosaic_0001>

<llo_original>
// kernel: _proposal_forward.1
$region0: #{_proposal_forward.1}
  #allocation0 [shape = 'u32[]', space=smem, size = 0x4, offset = 0x4, fixed_abs, tag = 'smem constant byte address 0x4 - core index']
  #allocation1 [shape = 'u32[144,128]{1,0:T(1,128)}', space=vmem, size = 0x12000, scoped, tag = 'internal scratch']
  #allocation2 [shape = 'bf16[576,32]{1,0:T(16,128)(2,1)}', space=vmem, size = 0x24000, scoped, tag = 'scratch operand']
  %s0 = inlined_call_operand.vmem [shape: bf16[2,576,3], index: 0, kind: input, shape index: {}]
  %s1 = inlined_call_operand.vmem [shape: bf16[9,3,32], index: 1, kind: input, shape index: {}]
  %s2 = inlined_call_operand.vmem [shape: f32[1,32], index: 2, kind: input, shape index: {}]
  %s3 = inlined_call_operand.vmem [shape: bf16[9,32,32], index: 3, kind: input, shape index: {}]
  %s4 = inlined_call_operand.vmem [shape: f32[1,32], index: 4, kind: input, shape index: {}]
  %s5 = inlined_call_operand.vmem [shape: bf16[32,128], index: 5, kind: input, shape index: {}]
  %s6 = inlined_call_operand.vmem [shape: f32[1,128], index: 6, kind: input, shape index: {}]
  %s7 = inlined_call_operand.vmem [shape: bf16[2,512,128], index: 7, kind: output, shape index: {}]
  %s8 = sld [smem:[#allocation0]]
  $region61: #{_proposal_forward.1} parent=0
    _
  %s10 = ssub.s32 1, %s8
  %s11 = scalar_select 0, %s10, %s8
  loop: start=0, step=1, limit=4
  $region2: #{_proposal_forward.1} parent=0 // loop_pre_header
    _
  $region3: #{_proposal_forward.1} parent=0 // loop_header
    %s13 = sphi 0, %s17
    %p14 = scmp.ge.s32.totalorder %s13, 4
    %s23 = sphi 0, %s25
    %s26 = sphi 0, %s23
    %s27 = sphi 0, %s26
    %s43 = sphi 0, %s27
    %s47 = sphi 0, %s47
    %s49 = sphi 0, %s47
    %s50 = sphi 0, %s49
    %s64 = sphi 0, %s50
    %s68 = sphi 0, %s68
    %s70 = sphi 0, %s68
    %s71 = sphi 0, %s70
    %s85 = sphi 0, %s71
    %s89 = sphi 0, %s89
    %s91 = sphi 0, %s89
    %s92 = sphi 0, %s91
    %s106 = sphi 0, %s92
    %s110 = sphi 0, %s110
    %s112 = sphi 0, %s110
    %s113 = sphi 0, %s112
    %s127 = sphi 0, %s113
    %s131 = sphi 0, %s131
    %s133 = sphi 0, %s131
    %s134 = sphi 0, %s133
    %s148 = sphi 0, %s134
    %s152 = sphi 0, %s152
    %s154 = sphi 0, %s152
    %s155 = sphi 0, %s154
    %s169 = sphi 0, %s155
    %s175 = sphi 0, %s177
    %s178 = sphi 0, %s175
    %s179 = sphi 0, %s178
    %s195 = sphi 0, %s179
  $region4: #{_proposal_forward.1} parent=0 // loop_header_branch
    %16 = sbr.rel (%p14) target = $region8
  $region5: #{_proposal_forward.1} parent=0 // loop_body
    %s18 = ssub.s32 %s13, 1
    %s19 = ssub.s32 %s13, 2
    %s20 = sadd.s32 %s13, 1
    %s21 = ssub.s32 %s13, %s20
    %p22 = scmp.eq.s32.totalorder %s21, 0
    %s24 = sadd.s32 %s23, 1
    %s25 = scalar_select %p22, %s23, %s24
    %p28 = pneg %p22
    %p29 = scmp.eq.s32.totalorder %s13, 1
    %p30 = por %p28, %p29
    %p31 = scmp.ne.s32.totalorder %s23, %s26
    %p32 = scmp.eq.s32.totalorder %s13, 0
    %p33 = por %p31, %p32
    %p34 = scmp.ne.s32.totalorder %s23, %s26
    %p35 = scmp.eq.s32.totalorder %s18, 1
    %p36 = por %p34, %p35
    %p37 = scmp.ne.s32.totalorder %s26, %s27
    %p38 = scmp.eq.s32.totalorder %s18, 0
    %p39 = por %p37, %p38
    %p40 = scmp.ne.s32.totalorder %s26, %s27
    %p41 = scmp.eq.s32.totalorder %s19, 1
    %p42 = por %p40, %p41
    %p44 = scmp.ne.s32.totalorder %s27, %s43
    %p45 = scmp.eq.s32.totalorder %s19, 0
    %p46 = por %p44, %p45
    %s48 = sadd.s32 %s47, 1
    %p51 = scmp.eq.s32.totalorder %s13, 1
    %p52 = scmp.ne.s32.totalorder %s47, %s49
    %p53 = scmp.eq.s32.totalorder %s13, 0
    %p54 = por %p52, %p53
    %p55 = scmp.ne.s32.totalorder %s47, %s49
    %p56 = scmp.eq.s32.totalorder %s18, 1
    %p57 = por %p55, %p56
    %p58 = scmp.ne.s32.totalorder %s49, %s50
    %p59 = scmp.eq.s32.totalorder %s18, 0
    %p60 = por %p58, %p59
    %p61 = scmp.ne.s32.totalorder %s49, %s50
    %p62 = scmp.eq.s32.totalorder %s19, 1
    %p63 = por %p61, %p62
    %p65 = scmp.ne.s32.totalorder %s50, %s64
    %p66 = scmp.eq.s32.totalorder %s19, 0
    %p67 = por %p65, %p66
    %s69 = sadd.s32 %s68, 1
    %p72 = scmp.eq.s32.totalorder %s13, 1
    %p73 = scmp.ne.s32.totalorder %s68, %s70
    %p74 = scmp.eq.s32.totalorder %s13, 0
    %p75 = por %p73, %p74
    %p76 = scmp.ne.s32.totalorder %s68, %s70
    %p77 = scmp.eq.s32.totalorder %s18, 1
    %p78 = por %p76, %p77
    %p79 = scmp.ne.s32.totalorder %s70, %s71
    %p80 = scmp.eq.s32.totalorder %s18, 0
    %p81 = por %p79, %p80
    %p82 = scmp.ne.s32.totalorder %s70, %s71
    %p83 = scmp.eq.s32.totalorder %s19, 1
    %p84 = por %p82, %p83
    %p86 = scmp.ne.s32.totalorder %s71, %s85
    %p87 = scmp.eq.s32.totalorder %s19, 0
    %p88 = por %p86, %p87
    %s90 = sadd.s32 %s89, 1
    %p93 = scmp.eq.s32.totalorder %s13, 1
    %p94 = scmp.ne.s32.totalorder %s89, %s91
    %p95 = scmp.eq.s32.totalorder %s13, 0
    %p96 = por %p94, %p95
    %p97 = scmp.ne.s32.totalorder %s89, %s91
    %p98 = scmp.eq.s32.totalorder %s18, 1
    %p99 = por %p97, %p98
    %p100 = scmp.ne.s32.totalorder %s91, %s92
    %p101 = scmp.eq.s32.totalorder %s18, 0
    %p102 = por %p100, %p101
    %p103 = scmp.ne.s32.totalorder %s91, %s92
    %p104 = scmp.eq.s32.totalorder %s19, 1
    %p105 = por %p103, %p104
    %p107 = scmp.ne.s32.totalorder %s92, %s106
    %p108 = scmp.eq.s32.totalorder %s19, 0
    %p109 = por %p107, %p108
    %s111 = sadd.s32 %s110, 1
    %p114 = scmp.eq.s32.totalorder %s13, 1
    %p115 = scmp.ne.s32.totalorder %s110, %s112
    %p116 = scmp.eq.s32.totalorder %s13, 0
    %p117 = por %p115, %p116
    %p118 = scmp.ne.s32.totalorder %s110, %s112
    %p119 = scmp.eq.s32.totalorder %s18, 1
    %p120 = por %p118, %p119
    %p121 = scmp.ne.s32.totalorder %s112, %s113
    %p122 = scmp.eq.s32.totalorder %s18, 0
    %p123 = por %p121, %p122
    %p124 = scmp.ne.s32.totalorder %s112, %s113
    %p125 = scmp.eq.s32.totalorder %s19, 1
    %p126 = por %p124, %p125
    %p128 = scmp.ne.s32.totalorder %s113, %s127
    %p129 = scmp.eq.s32.totalorder %s19, 0
    %p130 = por %p128, %p129
    %s132 = sadd.s32 %s131, 1
    %p135 = scmp.eq.s32.totalorder %s13, 1
    %p136 = scmp.ne.s32.totalorder %s131, %s133
    %p137 = scmp.eq.s32.totalorder %s13, 0
    %p138 = por %p136, %p137
    %p139 = scmp.ne.s32.totalorder %s131, %s133
    %p140 = scmp.eq.s32.totalorder %s18, 1
    %p141 = por %p139, %p140
    %p142 = scmp.ne.s32.totalorder %s133, %s134
    %p143 = scmp.eq.s32.totalorder %s18, 0
    %p144 = por %p142, %p143
    %p145 = scmp.ne.s32.totalorder %s133, %s134
    %p146 = scmp.eq.s32.totalorder %s19, 1
    %p147 = por %p145, %p146
    %p149 = scmp.ne.s32.totalorder %s134, %s148
    %p150 = scmp.eq.s32.totalorder %s19, 0
    %p151 = por %p149, %p150
    %s153 = sadd.s32 %s152, 1
    %p156 = scmp.eq.s32.totalorder %s13, 1
    %p157 = scmp.ne.s32.totalorder %s152, %s154
    %p158 = scmp.eq.s32.totalorder %s13, 0
    %p159 = por %p157, %p158
    %p160 = scmp.ne.s32.totalorder %s152, %s154
    %p161 = scmp.eq.s32.totalorder %s18, 1
    %p162 = por %p160, %p161
    %p163 = scmp.ne.s32.totalorder %s154, %s155
    %p164 = scmp.eq.s32.totalorder %s18, 0
    %p165 = por %p163, %p164
    %p166 = scmp.ne.s32.totalorder %s154, %s155
    %p167 = scmp.eq.s32.totalorder %s19, 1
    %p168 = por %p166, %p167
    %p170 = scmp.ne.s32.totalorder %s155, %s169
    %p171 = scmp.eq.s32.totalorder %s19, 0
    %p172 = por %p170, %p171
    %s173 = ssub.s32 %s13, %s20
    %p174 = scmp.eq.s32.totalorder %s173, 0
    %s176 = sadd.s32 %s175, 1
    %s177 = scalar_select %p174, %s175, %s176
    %p180 = pneg %p174
    %p181 = scmp.eq.s32.totalorder %s13, 1
    %p182 = por %p180, %p181
    %p183 = scmp.ne.s32.totalorder %s175, %s178
    %p184 = scmp.eq.s32.totalorder %s13, 0
    %p185 = por %p183, %p184
    %p186 = scmp.ne.s32.totalorder %s175, %s178
    %p187 = scmp.eq.s32.totalorder %s18, 1
    %p188 = por %p186, %p187
    %p189 = scmp.ne.s32.totalorder %s178, %s179
    %p190 = scmp.eq.s32.totalorder %s18, 0
    %p191 = por %p189, %p190
    %p192 = scmp.ne.s32.totalorder %s178, %s179
    %p193 = scmp.eq.s32.totalorder %s19, 1
    %p194 = por %p192, %p193
    %p196 = scmp.ne.s32.totalorder %s179, %s195
    %p197 = scmp.eq.s32.totalorder %s19, 0
    %p198 = por %p196, %p197
    %p199 = scmp.le.s32.totalorder 1, %s13
    %p200 = scmp.lt.s32.totalorder %s13, 3
    %p201 = pnand %p199, %p200
    %p202 = pneg %p201
    // Predicated region
    $region9: #{_proposal_forward.1} parent=5 // pred_check
      _
    $region10: #{_proposal_forward.1} parent=5 // pred_check_branch
      %204 = sbr.rel (%p201) target = $region12
    $region11: #{_proposal_forward.1} parent=5 // pred_region
      %s205 = ssub.s32 %s13, 1
      // Predicated region
      $region13: #{_proposal_forward.1} parent=11 // pred_check
        %p206 = pneg %p60
      $region14: #{_proposal_forward.1} parent=11 // pred_check_branch
        %208 = sbr.rel (%p206) target = $region16
      $region15: #{_proposal_forward.1} parent=11 // pred_region
        _
      $region16: #{_proposal_forward.1} parent=11 // pred_fallthru
        _
      // Predicated region
      $region17: #{_proposal_forward.1} parent=11 // pred_check
        %p209 = pneg %p81
      $region18: #{_proposal_forward.1} parent=11 // pred_check_branch
        %211 = sbr.rel (%p209) target = $region20
      $region19: #{_proposal_forward.1} parent=11 // pred_region
        _
      $region20: #{_proposal_forward.1} parent=11 // pred_fallthru
        _
      // Predicated region
      $region21: #{_proposal_forward.1} parent=11 // pred_check
        %p212 = pneg %p102
      $region22: #{_proposal_forward.1} parent=11 // pred_check_branch
        %214 = sbr.rel (%p212) target = $region24
      $region23: #{_proposal_forward.1} parent=11 // pred_region
        _
      $region24: #{_proposal_forward.1} parent=11 // pred_fallthru
        _
      // Predicated region
      $region25: #{_proposal_forward.1} parent=11 // pred_check
        %p215 = pneg %p123
      $region26: #{_proposal_forward.1} parent=11 // pred_check_branch
        %217 = sbr.rel (%p215) target = $region28
      $region27: #{_proposal_forward.1} parent=11 // pred_region
        _
      $region28: #{_proposal_forward.1} parent=11 // pred_fallthru
        _
      // Predicated region
      $region29: #{_proposal_forward.1} parent=11 // pred_check
        %p218 = pneg %p144
      $region30: #{_proposal_forward.1} parent=11 // pred_check_branch
        %220 = sbr.rel (%p218) target = $region32
      $region31: #{_proposal_forward.1} parent=11 // pred_region
        _
      $region32: #{_proposal_forward.1} parent=11 // pred_fallthru
        _
      // Predicated region
      $region33: #{_proposal_forward.1} parent=11 // pred_check
        %p221 = pneg %p165
      $region34: #{_proposal_forward.1} parent=11 // pred_check_branch
        %223 = sbr.rel (%p221) target = $region36
      $region35: #{_proposal_forward.1} parent=11 // pred_region
        _
      $region36: #{_proposal_forward.1} parent=11 // pred_fallthru
        _
    $region12: #{_proposal_forward.1} parent=5 // pred_fallthru
      _
    %p224 = scmp.lt.s32.totalorder %s13, 2
    // Predicated region
    $region37: #{_proposal_forward.1} parent=5 // pred_check
      %p225 = pneg %p224
    $region38: #{_proposal_forward.1} parent=5 // pred_check_branch
      %227 = sbr.rel (%p225) target = $region40
    $region39: #{_proposal_forward.1} parent=5 // pred_region
      // Predicated region
      $region41: #{_proposal_forward.1} parent=39 // pred_check
        %p228 = pneg %p33
      $region42: #{_proposal_forward.1} parent=39 // pred_check_branch
        %230 = sbr.rel (%p228) target = $region44
      $region43: #{_proposal_forward.1} parent=39 // pred_region
        %p231 = scmp.lt.s32.totalorder %s13, 1
        %s232 = scalar_select %p231, %s13, 1
        %s233 = smul.addr %s232, 72
        %s234 = smul.addr %s233, 4
        %s235 = scalar_lea.vmem %s0, %s234
      $region44: #{_proposal_forward.1} parent=39 // pred_fallthru
        _
    $region40: #{_proposal_forward.1} parent=5 // pred_fallthru
      _
    %p236 = scmp.le.s32.totalorder 1, %s13
    %p237 = scmp.lt.s32.totalorder %s13, 3
    %p238 = pnand %p236, %p237
    %p239 = pneg %p238
    // Predicated region
    $region45: #{_proposal_forward.1} parent=5 // pred_check
      _
    $region46: #{_proposal_forward.1} parent=5 // pred_check_branch
      %241 = sbr.rel (%p238) target = $region48
    $region47: #{_proposal_forward.1} parent=5 // pred_region
      %s242 = ssub.s32 %s13, 1
      %p243 = scmp.lt.s32.totalorder %s18, 1
      %s244 = scalar_select %p243, %s18, 1
      %s245 = smul.addr %s244, 72
      %s246 = smul.addr %s245, 4
      %s247 = scalar_lea.vmem %s0, %s246
      %p248 = pneg %p39
      %p249 = pneg %p36
      %p250 = pneg %p60
      %p251 = pneg %p57
      %p252 = pneg %p81
      %p253 = pneg %p78
      %p254 = pneg %p102
      %p255 = pneg %p99
      %p256 = pneg %p123
      %p257 = pneg %p120
      %p258 = pneg %p144
      %p259 = pneg %p141
      %p260 = pneg %p165
      %p261 = pneg %p162
      %p262 = pneg %p191
      %p263 = pneg %p188
      %p264 = scmp.lt.s32.totalorder %s18, 1
      %s265 = scalar_select %p264, %s18, 1
      %s266 = smul.addr %s265, 64
      %s267 = smul.addr %s266, 4
      %s268 = scalar_lea.vmem %s7, %s267
      %p269 = scmp.lt.s32.totalorder %s18, 1
      %s270 = scalar_select %p269, %s18, 1
      %s271 = smul.addr %s270, 72
      %s272 = smul.addr %s271, 4
      %s273 = scalar_lea.vmem %s0, %s272
      %p274 = scmp.lt.s32.totalorder %s18, 1
      %s275 = scalar_select %p274, %s18, 1
      %s276 = smul.addr %s275, 64
      %s277 = smul.addr %s276, 4
      %s278 = scalar_lea.vmem %s7, %s277
      %v280 = vld [vmem:[%s273] sm:$0xf]
      %v281 = vld [vmem:[%s273 + $0x4] sm:$0xf]
      %v282 = vld [vmem:[%s273 + $0x8] sm:$0xf]
      %v283 = vld [vmem:[%s273 + $0xc] sm:$0xf]
      %v284 = vld [vmem:[%s273 + $0x10] sm:$0xf]
      %v285 = vld [vmem:[%s273 + $0x14] sm:$0xf]
      %v286 = vld [vmem:[%s273 + $0x18] sm:$0xf]
      %v287 = vld [vmem:[%s273 + $0x1c] sm:$0xf]
      %v288 = vld [vmem:[%s273 + $0x20] sm:$0xf]
      %v289 = vld [vmem:[%s273 + $0x24] sm:$0xf]
      %v290 = vld [vmem:[%s273 + $0x28] sm:$0xf]
      %v291 = vld [vmem:[%s273 + $0x2c] sm:$0xf]
      %v292 = vld [vmem:[%s273 + $0x30] sm:$0xf]
      %v293 = vld [vmem:[%s273 + $0x34] sm:$0xf]
      %v294 = vld [vmem:[%s273 + $0x38] sm:$0xf]
      %v295 = vld [vmem:[%s273 + $0x3c] sm:$0xf]
      %v296 = vld [vmem:[%s273 + $0x40] sm:$0xf]
      %v297 = vld [vmem:[%s273 + $0x44] sm:$0xf]
      %v298 = vld [vmem:[%s273 + $0x48] sm:$0xf]
      %v299 = vld [vmem:[%s273 + $0x4c] sm:$0xf]
      %v300 = vld [vmem:[%s273 + $0x50] sm:$0xf]
      %v301 = vld [vmem:[%s273 + $0x54] sm:$0xf]
      %v302 = vld [vmem:[%s273 + $0x58] sm:$0xf]
      %v303 = vld [vmem:[%s273 + $0x5c] sm:$0xf]
      %v304 = vld [vmem:[%s273 + $0x60] sm:$0xf]
      %v305 = vld [vmem:[%s273 + $0x64] sm:$0xf]
      %v306 = vld [vmem:[%s273 + $0x68] sm:$0xf]
      %v307 = vld [vmem:[%s273 + $0x6c] sm:$0xf]
      %v308 = vld [vmem:[%s273 + $0x70] sm:$0xf]
      %v309 = vld [vmem:[%s273 + $0x74] sm:$0xf]
      %v310 = vld [vmem:[%s273 + $0x78] sm:$0xf]
      %v311 = vld [vmem:[%s273 + $0x7c] sm:$0xf]
      %v312 = vld [vmem:[%s273 + $0x80] sm:$0xf]
      %v313 = vld [vmem:[%s273 + $0x84] sm:$0xf]
      %v314 = vld [vmem:[%s273 + $0x88] sm:$0xf]
      %v315 = vld [vmem:[%s273 + $0x8c] sm:$0xf]
      %v316 = vld [vmem:[%s273 + $0x90] sm:$0xf]
      %v317 = vld [vmem:[%s273 + $0x94] sm:$0xf]
      %v318 = vld [vmem:[%s273 + $0x98] sm:$0xf]
      %v319 = vld [vmem:[%s273 + $0x9c] sm:$0xf]
      %v320 = vld [vmem:[%s273 + $0xa0] sm:$0xf]
      %v321 = vld [vmem:[%s273 + $0xa4] sm:$0xf]
      %v322 = vld [vmem:[%s273 + $0xa8] sm:$0xf]
      %v323 = vld [vmem:[%s273 + $0xac] sm:$0xf]
      %v324 = vld [vmem:[%s273 + $0xb0] sm:$0xf]
      %v325 = vld [vmem:[%s273 + $0xb4] sm:$0xf]
      %v326 = vld [vmem:[%s273 + $0xb8] sm:$0xf]
      %v327 = vld [vmem:[%s273 + $0xbc] sm:$0xf]
      %v328 = vld [vmem:[%s273 + $0xc0] sm:$0xf]
      %v329 = vld [vmem:[%s273 + $0xc4] sm:$0xf]
      %v330 = vld [vmem:[%s273 + $0xc8] sm:$0xf]
      %v331 = vld [vmem:[%s273 + $0xcc] sm:$0xf]
      %v332 = vld [vmem:[%s273 + $0xd0] sm:$0xf]
      %v333 = vld [vmem:[%s273 + $0xd4] sm:$0xf]
      %v334 = vld [vmem:[%s273 + $0xd8] sm:$0xf]
      %v335 = vld [vmem:[%s273 + $0xdc] sm:$0xf]
      %v336 = vld [vmem:[%s273 + $0xe0] sm:$0xf]
      %v337 = vld [vmem:[%s273 + $0xe4] sm:$0xf]
      %v338 = vld [vmem:[%s273 + $0xe8] sm:$0xf]
      %v339 = vld [vmem:[%s273 + $0xec] sm:$0xf]
      %v340 = vld [vmem:[%s273 + $0xf0] sm:$0xf]
      %v341 = vld [vmem:[%s273 + $0xf4] sm:$0xf]
      %v342 = vld [vmem:[%s273 + $0xf8] sm:$0xf]
      %v343 = vld [vmem:[%s273 + $0xfc] sm:$0xf]
      %v344 = vld [vmem:[%s1] sm:$0x3]
      %v409 = vunpack.c.l.b16 %v280
      %v410 = vunpack.c.l.b16 %v281
      %v411 = vunpack.c.l.b16 %v282
      %v412 = vunpack.c.l.b16 %v283
      %v413 = vunpack.c.l.b16 %v284
      %v414 = vunpack.c.l.b16 %v285
      %v415 = vunpack.c.l.b16 %v286
      %v416 = vunpack.c.l.b16 %v287
      %v417 = vunpack.c.l.b16 %v288
      %v418 = vunpack.c.l.b16 %v289
      %v419 = vunpack.c.l.b16 %v290
      %v420 = vunpack.c.l.b16 %v291
      %v421 = vunpack.c.l.b16 %v292
      %v422 = vunpack.c.l.b16 %v293
      %v423 = vunpack.c.l.b16 %v294
      %v424 = vunpack.c.l.b16 %v295
      %v425 = vunpack.c.l.b16 %v296
      %v426 = vunpack.c.l.b16 %v297
      %v427 = vunpack.c.l.b16 %v298
      %v428 = vunpack.c.l.b16 %v299
      %v429 = vunpack.c.l.b16 %v300
      %v430 = vunpack.c.l.b16 %v301
      %v431 = vunpack.c.l.b16 %v302
      %v432 = vunpack.c.l.b16 %v303
      %v433 = vunpack.c.l.b16 %v304
      %v434 = vunpack.c.l.b16 %v305
      %v435 = vunpack.c.l.b16 %v306
      %v436 = vunpack.c.l.b16 %v307
      %v437 = vunpack.c.l.b16 %v308
      %v438 = vunpack.c.l.b16 %v309
      %v439 = vunpack.c.l.b16 %v310
      %v440 = vunpack.c.l.b16 %v311
      %v441 = vunpack.c.l.b16 %v312
      %v442 = vunpack.c.l.b16 %v313
      %v443 = vunpack.c.l.b16 %v314
      %v444 = vunpack.c.l.b16 %v315
      %v445 = vunpack.c.l.b16 %v316
      %v446 = vunpack.c.l.b16 %v317
      %v447 = vunpack.c.l.b16 %v318
      %v448 = vunpack.c.l.b16 %v319
      %v449 = vunpack.c.l.b16 %v320
      %v450 = vunpack.c.l.b16 %v321
      %v451 = vunpack.c.l.b16 %v322
      %v452 = vunpack.c.l.b16 %v323
      %v453 = vunpack.c.l.b16 %v324
      %v454 = vunpack.c.l.b16 %v325
      %v455 = vunpack.c.l.b16 %v326
      %v456 = vunpack.c.l.b16 %v327
      %v457 = vunpack.c.l.b16 %v328
      %v458 = vunpack.c.l.b16 %v329
      %v459 = vunpack.c.l.b16 %v330
      %v460 = vunpack.c.l.b16 %v331
      %v461 = vunpack.c.l.b16 %v332
      %v462 = vunpack.c.l.b16 %v333
      %v463 = vunpack.c.l.b16 %v334
      %v464 = vunpack.c.l.b16 %v335
      %v465 = vunpack.c.l.b16 %v336
      %v466 = vunpack.c.l.b16 %v337
      %v467 = vunpack.c.l.b16 %v338
      %v468 = vunpack.c.l.b16 %v339
      %v469 = vunpack.c.l.b16 %v340
      %v470 = vunpack.c.l.b16 %v341
      %v471 = vunpack.c.l.b16 %v342
      %v472 = vunpack.c.l.b16 %v343
      %v473 = vpack.c.b16 %v410, %v409
      %v474 = vpack.c.b16 %v412, %v411
      %v475 = vpack.c.b16 %v414, %v413
      %v476 = vpack.c.b16 %v416, %v415
      %v477 = vpack.c.b16 %v418, %v417
      %v478 = vpack.c.b16 %v420, %v419
      %v479 = vpack.c.b16 %v422, %v421
      %v480 = vpack.c.b16 %v424, %v423
      %v481 = vpack.c.b16 %v426, %v425
      %v482 = vpack.c.b16 %v428, %v427
      %v483 = vpack.c.b16 %v430, %v429
      %v484 = vpack.c.b16 %v432, %v431
      %v485 = vpack.c.b16 %v434, %v433
      %v486 = vpack.c.b16 %v436, %v435
      %v487 = vpack.c.b16 %v438, %v437
      %v488 = vpack.c.b16 %v440, %v439
      %v489 = vpack.c.b16 %v442, %v441
      %v490 = vpack.c.b16 %v444, %v443
      %v491 = vpack.c.b16 %v446, %v445
      %v492 = vpack.c.b16 %v448, %v447
      %v493 = vpack.c.b16 %v450, %v449
      %v494 = vpack.c.b16 %v452, %v451
      %v495 = vpack.c.b16 %v454, %v453
      %v496 = vpack.c.b16 %v456, %v455
      %v497 = vpack.c.b16 %v458, %v457
      %v498 = vpack.c.b16 %v460, %v459
      %v499 = vpack.c.b16 %v462, %v461
      %v500 = vpack.c.b16 %v464, %v463
      %v501 = vpack.c.b16 %v466, %v465
      %v502 = vpack.c.b16 %v468, %v467
      %v503 = vpack.c.b16 %v470, %v469
      %v504 = vpack.c.b16 %v472, %v471
      %vm505 = vcmask 23552
      %v507 = vsel %vm505, %v473, 0
      %v510 = vsel %vm505, %v474, 0
      %v513 = vsel %vm505, %v475, 0
      %v516 = vsel %vm505, %v476, 0
      %v519 = vsel %vm505, %v477, 0
      %v522 = vsel %vm505, %v478, 0
      %v525 = vsel %vm505, %v479, 0
      %v528 = vsel %vm505, %v480, 0
      %v531 = vsel %vm505, %v481, 0
      %v534 = vsel %vm505, %v482, 0
      %v537 = vsel %vm505, %v483, 0
      %v540 = vsel %vm505, %v484, 0
      %v543 = vsel %vm505, %v485, 0
      %v546 = vsel %vm505, %v486, 0
      %v549 = vsel %vm505, %v487, 0
      %v552 = vsel %vm505, %v488, 0
      %v555 = vsel %vm505, %v489, 0
      %v558 = vsel %vm505, %v490, 0
      %v561 = vsel %vm505, %v491, 0
      %v564 = vsel %vm505, %v492, 0
      %v567 = vsel %vm505, %v493, 0
      %v570 = vsel %vm505, %v494, 0
      %v573 = vsel %vm505, %v495, 0
      %v576 = vsel %vm505, %v496, 0
      %v579 = vsel %vm505, %v497, 0
      %v582 = vsel %vm505, %v498, 0
      %v585 = vsel %vm505, %v499, 0
      %v588 = vsel %vm505, %v500, 0
      %v591 = vsel %vm505, %v501, 0
      %v594 = vsel %vm505, %v502, 0
      %v597 = vsel %vm505, %v503, 0
      %v600 = vsel %vm505, %v504, 0
      %vm602 = vcmask 1040384
      %vm603 = vcmask 1041408
      %v604 = vsel %vm602, 4294967295, 65535
      %v605 = vsel %vm603, %v604, 0
      %v607 = vand.u32 %v344, %v605
      %609 = vmatprep.subr.bf16.mxu0 0
      %610 = vmatpush1.bf16.msra.mxu0 %v607
      %611 = vmatprep.subr.bf16.mxu0 0
      %612 = vmatpush1.bf16.msra.mxu0 0
      %613 = vmatprep.subr.bf16.mxu0 0
      %614 = vmatpush1.bf16.msra.mxu0 0
      %615 = vmatprep.subr.bf16.mxu0 0
      %616 = vmatpush1.bf16.msra.mxu0 0
      %617 = vmatprep.subr.bf16.mxu0 0
      %618 = vmatpush1.bf16.msra.mxu0 0
      %619 = vmatprep.subr.bf16.mxu0 0
      %620 = vmatpush1.bf16.msra.mxu0 0
      %621 = vmatprep.subr.bf16.mxu0 0
      %622 = vmatpush1.bf16.msra.mxu0 0
      %623 = vmatprep.subr.bf16.mxu0 0
      %624 = vmatpush1.bf16.msra.mxu0 0
      %625 = vmatprep.subr.bf16.mxu0 0
      %626 = vmatpush1.bf16.msra.mxu0 0
      %627 = vmatprep.subr.bf16.mxu0 0
      %628 = vmatpush1.bf16.msra.mxu0 0
      %629 = vmatprep.subr.bf16.mxu0 0
      %630 = vmatpush1.bf16.msra.mxu0 0
      %631 = vmatprep.subr.bf16.mxu0 0
      %632 = vmatpush1.bf16.msra.mxu0 0
      %633 = vmatprep.subr.bf16.mxu0 0
      %634 = vmatpush1.bf16.msra.mxu0 0
      %635 = vmatprep.subr.bf16.mxu0 0
      %636 = vmatpush1.bf16.msra.mxu0 0
      %637 = vmatprep.subr.bf16.mxu0 0
      %638 = vmatpush1.bf16.msra.mxu0 0
      %639 = vmatprep.subr.bf16.mxu0 0
      %640 = vmatpush1.bf16.msra.mxu0 0
      %641 = vmatprep.mubr.bf16.mxu0 0
      %642 = vmatmul.mubr.bf16.gmra.mrb[0].mxu0 %v507
      %v643 = vpop.f32.mrb[0].mxu0
      %v644 = vadd.f32 0.0, %v643
      %v645 = vpop.f32.mrb[0].mxu0
      %v646 = vpop.f32.mrb[0].mxu0
      %v647 = vadd.f32 0.0, %v646
      %v648 = vpop.f32.mrb[0].mxu0
      %649 = vmatprep.mubr.bf16.mxu0 0
      %650 = vmatmul.mubr.bf16.gmra.mrb[0].mxu0 %v510
      %v651 = vpop.f32.mrb[0].mxu0
      %v652 = vadd.f32 0.0, %v651
      %v653 = vpop.f32.mrb[0].mxu0
      %v654 = vpop.f32.mrb[0].mxu0
      %v655 = vadd.f32 0.0, %v654
      %v656 = vpop.f32.mrb[0].mxu0
      %657 = vmatprep.mubr.bf16.mxu0 0
      %658 = vmatmul.mubr.bf16.gmra.mrb[0].mxu0 %v513
      %v659 = vpop.f32.mrb[0].mxu0
      %v660 = vadd.f32 0.0, %v659
      %v661 = vpop.f32.mrb[0].mxu0
      %v662 = vpop.f32.mrb[0].mxu0
      %v663 = vadd.f32 0.0, %v662
      %v664 = vpop.f32.mrb[0].mxu0
      %665 = vmatprep.mubr.bf16.mxu0 0
      %666 = vmatmul.mubr.bf16.gmra.mrb[0].mxu0 %v516
      %v667 = vpop.f32.mrb[0].mxu0
      %v668 = vadd.f32 0.0, %v667
      %v669 = vpop.f32.mrb[0].mxu0
      %v670 = vpop.f32.mrb[0].mxu0
      %v671 = vadd.f32 0.0, %v670
      %v672 = vpop.f32.mrb[0].mxu0
      %673 = vmatprep.mubr.bf16.mxu0 0
      %674 = vmatmul.mubr.bf16.gmra.mrb[0].mxu0 %v519
      %v675 = vpop.f32.mrb[0].mxu0
      %v676 = vadd.f32 0.0, %v675
      %v677 = vpop.f32.mrb[0].mxu0
      %v678 = vpop.f32.mrb[0].mxu0
      %v679 = vadd.f32 0.0, %v678
      %v680 = vpop.f32.mrb[0].mxu0
      %681 = vmatprep.mubr.bf16.mxu0 0
      %682 = vmatmul.mubr.bf16.gmra.mrb[0].mxu0 %v522
      %v683 = vpop.f32.mrb[0].mxu0
      %v684 = vadd.f32 0.0, %v683
      %v685 = vpop.f32.mrb[0].mxu0
      %v686 = vpop.f32.mrb[0].mxu0
      %v687 = vadd.f32 0.0, %v686
      %v688 = vpop.f32.mrb[0].mxu0
      %689 = vmatprep.mubr.bf16.mxu0 0
      %690 = vmatmul.mubr.bf16.gmra.mrb[0].mxu0 %v525
      %v691 = vpop.f32.mrb[0].mxu0
      %v692 = vadd.f32 0.0, %v691
      %v693 = vpop.f32.mrb[0].mxu0
      %v694 = vpop.f32.mrb[0].mxu0
      %v695 = vadd.f32 0.0, %v694
      %v696 = vpop.f32.mrb[0].mxu0
      %697 = vmatprep.mubr.bf16.mxu0 0
      %698 = vmatmul.mubr.bf16.gmra.mrb[0].mxu0 %v528
      %v699 = vpop.f32.mrb[0].mxu0
      %v700 = vadd.f32 0.0, %v699
      %v701 = vpop.f32.mrb[0].mxu0
      %v702 = vpop.f32.mrb[0].mxu0
      %v703 = vadd.f32 0.0, %v702
      %v704 = vpop.f32.mrb[0].mxu0
      %705 = vmatprep.mubr.bf16.mxu0 0
      %706 = vmatmul.mubr.bf16.gmra.mrb[0].mxu0 %v531
      %v707 = vpop.f32.mrb[0].mxu0
      %v708 = vadd.f32 0.0, %v707
      %v709 = vpop.f32.mrb[0].mxu0
      %v710 = vpop.f32.mrb[0].mxu0
      %v711 = vadd.f32 0.0, %v710
      %v712 = vpop.f32.mrb[0].mxu0
      %713 = vmatprep.mubr.bf16.mxu0 0
      %714 = vmatmul.mubr.bf16.gmra.mrb[0].mxu0 %v534
      %v715 = vpop.f32.mrb[0].mxu0
      %v716 = vadd.f32 0.0, %v715
      %v717 = vpop.f32.mrb[0].mxu0
      %v718 = vpop.f32.mrb[0].mxu0
      %v719 = vadd.f32 0.0, %v718
      %v720 = vpop.f32.mrb[0].mxu0
      %721 = vmatprep.mubr.bf16.mxu0 0
      %722 = vmatmul.mubr.bf16.gmra.mrb[0].mxu0 %v537
      %v723 = vpop.f32.mrb[0].mxu0
      %v724 = vadd.f32 0.0, %v723
      %v725 = vpop.f32.mrb[0].mxu0
      %v726 = vpop.f32.mrb[0].mxu0
      %v727 = vadd.f32 0.0, %v726
      %v728 = vpop.f32.mrb[0].mxu0
      %729 = vmatprep.mubr.bf16.mxu0 0
      %730 = vmatmul.mubr.bf16.gmra.mrb[0].mxu0 %v540
      %v731 = vpop.f32.mrb[0].mxu0
      %v732 = vadd.f32 0.0, %v731
      %v733 = vpop.f32.mrb[0].mxu0
      %v734 = vpop.f32.mrb[0].mxu0
      %v735 = vadd.f32 0.0, %v734
      %v736 = vpop.f32.mrb[0].mxu0
      %737 = vmatprep.mubr.bf16.mxu0 0
      %738 = vmatmul.mubr.bf16.gmra.mrb[0].mxu0 %v543
      %v739 = vpop.f32.mrb[0].mxu0
      %v740 = vadd.f32 0.0, %v739
      %v741 = vpop.f32.mrb[0].mxu0
      %v742 = vpop.f32.mrb[0].mxu0
      %v743 = vadd.f32 0.0, %v742
      %v744 = vpop.f32.mrb[0].mxu0
      %745 = vmatprep.mubr.bf16.mxu0 0
      %746 = vmatmul.mubr.bf16.gmra.mrb[0].mxu0 %v546
      %v747 = vpop.f32.mrb[0].mxu0
      %v748 = vadd.f32 0.0, %v747
      %v749 = vpop.f32.mrb[0].mxu0
      %v750 = vpop.f32.mrb[0].mxu0
      %v751 = vadd.f32 0.0, %v750
      %v752 = vpop.f32.mrb[0].mxu0
      %753 = vmatprep.mubr.bf16.mxu0 0
      %754 = vmatmul.mubr.bf16.gmra.mrb[0].mxu0 %v549
      %v755 = vpop.f32.mrb[0].mxu0
      %v756 = vadd.f32 0.0, %v755
      %v757 = vpop.f32.mrb[0].mxu0
      %v758 = vpop.f32.mrb[0].mxu0
      %v759 = vadd.f32 0.0, %v758
      %v760 = vpop.f32.mrb[0].mxu0
      %761 = vmatprep.mubr.bf16.mxu0 0
      %762 = vmatmul.mubr.bf16.gmra.mrb[0].mxu0 %v552
      %v763 = vpop.f32.mrb[0].mxu0
      %v764 = vadd.f32 0.0, %v763
      %v765 = vpop.f32.mrb[0].mxu0
      %v766 = vpop.f32.mrb[0].mxu0
      %v767 = vadd.f32 0.0, %v766
      %v768 = vpop.f32.mrb[0].mxu0
      %769 = vmatprep.mubr.bf16.mxu0 0
      %770 = vmatmul.mubr.bf16.gmra.mrb[0].mxu0 %v555
      %v771 = vpop.f32.mrb[0].mxu0
      %v772 = vadd.f32 0.0, %v771
      %v773 = vpop.f32.mrb[0].mxu0
      %v774 = vpop.f32.mrb[0].mxu0
      %v775 = vadd.f32 0.0, %v774
      %v776 = vpop.f32.mrb[0].mxu0
      %777 = vmatprep.mubr.bf16.mxu0 0
      %778 = vmatmul.mubr.bf16.gmra.mrb[0].mxu0 %v558
      %v779 = vpop.f32.mrb[0].mxu0
      %v780 = vadd.f32 0.0, %v779
      %v781 = vpop.f32.mrb[0].mxu0
      %v782 = vpop.f32.mrb[0].mxu0
      %v783 = vadd.f32 0.0, %v782
      %v784 = vpop.f32.mrb[0].mxu0
      %785 = vmatprep.mubr.bf16.mxu0 0
      %786 = vmatmul.mubr.bf16.gmra.mrb[0].mxu0 %v561
      %v787 = vpop.f32.mrb[0].mxu0
      %v788 = vadd.f32 0.0, %v787
      %v789 = vpop.f32.mrb[0].mxu0
      %v790 = vpop.f32.mrb[0].mxu0
      %v791 = vadd.f32 0.0, %v790
      %v792 = vpop.f32.mrb[0].mxu0
      %793 = vmatprep.mubr.bf16.mxu0 0
      %794 = vmatmul.mubr.bf16.gmra.mrb[0].mxu0 %v564
      %v795 = vpop.f32.mrb[0].mxu0
      %v796 = vadd.f32 0.0, %v795
      %v797 = vpop.f32.mrb[0].mxu0
      %v798 = vpop.f32.mrb[0].mxu0
      %v799 = vadd.f32 0.0, %v798
      %v800 = vpop.f32.mrb[0].mxu0
      %801 = vmatprep.mubr.bf16.mxu0 0
      %802 = vmatmul.mubr.bf16.gmra.mrb[0].mxu0 %v567
      %v803 = vpop.f32.mrb[0].mxu0
      %v804 = vadd.f32 0.0, %v803
      %v805 = vpop.f32.mrb[0].mxu0
      %v806 = vpop.f32.mrb[0].mxu0
      %v807 = vadd.f32 0.0, %v806
      %v808 = vpop.f32.mrb[0].mxu0
      %809 = vmatprep.mubr.bf16.mxu0 0
      %810 = vmatmul.mubr.bf16.gmra.mrb[0].mxu0 %v570
      %v811 = vpop.f32.mrb[0].mxu0
      %v812 = vadd.f32 0.0, %v811
      %v813 = vpop.f32.mrb[0].mxu0
      %v814 = vpop.f32.mrb[0].mxu0
      %v815 = vadd.f32 0.0, %v814
      %v816 = vpop.f32.mrb[0].mxu0
      %817 = vmatprep.mubr.bf16.mxu0 0
      %818 = vmatmul.mubr.bf16.gmra.mrb[0].mxu0 %v573
      %v819 = vpop.f32.mrb[0].mxu0
      %v820 = vadd.f32 0.0, %v819
      %v821 = vpop.f32.mrb[0].mxu0
      %v822 = vpop.f32.mrb[0].mxu0
      %v823 = vadd.f32 0.0, %v822
      %v824 = vpop.f32.mrb[0].mxu0
      %825 = vmatprep.mubr.bf16.mxu0 0
      %826 = vmatmul.mubr.bf16.gmra.mrb[0].mxu0 %v576
      %v827 = vpop.f32.mrb[0].mxu0
      %v828 = vadd.f32 0.0, %v827
      %v829 = vpop.f32.mrb[0].mxu0
      %v830 = vpop.f32.mrb[0].mxu0
      %v831 = vadd.f32 0.0, %v830
      %v832 = vpop.f32.mrb[0].mxu0
      %833 = vmatprep.mubr.bf16.mxu0 0
      %834 = vmatmul.mubr.bf16.gmra.mrb[0].mxu0 %v579
      %v835 = vpop.f32.mrb[0].mxu0
      %v836 = vadd.f32 0.0, %v835
      %v837 = vpop.f32.mrb[0].mxu0
      %v838 = vpop.f32.mrb[0].mxu0
      %v839 = vadd.f32 0.0, %v838
      %v840 = vpop.f32.mrb[0].mxu0
      %841 = vmatprep.mubr.bf16.mxu0 0
      %842 = vmatmul.mubr.bf16.gmra.mrb[0].mxu0 %v582
      %v843 = vpop.f32.mrb[0].mxu0
      %v844 = vadd.f32 0.0, %v843
      %v845 = vpop.f32.mrb[0].mxu0
      %v846 = vpop.f32.mrb[0].mxu0
      %v847 = vadd.f32 0.0, %v846
      %v848 = vpop.f32.mrb[0].mxu0
      %849 = vmatprep.mubr.bf16.mxu0 0
      %850 = vmatmul.mubr.bf16.gmra.mrb[0].mxu0 %v585
      %v851 = vpop.f32.mrb[0].mxu0
      %v852 = vadd.f32 0.0, %v851
      %v853 = vpop.f32.mrb[0].mxu0
      %v854 = vpop.f32.mrb[0].mxu0
      %v855 = vadd.f32 0.0, %v854
      %v856 = vpop.f32.mrb[0].mxu0
      %857 = vmatprep.mubr.bf16.mxu0 0
      %858 = vmatmul.mubr.bf16.gmra.mrb[0].mxu0 %v588
      %v859 = vpop.f32.mrb[0].mxu0
      %v860 = vadd.f32 0.0, %v859
      %v861 = vpop.f32.mrb[0].mxu0
      %v862 = vpop.f32.mrb[0].mxu0
      %v863 = vadd.f32 0.0, %v862
      %v864 = vpop.f32.mrb[0].mxu0
      %865 = vmatprep.mubr.bf16.mxu0 0
      %866 = vmatmul.mubr.bf16.gmra.mrb[0].mxu0 %v591
      %v867 = vpop.f32.mrb[0].mxu0
      %v868 = vadd.f32 0.0, %v867
      %v869 = vpop.f32.mrb[0].mxu0
      %v870 = vpop.f32.mrb[0].mxu0
      %v871 = vadd.f32 0.0, %v870
      %v872 = vpop.f32.mrb[0].mxu0
      %873 = vmatprep.mubr.bf16.mxu0 0
      %874 = vmatmul.mubr.bf16.gmra.mrb[0].mxu0 %v594
      %v875 = vpop.f32.mrb[0].mxu0
      %v876 = vadd.f32 0.0, %v875
      %v877 = vpop.f32.mrb[0].mxu0
      %v878 = vpop.f32.mrb[0].mxu0
      %v879 = vadd.f32 0.0, %v878
      %v880 = vpop.f32.mrb[0].mxu0
      %881 = vmatprep.mubr.bf16.mxu0 0
      %882 = vmatmul.mubr.bf16.gmra.mrb[0].mxu0 %v597
      %v883 = vpop.f32.mrb[0].mxu0
      %v884 = vadd.f32 0.0, %v883
      %v885 = vpop.f32.mrb[0].mxu0
      %v886 = vpop.f32.mrb[0].mxu0
      %v887 = vadd.f32 0.0, %v886
      %v888 = vpop.f32.mrb[0].mxu0
      %889 = vmatprep.mubr.bf16.mxu0 0
      %890 = vmatmul.mubr.bf16.gmra.mrb[0].mxu0 %v600
      %v891 = vpop.f32.mrb[0].mxu0
      %v892 = vadd.f32 0.0, %v891
      %v893 = vpop.f32.mrb[0].mxu0
      %v894 = vpop.f32.mrb[0].mxu0
      %v895 = vadd.f32 0.0, %v894
      %v896 = vpop.f32.mrb[0].mxu0
      %897 = vdwg.mxu0
      %s898 = scalar_lea.vmem %s1, 2
      %v899 = vld [vmem:[%s898] sm:$0x3]
      %v901 = vand.u32 %v899, %v605
      %903 = vmatprep.subr.bf16.mxu0 0
      %904 = vmatpush1.bf16.msra.mxu0 %v901
      %905 = vmatprep.subr.bf16.mxu0 0
      %906 = vmatpush1.bf16.msra.mxu0 0
      %907 = vmatprep.subr.bf16.mxu0 0
      %908 = vmatpush1.bf16.msra.mxu0 0
      %909 = vmatprep.subr.bf16.mxu0 0
      %910 = vmatpush1.bf16.msra.mxu0 0
      %911 = vmatprep.subr.bf16.mxu0 0
      %912 = vmatpush1.bf16.msra.mxu0 0
      %913 = vmatprep.subr.bf16.mxu0 0
      %914 = vmatpush1.bf16.msra.mxu0 0
      %915 = vmatprep.subr.bf16.mxu0 0
      %916 = vmatpush1.bf16.msra.mxu0 0
      %917 = vmatprep.subr.bf16.mxu0 0
      %918 = vmatpush1.bf16.msra.mxu0 0
      %919 = vmatprep.subr.bf16.mxu0 0
      %920 = vmatpush1.bf16.msra.mxu0 0
      %921 = vmatprep.subr.bf16.mxu0 0
      %922 = vmatpush1.bf16.msra.mxu0 0
      %923 = vmatprep.subr.bf16.mxu0 0
      %924 = vmatpush1.bf16.msra.mxu0 0
      %925 = vmatprep.subr.bf16.mxu0 0
      %926 = vmatpush1.bf16.msra.mxu0 0
      %927 = vmatprep.subr.bf16.mxu0 0
      %928 = vmatpush1.bf16.msra.mxu0 0
      %929 = vmatprep.subr.bf16.mxu0 0
      %930 = vmatpush1.bf16.msra.mxu0 0
      %931 = vmatprep.subr.bf16.mxu0 0
      %932 = vmatpush1.bf16.msra.mxu0 0
      %933 = vmatprep.subr.bf16.mxu0 0
      %934 = vmatpush1.bf16.msra.mxu0 0
      %935 = vmatprep.mubr.bf16.mxu0 0
      %936 = vmatmul.mubr.bf16.gmra.mrb[0].mxu0 %v507
      %v937 = vpop.f32.mrb[0].mxu0
      %v938 = vadd.f32 0.0, %v937
      %v939 = vpop.f32.mrb[0].mxu0
      %v940 = vpop.f32.mrb[0].mxu0
      %v941 = vadd.f32 0.0, %v940
      %v942 = vpop.f32.mrb[0].mxu0
      %943 = vmatprep.mubr.bf16.mxu0 0
      %944 = vmatmul.mubr.bf16.gmra.mrb[0].mxu0 %v510
      %v945 = vpop.f32.mrb[0].mxu0
      %v946 = vadd.f32 0.0, %v945
      %v947 = vpop.f32.mrb[0].mxu0
      %v948 = vpop.f32.mrb[0].mxu0
      %v949 = vadd.f32 0.0, %v948
      %v950 = vpop.f32.mrb[0].mxu0
      %951 = vmatprep.mubr.bf16.mxu0 0
      %952 = vmatmul.mubr.bf16.gmra.mrb[0].mxu0 %v513
      %v953 = vpop.f32.mrb[0].mxu0
      %v954 = vadd.f32 0.0, %v953
      %v955 = vpop.f32.mrb[0].mxu0
      %v956 = vpop.f32.mrb[0].mxu0
      %v957 = vadd.f32 0.0, %v956
      %v958 = vpop.f32.mrb[0].mxu0
      %959 = vmatprep.mubr.bf16.mxu0 0
      %960 = vmatmul.mubr.bf16.gmra.mrb[0].mxu0 %v516
      %v961 = vpop.f32.mrb[0].mxu0
      %v962 = vadd.f32 0.0, %v961
      %v963 = vpop.f32.mrb[0].mxu0
      %v964 = vpop.f32.mrb[0].mxu0
      %v965 = vadd.f32 0.0, %v964
      %v966 = vpop.f32.mrb[0].mxu0
      %967 = vmatprep.mubr.bf16.mxu0 0
      %968 = vmatmul.mubr.bf16.gmra.mrb[0].mxu0 %v519
      %v969 = vpop.f32.mrb[0].mxu0
      %v970 = vadd.f32 0.0, %v969
      %v971 = vpop.f32.mrb[0].mxu0
      %v972 = vpop.f32.mrb[0].mxu0
      %v973 = vadd.f32 0.0, %v972
      %v974 = vpop.f32.mrb[0].mxu0
      %975 = vmatprep.mubr.bf16.mxu0 0
      %976 = vmatmul.mubr.bf16.gmra.mrb[0].mxu0 %v522
      %v977 = vpop.f32.mrb[0].mxu0
      %v978 = vadd.f32 0.0, %v977
      %v979 = vpop.f32.mrb[0].mxu0
      %v980 = vpop.f32.mrb[0].mxu0
      %v981 = vadd.f32 0.0, %v980
      %v982 = vpop.f32.mrb[0].mxu0
      %983 = vmatprep.mubr.bf16.mxu0 0
      %984 = vmatmul.mubr.bf16.gmra.mrb[0].mxu0 %v525
      %v985 = vpop.f32.mrb[0].mxu0
      %v986 = vadd.f32 0.0, %v985
      %v987 = vpop.f32.mrb[0].mxu0
      %v988 = vpop.f32.mrb[0].mxu0
      %v989 = vadd.f32 0.0, %v988
      %v990 = vpop.f32.mrb[0].mxu0
      %991 = vmatprep.mubr.bf16.mxu0 0
      %992 = vmatmul.mubr.bf16.gmra.mrb[0].mxu0 %v528
      %v993 = vpop.f32.mrb[0].mxu0
      %v994 = vadd.f32 0.0, %v993
      %v995 = vpop.f32.mrb[0].mxu0
      %v996 = vpop.f32.mrb[0].mxu0
      %v997 = vadd.f32 0.0, %v996
      %v998 = vpop.f32.mrb[0].mxu0
      %999 = vmatprep.mubr.bf16.mxu0 0
      %1000 = vmatmul.mubr.bf16.gmra.mrb[0].mxu0 %v531
      %v1001 = vpop.f32.mrb[0].mxu0
      %v1002 = vadd.f32 0.0, %v1001
      %v1003 = vpop.f32.mrb[0].mxu0
      %v1004 = vpop.f32.mrb[0].mxu0
      %v1005 = vadd.f32 0.0, %v1004
      %v1006 = vpop.f32.mrb[0].mxu0
      %1007 = vmatprep.mubr.bf16.mxu0 0
      %1008 = vmatmul.mubr.bf16.gmra.mrb[0].mxu0 %v534
      %v1009 = vpop.f32.mrb[0].mxu0
      %v1010 = vadd.f32 0.0, %v1009
      %v1011 = vpop.f32.mrb[0].mxu0
      %v1012 = vpop.f32.mrb[0].mxu0
      %v1013 = vadd.f32 0.0, %v1012
      %v1014 = vpop.f32.mrb[0].mxu0
      %1015 = vmatprep.mubr.bf16.mxu0 0
      %1016 = vmatmul.mubr.bf16.gmra.mrb[0].mxu0 %v537
      %v1017 = vpop.f32.mrb[0].mxu0
      %v1018 = vadd.f32 0.0, %v1017
      %v1019 = vpop.f32.mrb[0].mxu0
      %v1020 = vpop.f32.mrb[0].mxu0
      %v1021 = vadd.f32 0.0, %v1020
      %v1022 = vpop.f32.mrb[0].mxu0
      %1023 = vmatprep.mubr.bf16.mxu0 0
      %1024 = vmatmul.mubr.bf16.gmra.mrb[0].mxu0 %v540
      %v1025 = vpop.f32.mrb[0].mxu0
      %v1026 = vadd.f32 0.0, %v1025
      %v1027 = vpop.f32.mrb[0].mxu0
      %v1028 = vpop.f32.mrb[0].mxu0
      %v1029 = vadd.f32 0.0, %v1028
      %v1030 = vpop.f32.mrb[0].mxu0
      %1031 = vmatprep.mubr.bf16.mxu0 0
      %1032 = vmatmul.mubr.bf16.gmra.mrb[0].mxu0 %v543
      %v1033 = vpop.f32.mrb[0].mxu0
      %v1034 = vadd.f32 0.0, %v1033
      %v1035 = vpop.f32.mrb[0].mxu0
      %v1036 = vpop.f32.mrb[0].mxu0
      %v1037 = vadd.f32 0.0, %v1036
      %v1038 = vpop.f32.mrb[0].mxu0
      %1039 = vmatprep.mubr.bf16.mxu0 0
      %1040 = vmatmul.mubr.bf16.gmra.mrb[0].mxu0 %v546
      %v1041 = vpop.f32.mrb[0].mxu0
      %v1042 = vadd.f32 0.0, %v1041
      %v1043 = vpop.f32.mrb[0].mxu0
      %v1044 = vpop.f32.mrb[0].mxu0
      %v1045 = vadd.f32 0.0, %v1044
      %v1046 = vpop.f32.mrb[0].mxu0
      %1047 = vmatprep.mubr.bf16.mxu0 0
      %1048 = vmatmul.mubr.bf16.gmra.mrb[0].mxu0 %v549
      %v1049 = vpop.f32.mrb[0].mxu0
      %v1050 = vadd.f32 0.0, %v1049
      %v1051 = vpop.f32.mrb[0].mxu0
      %v1052 = vpop.f32.mrb[0].mxu0
      %v1053 = vadd.f32 0.0, %v1052
      %v1054 = vpop.f32.mrb[0].mxu0
      %1055 = vmatprep.mubr.bf16.mxu0 0
      %1056 = vmatmul.mubr.bf16.gmra.mrb[0].mxu0 %v552
      %v1057 = vpop.f32.mrb[0].mxu0
      %v1058 = vadd.f32 0.0, %v1057
      %v1059 = vpop.f32.mrb[0].mxu0
      %v1060 = vpop.f32.mrb[0].mxu0
      %v1061 = vadd.f32 0.0, %v1060
      %v1062 = vpop.f32.mrb[0].mxu0
      %1063 = vmatprep.mubr.bf16.mxu0 0
      %1064 = vmatmul.mubr.bf16.gmra.mrb[0].mxu0 %v555
      %v1065 = vpop.f32.mrb[0].mxu0
      %v1066 = vadd.f32 0.0, %v1065
      %v1067 = vpop.f32.mrb[0].mxu0
      %v1068 = vpop.f32.mrb[0].mxu0
      %v1069 = vadd.f32 0.0, %v1068
      %v1070 = vpop.f32.mrb[0].mxu0
      %1071 = vmatprep.mubr.bf16.mxu0 0
      %1072 = vmatmul.mubr.bf16.gmra.mrb[0].mxu0 %v558
      %v1073 = vpop.f32.mrb[0].mxu0
      %v1074 = vadd.f32 0.0, %v1073
      %v1075 = vpop.f32.mrb[0].mxu0
      %v1076 = vpop.f32.mrb[0].mxu0
      %v1077 = vadd.f32 0.0, %v1076
      %v1078 = vpop.f32.mrb[0].mxu0
      %1079 = vmatprep.mubr.bf16.mxu0 0
      %1080 = vmatmul.mubr.bf16.gmra.mrb[0].mxu0 %v561
      %v1081 = vpop.f32.mrb[0].mxu0
      %v1082 = vadd.f32 0.0, %v1081
      %v1083 = vpop.f32.mrb[0].mxu0
      %v1084 = vpop.f32.mrb[0].mxu0
      %v1085 = vadd.f32 0.0, %v1084
      %v1086 = vpop.f32.mrb[0].mxu0
      %1087 = vmatprep.mubr.bf16.mxu0 0
      %1088 = vmatmul.mubr.bf16.gmra.mrb[0].mxu0 %v564
      %v1089 = vpop.f32.mrb[0].mxu0
      %v1090 = vadd.f32 0.0, %v1089
      %v1091 = vpop.f32.mrb[0].mxu0
      %v1092 = vpop.f32.mrb[0].mxu0
      %v1093 = vadd.f32 0.0, %v1092
      %v1094 = vpop.f32.mrb[0].mxu0
      %1095 = vmatprep.mubr.bf16.mxu0 0
      %1096 = vmatmul.mubr.bf16.gmra.mrb[0].mxu0 %v567
      %v1097 = vpop.f32.mrb[0].mxu0
      %v1098 = vadd.f32 0.0, %v1097
      %v1099 = vpop.f32.mrb[0].mxu0
      %v1100 = vpop.f32.mrb[0].mxu0
      %v1101 = vadd.f32 0.0, %v1100
      %v1102 = vpop.f32.mrb[0].mxu0
      %1103 = vmatprep.mubr.bf16.mxu0 0
      %1104 = vmatmul.mubr.bf16.gmra.mrb[0].mxu0 %v570
      %v1105 = vpop.f32.mrb[0].mxu0
      %v1106 = vadd.f32 0.0, %v1105
      %v1107 = vpop.f32.mrb[0].mxu0
      %v1108 = vpop.f32.mrb[0].mxu0
      %v1109 = vadd.f32 0.0, %v1108
      %v1110 = vpop.f32.mrb[0].mxu0
      %1111 = vmatprep.mubr.bf16.mxu0 0
      %1112 = vmatmul.mubr.bf16.gmra.mrb[0].mxu0 %v573
      %v1113 = vpop.f32.mrb[0].mxu0
      %v1114 = vadd.f32 0.0, %v1113
      %v1115 = vpop.f32.mrb[0].mxu0
      %v1116 = vpop.f32.mrb[0].mxu0
      %v1117 = vadd.f32 0.0, %v1116
      %v1118 = vpop.f32.mrb[0].mxu0
      %1119 = vmatprep.mubr.bf16.mxu0 0
      %1120 = vmatmul.mubr.bf16.gmra.mrb[0].mxu0 %v576
      %v1121 = vpop.f32.mrb[0].mxu0
      %v1122 = vadd.f32 0.0, %v1121
      %v1123 = vpop.f32.mrb[0].mxu0
      %v1124 = vpop.f32.mrb[0].mxu0
      %v1125 = vadd.f32 0.0, %v1124
      %v1126 = vpop.f32.mrb[0].mxu0
      %1127 = vmatprep.mubr.bf16.mxu0 0
      %1128 = vmatmul.mubr.bf16.gmra.mrb[0].mxu0 %v579
      %v1129 = vpop.f32.mrb[0].mxu0
      %v1130 = vadd.f32 0.0, %v1129
      %v1131 = vpop.f32.mrb[0].mxu0
      %v1132 = vpop.f32.mrb[0].mxu0
      %v1133 = vadd.f32 0.0, %v1132
      %v1134 = vpop.f32.mrb[0].mxu0
      %1135 = vmatprep.mubr.bf16.mxu0 0
      %1136 = vmatmul.mubr.bf16.gmra.mrb[0].mxu0 %v582
      %v1137 = vpop.f32.mrb[0].mxu0
      %v1138 = vadd.f32 0.0, %v1137
      %v1139 = vpop.f32.mrb[0].mxu0
      %v1140 = vpop.f32.mrb[0].mxu0
      %v1141 = vadd.f32 0.0, %v1140
      %v1142 = vpop.f32.mrb[0].mxu0
      %1143 = vmatprep.mubr.bf16.mxu0 0
      %1144 = vmatmul.mubr.bf16.gmra.mrb[0].mxu0 %v585
      %v1145 = vpop.f32.mrb[0].mxu0
      %v1146 = vadd.f32 0.0, %v1145
      %v1147 = vpop.f32.mrb[0].mxu0
      %v1148 = vpop.f32.mrb[0].mxu0
      %v1149 = vadd.f32 0.0, %v1148
      %v1150 = vpop.f32.mrb[0].mxu0
      %1151 = vmatprep.mubr.bf16.mxu0 0
      %1152 = vmatmul.mubr.bf16.gmra.mrb[0].mxu0 %v588
      %v1153 = vpop.f32.mrb[0].mxu0
      %v1154 = vadd.f32 0.0, %v1153
      %v1155 = vpop.f32.mrb[0].mxu0
      %v1156 = vpop.f32.mrb[0].mxu0
      %v1157 = vadd.f32 0.0, %v1156
      %v1158 = vpop.f32.mrb[0].mxu0
      %1159 = vmatprep.mubr.bf16.mxu0 0
      %1160 = vmatmul.mubr.bf16.gmra.mrb[0].mxu0 %v591
      %v1161 = vpop.f32.mrb[0].mxu0
      %v1162 = vadd.f32 0.0, %v1161
      %v1163 = vpop.f32.mrb[0].mxu0
      %v1164 = vpop.f32.mrb[0].mxu0
      %v1165 = vadd.f32 0.0, %v1164
      %v1166 = vpop.f32.mrb[0].mxu0
      %1167 = vmatprep.mubr.bf16.mxu0 0
      %1168 = vmatmul.mubr.bf16.gmra.mrb[0].mxu0 %v594
      %v1169 = vpop.f32.mrb[0].mxu0
      %v1170 = vadd.f32 0.0, %v1169
      %v1171 = vpop.f32.mrb[0].mxu0
      %v1172 = vpop.f32.mrb[0].mxu0
      %v1173 = vadd.f32 0.0, %v1172
      %v1174 = vpop.f32.mrb[0].mxu0
      %1175 = vmatprep.mubr.bf16.mxu0 0
      %1176 = vmatmul.mubr.bf16.gmra.mrb[0].mxu0 %v597
      %v1177 = vpop.f32.mrb[0].mxu0
      %v1178 = vadd.f32 0.0, %v1177
      %v1179 = vpop.f32.mrb[0].mxu0
      %v1180 = vpop.f32.mrb[0].mxu0
      %v1181 = vadd.f32 0.0, %v1180
      %v1182 = vpop.f32.mrb[0].mxu0
      %1183 = vmatprep.mubr.bf16.mxu0 0
      %1184 = vmatmul.mubr.bf16.gmra.mrb[0].mxu0 %v600
      %v1185 = vpop.f32.mrb[0].mxu0
      %v1186 = vadd.f32 0.0, %v1185
      %v1187 = vpop.f32.mrb[0].mxu0
      %v1188 = vpop.f32.mrb[0].mxu0
      %v1189 = vadd.f32 0.0, %v1188
      %v1190 = vpop.f32.mrb[0].mxu0
      %1191 = vdwg.mxu0
      %s1192 = scalar_lea.vmem %s1, 4
      %v1193 = vld [vmem:[%s1192] sm:$0x3]
      %v1195 = vand.u32 %v1193, %v605
      %1197 = vmatprep.subr.bf16.mxu0 0
      %1198 = vmatpush1.bf16.msra.mxu0 %v1195
      %1199 = vmatprep.subr.bf16.mxu0 0
      %1200 = vmatpush1.bf16.msra.mxu0 0
      %1201 = vmatprep.subr.bf16.mxu0 0
      %1202 = vmatpush1.bf16.msra.mxu0 0
      %1203 = vmatprep.subr.bf16.mxu0 0
      %1204 = vmatpush1.bf16.msra.mxu0 0
      %1205 = vmatprep.subr.bf16.mxu0 0
      %1206 = vmatpush1.bf16.msra.mxu0 0
      %1207 = vmatprep.subr.bf16.mxu0 0
      %1208 = vmatpush1.bf16.msra.mxu0 0
      %1209 = vmatprep.subr.bf16.mxu0 0
      %1210 = vmatpush1.bf16.msra.mxu0 0
      %1211 = vmatprep.subr.bf16.mxu0 0
      %1212 = vmatpush1.bf16.msra.mxu0 0
      %1213 = vmatprep.subr.bf16.mxu0 0
      %1214 = vmatpush1.bf16.msra.mxu0 0
      %1215 = vmatprep.subr.bf16.mxu0 0
      %1216 = vmatpush1.bf16.msra.mxu0 0
      %1217 = vmatprep.subr.bf16.mxu0 0
      %1218 = vmatpush1.bf16.msra.mxu0 0
      %1219 = vmatprep.subr.bf16.mxu0 0
      %1220 = vmatpush1.bf16.msra.mxu0 0
      %1221 = vmatprep.subr.bf16.mxu0 0
      %1222 = vmatpush1.bf16.msra.mxu0 0
      %1223 = vmatprep.subr.bf16.mxu0 0
      %1224 = vmatpush1.bf16.msra.mxu0 0
      %1225 = vmatprep.subr.bf16.mxu0 0
      %1226 = vmatpush1.bf16.msra.mxu0 0
      %1227 = vmatprep.subr.bf16.mxu0 0
      %1228 = vmatpush1.bf16.msra.mxu0 0
      %1229 = vmatprep.mubr.bf16.mxu0 0
      %1230 = vmatmul.mubr.bf16.gmra.mrb[0].mxu0 %v507
      %v1231 = vpop.f32.mrb[0].mxu0
      %v1232 = vadd.f32 0.0, %v1231
      %v1233 = vpop.f32.mrb[0].mxu0
      %v1234 = vpop.f32.mrb[0].mxu0
      %v1235 = vadd.f32 0.0, %v1234
      %v1236 = vpop.f32.mrb[0].mxu0
      %1237 = vmatprep.mubr.bf16.mxu0 0
      %1238 = vmatmul.mubr.bf16.gmra.mrb[0].mxu0 %v510
      %v1239 = vpop.f32.mrb[0].mxu0
      %v1240 = vadd.f32 0.0, %v1239
      %v1241 = vpop.f32.mrb[0].mxu0
      %v1242 = vpop.f32.mrb[0].mxu0
      %v1243 = vadd.f32 0.0, %v1242
      %v1244 = vpop.f32.mrb[0].mxu0
      %1245 = vmatprep.mubr.bf16.mxu0 0
      %1246 = vmatmul.mubr.bf16.gmra.mrb[0].mxu0 %v513
      %v1247 = vpop.f32.mrb[0].mxu0
      %v1248 = vadd.f32 0.0, %v1247
      %v1249 = vpop.f32.mrb[0].mxu0
      %v1250 = vpop.f32.mrb[0].mxu0
      %v1251 = vadd.f32 0.0, %v1250
      %v1252 = vpop.f32.mrb[0].mxu0
      %1253 = vmatprep.mubr.bf16.mxu0 0
      %1254 = vmatmul.mubr.bf16.gmra.mrb[0].mxu0 %v516
      %v1255 = vpop.f32.mrb[0].mxu0
      %v1256 = vadd.f32 0.0, %v1255
      %v1257 = vpop.f32.mrb[0].mxu0
      %v1258 = vpop.f32.mrb[0].mxu0
      %v1259 = vadd.f32 0.0, %v1258
      %v1260 = vpop.f32.mrb[0].mxu0
      %1261 = vmatprep.mubr.bf16.mxu0 0
      %1262 = vmatmul.mubr.bf16.gmra.mrb[0].mxu0 %v519
      %v1263 = vpop.f32.mrb[0].mxu0
      %v1264 = vadd.f32 0.0, %v1263
      %v1265 = vpop.f32.mrb[0].mxu0
      %v1266 = vpop.f32.mrb[0].mxu0
      %v1267 = vadd.f32 0.0, %v1266
      %v1268 = vpop.f32.mrb[0].mxu0
      %1269 = vmatprep.mubr.bf16.mxu0 0
      %1270 = vmatmul.mubr.bf16.gmra.mrb[0].mxu0 %v522
      %v1271 = vpop.f32.mrb[0].mxu0
      %v1272 = vadd.f32 0.0, %v1271
      %v1273 = vpop.f32.mrb[0].mxu0
      %v1274 = vpop.f32.mrb[0].mxu0
      %v1275 = vadd.f32 0.0, %v1274
      %v1276 = vpop.f32.mrb[0].mxu0
      %1277 = vmatprep.mubr.bf16.mxu0 0
      %1278 = vmatmul.mubr.bf16.gmra.mrb[0].mxu0 %v525
      %v1279 = vpop.f32.mrb[0].mxu0
      %v1280 = vadd.f32 0.0, %v1279
      %v1281 = vpop.f32.mrb[0].mxu0
      %v1282 = vpop.f32.mrb[0].mxu0
      %v1283 = vadd.f32 0.0, %v1282
      %v1284 = vpop.f32.mrb[0].mxu0
      %1285 = vmatprep.mubr.bf16.mxu0 0
      %1286 = vmatmul.mubr.bf16.gmra.mrb[0].mxu0 %v528
      %v1287 = vpop.f32.mrb[0].mxu0
      %v1288 = vadd.f32 0.0, %v1287
      %v1289 = vpop.f32.mrb[0].mxu0
      %v1290 = vpop.f32.mrb[0].mxu0
      %v1291 = vadd.f32 0.0, %v1290
      %v1292 = vpop.f32.mrb[0].mxu0
      %1293 = vmatprep.mubr.bf16.mxu0 0
      %1294 = vmatmul.mubr.bf16.gmra.mrb[0].mxu0 %v531
      %v1295 = vpop.f32.mrb[0].mxu0
      %v1296 = vadd.f32 0.0, %v1295
      %v1297 = vpop.f32.mrb[0].mxu0
      %v1298 = vpop.f32.mrb[0].mxu0
      %v1299 = vadd.f32 0.0, %v1298
      %v1300 = vpop.f32.mrb[0].mxu0
      %1301 = vmatprep.mubr.bf16.mxu0 0
      %1302 = vmatmul.mubr.bf16.gmra.mrb[0].mxu0 %v534
      %v1303 = vpop.f32.mrb[0].mxu0
      %v1304 = vadd.f32 0.0, %v1303
      %v1305 = vpop.f32.mrb[0].mxu0
      %v1306 = vpop.f32.mrb[0].mxu0
      %v1307 = vadd.f32 0.0, %v1306
      %v1308 = vpop.f32.mrb[0].mxu0
      %1309 = vmatprep.mubr.bf16.mxu0 0
      %1310 = vmatmul.mubr.bf16.gmra.mrb[0].mxu0 %v537
      %v1311 = vpop.f32.mrb[0].mxu0
      %v1312 = vadd.f32 0.0, %v1311
      %v1313 = vpop.f32.mrb[0].mxu0
      %v1314 = vpop.f32.mrb[0].mxu0
      %v1315 = vadd.f32 0.0, %v1314
      %v1316 = vpop.f32.mrb[0].mxu0
      %1317 = vmatprep.mubr.bf16.mxu0 0
      %1318 = vmatmul.mubr.bf16.gmra.mrb[0].mxu0 %v540
      %v1319 = vpop.f32.mrb[0].mxu0
      %v1320 = vadd.f32 0.0, %v1319
      %v1321 = vpop.f32.mrb[0].mxu0
      %v1322 = vpop.f32.mrb[0].mxu0
      %v1323 = vadd.f32 0.0, %v1322
      %v1324 = vpop.f32.mrb[0].mxu0
      %1325 = vmatprep.mubr.bf16.mxu0 0
      %1326 = vmatmul.mubr.bf16.gmra.mrb[0].mxu0 %v543
      %v1327 = vpop.f32.mrb[0].mxu0
      %v1328 = vadd.f32 0.0, %v1327
      %v1329 = vpop.f32.mrb[0].mxu0
      %v1330 = vpop.f32.mrb[0].mxu0
      %v1331 = vadd.f32 0.0, %v1330
      %v1332 = vpop.f32.mrb[0].mxu0
      %1333 = vmatprep.mubr.bf16.mxu0 0
      %1334 = vmatmul.mubr.bf16.gmra.mrb[0].mxu0 %v546
      %v1335 = vpop.f32.mrb[0].mxu0
      %v1336 = vadd.f32 0.0, %v1335
      %v1337 = vpop.f32.mrb[0].mxu0
      %v1338 = vpop.f32.mrb[0].mxu0
      %v1339 = vadd.f32 0.0, %v1338
      %v1340 = vpop.f32.mrb[0].mxu0
      %1341 = vmatprep.mubr.bf16.mxu0 0
      %1342 = vmatmul.mubr.bf16.gmra.mrb[0].mxu0 %v549
      %v1343 = vpop.f32.mrb[0].mxu0
      %v1344 = vadd.f32 0.0, %v1343
      %v1345 = vpop.f32.mrb[0].mxu0
      %v1346 = vpop.f32.mrb[0].mxu0
      %v1347 = vadd.f32 0.0, %v1346
      %v1348 = vpop.f32.mrb[0].mxu0
      %1349 = vmatprep.mubr.bf16.mxu0 0
      %1350 = vmatmul.mubr.bf16.gmra.mrb[0].mxu0 %v552
      %v1351 = vpop.f32.mrb[0].mxu0
      %v1352 = vadd.f32 0.0, %v1351
      %v1353 = vpop.f32.mrb[0].mxu0
      %v1354 = vpop.f32.mrb[0].mxu0
      %v1355 = vadd.f32 0.0, %v1354
      %v1356 = vpop.f32.mrb[0].mxu0
      %1357 = vmatprep.mubr.bf16.mxu0 0
      %1358 = vmatmul.mubr.bf16.gmra.mrb[0].mxu0 %v555
      %v1359 = vpop.f32.mrb[0].mxu0
      %v1360 = vadd.f32 0.0, %v1359
      %v1361 = vpop.f32.mrb[0].mxu0
      %v1362 = vpop.f32.mrb[0].mxu0
      %v1363 = vadd.f32 0.0, %v1362
      %v1364 = vpop.f32.mrb[0].mxu0
      %1365 = vmatprep.mubr.bf16.mxu0 0
      %1366 = vmatmul.mubr.bf16.gmra.mrb[0].mxu0 %v558
      %v1367 = vpop.f32.mrb[0].mxu0
      %v1368 = vadd.f32 0.0, %v1367
      %v1369 = vpop.f32.mrb[0].mxu0
      %v1370 = vpop.f32.mrb[0].mxu0
      %v1371 = vadd.f32 0.0, %v1370
      %v1372 = vpop.f32.mrb[0].mxu0
      %1373 = vmatprep.mubr.bf16.mxu0 0
      %1374 = vmatmul.mubr.bf16.gmra.mrb[0].mxu0 %v561
      %v1375 = vpop.f32.mrb[0].mxu0
      %v1376 = vadd.f32 0.0, %v1375
      %v1377 = vpop.f32.mrb[0].mxu0
      %v1378 = vpop.f32.mrb[0].mxu0
      %v1379 = vadd.f32 0.0, %v1378
      %v1380 = vpop.f32.mrb[0].mxu0
      %1381 = vmatprep.mubr.bf16.mxu0 0
      %1382 = vmatmul.mubr.bf16.gmra.mrb[0].mxu0 %v564
      %v1383 = vpop.f32.mrb[0].mxu0
      %v1384 = vadd.f32 0.0, %v1383
      %v1385 = vpop.f32.mrb[0].mxu0
      %v1386 = vpop.f32.mrb[0].mxu0
      %v1387 = vadd.f32 0.0, %v1386
      %v1388 = vpop.f32.mrb[0].mxu0
      %1389 = vmatprep.mubr.bf16.mxu0 0
      %1390 = vmatmul.mubr.bf16.gmra.mrb[0].mxu0 %v567
      %v1391 = vpop.f32.mrb[0].mxu0
      %v1392 = vadd.f32 0.0, %v1391
      %v1393 = vpop.f32.mrb[0].mxu0
      %v1394 = vpop.f32.mrb[0].mxu0
      %v1395 = vadd.f32 0.0, %v1394
      %v1396 = vpop.f32.mrb[0].mxu0
      %1397 = vmatprep.mubr.bf16.mxu0 0
      %1398 = vmatmul.mubr.bf16.gmra.mrb[0].mxu0 %v570
      %v1399 = vpop.f32.mrb[0].mxu0
      %v1400 = vadd.f32 0.0, %v1399
      %v1401 = vpop.f32.mrb[0].mxu0
      %v1402 = vpop.f32.mrb[0].mxu0
      %v1403 = vadd.f32 0.0, %v1402
      %v1404 = vpop.f32.mrb[0].mxu0
      %1405 = vmatprep.mubr.bf16.mxu0 0
      %1406 = vmatmul.mubr.bf16.gmra.mrb[0].mxu0 %v573
      %v1407 = vpop.f32.mrb[0].mxu0
      %v1408 = vadd.f32 0.0, %v1407
      %v1409 = vpop.f32.mrb[0].mxu0
      %v1410 = vpop.f32.mrb[0].mxu0
      %v1411 = vadd.f32 0.0, %v1410
      %v1412 = vpop.f32.mrb[0].mxu0
      %1413 = vmatprep.mubr.bf16.mxu0 0
      %1414 = vmatmul.mubr.bf16.gmra.mrb[0].mxu0 %v576
      %v1415 = vpop.f32.mrb[0].mxu0
      %v1416 = vadd.f32 0.0, %v1415
      %v1417 = vpop.f32.mrb[0].mxu0
      %v1418 = vpop.f32.mrb[0].mxu0
      %v1419 = vadd.f32 0.0, %v1418
      %v1420 = vpop.f32.mrb[0].mxu0
      %1421 = vmatprep.mubr.bf16.mxu0 0
      %1422 = vmatmul.mubr.bf16.gmra.mrb[0].mxu0 %v579
      %v1423 = vpop.f32.mrb[0].mxu0
      %v1424 = vadd.f32 0.0, %v1423
      %v1425 = vpop.f32.mrb[0].mxu0
      %v1426 = vpop.f32.mrb[0].mxu0
      %v1427 = vadd.f32 0.0, %v1426
      %v1428 = vpop.f32.mrb[0].mxu0
      %1429 = vmatprep.mubr.bf16.mxu0 0
      %1430 = vmatmul.mubr.bf16.gmra.mrb[0].mxu0 %v582
      %v1431 = vpop.f32.mrb[0].mxu0
      %v1432 = vadd.f32 0.0, %v1431
      %v1433 = vpop.f32.mrb[0].mxu0
      %v1434 = vpop.f32.mrb[0].mxu0
      %v1435 = vadd.f32 0.0, %v1434
      %v1436 = vpop.f32.mrb[0].mxu0
      %1437 = vmatprep.mubr.bf16.mxu0 0
      %1438 = vmatmul.mubr.bf16.gmra.mrb[0].mxu0 %v585
      %v1439 = vpop.f32.mrb[0].mxu0
      %v1440 = vadd.f32 0.0, %v1439
      %v1441 = vpop.f32.mrb[0].mxu0
      %v1442 = vpop.f32.mrb[0].mxu0
      %v1443 = vadd.f32 0.0, %v1442
      %v1444 = vpop.f32.mrb[0].mxu0
      %1445 = vmatprep.mubr.bf16.mxu0 0
      %1446 = vmatmul.mubr.bf16.gmra.mrb[0].mxu0 %v588
      %v1447 = vpop.f32.mrb[0].mxu0
      %v1448 = vadd.f32 0.0, %v1447
      %v1449 = vpop.f32.mrb[0].mxu0
      %v1450 = vpop.f32.mrb[0].mxu0
      %v1451 = vadd.f32 0.0, %v1450
      %v1452 = vpop.f32.mrb[0].mxu0
      %1453 = vmatprep.mubr.bf16.mxu0 0
      %1454 = vmatmul.mubr.bf16.gmra.mrb[0].mxu0 %v591
      %v1455 = vpop.f32.mrb[0].mxu0
      %v1456 = vadd.f32 0.0, %v1455
      %v1457 = vpop.f32.mrb[0].mxu0
      %v1458 = vpop.f32.mrb[0].mxu0
      %v1459 = vadd.f32 0.0, %v1458
      %v1460 = vpop.f32.mrb[0].mxu0
      %1461 = vmatprep.mubr.bf16.mxu0 0
      %1462 = vmatmul.mubr.bf16.gmra.mrb[0].mxu0 %v594
      %v1463 = vpop.f32.mrb[0].mxu0
      %v1464 = vadd.f32 0.0, %v1463
      %v1465 = vpop.f32.mrb[0].mxu0
      %v1466 = vpop.f32.mrb[0].mxu0
      %v1467 = vadd.f32 0.0, %v1466
      %v1468 = vpop.f32.mrb[0].mxu0
      %1469 = vmatprep.mubr.bf16.mxu0 0
      %1470 = vmatmul.mubr.bf16.gmra.mrb[0].mxu0 %v597
      %v1471 = vpop.f32.mrb[0].mxu0
      %v1472 = vadd.f32 0.0, %v1471
      %v1473 = vpop.f32.mrb[0].mxu0
      %v1474 = vpop.f32.mrb[0].mxu0
      %v1475 = vadd.f32 0.0, %v1474
      %v1476 = vpop.f32.mrb[0].mxu0
      %1477 = vmatprep.mubr.bf16.mxu0 0
      %1478 = vmatmul.mubr.bf16.gmra.mrb[0].mxu0 %v600
      %v1479 = vpop.f32.mrb[0].mxu0
      %v1480 = vadd.f32 0.0, %v1479
      %v1481 = vpop.f32.mrb[0].mxu0
      %v1482 = vpop.f32.mrb[0].mxu0
      %v1483 = vadd.f32 0.0, %v1482
      %v1484 = vpop.f32.mrb[0].mxu0
      %1485 = vdwg.mxu0
      %v1486 = vrot.slane %v644, 7
      %v1487 = vrot.slane %v647, 7
      %v1488 = vrot.slane %v652, 7
      %v1489 = vrot.slane %v655, 7
      %v1490 = vrot.slane %v660, 7
      %v1491 = vrot.slane %v663, 7
      %v1492 = vrot.slane %v668, 7
      %v1493 = vrot.slane %v671, 7
      %v1494 = vrot.slane %v676, 7
      %v1495 = vrot.slane %v679, 7
      %v1496 = vrot.slane %v684, 7
      %v1497 = vrot.slane %v687, 7
      %v1498 = vrot.slane %v692, 7
      %v1499 = vrot.slane %v695, 7
      %v1500 = vrot.slane %v700, 7
      %v1501 = vrot.slane %v703, 7
      %v1502 = vrot.slane %v708, 7
      %v1503 = vrot.slane %v711, 7
      %v1504 = vrot.slane %v716, 7
      %v1505 = vrot.slane %v719, 7
      %v1506 = vrot.slane %v724, 7
      %v1507 = vrot.slane %v727, 7
      %v1508 = vrot.slane %v732, 7
      %v1509 = vrot.slane %v735, 7
      %v1510 = vrot.slane %v740, 7
      %v1511 = vrot.slane %v743, 7
      %v1512 = vrot.slane %v748, 7
      %v1513 = vrot.slane %v751, 7
      %v1514 = vrot.slane %v756, 7
      %v1515 = vrot.slane %v759, 7
      %v1516 = vrot.slane %v764, 7
      %v1517 = vrot.slane %v767, 7
      %v1518 = vrot.slane %v772, 7
      %v1519 = vrot.slane %v775, 7
      %v1520 = vrot.slane %v780, 7
      %v1521 = vrot.slane %v783, 7
      %v1522 = vrot.slane %v788, 7
      %v1523 = vrot.slane %v791, 7
      %v1524 = vrot.slane %v796, 7
      %v1525 = vrot.slane %v799, 7
      %v1526 = vrot.slane %v804, 7
      %v1527 = vrot.slane %v807, 7
      %v1528 = vrot.slane %v812, 7
      %v1529 = vrot.slane %v815, 7
      %v1530 = vrot.slane %v820, 7
      %v1531 = vrot.slane %v823, 7
      %v1532 = vrot.slane %v828, 7
      %v1533 = vrot.slane %v831, 7
      %v1534 = vrot.slane %v836, 7
      %v1535 = vrot.slane %v839, 7
      %v1536 = vrot.slane %v844, 7
      %v1537 = vrot.slane %v847, 7
      %v1538 = vrot.slane %v852, 7
      %v1539 = vrot.slane %v855, 7
      %v1540 = vrot.slane %v860, 7
      %v1541 = vrot.slane %v863, 7
      %v1542 = vrot.slane %v868, 7
      %v1543 = vrot.slane %v871, 7
      %v1544 = vrot.slane %v876, 7
      %v1545 = vrot.slane %v879, 7
      %v1546 = vrot.slane %v884, 7
      %v1547 = vrot.slane %v887, 7
      %v1548 = vrot.slane %v892, 7
      %v1549 = vrot.slane %v895, 7
      %v1550 = vlaneseq
      %v1551 = vshrl.u32 %v1550, 7
      %vm1552 = vcmp.lt.s32.totalorder %v1551, 1
      %v1553 = vsel %vm1552, %v1548, %v1549
      %v1554 = vsel %vm1552, %v1547, %v1548
      %v1555 = vsel %vm1552, %v1546, %v1547
      %v1556 = vsel %vm1552, %v1545, %v1546
      %v1557 = vsel %vm1552, %v1544, %v1545
      %v1558 = vsel %vm1552, %v1543, %v1544
      %v1559 = vsel %vm1552, %v1542, %v1543
      %v1560 = vsel %vm1552, %v1541, %v1542
      %v1561 = vsel %vm1552, %v1540, %v1541
      %v1562 = vsel %vm1552, %v1539, %v1540
      %v1563 = vsel %vm1552, %v1538, %v1539
      %v1564 = vsel %vm1552, %v1537, %v1538
      %v1565 = vsel %vm1552, %v1536, %v1537
      %v1566 = vsel %vm1552, %v1535, %v1536
      %v1567 = vsel %vm1552, %v1534, %v1535
      %v1568 = vsel %vm1552, %v1533, %v1534
      %v1569 = vsel %vm1552, %v1532, %v1533
      %v1570 = vsel %vm1552, %v1531, %v1532
      %v1571 = vsel %vm1552, %v1530, %v1531
      %v1572 = vsel %vm1552, %v1529, %v1530
      %v1573 = vsel %vm1552, %v1528, %v1529
      %v1574 = vsel %vm1552, %v1527, %v1528
      %v1575 = vsel %vm1552, %v1526, %v1527
      %v1576 = vsel %vm1552, %v1525, %v1526
      %v1577 = vsel %vm1552, %v1524, %v1525
      %v1578 = vsel %vm1552, %v1523, %v1524
      %v1579 = vsel %vm1552, %v1522, %v1523
      %v1580 = vsel %vm1552, %v1521, %v1522
      %v1581 = vsel %vm1552, %v1520, %v1521
      %v1582 = vsel %vm1552, %v1519, %v1520
      %v1583 = vsel %vm1552, %v1518, %v1519
      %v1584 = vsel %vm1552, %v1517, %v1518
      %v1585 = vsel %vm1552, %v1516, %v1517
      %v1586 = vsel %vm1552, %v1515, %v1516
      %v1587 = vsel %vm1552, %v1514, %v1515
      %v1588 = vsel %vm1552, %v1513, %v1514
      %v1589 = vsel %vm1552, %v1512, %v1513
      %v1590 = vsel %vm1552, %v1511, %v1512
      %v1591 = vsel %vm1552, %v1510, %v1511
      %v1592 = vsel %vm1552, %v1509, %v1510
      %v1593 = vsel %vm1552, %v1508, %v1509
      %v1594 = vsel %vm1552, %v1507, %v1508
      %v1595 = vsel %vm1552, %v1506, %v1507
      %v1596 = vsel %vm1552, %v1505, %v1506
      %v1597 = vsel %vm1552, %v1504, %v1505
      %v1598 = vsel %vm1552, %v1503, %v1504
      %v1599 = vsel %vm1552, %v1502, %v1503
      %v1600 = vsel %vm1552, %v1501, %v1502
      %v1601 = vsel %vm1552, %v1500, %v1501
      %v1602 = vsel %vm1552, %v1499, %v1500
      %v1603 = vsel %vm1552, %v1498, %v1499
      %v1604 = vsel %vm1552, %v1497, %v1498
      %v1605 = vsel %vm1552, %v1496, %v1497
      %v1606 = vsel %vm1552, %v1495, %v1496
      %v1607 = vsel %vm1552, %v1494, %v1495
      %v1608 = vsel %vm1552, %v1493, %v1494
      %v1609 = vsel %vm1552, %v1492, %v1493
      %v1610 = vsel %vm1552, %v1491, %v1492
      %v1611 = vsel %vm1552, %v1490, %v1491
      %v1612 = vsel %vm1552, %v1489, %v1490
      %v1613 = vsel %vm1552, %v1488, %v1489
      %v1614 = vsel %vm1552, %v1487, %v1488
      %v1615 = vsel %vm1552, %v1486, %v1487
      %v1616 = vsel %vm1552, %v1549, %v1486
      %v1617 = vadd.f32 %v1616, 0.0
      %v1618 = vadd.f32 %v1615, 0.0
      %v1619 = vadd.f32 %v1614, 0.0
      %v1620 = vadd.f32 %v1613, 0.0
      %v1621 = vadd.f32 %v1612, 0.0
      %v1622 = vadd.f32 %v1611, 0.0
      %v1623 = vadd.f32 %v1610, 0.0
      %v1624 = vadd.f32 %v1609, 0.0
      %v1625 = vadd.f32 %v1608, 0.0
      %v1626 = vadd.f32 %v1607, 0.0
      %v1627 = vadd.f32 %v1606, 0.0
      %v1628 = vadd.f32 %v1605, 0.0
      %v1629 = vadd.f32 %v1604, 0.0
      %v1630 = vadd.f32 %v1603, 0.0
      %v1631 = vadd.f32 %v1602, 0.0
      %v1632 = vadd.f32 %v1601, 0.0
      %v1633 = vadd.f32 %v1600, 0.0
      %v1634 = vadd.f32 %v1599, 0.0
      %v1635 = vadd.f32 %v1598, 0.0
      %v1636 = vadd.f32 %v1597, 0.0
      %v1637 = vadd.f32 %v1596, 0.0
      %v1638 = vadd.f32 %v1595, 0.0
      %v1639 = vadd.f32 %v1594, 0.0
      %v1640 = vadd.f32 %v1593, 0.0
      %v1641 = vadd.f32 %v1592, 0.0
      %v1642 = vadd.f32 %v1591, 0.0
      %v1643 = vadd.f32 %v1590, 0.0
      %v1644 = vadd.f32 %v1589, 0.0
      %v1645 = vadd.f32 %v1588, 0.0
      %v1646 = vadd.f32 %v1587, 0.0
      %v1647 = vadd.f32 %v1586, 0.0
      %v1648 = vadd.f32 %v1585, 0.0
      %v1649 = vadd.f32 %v1584, 0.0
      %v1650 = vadd.f32 %v1583, 0.0
      %v1651 = vadd.f32 %v1582, 0.0
      %v1652 = vadd.f32 %v1581, 0.0
      %v1653 = vadd.f32 %v1580, 0.0
      %v1654 = vadd.f32 %v1579, 0.0
      %v1655 = vadd.f32 %v1578, 0.0
      %v1656 = vadd.f32 %v1577, 0.0
      %v1657 = vadd.f32 %v1576, 0.0
      %v1658 = vadd.f32 %v1575, 0.0
      %v1659 = vadd.f32 %v1574, 0.0
      %v1660 = vadd.f32 %v1573, 0.0
      %v1661 = vadd.f32 %v1572, 0.0
      %v1662 = vadd.f32 %v1571, 0.0
      %v1663 = vadd.f32 %v1570, 0.0
      %v1664 = vadd.f32 %v1569, 0.0
      %v1665 = vadd.f32 %v1568, 0.0
      %v1666 = vadd.f32 %v1567, 0.0
      %v1667 = vadd.f32 %v1566, 0.0
      %v1668 = vadd.f32 %v1565, 0.0
      %v1669 = vadd.f32 %v1564, 0.0
      %v1670 = vadd.f32 %v1563, 0.0
      %v1671 = vadd.f32 %v1562, 0.0
      %v1672 = vadd.f32 %v1561, 0.0
      %v1673 = vadd.f32 %v1560, 0.0
      %v1674 = vadd.f32 %v1559, 0.0
      %v1675 = vadd.f32 %v1558, 0.0
      %v1676 = vadd.f32 %v1557, 0.0
      %v1677 = vadd.f32 %v1556, 0.0
      %v1678 = vadd.f32 %v1555, 0.0
      %v1679 = vadd.f32 %v1554, 0.0
      %v1680 = vadd.f32 %v1553, 0.0
      %v1681 = vadd.f32 %v1617, %v938
      %v1682 = vadd.f32 %v1618, %v941
      %v1683 = vadd.f32 %v1619, %v946
      %v1684 = vadd.f32 %v1620, %v949
      %v1685 = vadd.f32 %v1621, %v954
      %v1686 = vadd.f32 %v1622, %v957
      %v1687 = vadd.f32 %v1623, %v962
      %v1688 = vadd.f32 %v1624, %v965
      %v1689 = vadd.f32 %v1625, %v970
      %v1690 = vadd.f32 %v1626, %v973
      %v1691 = vadd.f32 %v1627, %v978
      %v1692 = vadd.f32 %v1628, %v981
      %v1693 = vadd.f32 %v1629, %v986
      %v1694 = vadd.f32 %v1630, %v989
      %v1695 = vadd.f32 %v1631, %v994
      %v1696 = vadd.f32 %v1632, %v997
      %v1697 = vadd.f32 %v1633, %v1002
      %v1698 = vadd.f32 %v1634, %v1005
      %v1699 = vadd.f32 %v1635, %v1010
      %v1700 = vadd.f32 %v1636, %v1013
      %v1701 = vadd.f32 %v1637, %v1018
      %v1702 = vadd.f32 %v1638, %v1021
      %v1703 = vadd.f32 %v1639, %v1026
      %v1704 = vadd.f32 %v1640, %v1029
      %v1705 = vadd.f32 %v1641, %v1034
      %v1706 = vadd.f32 %v1642, %v1037
      %v1707 = vadd.f32 %v1643, %v1042
      %v1708 = vadd.f32 %v1644, %v1045
      %v1709 = vadd.f32 %v1645, %v1050
      %v1710 = vadd.f32 %v1646, %v1053
      %v1711 = vadd.f32 %v1647, %v1058
      %v1712 = vadd.f32 %v1648, %v1061
      %v1713 = vadd.f32 %v1649, %v1066
      %v1714 = vadd.f32 %v1650, %v1069
      %v1715 = vadd.f32 %v1651, %v1074
      %v1716 = vadd.f32 %v1652, %v1077
      %v1717 = vadd.f32 %v1653, %v1082
      %v1718 = vadd.f32 %v1654, %v1085
      %v1719 = vadd.f32 %v1655, %v1090
      %v1720 = vadd.f32 %v1656, %v1093
      %v1721 = vadd.f32 %v1657, %v1098
      %v1722 = vadd.f32 %v1658, %v1101
      %v1723 = vadd.f32 %v1659, %v1106
      %v1724 = vadd.f32 %v1660, %v1109
      %v1725 = vadd.f32 %v1661, %v1114
      %v1726 = vadd.f32 %v1662, %v1117
      %v1727 = vadd.f32 %v1663, %v1122
      %v1728 = vadd.f32 %v1664, %v1125
      %v1729 = vadd.f32 %v1665, %v1130
      %v1730 = vadd.f32 %v1666, %v1133
      %v1731 = vadd.f32 %v1667, %v1138
      %v1732 = vadd.f32 %v1668, %v1141
      %v1733 = vadd.f32 %v1669, %v1146
      %v1734 = vadd.f32 %v1670, %v1149
      %v1735 = vadd.f32 %v1671, %v1154
      %v1736 = vadd.f32 %v1672, %v1157
      %v1737 = vadd.f32 %v1673, %v1162
      %v1738 = vadd.f32 %v1674, %v1165
      %v1739 = vadd.f32 %v1675, %v1170
      %v1740 = vadd.f32 %v1676, %v1173
      %v1741 = vadd.f32 %v1677, %v1178
      %v1742 = vadd.f32 %v1678, %v1181
      %v1743 = vadd.f32 %v1679, %v1186
      %v1744 = vadd.f32 %v1680, %v1189
      %v1745 = vrot.slane %v1232, 1
      %v1746 = vrot.slane %v1235, 1
      %v1747 = vrot.slane %v1240, 1
      %v1748 = vrot.slane %v1243, 1
      %v1749 = vrot.slane %v1248, 1
      %v1750 = vrot.slane %v1251, 1
      %v1751 = vrot.slane %v1256, 1
      %v1752 = vrot.slane %v1259, 1
      %v1753 = vrot.slane %v1264, 1
      %v1754 = vrot.slane %v1267, 1
      %v1755 = vrot.slane %v1272, 1
      %v1756 = vrot.slane %v1275, 1
      %v1757 = vrot.slane %v1280, 1
      %v1758 = vrot.slane %v1283, 1
      %v1759 = vrot.slane %v1288, 1
      %v1760 = vrot.slane %v1291, 1
      %v1761 = vrot.slane %v1296, 1
      %v1762 = vrot.slane %v1299, 1
      %v1763 = vrot.slane %v1304, 1
      %v1764 = vrot.slane %v1307, 1
      %v1765 = vrot.slane %v1312, 1
      %v1766 = vrot.slane %v1315, 1
      %v1767 = vrot.slane %v1320, 1
      %v1768 = vrot.slane %v1323, 1
      %v1769 = vrot.slane %v1328, 1
      %v1770 = vrot.slane %v1331, 1
      %v1771 = vrot.slane %v1336, 1
      %v1772 = vrot.slane %v1339, 1
      %v1773 = vrot.slane %v1344, 1
      %v1774 = vrot.slane %v1347, 1
      %v1775 = vrot.slane %v1352, 1
      %v1776 = vrot.slane %v1355, 1
      %v1777 = vrot.slane %v1360, 1
      %v1778 = vrot.slane %v1363, 1
      %v1779 = vrot.slane %v1368, 1
      %v1780 = vrot.slane %v1371, 1
      %v1781 = vrot.slane %v1376, 1
      %v1782 = vrot.slane %v1379, 1
      %v1783 = vrot.slane %v1384, 1
      %v1784 = vrot.slane %v1387, 1
      %v1785 = vrot.slane %v1392, 1
      %v1786 = vrot.slane %v1395, 1
      %v1787 = vrot.slane %v1400, 1
      %v1788 = vrot.slane %v1403, 1
      %v1789 = vrot.slane %v1408, 1
      %v1790 = vrot.slane %v1411, 1
      %v1791 = vrot.slane %v1416, 1
      %v1792 = vrot.slane %v1419, 1
      %v1793 = vrot.slane %v1424, 1
      %v1794 = vrot.slane %v1427, 1
      %v1795 = vrot.slane %v1432, 1
      %v1796 = vrot.slane %v1435, 1
      %v1797 = vrot.slane %v1440, 1
      %v1798 = vrot.slane %v1443, 1
      %v1799 = vrot.slane %v1448, 1
      %v1800 = vrot.slane %v1451, 1
      %v1801 = vrot.slane %v1456, 1
      %v1802 = vrot.slane %v1459, 1
      %v1803 = vrot.slane %v1464, 1
      %v1804 = vrot.slane %v1467, 1
      %v1805 = vrot.slane %v1472, 1
      %v1806 = vrot.slane %v1475, 1
      %v1807 = vrot.slane %v1480, 1
      %v1808 = vrot.slane %v1483, 1
      %vm1809 = vcmp.lt.s32.totalorder %v1551, 7
      %v1810 = vsel %vm1809, %v1807, %v1808
      %v1811 = vsel %vm1809, %v1806, %v1807
      %v1812 = vsel %vm1809, %v1805, %v1806
      %v1813 = vsel %vm1809, %v1804, %v1805
      %v1814 = vsel %vm1809, %v1803, %v1804
      %v1815 = vsel %vm1809, %v1802, %v1803
      %v1816 = vsel %vm1809, %v1801, %v1802
      %v1817 = vsel %vm1809, %v1800, %v1801
      %v1818 = vsel %vm1809, %v1799, %v1800
      %v1819 = vsel %vm1809, %v1798, %v1799
      %v1820 = vsel %vm1809, %v1797, %v1798
      %v1821 = vsel %vm1809, %v1796, %v1797
      %v1822 = vsel %vm1809, %v1795, %v1796
      %v1823 = vsel %vm1809, %v1794, %v1795
      %v1824 = vsel %vm1809, %v1793, %v1794
      %v1825 = vsel %vm1809, %v1792, %v1793
      %v1826 = vsel %vm1809, %v1791, %v1792
      %v1827 = vsel %vm1809, %v1790, %v1791
      %v1828 = vsel %vm1809, %v1789, %v1790
      %v1829 = vsel %vm1809, %v1788, %v1789
      %v1830 = vsel %vm1809, %v1787, %v1788
      %v1831 = vsel %vm1809, %v1786, %v1787
      %v1832 = vsel %vm1809, %v1785, %v1786
      %v1833 = vsel %vm1809, %v1784, %v1785
      %v1834 = vsel %vm1809, %v1783, %v1784
      %v1835 = vsel %vm1809, %v1782, %v1783
      %v1836 = vsel %vm1809, %v1781, %v1782
      %v1837 = vsel %vm1809, %v1780, %v1781
      %v1838 = vsel %vm1809, %v1779, %v1780
      %v1839 = vsel %vm1809, %v1778, %v1779
      %v1840 = vsel %vm1809, %v1777, %v1778
      %v1841 = vsel %vm1809, %v1776, %v1777
      %v1842 = vsel %vm1809, %v1775, %v1776
      %v1843 = vsel %vm1809, %v1774, %v1775
      %v1844 = vsel %vm1809, %v1773, %v1774
      %v1845 = vsel %vm1809, %v1772, %v1773
      %v1846 = vsel %vm1809, %v1771, %v1772
      %v1847 = vsel %vm1809, %v1770, %v1771
      %v1848 = vsel %vm1809, %v1769, %v1770
      %v1849 = vsel %vm1809, %v1768, %v1769
      %v1850 = vsel %vm1809, %v1767, %v1768
      %v1851 = vsel %vm1809, %v1766, %v1767
      %v1852 = vsel %vm1809, %v1765, %v1766
      %v1853 = vsel %vm1809, %v1764, %v1765
      %v1854 = vsel %vm1809, %v1763, %v1764
      %v1855 = vsel %vm1809, %v1762, %v1763
      %v1856 = vsel %vm1809, %v1761, %v1762
      %v1857 = vsel %vm1809, %v1760, %v1761
      %v1858 = vsel %vm1809, %v1759, %v1760
      %v1859 = vsel %vm1809, %v1758, %v1759
      %v1860 = vsel %vm1809, %v1757, %v1758
      %v1861 = vsel %vm1809, %v1756, %v1757
      %v1862 = vsel %vm1809, %v1755, %v1756
      %v1863 = vsel %vm1809, %v1754, %v1755
      %v1864 = vsel %vm1809, %v1753, %v1754
      %v1865 = vsel %vm1809, %v1752, %v1753
      %v1866 = vsel %vm1809, %v1751, %v1752
      %v1867 = vsel %vm1809, %v1750, %v1751
      %v1868 = vsel %vm1809, %v1749, %v1750
      %v1869 = vsel %vm1809, %v1748, %v1749
      %v1870 = vsel %vm1809, %v1747, %v1748
      %v1871 = vsel %vm1809, %v1746, %v1747
      %v1872 = vsel %vm1809, %v1745, %v1746
      %v1873 = vsel %vm1809, %v1808, %v1745
      %v1874 = vadd.f32 %v1681, %v1872
      %v1875 = vadd.f32 %v1682, %v1871
      %v1876 = vadd.f32 %v1683, %v1870
      %v1877 = vadd.f32 %v1684, %v1869
      %v1878 = vadd.f32 %v1685, %v1868
      %v1879 = vadd.f32 %v1686, %v1867
      %v1880 = vadd.f32 %v1687, %v1866
      %v1881 = vadd.f32 %v1688, %v1865
      %v1882 = vadd.f32 %v1689, %v1864
      %v1883 = vadd.f32 %v1690, %v1863
      %v1884 = vadd.f32 %v1691, %v1862
      %v1885 = vadd.f32 %v1692, %v1861
      %v1886 = vadd.f32 %v1693, %v1860
      %v1887 = vadd.f32 %v1694, %v1859
      %v1888 = vadd.f32 %v1695, %v1858
      %v1889 = vadd.f32 %v1696, %v1857
      %v1890 = vadd.f32 %v1697, %v1856
      %v1891 = vadd.f32 %v1698, %v1855
      %v1892 = vadd.f32 %v1699, %v1854
      %v1893 = vadd.f32 %v1700, %v1853
      %v1894 = vadd.f32 %v1701, %v1852
      %v1895 = vadd.f32 %v1702, %v1851
      %v1896 = vadd.f32 %v1703, %v1850
      %v1897 = vadd.f32 %v1704, %v1849
      %v1898 = vadd.f32 %v1705, %v1848
      %v1899 = vadd.f32 %v1706, %v1847
      %v1900 = vadd.f32 %v1707, %v1846
      %v1901 = vadd.f32 %v1708, %v1845
      %v1902 = vadd.f32 %v1709, %v1844
      %v1903 = vadd.f32 %v1710, %v1843
      %v1904 = vadd.f32 %v1711, %v1842
      %v1905 = vadd.f32 %v1712, %v1841
      %v1906 = vadd.f32 %v1713, %v1840
      %v1907 = vadd.f32 %v1714, %v1839
      %v1908 = vadd.f32 %v1715, %v1838
      %v1909 = vadd.f32 %v1716, %v1837
      %v1910 = vadd.f32 %v1717, %v1836
      %v1911 = vadd.f32 %v1718, %v1835
      %v1912 = vadd.f32 %v1719, %v1834
      %v1913 = vadd.f32 %v1720, %v1833
      %v1914 = vadd.f32 %v1721, %v1832
      %v1915 = vadd.f32 %v1722, %v1831
      %v1916 = vadd.f32 %v1723, %v1830
      %v1917 = vadd.f32 %v1724, %v1829
      %v1918 = vadd.f32 %v1725, %v1828
      %v1919 = vadd.f32 %v1726, %v1827
      %v1920 = vadd.f32 %v1727, %v1826
      %v1921 = vadd.f32 %v1728, %v1825
      %v1922 = vadd.f32 %v1729, %v1824
      %v1923 = vadd.f32 %v1730, %v1823
      %v1924 = vadd.f32 %v1731, %v1822
      %v1925 = vadd.f32 %v1732, %v1821
      %v1926 = vadd.f32 %v1733, %v1820
      %v1927 = vadd.f32 %v1734, %v1819
      %v1928 = vadd.f32 %v1735, %v1818
      %v1929 = vadd.f32 %v1736, %v1817
      %v1930 = vadd.f32 %v1737, %v1816
      %v1931 = vadd.f32 %v1738, %v1815
      %v1932 = vadd.f32 %v1739, %v1814
      %v1933 = vadd.f32 %v1740, %v1813
      %v1934 = vadd.f32 %v1741, %v1812
      %v1935 = vadd.f32 %v1742, %v1811
      %v1936 = vadd.f32 %v1743, %v1810
      %v1937 = vadd.f32 %v1744, %v1873
      %v1938 = vld [vmem:[%s273 + $0x10] sm:$0xf]
      %v1939 = vld [vmem:[%s273 + $0x14] sm:$0xf]
      %v1940 = vld [vmem:[%s273 + $0x18] sm:$0xf]
      %v1941 = vld [vmem:[%s273 + $0x1c] sm:$0xf]
      %v1942 = vld [vmem:[%s273 + $0x20] sm:$0xf]
      %v1943 = vld [vmem:[%s273 + $0x24] sm:$0xf]
      %v1944 = vld [vmem:[%s273 + $0x28] sm:$0xf]
      %v1945 = vld [vmem:[%s273 + $0x2c] sm:$0xf]
      %v1946 = vld [vmem:[%s273 + $0x30] sm:$0xf]
      %v1947 = vld [vmem:[%s273 + $0x34] sm:$0xf]
      %v1948 = vld [vmem:[%s273 + $0x38] sm:$0xf]
      %v1949 = vld [vmem:[%s273 + $0x3c] sm:$0xf]
      %v1950 = vld [vmem:[%s273 + $0x40] sm:$0xf]
      %v1951 = vld [vmem:[%s273 + $0x44] sm:$0xf]
      %v1952 = vld [vmem:[%s273 + $0x48] sm:$0xf]
      %v1953 = vld [vmem:[%s273 + $0x4c] sm:$0xf]
      %v1954 = vld [vmem:[%s273 + $0x50] sm:$0xf]
      %v1955 = vld [vmem:[%s273 + $0x54] sm:$0xf]
      %v1956 = vld [vmem:[%s273 + $0x58] sm:$0xf]
      %v1957 = vld [vmem:[%s273 + $0x5c] sm:$0xf]
      %v1958 = vld [vmem:[%s273 + $0x60] sm:$0xf]
      %v1959 = vld [vmem:[%s273 + $0x64] sm:$0xf]
      %v1960 = vld [vmem:[%s273 + $0x68] sm:$0xf]
      %v1961 = vld [vmem:[%s273 + $0x6c] sm:$0xf]
      %v1962 = vld [vmem:[%s273 + $0x70] sm:$0xf]
      %v1963 = vld [vmem:[%s273 + $0x74] sm:$0xf]
      %v1964 = vld [vmem:[%s273 + $0x78] sm:$0xf]
      %v1965 = vld [vmem:[%s273 + $0x7c] sm:$0xf]
      %v1966 = vld [vmem:[%s273 + $0x80] sm:$0xf]
      %v1967 = vld [vmem:[%s273 + $0x84] sm:$0xf]
      %v1968 = vld [vmem:[%s273 + $0x88] sm:$0xf]
      %v1969 = vld [vmem:[%s273 + $0x8c] sm:$0xf]
      %v1970 = vld [vmem:[%s273 + $0x90] sm:$0xf]
      %v1971 = vld [vmem:[%s273 + $0x94] sm:$0xf]
      %v1972 = vld [vmem:[%s273 + $0x98] sm:$0xf]
      %v1973 = vld [vmem:[%s273 + $0x9c] sm:$0xf]
      %v1974 = vld [vmem:[%s273 + $0xa0] sm:$0xf]
      %v1975 = vld [vmem:[%s273 + $0xa4] sm:$0xf]
      %v1976 = vld [vmem:[%s273 + $0xa8] sm:$0xf]
      %v1977 = vld [vmem:[%s273 + $0xac] sm:$0xf]
      %v1978 = vld [vmem:[%s273 + $0xb0] sm:$0xf]
      %v1979 = vld [vmem:[%s273 + $0xb4] sm:$0xf]
      %v1980 = vld [vmem:[%s273 + $0xb8] sm:$0xf]
      %v1981 = vld [vmem:[%s273 + $0xbc] sm:$0xf]
      %v1982 = vld [vmem:[%s273 + $0xc0] sm:$0xf]
      %v1983 = vld [vmem:[%s273 + $0xc4] sm:$0xf]
      %v1984 = vld [vmem:[%s273 + $0xc8] sm:$0xf]
      %v1985 = vld [vmem:[%s273 + $0xcc] sm:$0xf]
      %v1986 = vld [vmem:[%s273 + $0xd0] sm:$0xf]
      %v1987 = vld [vmem:[%s273 + $0xd4] sm:$0xf]
      %v1988 = vld [vmem:[%s273 + $0xd8] sm:$0xf]
      %v1989 = vld [vmem:[%s273 + $0xdc] sm:$0xf]
      %v1990 = vld [vmem:[%s273 + $0xe0] sm:$0xf]
      %v1991 = vld [vmem:[%s273 + $0xe4] sm:$0xf]
      %v1992 = vld [vmem:[%s273 + $0xe8] sm:$0xf]
      %v1993 = vld [vmem:[%s273 + $0xec] sm:$0xf]
      %v1994 = vld [vmem:[%s273 + $0xf0] sm:$0xf]
      %v1995 = vld [vmem:[%s273 + $0xf4] sm:$0xf]
      %v1996 = vld [vmem:[%s273 + $0xf8] sm:$0xf]
      %v1997 = vld [vmem:[%s273 + $0xfc] sm:$0xf]
      %v1998 = vld [vmem:[%s273 + $0x100] sm:$0xf]
      %v1999 = vld [vmem:[%s273 + $0x104] sm:$0xf]
      %v2000 = vld [vmem:[%s273 + $0x108] sm:$0xf]
      %v2001 = vld [vmem:[%s273 + $0x10c] sm:$0xf]
      %s2002 = scalar_lea.vmem %s1, 6
      %v2003 = vld [vmem:[%s2002] sm:$0x3]
      %v2068 = vunpack.c.l.b16 %v1938
      %v2069 = vunpack.c.l.b16 %v1939
      %v2070 = vunpack.c.l.b16 %v1940
      %v2071 = vunpack.c.l.b16 %v1941
      %v2072 = vunpack.c.l.b16 %v1942
      %v2073 = vunpack.c.l.b16 %v1943
      %v2074 = vunpack.c.l.b16 %v1944
      %v2075 = vunpack.c.l.b16 %v1945
      %v2076 = vunpack.c.l.b16 %v1946
      %v2077 = vunpack.c.l.b16 %v1947
      %v2078 = vunpack.c.l.b16 %v1948
      %v2079 = vunpack.c.l.b16 %v1949
      %v2080 = vunpack.c.l.b16 %v1950
      %v2081 = vunpack.c.l.b16 %v1951
      %v2082 = vunpack.c.l.b16 %v1952
      %v2083 = vunpack.c.l.b16 %v1953
      %v2084 = vunpack.c.l.b16 %v1954
      %v2085 = vunpack.c.l.b16 %v1955
      %v2086 = vunpack.c.l.b16 %v1956
      %v2087 = vunpack.c.l.b16 %v1957
      %v2088 = vunpack.c.l.b16 %v1958
      %v2089 = vunpack.c.l.b16 %v1959
      %v2090 = vunpack.c.l.b16 %v1960
      %v2091 = vunpack.c.l.b16 %v1961
      %v2092 = vunpack.c.l.b16 %v1962
      %v2093 = vunpack.c.l.b16 %v1963
      %v2094 = vunpack.c.l.b16 %v1964
      %v2095 = vunpack.c.l.b16 %v1965
      %v2096 = vunpack.c.l.b16 %v1966
      %v2097 = vunpack.c.l.b16 %v1967
      %v2098 = vunpack.c.l.b16 %v1968
      %v2099 = vunpack.c.l.b16 %v1969
      %v2100 = vunpack.c.l.b16 %v1970
      %v2101 = vunpack.c.l.b16 %v1971
      %v2102 = vunpack.c.l.b16 %v1972
      %v2103 = vunpack.c.l.b16 %v1973
      %v2104 = vunpack.c.l.b16 %v1974
      %v2105 = vunpack.c.l.b16 %v1975
      %v2106 = vunpack.c.l.b16 %v1976
      %v2107 = vunpack.c.l.b16 %v1977
      %v2108 = vunpack.c.l.b16 %v1978
      %v2109 = vunpack.c.l.b16 %v1979
      %v2110 = vunpack.c.l.b16 %v1980
      %v2111 = vunpack.c.l.b16 %v1981
      %v2112 = vunpack.c.l.b16 %v1982
      %v2113 = vunpack.c.l.b16 %v1983
      %v2114 = vunpack.c.l.b16 %v1984
      %v2115 = vunpack.c.l.b16 %v1985
      %v2116 = vunpack.c.l.b16 %v1986
      %v2117 = vunpack.c.l.b16 %v1987
      %v2118 = vunpack.c.l.b16 %v1988
      %v2119 = vunpack.c.l.b16 %v1989
      %v2120 = vunpack.c.l.b16 %v1990
      %v2121 = vunpack.c.l.b16 %v1991
      %v2122 = vunpack.c.l.b16 %v1992
      %v2123 = vunpack.c.l.b16 %v1993
      %v2124 = vunpack.c.l.b16 %v1994
      %v2125 = vunpack.c.l.b16 %v1995
      %v2126 = vunpack.c.l.b16 %v1996
      %v2127 = vunpack.c.l.b16 %v1997
      %v2128 = vunpack.c.l.b16 %v1998
      %v2129 = vunpack.c.l.b16 %v1999
      %v2130 = vunpack.c.l.b16 %v2000
      %v2131 = vunpack.c.l.b16 %v2001
      %v2132 = vpack.c.b16 %v2069, %v2068
      %v2133 = vpack.c.b16 %v2071, %v2070
      %v2134 = vpack.c.b16 %v2073, %v2072
      %v2135 = vpack.c.b16 %v2075, %v2074
      %v2136 = vpack.c.b16 %v2077, %v2076
      %v2137 = vpack.c.b16 %v2079, %v2078
      %v2138 = vpack.c.b16 %v2081, %v2080
      %v2139 = vpack.c.b16 %v2083, %v2082
      %v2140 = vpack.c.b16 %v2085, %v2084
      %v2141 = vpack.c.b16 %v2087, %v2086
      %v2142 = vpack.c.b16 %v2089, %v2088
      %v2143 = vpack.c.b16 %v2091, %v2090
      %v2144 = vpack.c.b16 %v2093, %v2092
      %v2145 = vpack.c.b16 %v2095, %v2094
      %v2146 = vpack.c.b16 %v2097, %v2096
      %v2147 = vpack.c.b16 %v2099, %v2098
      %v2148 = vpack.c.b16 %v2101, %v2100
      %v2149 = vpack.c.b16 %v2103, %v2102
      %v2150 = vpack.c.b16 %v2105, %v2104
      %v2151 = vpack.c.b16 %v2107, %v2106
      %v2152 = vpack.c.b16 %v2109, %v2108
      %v2153 = vpack.c.b16 %v2111, %v2110
      %v2154 = vpack.c.b16 %v2113, %v2112
      %v2155 = vpack.c.b16 %v2115, %v2114
      %v2156 = vpack.c.b16 %v2117, %v2116
      %v2157 = vpack.c.b16 %v2119, %v2118
      %v2158 = vpack.c.b16 %v2121, %v2120
      %v2159 = vpack.c.b16 %v2123, %v2122
      %v2160 = vpack.c.b16 %v2125, %v2124
      %v2161 = vpack.c.b16 %v2127, %v2126
      %v2162 = vpack.c.b16 %v2129, %v2128
      %v2163 = vpack.c.b16 %v2131, %v2130
      %v2165 = vsel %vm505, %v2132, 0
      %v2168 = vsel %vm505, %v2133, 0
      %v2171 = vsel %vm505, %v2134, 0
      %v2174 = vsel %vm505, %v2135, 0
      %v2177 = vsel %vm505, %v2136, 0
      %v2180 = vsel %vm505, %v2137, 0
      %v2183 = vsel %vm505, %v2138, 0
      %v2186 = vsel %vm505, %v2139, 0
      %v2189 = vsel %vm505, %v2140, 0
      %v2192 = vsel %vm505, %v2141, 0
      %v2195 = vsel %vm505, %v2142, 0
      %v2198 = vsel %vm505, %v2143, 0
      %v2201 = vsel %vm505, %v2144, 0
      %v2204 = vsel %vm505, %v2145, 0
      %v2207 = vsel %vm505, %v2146, 0
      %v2210 = vsel %vm505, %v2147, 0
      %v2213 = vsel %vm505, %v2148, 0
      %v2216 = vsel %vm505, %v2149, 0
      %v2219 = vsel %vm505, %v2150, 0
      %v2222 = vsel %vm505, %v2151, 0
      %v2225 = vsel %vm505, %v2152, 0
      %v2228 = vsel %vm505, %v2153, 0
      %v2231 = vsel %vm505, %v2154, 0
      %v2234 = vsel %vm505, %v2155, 0
      %v2237 = vsel %vm505, %v2156, 0
      %v2240 = vsel %vm505, %v2157, 0
      %v2243 = vsel %vm505, %v2158, 0
      %v2246 = vsel %vm505, %v2159, 0
      %v2249 = vsel %vm505, %v2160, 0
      %v2252 = vsel %vm505, %v2161, 0
      %v2255 = vsel %vm505, %v2162, 0
      %v2258 = vsel %vm505, %v2163, 0
      %v2261 = vand.u32 %v2003, %v605
      %2263 = vmatprep.subr.bf16.mxu0 0
      %2264 = vmatpush1.bf16.msra.mxu0 %v2261
      %2265 = vmatprep.subr.bf16.mxu0 0
      %2266 = vmatpush1.bf16.msra.mxu0 0
      %2267 = vmatprep.subr.bf16.mxu0 0
      %2268 = vmatpush1.bf16.msra.mxu0 0
      %2269 = vmatprep.subr.bf16.mxu0 0
      %2270 = vmatpush1.bf16.msra.mxu0 0
      %2271 = vmatprep.subr.bf16.mxu0 0
      %2272 = vmatpush1.bf16.msra.mxu0 0
      %2273 = vmatprep.subr.bf16.mxu0 0
      %2274 = vmatpush1.bf16.msra.mxu0 0
      %2275 = vmatprep.subr.bf16.mxu0 0
      %2276 = vmatpush1.bf16.msra.mxu0 0
      %2277 = vmatprep.subr.bf16.mxu0 0
      %2278 = vmatpush1.bf16.msra.mxu0 0
      %2279 = vmatprep.subr.bf16.mxu0 0
      %2280 = vmatpush1.bf16.msra.mxu0 0
      %2281 = vmatprep.subr.bf16.mxu0 0
      %2282 = vmatpush1.bf16.msra.mxu0 0
      %2283 = vmatprep.subr.bf16.mxu0 0
      %2284 = vmatpush1.bf16.msra.mxu0 0
      %2285 = vmatprep.subr.bf16.mxu0 0
      %2286 = vmatpush1.bf16.msra.mxu0 0
      %2287 = vmatprep.subr.bf16.mxu0 0
      %2288 = vmatpush1.bf16.msra.mxu0 0
      %2289 = vmatprep.subr.bf16.mxu0 0
      %2290 = vmatpush1.bf16.msra.mxu0 0
      %2291 = vmatprep.subr.bf16.mxu0 0
      %2292 = vmatpush1.bf16.msra.mxu0 0
      %2293 = vmatprep.subr.bf16.mxu0 0
      %2294 = vmatpush1.bf16.msra.mxu0 0
      %2295 = vmatprep.mubr.bf16.mxu0 0
      %2296 = vmatmul.mubr.bf16.gmra.mrb[0].mxu0 %v2165
      %v2297 = vpop.f32.mrb[0].mxu0
      %v2298 = vadd.f32 0.0, %v2297
      %v2299 = vpop.f32.mrb[0].mxu0
      %v2300 = vpop.f32.mrb[0].mxu0
      %v2301 = vadd.f32 0.0, %v2300
      %v2302 = vpop.f32.mrb[0].mxu0
      %2303 = vmatprep.mubr.bf16.mxu0 0
      %2304 = vmatmul.mubr.bf16.gmra.mrb[0].mxu0 %v2168
      %v2305 = vpop.f32.mrb[0].mxu0
      %v2306 = vadd.f32 0.0, %v2305
      %v2307 = vpop.f32.mrb[0].mxu0
      %v2308 = vpop.f32.mrb[0].mxu0
      %v2309 = vadd.f32 0.0, %v2308
      %v2310 = vpop.f32.mrb[0].mxu0
      %2311 = vmatprep.mubr.bf16.mxu0 0
      %2312 = vmatmul.mubr.bf16.gmra.mrb[0].mxu0 %v2171
      %v2313 = vpop.f32.mrb[0].mxu0
      %v2314 = vadd.f32 0.0, %v2313
      %v2315 = vpop.f32.mrb[0].mxu0
      %v2316 = vpop.f32.mrb[0].mxu0
      %v2317 = vadd.f32 0.0, %v2316
      %v2318 = vpop.f32.mrb[0].mxu0
      %2319 = vmatprep.mubr.bf16.mxu0 0
      %2320 = vmatmul.mubr.bf16.gmra.mrb[0].mxu0 %v2174
      %v2321 = vpop.f32.mrb[0].mxu0
      %v2322 = vadd.f32 0.0, %v2321
      %v2323 = vpop.f32.mrb[0].mxu0
      %v2324 = vpop.f32.mrb[0].mxu0
      %v2325 = vadd.f32 0.0, %v2324
      %v2326 = vpop.f32.mrb[0].mxu0
      %2327 = vmatprep.mubr.bf16.mxu0 0
      %2328 = vmatmul.mubr.bf16.gmra.mrb[0].mxu0 %v2177
      %v2329 = vpop.f32.mrb[0].mxu0
      %v2330 = vadd.f32 0.0, %v2329
      %v2331 = vpop.f32.mrb[0].mxu0
      %v2332 = vpop.f32.mrb[0].mxu0
      %v2333 = vadd.f32 0.0, %v2332
      %v2334 = vpop.f32.mrb[0].mxu0
      %2335 = vmatprep.mubr.bf16.mxu0 0
      %2336 = vmatmul.mubr.bf16.gmra.mrb[0].mxu0 %v2180
      %v2337 = vpop.f32.mrb[0].mxu0
      %v2338 = vadd.f32 0.0, %v2337
      %v2339 = vpop.f32.mrb[0].mxu0
      %v2340 = vpop.f32.mrb[0].mxu0
      %v2341 = vadd.f32 0.0, %v2340
      %v2342 = vpop.f32.mrb[0].mxu0
      %2343 = vmatprep.mubr.bf16.mxu0 0
      %2344 = vmatmul.mubr.bf16.gmra.mrb[0].mxu0 %v2183
      %v2345 = vpop.f32.mrb[0].mxu0
      %v2346 = vadd.f32 0.0, %v2345
      %v2347 = vpop.f32.mrb[0].mxu0
      %v2348 = vpop.f32.mrb[0].mxu0
      %v2349 = vadd.f32 0.0, %v2348
      %v2350 = vpop.f32.mrb[0].mxu0
      %2351 = vmatprep.mubr.bf16.mxu0 0
      %2352 = vmatmul.mubr.bf16.gmra.mrb[0].mxu0 %v2186
      %v2353 = vpop.f32.mrb[0].mxu0
      %v2354 = vadd.f32 0.0, %v2353
      %v2355 = vpop.f32.mrb[0].mxu0
      %v2356 = vpop.f32.mrb[0].mxu0
      %v2357 = vadd.f32 0.0, %v2356
      %v2358 = vpop.f32.mrb[0].mxu0
      %2359 = vmatprep.mubr.bf16.mxu0 0
      %2360 = vmatmul.mubr.bf16.gmra.mrb[0].mxu0 %v2189
      %v2361 = vpop.f32.mrb[0].mxu0
      %v2362 = vadd.f32 0.0, %v2361
      %v2363 = vpop.f32.mrb[0].mxu0
      %v2364 = vpop.f32.mrb[0].mxu0
      %v2365 = vadd.f32 0.0, %v2364
      %v2366 = vpop.f32.mrb[0].mxu0
      %2367 = vmatprep.mubr.bf16.mxu0 0
      %2368 = vmatmul.mubr.bf16.gmra.mrb[0].mxu0 %v2192
      %v2369 = vpop.f32.mrb[0].mxu0
      %v2370 = vadd.f32 0.0, %v2369
      %v2371 = vpop.f32.mrb[0].mxu0
      %v2372 = vpop.f32.mrb[0].mxu0
      %v2373 = vadd.f32 0.0, %v2372
      %v2374 = vpop.f32.mrb[0].mxu0
      %2375 = vmatprep.mubr.bf16.mxu0 0
      %2376 = vmatmul.mubr.bf16.gmra.mrb[0].mxu0 %v2195
      %v2377 = vpop.f32.mrb[0].mxu0
      %v2378 = vadd.f32 0.0, %v2377
      %v2379 = vpop.f32.mrb[0].mxu0
      %v2380 = vpop.f32.mrb[0].mxu0
      %v2381 = vadd.f32 0.0, %v2380
      %v2382 = vpop.f32.mrb[0].mxu0
      %2383 = vmatprep.mubr.bf16.mxu0 0
      %2384 = vmatmul.mubr.bf16.gmra.mrb[0].mxu0 %v2198
      %v2385 = vpop.f32.mrb[0].mxu0
      %v2386 = vadd.f32 0.0, %v2385
      %v2387 = vpop.f32.mrb[0].mxu0
      %v2388 = vpop.f32.mrb[0].mxu0
      %v2389 = vadd.f32 0.0, %v2388
      %v2390 = vpop.f32.mrb[0].mxu0
      %2391 = vmatprep.mubr.bf16.mxu0 0
      %2392 = vmatmul.mubr.bf16.gmra.mrb[0].mxu0 %v2201
      %v2393 = vpop.f32.mrb[0].mxu0
      %v2394 = vadd.f32 0.0, %v2393
      %v2395 = vpop.f32.mrb[0].mxu0
      %v2396 = vpop.f32.mrb[0].mxu0
      %v2397 = vadd.f32 0.0, %v2396
      %v2398 = vpop.f32.mrb[0].mxu0
      %2399 = vmatprep.mubr.bf16.mxu0 0
      %2400 = vmatmul.mubr.bf16.gmra.mrb[0].mxu0 %v2204
      %v2401 = vpop.f32.mrb[0].mxu0
      %v2402 = vadd.f32 0.0, %v2401
      %v2403 = vpop.f32.mrb[0].mxu0
      %v2404 = vpop.f32.mrb[0].mxu0
      %v2405 = vadd.f32 0.0, %v2404
      %v2406 = vpop.f32.mrb[0].mxu0
      %2407 = vmatprep.mubr.bf16.mxu0 0
      %2408 = vmatmul.mubr.bf16.gmra.mrb[0].mxu0 %v2207
      %v2409 = vpop.f32.mrb[0].mxu0
      %v2410 = vadd.f32 0.0, %v2409
      %v2411 = vpop.f32.mrb[0].mxu0
      %v2412 = vpop.f32.mrb[0].mxu0
      %v2413 = vadd.f32 0.0, %v2412
      %v2414 = vpop.f32.mrb[0].mxu0
      %2415 = vmatprep.mubr.bf16.mxu0 0
      %2416 = vmatmul.mubr.bf16.gmra.mrb[0].mxu0 %v2210
      %v2417 = vpop.f32.mrb[0].mxu0
      %v2418 = vadd.f32 0.0, %v2417
      %v2419 = vpop.f32.mrb[0].mxu0
      %v2420 = vpop.f32.mrb[0].mxu0
      %v2421 = vadd.f32 0.0, %v2420
      %v2422 = vpop.f32.mrb[0].mxu0
      %2423 = vmatprep.mubr.bf16.mxu0 0
      %2424 = vmatmul.mubr.bf16.gmra.mrb[0].mxu0 %v2213
      %v2425 = vpop.f32.mrb[0].mxu0
      %v2426 = vadd.f32 0.0, %v2425
      %v2427 = vpop.f32.mrb[0].mxu0
      %v2428 = vpop.f32.mrb[0].mxu0
      %v2429 = vadd.f32 0.0, %v2428
      %v2430 = vpop.f32.mrb[0].mxu0
      %2431 = vmatprep.mubr.bf16.mxu0 0
      %2432 = vmatmul.mubr.bf16.gmra.mrb[0].mxu0 %v2216
      %v2433 = vpop.f32.mrb[0].mxu0
      %v2434 = vadd.f32 0.0, %v2433
      %v2435 = vpop.f32.mrb[0].mxu0
      %v2436 = vpop.f32.mrb[0].mxu0
      %v2437 = vadd.f32 0.0, %v2436
      %v2438 = vpop.f32.mrb[0].mxu0
      %2439 = vmatprep.mubr.bf16.mxu0 0
      %2440 = vmatmul.mubr.bf16.gmra.mrb[0].mxu0 %v2219
      %v2441 = vpop.f32.mrb[0].mxu0
      %v2442 = vadd.f32 0.0, %v2441
      %v2443 = vpop.f32.mrb[0].mxu0
      %v2444 = vpop.f32.mrb[0].mxu0
      %v2445 = vadd.f32 0.0, %v2444
      %v2446 = vpop.f32.mrb[0].mxu0
      %2447 = vmatprep.mubr.bf16.mxu0 0
      %2448 = vmatmul.mubr.bf16.gmra.mrb[0].mxu0 %v2222
      %v2449 = vpop.f32.mrb[0].mxu0
      %v2450 = vadd.f32 0.0, %v2449
      %v2451 = vpop.f32.mrb[0].mxu0
      %v2452 = vpop.f32.mrb[0].mxu0
      %v2453 = vadd.f32 0.0, %v2452
      %v2454 = vpop.f32.mrb[0].mxu0
      %2455 = vmatprep.mubr.bf16.mxu0 0
      %2456 = vmatmul.mubr.bf16.gmra.mrb[0].mxu0 %v2225
      %v2457 = vpop.f32.mrb[0].mxu0
      %v2458 = vadd.f32 0.0, %v2457
      %v2459 = vpop.f32.mrb[0].mxu0
      %v2460 = vpop.f32.mrb[0].mxu0
      %v2461 = vadd.f32 0.0, %v2460
      %v2462 = vpop.f32.mrb[0].mxu0
      %2463 = vmatprep.mubr.bf16.mxu0 0
      %2464 = vmatmul.mubr.bf16.gmra.mrb[0].mxu0 %v2228
      %v2465 = vpop.f32.mrb[0].mxu0
      %v2466 = vadd.f32 0.0, %v2465
      %v2467 = vpop.f32.mrb[0].mxu0
      %v2468 = vpop.f32.mrb[0].mxu0
      %v2469 = vadd.f32 0.0, %v2468
      %v2470 = vpop.f32.mrb[0].mxu0
      %2471 = vmatprep.mubr.bf16.mxu0 0
      %2472 = vmatmul.mubr.bf16.gmra.mrb[0].mxu0 %v2231
      %v2473 = vpop.f32.mrb[0].mxu0
      %v2474 = vadd.f32 0.0, %v2473
      %v2475 = vpop.f32.mrb[0].mxu0
      %v2476 = vpop.f32.mrb[0].mxu0
      %v2477 = vadd.f32 0.0, %v2476
      %v2478 = vpop.f32.mrb[0].mxu0
      %2479 = vmatprep.mubr.bf16.mxu0 0
      %2480 = vmatmul.mubr.bf16.gmra.mrb[0].mxu0 %v2234
      %v2481 = vpop.f32.mrb[0].mxu0
      %v2482 = vadd.f32 0.0, %v2481
      %v2483 = vpop.f32.mrb[0].mxu0
      %v2484 = vpop.f32.mrb[0].mxu0
      %v2485 = vadd.f32 0.0, %v2484
      %v2486 = vpop.f32.mrb[0].mxu0
      %2487 = vmatprep.mubr.bf16.mxu0 0
      %2488 = vmatmul.mubr.bf16.gmra.mrb[0].mxu0 %v2237
      %v2489 = vpop.f32.mrb[0].mxu0
      %v2490 = vadd.f32 0.0, %v2489
      %v2491 = vpop.f32.mrb[0].mxu0
      %v2492 = vpop.f32.mrb[0].mxu0
      %v2493 = vadd.f32 0.0, %v2492
      %v2494 = vpop.f32.mrb[0].mxu0
      %2495 = vmatprep.mubr.bf16.mxu0 0
      %2496 = vmatmul.mubr.bf16.gmra.mrb[0].mxu0 %v2240
      %v2497 = vpop.f32.mrb[0].mxu0
      %v2498 = vadd.f32 0.0, %v2497
      %v2499 = vpop.f32.mrb[0].mxu0
      %v2500 = vpop.f32.mrb[0].mxu0
      %v2501 = vadd.f32 0.0, %v2500
      %v2502 = vpop.f32.mrb[0].mxu0
      %2503 = vmatprep.mubr.bf16.mxu0 0
      %2504 = vmatmul.mubr.bf16.gmra.mrb[0].mxu0 %v2243
      %v2505 = vpop.f32.mrb[0].mxu0
      %v2506 = vadd.f32 0.0, %v2505
      %v2507 = vpop.f32.mrb[0].mxu0
      %v2508 = vpop.f32.mrb[0].mxu0
      %v2509 = vadd.f32 0.0, %v2508
      %v2510 = vpop.f32.mrb[0].mxu0
      %2511 = vmatprep.mubr.bf16.mxu0 0
      %2512 = vmatmul.mubr.bf16.gmra.mrb[0].mxu0 %v2246
      %v2513 = vpop.f32.mrb[0].mxu0
      %v2514 = vadd.f32 0.0, %v2513
      %v2515 = vpop.f32.mrb[0].mxu0
      %v2516 = vpop.f32.mrb[0].mxu0
      %v2517 = vadd.f32 0.0, %v2516
      %v2518 = vpop.f32.mrb[0].mxu0
      %2519 = vmatprep.mubr.bf16.mxu0 0
      %2520 = vmatmul.mubr.bf16.gmra.mrb[0].mxu0 %v2249
      %v2521 = vpop.f32.mrb[0].mxu0
      %v2522 = vadd.f32 0.0, %v2521
      %v2523 = vpop.f32.mrb[0].mxu0
      %v2524 = vpop.f32.mrb[0].mxu0
      %v2525 = vadd.f32 0.0, %v2524
      %v2526 = vpop.f32.mrb[0].mxu0
      %2527 = vmatprep.mubr.bf16.mxu0 0
      %2528 = vmatmul.mubr.bf16.gmra.mrb[0].mxu0 %v2252
      %v2529 = vpop.f32.mrb[0].mxu0
      %v2530 = vadd.f32 0.0, %v2529
      %v2531 = vpop.f32.mrb[0].mxu0
      %v2532 = vpop.f32.mrb[0].mxu0
      %v2533 = vadd.f32 0.0, %v2532
      %v2534 = vpop.f32.mrb[0].mxu0
      %2535 = vmatprep.mubr.bf16.mxu0 0
      %2536 = vmatmul.mubr.bf16.gmra.mrb[0].mxu0 %v2255
      %v2537 = vpop.f32.mrb[0].mxu0
      %v2538 = vadd.f32 0.0, %v2537
      %v2539 = vpop.f32.mrb[0].mxu0
      %v2540 = vpop.f32.mrb[0].mxu0
      %v2541 = vadd.f32 0.0, %v2540
      %v2542 = vpop.f32.mrb[0].mxu0
      %2543 = vmatprep.mubr.bf16.mxu0 0
      %2544 = vmatmul.mubr.bf16.gmra.mrb[0].mxu0 %v2258
      %v2545 = vpop.f32.mrb[0].mxu0
      %v2546 = vadd.f32 0.0, %v2545
      %v2547 = vpop.f32.mrb[0].mxu0
      %v2548 = vpop.f32.mrb[0].mxu0
      %v2549 = vadd.f32 0.0, %v2548
      %v2550 = vpop.f32.mrb[0].mxu0
      %2551 = vdwg.mxu0
      %s2552 = scalar_lea.vmem %s1, 8
      %v2553 = vld [vmem:[%s2552] sm:$0x3]
      %v2555 = vand.u32 %v2553, %v605
      %2557 = vmatprep.subr.bf16.mxu0 0
      %2558 = vmatpush1.bf16.msra.mxu0 %v2555
      %2559 = vmatprep.subr.bf16.mxu0 0
      %2560 = vmatpush1.bf16.msra.mxu0 0
      %2561 = vmatprep.subr.bf16.mxu0 0
      %2562 = vmatpush1.bf16.msra.mxu0 0
      %2563 = vmatprep.subr.bf16.mxu0 0
      %2564 = vmatpush1.bf16.msra.mxu0 0
      %2565 = vmatprep.subr.bf16.mxu0 0
      %2566 = vmatpush1.bf16.msra.mxu0 0
      %2567 = vmatprep.subr.bf16.mxu0 0
      %2568 = vmatpush1.bf16.msra.mxu0 0
      %2569 = vmatprep.subr.bf16.mxu0 0
      %2570 = vmatpush1.bf16.msra.mxu0 0
      %2571 = vmatprep.subr.bf16.mxu0 0
      %2572 = vmatpush1.bf16.msra.mxu0 0
      %2573 = vmatprep.subr.bf16.mxu0 0
      %2574 = vmatpush1.bf16.msra.mxu0 0
      %2575 = vmatprep.subr.bf16.mxu0 0
      %2576 = vmatpush1.bf16.msra.mxu0 0
      %2577 = vmatprep.subr.bf16.mxu0 0
      %2578 = vmatpush1.bf16.msra.mxu0 0
      %2579 = vmatprep.subr.bf16.mxu0 0
      %2580 = vmatpush1.bf16.msra.mxu0 0
      %2581 = vmatprep.subr.bf16.mxu0 0
      %2582 = vmatpush1.bf16.msra.mxu0 0
      %2583 = vmatprep.subr.bf16.mxu0 0
      %2584 = vmatpush1.bf16.msra.mxu0 0
      %2585 = vmatprep.subr.bf16.mxu0 0
      %2586 = vmatpush1.bf16.msra.mxu0 0
      %2587 = vmatprep.subr.bf16.mxu0 0
      %2588 = vmatpush1.bf16.msra.mxu0 0
      %2589 = vmatprep.mubr.bf16.mxu0 0
      %2590 = vmatmul.mubr.bf16.gmra.mrb[0].mxu0 %v2165
      %v2591 = vpop.f32.mrb[0].mxu0
      %v2592 = vadd.f32 0.0, %v2591
      %v2593 = vpop.f32.mrb[0].mxu0
      %v2594 = vpop.f32.mrb[0].mxu0
      %v2595 = vadd.f32 0.0, %v2594
      %v2596 = vpop.f32.mrb[0].mxu0
      %2597 = vmatprep.mubr.bf16.mxu0 0
      %2598 = vmatmul.mubr.bf16.gmra.mrb[0].mxu0 %v2168
      %v2599 = vpop.f32.mrb[0].mxu0
      %v2600 = vadd.f32 0.0, %v2599
      %v2601 = vpop.f32.mrb[0].mxu0
      %v2602 = vpop.f32.mrb[0].mxu0
      %v2603 = vadd.f32 0.0, %v2602
      %v2604 = vpop.f32.mrb[0].mxu0
      %2605 = vmatprep.mubr.bf16.mxu0 0
      %2606 = vmatmul.mubr.bf16.gmra.mrb[0].mxu0 %v2171
      %v2607 = vpop.f32.mrb[0].mxu0
      %v2608 = vadd.f32 0.0, %v2607
      %v2609 = vpop.f32.mrb[0].mxu0
      %v2610 = vpop.f32.mrb[0].mxu0
      %v2611 = vadd.f32 0.0, %v2610
      %v2612 = vpop.f32.mrb[0].mxu0
      %2613 = vmatprep.mubr.bf16.mxu0 0
      %2614 = vmatmul.mubr.bf16.gmra.mrb[0].mxu0 %v2174
      %v2615 = vpop.f32.mrb[0].mxu0
      %v2616 = vadd.f32 0.0, %v2615
      %v2617 = vpop.f32.mrb[0].mxu0
      %v2618 = vpop.f32.mrb[0].mxu0
      %v2619 = vadd.f32 0.0, %v2618
      %v2620 = vpop.f32.mrb[0].mxu0
      %2621 = vmatprep.mubr.bf16.mxu0 0
      %2622 = vmatmul.mubr.bf16.gmra.mrb[0].mxu0 %v2177
      %v2623 = vpop.f32.mrb[0].mxu0
      %v2624 = vadd.f32 0.0, %v2623
      %v2625 = vpop.f32.mrb[0].mxu0
      %v2626 = vpop.f32.mrb[0].mxu0
      %v2627 = vadd.f32 0.0, %v2626
      %v2628 = vpop.f32.mrb[0].mxu0
      %2629 = vmatprep.mubr.bf16.mxu0 0
      %2630 = vmatmul.mubr.bf16.gmra.mrb[0].mxu0 %v2180
      %v2631 = vpop.f32.mrb[0].mxu0
      %v2632 = vadd.f32 0.0, %v2631
      %v2633 = vpop.f32.mrb[0].mxu0
      %v2634 = vpop.f32.mrb[0].mxu0
      %v2635 = vadd.f32 0.0, %v2634
      %v2636 = vpop.f32.mrb[0].mxu0
      %2637 = vmatprep.mubr.bf16.mxu0 0
      %2638 = vmatmul.mubr.bf16.gmra.mrb[0].mxu0 %v2183
      %v2639 = vpop.f32.mrb[0].mxu0
      %v2640 = vadd.f32 0.0, %v2639
      %v2641 = vpop.f32.mrb[0].mxu0
      %v2642 = vpop.f32.mrb[0].mxu0
      %v2643 = vadd.f32 0.0, %v2642
      %v2644 = vpop.f32.mrb[0].mxu0
      %2645 = vmatprep.mubr.bf16.mxu0 0
      %2646 = vmatmul.mubr.bf16.gmra.mrb[0].mxu0 %v2186
      %v2647 = vpop.f32.mrb[0].mxu0
      %v2648 = vadd.f32 0.0, %v2647
      %v2649 = vpop.f32.mrb[0].mxu0
      %v2650 = vpop.f32.mrb[0].mxu0
      %v2651 = vadd.f32 0.0, %v2650
      %v2652 = vpop.f32.mrb[0].mxu0
      %2653 = vmatprep.mubr.bf16.mxu0 0
      %2654 = vmatmul.mubr.bf16.gmra.mrb[0].mxu0 %v2189
      %v2655 = vpop.f32.mrb[0].mxu0
      %v2656 = vadd.f32 0.0, %v2655
      %v2657 = vpop.f32.mrb[0].mxu0
      %v2658 = vpop.f32.mrb[0].mxu0
      %v2659 = vadd.f32 0.0, %v2658
      %v2660 = vpop.f32.mrb[0].mxu0
      %2661 = vmatprep.mubr.bf16.mxu0 0
      %2662 = vmatmul.mubr.bf16.gmra.mrb[0].mxu0 %v2192
      %v2663 = vpop.f32.mrb[0].mxu0
      %v2664 = vadd.f32 0.0, %v2663
      %v2665 = vpop.f32.mrb[0].mxu0
      %v2666 = vpop.f32.mrb[0].mxu0
      %v2667 = vadd.f32 0.0, %v2666
      %v2668 = vpop.f32.mrb[0].mxu0
      %2669 = vmatprep.mubr.bf16.mxu0 0
      %2670 = vmatmul.mubr.bf16.gmra.mrb[0].mxu0 %v2195
      %v2671 = vpop.f32.mrb[0].mxu0
      %v2672 = vadd.f32 0.0, %v2671
      %v2673 = vpop.f32.mrb[0].mxu0
      %v2674 = vpop.f32.mrb[0].mxu0
      %v2675 = vadd.f32 0.0, %v2674
      %v2676 = vpop.f32.mrb[0].mxu0
      %2677 = vmatprep.mubr.bf16.mxu0 0
      %2678 = vmatmul.mubr.bf16.gmra.mrb[0].mxu0 %v2198
      %v2679 = vpop.f32.mrb[0].mxu0
      %v2680 = vadd.f32 0.0, %v2679
      %v2681 = vpop.f32.mrb[0].mxu0
      %v2682 = vpop.f32.mrb[0].mxu0
      %v2683 = vadd.f32 0.0, %v2682
      %v2684 = vpop.f32.mrb[0].mxu0
      %2685 = vmatprep.mubr.bf16.mxu0 0
      %2686 = vmatmul.mubr.bf16.gmra.mrb[0].mxu0 %v2201
      %v2687 = vpop.f32.mrb[0].mxu0
      %v2688 = vadd.f32 0.0, %v2687
      %v2689 = vpop.f32.mrb[0].mxu0
      %v2690 = vpop.f32.mrb[0].mxu0
      %v2691 = vadd.f32 0.0, %v2690
      %v2692 = vpop.f32.mrb[0].mxu0
      %2693 = vmatprep.mubr.bf16.mxu0 0
      %2694 = vmatmul.mubr.bf16.gmra.mrb[0].mxu0 %v2204
      %v2695 = vpop.f32.mrb[0].mxu0
      %v2696 = vadd.f32 0.0, %v2695
      %v2697 = vpop.f32.mrb[0].mxu0
      %v2698 = vpop.f32.mrb[0].mxu0
      %v2699 = vadd.f32 0.0, %v2698
      %v2700 = vpop.f32.mrb[0].mxu0
      %2701 = vmatprep.mubr.bf16.mxu0 0
      %2702 = vmatmul.mubr.bf16.gmra.mrb[0].mxu0 %v2207
      %v2703 = vpop.f32.mrb[0].mxu0
      %v2704 = vadd.f32 0.0, %v2703
      %v2705 = vpop.f32.mrb[0].mxu0
      %v2706 = vpop.f32.mrb[0].mxu0
      %v2707 = vadd.f32 0.0, %v2706
      %v2708 = vpop.f32.mrb[0].mxu0
      %2709 = vmatprep.mubr.bf16.mxu0 0
      %2710 = vmatmul.mubr.bf16.gmra.mrb[0].mxu0 %v2210
      %v2711 = vpop.f32.mrb[0].mxu0
      %v2712 = vadd.f32 0.0, %v2711
      %v2713 = vpop.f32.mrb[0].mxu0
      %v2714 = vpop.f32.mrb[0].mxu0
      %v2715 = vadd.f32 0.0, %v2714
      %v2716 = vpop.f32.mrb[0].mxu0
      %2717 = vmatprep.mubr.bf16.mxu0 0
      %2718 = vmatmul.mubr.bf16.gmra.mrb[0].mxu0 %v2213
      %v2719 = vpop.f32.mrb[0].mxu0
      %v2720 = vadd.f32 0.0, %v2719
      %v2721 = vpop.f32.mrb[0].mxu0
      %v2722 = vpop.f32.mrb[0].mxu0
      %v2723 = vadd.f32 0.0, %v2722
      %v2724 = vpop.f32.mrb[0].mxu0
      %2725 = vmatprep.mubr.bf16.mxu0 0
      %2726 = vmatmul.mubr.bf16.gmra.mrb[0].mxu0 %v2216
      %v2727 = vpop.f32.mrb[0].mxu0
      %v2728 = vadd.f32 0.0, %v2727
      %v2729 = vpop.f32.mrb[0].mxu0
      %v2730 = vpop.f32.mrb[0].mxu0
      %v2731 = vadd.f32 0.0, %v2730
      %v2732 = vpop.f32.mrb[0].mxu0
      %2733 = vmatprep.mubr.bf16.mxu0 0
      %2734 = vmatmul.mubr.bf16.gmra.mrb[0].mxu0 %v2219
      %v2735 = vpop.f32.mrb[0].mxu0
      %v2736 = vadd.f32 0.0, %v2735
      %v2737 = vpop.f32.mrb[0].mxu0
      %v2738 = vpop.f32.mrb[0].mxu0
      %v2739 = vadd.f32 0.0, %v2738
      %v2740 = vpop.f32.mrb[0].mxu0
      %2741 = vmatprep.mubr.bf16.mxu0 0
      %2742 = vmatmul.mubr.bf16.gmra.mrb[0].mxu0 %v2222
      %v2743 = vpop.f32.mrb[0].mxu0
      %v2744 = vadd.f32 0.0, %v2743
      %v2745 = vpop.f32.mrb[0].mxu0
      %v2746 = vpop.f32.mrb[0].mxu0
      %v2747 = vadd.f32 0.0, %v2746
      %v2748 = vpop.f32.mrb[0].mxu0
      %2749 = vmatprep.mubr.bf16.mxu0 0
      %2750 = vmatmul.mubr.bf16.gmra.mrb[0].mxu0 %v2225
      %v2751 = vpop.f32.mrb[0].mxu0
      %v2752 = vadd.f32 0.0, %v2751
      %v2753 = vpop.f32.mrb[0].mxu0
      %v2754 = vpop.f32.mrb[0].mxu0
      %v2755 = vadd.f32 0.0, %v2754
      %v2756 = vpop.f32.mrb[0].mxu0
      %2757 = vmatprep.mubr.bf16.mxu0 0
      %2758 = vmatmul.mubr.bf16.gmra.mrb[0].mxu0 %v2228
      %v2759 = vpop.f32.mrb[0].mxu0
      %v2760 = vadd.f32 0.0, %v2759
      %v2761 = vpop.f32.mrb[0].mxu0
      %v2762 = vpop.f32.mrb[0].mxu0
      %v2763 = vadd.f32 0.0, %v2762
      %v2764 = vpop.f32.mrb[0].mxu0
      %2765 = vmatprep.mubr.bf16.mxu0 0
      %2766 = vmatmul.mubr.bf16.gmra.mrb[0].mxu0 %v2231
      %v2767 = vpop.f32.mrb[0].mxu0
      %v2768 = vadd.f32 0.0, %v2767
      %v2769 = vpop.f32.mrb[0].mxu0
      %v2770 = vpop.f32.mrb[0].mxu0
      %v2771 = vadd.f32 0.0, %v2770
      %v2772 = vpop.f32.mrb[0].mxu0
      %2773 = vmatprep.mubr.bf16.mxu0 0
      %2774 = vmatmul.mubr.bf16.gmra.mrb[0].mxu0 %v2234
      %v2775 = vpop.f32.mrb[0].mxu0
      %v2776 = vadd.f32 0.0, %v2775
      %v2777 = vpop.f32.mrb[0].mxu0
      %v2778 = vpop.f32.mrb[0].mxu0
      %v2779 = vadd.f32 0.0, %v2778
      %v2780 = vpop.f32.mrb[0].mxu0
      %2781 = vmatprep.mubr.bf16.mxu0 0
      %2782 = vmatmul.mubr.bf16.gmra.mrb[0].mxu0 %v2237
      %v2783 = vpop.f32.mrb[0].mxu0
      %v2784 = vadd.f32 0.0, %v2783
      %v2785 = vpop.f32.mrb[0].mxu0
      %v2786 = vpop.f32.mrb[0].mxu0
      %v2787 = vadd.f32 0.0, %v2786
      %v2788 = vpop.f32.mrb[0].mxu0
      %2789 = vmatprep.mubr.bf16.mxu0 0
      %2790 = vmatmul.mubr.bf16.gmra.mrb[0].mxu0 %v2240
      %v2791 = vpop.f32.mrb[0].mxu0
      %v2792 = vadd.f32 0.0, %v2791
      %v2793 = vpop.f32.mrb[0].mxu0
      %v2794 = vpop.f32.mrb[0].mxu0
      %v2795 = vadd.f32 0.0, %v2794
      %v2796 = vpop.f32.mrb[0].mxu0
      %2797 = vmatprep.mubr.bf16.mxu0 0
      %2798 = vmatmul.mubr.bf16.gmra.mrb[0].mxu0 %v2243
      %v2799 = vpop.f32.mrb[0].mxu0
      %v2800 = vadd.f32 0.0, %v2799
      %v2801 = vpop.f32.mrb[0].mxu0
      %v2802 = vpop.f32.mrb[0].mxu0
      %v2803 = vadd.f32 0.0, %v2802
      %v2804 = vpop.f32.mrb[0].mxu0
      %2805 = vmatprep.mubr.bf16.mxu0 0
      %2806 = vmatmul.mubr.bf16.gmra.mrb[0].mxu0 %v2246
      %v2807 = vpop.f32.mrb[0].mxu0
      %v2808 = vadd.f32 0.0, %v2807
      %v2809 = vpop.f32.mrb[0].mxu0
      %v2810 = vpop.f32.mrb[0].mxu0
      %v2811 = vadd.f32 0.0, %v2810
      %v2812 = vpop.f32.mrb[0].mxu0
      %2813 = vmatprep.mubr.bf16.mxu0 0
      %2814 = vmatmul.mubr.bf16.gmra.mrb[0].mxu0 %v2249
      %v2815 = vpop.f32.mrb[0].mxu0
      %v2816 = vadd.f32 0.0, %v2815
      %v2817 = vpop.f32.mrb[0].mxu0
      %v2818 = vpop.f32.mrb[0].mxu0
      %v2819 = vadd.f32 0.0, %v2818
      %v2820 = vpop.f32.mrb[0].mxu0
      %2821 = vmatprep.mubr.bf16.mxu0 0
      %2822 = vmatmul.mubr.bf16.gmra.mrb[0].mxu0 %v2252
      %v2823 = vpop.f32.mrb[0].mxu0
      %v2824 = vadd.f32 0.0, %v2823
      %v2825 = vpop.f32.mrb[0].mxu0
      %v2826 = vpop.f32.mrb[0].mxu0
      %v2827 = vadd.f32 0.0, %v2826
      %v2828 = vpop.f32.mrb[0].mxu0
      %2829 = vmatprep.mubr.bf16.mxu0 0
      %2830 = vmatmul.mubr.bf16.gmra.mrb[0].mxu0 %v2255
      %v2831 = vpop.f32.mrb[0].mxu0
      %v2832 = vadd.f32 0.0, %v2831
      %v2833 = vpop.f32.mrb[0].mxu0
      %v2834 = vpop.f32.mrb[0].mxu0
      %v2835 = vadd.f32 0.0, %v2834
      %v2836 = vpop.f32.mrb[0].mxu0
      %2837 = vmatprep.mubr.bf16.mxu0 0
      %2838 = vmatmul.mubr.bf16.gmra.mrb[0].mxu0 %v2258
      %v2839 = vpop.f32.mrb[0].mxu0
      %v2840 = vadd.f32 0.0, %v2839
      %v2841 = vpop.f32.mrb[0].mxu0
      %v2842 = vpop.f32.mrb[0].mxu0
      %v2843 = vadd.f32 0.0, %v2842
      %v2844 = vpop.f32.mrb[0].mxu0
      %2845 = vdwg.mxu0
      %s2846 = scalar_lea.vmem %s1, 10
      %v2847 = vld [vmem:[%s2846] sm:$0x3]
      %v2849 = vand.u32 %v2847, %v605
      %2851 = vmatprep.subr.bf16.mxu0 0
      %2852 = vmatpush1.bf16.msra.mxu0 %v2849
      %2853 = vmatprep.subr.bf16.mxu0 0
      %2854 = vmatpush1.bf16.msra.mxu0 0
      %2855 = vmatprep.subr.bf16.mxu0 0
      %2856 = vmatpush1.bf16.msra.mxu0 0
      %2857 = vmatprep.subr.bf16.mxu0 0
      %2858 = vmatpush1.bf16.msra.mxu0 0
      %2859 = vmatprep.subr.bf16.mxu0 0
      %2860 = vmatpush1.bf16.msra.mxu0 0
      %2861 = vmatprep.subr.bf16.mxu0 0
      %2862 = vmatpush1.bf16.msra.mxu0 0
      %2863 = vmatprep.subr.bf16.mxu0 0
      %2864 = vmatpush1.bf16.msra.mxu0 0
      %2865 = vmatprep.subr.bf16.mxu0 0
      %2866 = vmatpush1.bf16.msra.mxu0 0
      %2867 = vmatprep.subr.bf16.mxu0 0
      %2868 = vmatpush1.bf16.msra.mxu0 0
      %2869 = vmatprep.subr.bf16.mxu0 0
      %2870 = vmatpush1.bf16.msra.mxu0 0
      %2871 = vmatprep.subr.bf16.mxu0 0
      %2872 = vmatpush1.bf16.msra.mxu0 0
      %2873 = vmatprep.subr.bf16.mxu0 0
      %2874 = vmatpush1.bf16.msra.mxu0 0
      %2875 = vmatprep.subr.bf16.mxu0 0
      %2876 = vmatpush1.bf16.msra.mxu0 0
      %2877 = vmatprep.subr.bf16.mxu0 0
      %2878 = vmatpush1.bf16.msra.mxu0 0
      %2879 = vmatprep.subr.bf16.mxu0 0
      %2880 = vmatpush1.bf16.msra.mxu0 0
      %2881 = vmatprep.subr.bf16.mxu0 0
      %2882 = vmatpush1.bf16.msra.mxu0 0
      %2883 = vmatprep.mubr.bf16.mxu0 0
      %2884 = vmatmul.mubr.bf16.gmra.mrb[0].mxu0 %v2165
      %v2885 = vpop.f32.mrb[0].mxu0
      %v2886 = vadd.f32 0.0, %v2885
      %v2887 = vpop.f32.mrb[0].mxu0
      %v2888 = vpop.f32.mrb[0].mxu0
      %v2889 = vadd.f32 0.0, %v2888
      %v2890 = vpop.f32.mrb[0].mxu0
      %2891 = vmatprep.mubr.bf16.mxu0 0
      %2892 = vmatmul.mubr.bf16.gmra.mrb[0].mxu0 %v2168
      %v2893 = vpop.f32.mrb[0].mxu0
      %v2894 = vadd.f32 0.0, %v2893
      %v2895 = vpop.f32.mrb[0].mxu0
      %v2896 = vpop.f32.mrb[0].mxu0
      %v2897 = vadd.f32 0.0, %v2896
      %v2898 = vpop.f32.mrb[0].mxu0
      %2899 = vmatprep.mubr.bf16.mxu0 0
      %2900 = vmatmul.mubr.bf16.gmra.mrb[0].mxu0 %v2171
      %v2901 = vpop.f32.mrb[0].mxu0
      %v2902 = vadd.f32 0.0, %v2901
      %v2903 = vpop.f32.mrb[0].mxu0
      %v2904 = vpop.f32.mrb[0].mxu0
      %v2905 = vadd.f32 0.0, %v2904
      %v2906 = vpop.f32.mrb[0].mxu0
      %2907 = vmatprep.mubr.bf16.mxu0 0
      %2908 = vmatmul.mubr.bf16.gmra.mrb[0].mxu0 %v2174
      %v2909 = vpop.f32.mrb[0].mxu0
      %v2910 = vadd.f32 0.0, %v2909
      %v2911 = vpop.f32.mrb[0].mxu0
      %v2912 = vpop.f32.mrb[0].mxu0
      %v2913 = vadd.f32 0.0, %v2912
      %v2914 = vpop.f32.mrb[0].mxu0
      %2915 = vmatprep.mubr.bf16.mxu0 0
      %2916 = vmatmul.mubr.bf16.gmra.mrb[0].mxu0 %v2177
      %v2917 = vpop.f32.mrb[0].mxu0
      %v2918 = vadd.f32 0.0, %v2917
      %v2919 = vpop.f32.mrb[0].mxu0
      %v2920 = vpop.f32.mrb[0].mxu0
      %v2921 = vadd.f32 0.0, %v2920
      %v2922 = vpop.f32.mrb[0].mxu0
      %2923 = vmatprep.mubr.bf16.mxu0 0
      %2924 = vmatmul.mubr.bf16.gmra.mrb[0].mxu0 %v2180
      %v2925 = vpop.f32.mrb[0].mxu0
      %v2926 = vadd.f32 0.0, %v2925
      %v2927 = vpop.f32.mrb[0].mxu0
      %v2928 = vpop.f32.mrb[0].mxu0
      %v2929 = vadd.f32 0.0, %v2928
      %v2930 = vpop.f32.mrb[0].mxu0
      %2931 = vmatprep.mubr.bf16.mxu0 0
      %2932 = vmatmul.mubr.bf16.gmra.mrb[0].mxu0 %v2183
      %v2933 = vpop.f32.mrb[0].mxu0
      %v2934 = vadd.f32 0.0, %v2933
      %v2935 = vpop.f32.mrb[0].mxu0
      %v2936 = vpop.f32.mrb[0].mxu0
      %v2937 = vadd.f32 0.0, %v2936
      %v2938 = vpop.f32.mrb[0].mxu0
      %2939 = vmatprep.mubr.bf16.mxu0 0
      %2940 = vmatmul.mubr.bf16.gmra.mrb[0].mxu0 %v2186
      %v2941 = vpop.f32.mrb[0].mxu0
      %v2942 = vadd.f32 0.0, %v2941
      %v2943 = vpop.f32.mrb[0].mxu0
      %v2944 = vpop.f32.mrb[0].mxu0
      %v2945 = vadd.f32 0.0, %v2944
      %v2946 = vpop.f32.mrb[0].mxu0
      %2947 = vmatprep.mubr.bf16.mxu0 0
      %2948 = vmatmul.mubr.bf16.gmra.mrb[0].mxu0 %v2189
      %v2949 = vpop.f32.mrb[0].mxu0
      %v2950 = vadd.f32 0.0, %v2949
      %v2951 = vpop.f32.mrb[0].mxu0
      %v2952 = vpop.f32.mrb[0].mxu0
      %v2953 = vadd.f32 0.0, %v2952
      %v2954 = vpop.f32.mrb[0].mxu0
      %2955 = vmatprep.mubr.bf16.mxu0 0
      %2956 = vmatmul.mubr.bf16.gmra.mrb[0].mxu0 %v2192
      %v2957 = vpop.f32.mrb[0].mxu0
      %v2958 = vadd.f32 0.0, %v2957
      %v2959 = vpop.f32.mrb[0].mxu0
      %v2960 = vpop.f32.mrb[0].mxu0
      %v2961 = vadd.f32 0.0, %v2960
      %v2962 = vpop.f32.mrb[0].mxu0
      %2963 = vmatprep.mubr.bf16.mxu0 0
      %2964 = vmatmul.mubr.bf16.gmra.mrb[0].mxu0 %v2195
      %v2965 = vpop.f32.mrb[0].mxu0
      %v2966 = vadd.f32 0.0, %v2965
      %v2967 = vpop.f32.mrb[0].mxu0
      %v2968 = vpop.f32.mrb[0].mxu0
      %v2969 = vadd.f32 0.0, %v2968
      %v2970 = vpop.f32.mrb[0].mxu0
      %2971 = vmatprep.mubr.bf16.mxu0 0
      %2972 = vmatmul.mubr.bf16.gmra.mrb[0].mxu0 %v2198
      %v2973 = vpop.f32.mrb[0].mxu0
      %v2974 = vadd.f32 0.0, %v2973
      %v2975 = vpop.f32.mrb[0].mxu0
      %v2976 = vpop.f32.mrb[0].mxu0
      %v2977 = vadd.f32 0.0, %v2976
      %v2978 = vpop.f32.mrb[0].mxu0
      %2979 = vmatprep.mubr.bf16.mxu0 0
      %2980 = vmatmul.mubr.bf16.gmra.mrb[0].mxu0 %v2201
      %v2981 = vpop.f32.mrb[0].mxu0
      %v2982 = vadd.f32 0.0, %v2981
      %v2983 = vpop.f32.mrb[0].mxu0
      %v2984 = vpop.f32.mrb[0].mxu0
      %v2985 = vadd.f32 0.0, %v2984
      %v2986 = vpop.f32.mrb[0].mxu0
      %2987 = vmatprep.mubr.bf16.mxu0 0
      %2988 = vmatmul.mubr.bf16.gmra.mrb[0].mxu0 %v2204
      %v2989 = vpop.f32.mrb[0].mxu0
      %v2990 = vadd.f32 0.0, %v2989
      %v2991 = vpop.f32.mrb[0].mxu0
      %v2992 = vpop.f32.mrb[0].mxu0
      %v2993 = vadd.f32 0.0, %v2992
      %v2994 = vpop.f32.mrb[0].mxu0
      %2995 = vmatprep.mubr.bf16.mxu0 0
      %2996 = vmatmul.mubr.bf16.gmra.mrb[0].mxu0 %v2207
      %v2997 = vpop.f32.mrb[0].mxu0
      %v2998 = vadd.f32 0.0, %v2997
      %v2999 = vpop.f32.mrb[0].mxu0
      %v3000 = vpop.f32.mrb[0].mxu0
      %v3001 = vadd.f32 0.0, %v3000
      %v3002 = vpop.f32.mrb[0].mxu0
      %3003 = vmatprep.mubr.bf16.mxu0 0
      %3004 = vmatmul.mubr.bf16.gmra.mrb[0].mxu0 %v2210
      %v3005 = vpop.f32.mrb[0].mxu0
      %v3006 = vadd.f32 0.0, %v3005
      %v3007 = vpop.f32.mrb[0].mxu0
      %v3008 = vpop.f32.mrb[0].mxu0
      %v3009 = vadd.f32 0.0, %v3008
      %v3010 = vpop.f32.mrb[0].mxu0
      %3011 = vmatprep.mubr.bf16.mxu0 0
      %3012 = vmatmul.mubr.bf16.gmra.mrb[0].mxu0 %v2213
      %v3013 = vpop.f32.mrb[0].mxu0
      %v3014 = vadd.f32 0.0, %v3013
      %v3015 = vpop.f32.mrb[0].mxu0
      %v3016 = vpop.f32.mrb[0].mxu0
      %v3017 = vadd.f32 0.0, %v3016
      %v3018 = vpop.f32.mrb[0].mxu0
      %3019 = vmatprep.mubr.bf16.mxu0 0
      %3020 = vmatmul.mubr.bf16.gmra.mrb[0].mxu0 %v2216
      %v3021 = vpop.f32.mrb[0].mxu0
      %v3022 = vadd.f32 0.0, %v3021
      %v3023 = vpop.f32.mrb[0].mxu0
      %v3024 = vpop.f32.mrb[0].mxu0
      %v3025 = vadd.f32 0.0, %v3024
      %v3026 = vpop.f32.mrb[0].mxu0
      %3027 = vmatprep.mubr.bf16.mxu0 0
      %3028 = vmatmul.mubr.bf16.gmra.mrb[0].mxu0 %v2219
      %v3029 = vpop.f32.mrb[0].mxu0
      %v3030 = vadd.f32 0.0, %v3029
      %v3031 = vpop.f32.mrb[0].mxu0
      %v3032 = vpop.f32.mrb[0].mxu0
      %v3033 = vadd.f32 0.0, %v3032
      %v3034 = vpop.f32.mrb[0].mxu0
      %3035 = vmatprep.mubr.bf16.mxu0 0
      %3036 = vmatmul.mubr.bf16.gmra.mrb[0].mxu0 %v2222
      %v3037 = vpop.f32.mrb[0].mxu0
      %v3038 = vadd.f32 0.0, %v3037
      %v3039 = vpop.f32.mrb[0].mxu0
      %v3040 = vpop.f32.mrb[0].mxu0
      %v3041 = vadd.f32 0.0, %v3040
      %v3042 = vpop.f32.mrb[0].mxu0
      %3043 = vmatprep.mubr.bf16.mxu0 0
      %3044 = vmatmul.mubr.bf16.gmra.mrb[0].mxu0 %v2225
      %v3045 = vpop.f32.mrb[0].mxu0
      %v3046 = vadd.f32 0.0, %v3045
      %v3047 = vpop.f32.mrb[0].mxu0
      %v3048 = vpop.f32.mrb[0].mxu0
      %v3049 = vadd.f32 0.0, %v3048
      %v3050 = vpop.f32.mrb[0].mxu0
      %3051 = vmatprep.mubr.bf16.mxu0 0
      %3052 = vmatmul.mubr.bf16.gmra.mrb[0].mxu0 %v2228
      %v3053 = vpop.f32.mrb[0].mxu0
      %v3054 = vadd.f32 0.0, %v3053
      %v3055 = vpop.f32.mrb[0].mxu0
      %v3056 = vpop.f32.mrb[0].mxu0
      %v3057 = vadd.f32 0.0, %v3056
      %v3058 = vpop.f32.mrb[0].mxu0
      %3059 = vmatprep.mubr.bf16.mxu0 0
      %3060 = vmatmul.mubr.bf16.gmra.mrb[0].mxu0 %v2231
      %v3061 = vpop.f32.mrb[0].mxu0
      %v3062 = vadd.f32 0.0, %v3061
      %v3063 = vpop.f32.mrb[0].mxu0
      %v3064 = vpop.f32.mrb[0].mxu0
      %v3065 = vadd.f32 0.0, %v3064
      %v3066 = vpop.f32.mrb[0].mxu0
      %3067 = vmatprep.mubr.bf16.mxu0 0
      %3068 = vmatmul.mubr.bf16.gmra.mrb[0].mxu0 %v2234
      %v3069 = vpop.f32.mrb[0].mxu0
      %v3070 = vadd.f32 0.0, %v3069
      %v3071 = vpop.f32.mrb[0].mxu0
      %v3072 = vpop.f32.mrb[0].mxu0
      %v3073 = vadd.f32 0.0, %v3072
      %v3074 = vpop.f32.mrb[0].mxu0
      %3075 = vmatprep.mubr.bf16.mxu0 0
      %3076 = vmatmul.mubr.bf16.gmra.mrb[0].mxu0 %v2237
      %v3077 = vpop.f32.mrb[0].mxu0
      %v3078 = vadd.f32 0.0, %v3077
      %v3079 = vpop.f32.mrb[0].mxu0
      %v3080 = vpop.f32.mrb[0].mxu0
      %v3081 = vadd.f32 0.0, %v3080
      %v3082 = vpop.f32.mrb[0].mxu0
      %3083 = vmatprep.mubr.bf16.mxu0 0
      %3084 = vmatmul.mubr.bf16.gmra.mrb[0].mxu0 %v2240
      %v3085 = vpop.f32.mrb[0].mxu0
      %v3086 = vadd.f32 0.0, %v3085
      %v3087 = vpop.f32.mrb[0].mxu0
      %v3088 = vpop.f32.mrb[0].mxu0
      %v3089 = vadd.f32 0.0, %v3088
      %v3090 = vpop.f32.mrb[0].mxu0
      %3091 = vmatprep.mubr.bf16.mxu0 0
      %3092 = vmatmul.mubr.bf16.gmra.mrb[0].mxu0 %v2243
      %v3093 = vpop.f32.mrb[0].mxu0
      %v3094 = vadd.f32 0.0, %v3093
      %v3095 = vpop.f32.mrb[0].mxu0
      %v3096 = vpop.f32.mrb[0].mxu0
      %v3097 = vadd.f32 0.0, %v3096
      %v3098 = vpop.f32.mrb[0].mxu0
      %3099 = vmatprep.mubr.bf16.mxu0 0
      %3100 = vmatmul.mubr.bf16.gmra.mrb[0].mxu0 %v2246
      %v3101 = vpop.f32.mrb[0].mxu0
      %v3102 = vadd.f32 0.0, %v3101
      %v3103 = vpop.f32.mrb[0].mxu0
      %v3104 = vpop.f32.mrb[0].mxu0
      %v3105 = vadd.f32 0.0, %v3104
      %v3106 = vpop.f32.mrb[0].mxu0
      %3107 = vmatprep.mubr.bf16.mxu0 0
      %3108 = vmatmul.mubr.bf16.gmra.mrb[0].mxu0 %v2249
      %v3109 = vpop.f32.mrb[0].mxu0
      %v3110 = vadd.f32 0.0, %v3109
      %v3111 = vpop.f32.mrb[0].mxu0
      %v3112 = vpop.f32.mrb[0].mxu0
      %v3113 = vadd.f32 0.0, %v3112
      %v3114 = vpop.f32.mrb[0].mxu0
      %3115 = vmatprep.mubr.bf16.mxu0 0
      %3116 = vmatmul.mubr.bf16.gmra.mrb[0].mxu0 %v2252
      %v3117 = vpop.f32.mrb[0].mxu0
      %v3118 = vadd.f32 0.0, %v3117
      %v3119 = vpop.f32.mrb[0].mxu0
      %v3120 = vpop.f32.mrb[0].mxu0
      %v3121 = vadd.f32 0.0, %v3120
      %v3122 = vpop.f32.mrb[0].mxu0
      %3123 = vmatprep.mubr.bf16.mxu0 0
      %3124 = vmatmul.mubr.bf16.gmra.mrb[0].mxu0 %v2255
      %v3125 = vpop.f32.mrb[0].mxu0
      %v3126 = vadd.f32 0.0, %v3125
      %v3127 = vpop.f32.mrb[0].mxu0
      %v3128 = vpop.f32.mrb[0].mxu0
      %v3129 = vadd.f32 0.0, %v3128
      %v3130 = vpop.f32.mrb[0].mxu0
      %3131 = vmatprep.mubr.bf16.mxu0 0
      %3132 = vmatmul.mubr.bf16.gmra.mrb[0].mxu0 %v2258
      %v3133 = vpop.f32.mrb[0].mxu0
      %v3134 = vadd.f32 0.0, %v3133
      %v3135 = vpop.f32.mrb[0].mxu0
      %v3136 = vpop.f32.mrb[0].mxu0
      %v3137 = vadd.f32 0.0, %v3136
      %v3138 = vpop.f32.mrb[0].mxu0
      %3139 = vdwg.mxu0
      %v3140 = vrot.slane %v2298, 7
      %v3141 = vrot.slane %v2301, 7
      %v3142 = vrot.slane %v2306, 7
      %v3143 = vrot.slane %v2309, 7
      %v3144 = vrot.slane %v2314, 7
      %v3145 = vrot.slane %v2317, 7
      %v3146 = vrot.slane %v2322, 7
      %v3147 = vrot.slane %v2325, 7
      %v3148 = vrot.slane %v2330, 7
      %v3149 = vrot.slane %v2333, 7
      %v3150 = vrot.slane %v2338, 7
      %v3151 = vrot.slane %v2341, 7
      %v3152 = vrot.slane %v2346, 7
      %v3153 = vrot.slane %v2349, 7
      %v3154 = vrot.slane %v2354, 7
      %v3155 = vrot.slane %v2357, 7
      %v3156 = vrot.slane %v2362, 7
      %v3157 = vrot.slane %v2365, 7
      %v3158 = vrot.slane %v2370, 7
      %v3159 = vrot.slane %v2373, 7
      %v3160 = vrot.slane %v2378, 7
      %v3161 = vrot.slane %v2381, 7
      %v3162 = vrot.slane %v2386, 7
      %v3163 = vrot.slane %v2389, 7
      %v3164 = vrot.slane %v2394, 7
      %v3165 = vrot.slane %v2397, 7
      %v3166 = vrot.slane %v2402, 7
      %v3167 = vrot.slane %v2405, 7
      %v3168 = vrot.slane %v2410, 7
      %v3169 = vrot.slane %v2413, 7
      %v3170 = vrot.slane %v2418, 7
      %v3171 = vrot.slane %v2421, 7
      %v3172 = vrot.slane %v2426, 7
      %v3173 = vrot.slane %v2429, 7
      %v3174 = vrot.slane %v2434, 7
      %v3175 = vrot.slane %v2437, 7
      %v3176 = vrot.slane %v2442, 7
      %v3177 = vrot.slane %v2445, 7
      %v3178 = vrot.slane %v2450, 7
      %v3179 = vrot.slane %v2453, 7
      %v3180 = vrot.slane %v2458, 7
      %v3181 = vrot.slane %v2461, 7
      %v3182 = vrot.slane %v2466, 7
      %v3183 = vrot.slane %v2469, 7
      %v3184 = vrot.slane %v2474, 7
      %v3185 = vrot.slane %v2477, 7
      %v3186 = vrot.slane %v2482, 7
      %v3187 = vrot.slane %v2485, 7
      %v3188 = vrot.slane %v2490, 7
      %v3189 = vrot.slane %v2493, 7
      %v3190 = vrot.slane %v2498, 7
      %v3191 = vrot.slane %v2501, 7
      %v3192 = vrot.slane %v2506, 7
      %v3193 = vrot.slane %v2509, 7
      %v3194 = vrot.slane %v2514, 7
      %v3195 = vrot.slane %v2517, 7
      %v3196 = vrot.slane %v2522, 7
      %v3197 = vrot.slane %v2525, 7
      %v3198 = vrot.slane %v2530, 7
      %v3199 = vrot.slane %v2533, 7
      %v3200 = vrot.slane %v2538, 7
      %v3201 = vrot.slane %v2541, 7
      %v3202 = vrot.slane %v2546, 7
      %v3203 = vrot.slane %v2549, 7
      %v3204 = vsel %vm1552, %v3202, %v3203
      %v3205 = vsel %vm1552, %v3201, %v3202
      %v3206 = vsel %vm1552, %v3200, %v3201
      %v3207 = vsel %vm1552, %v3199, %v3200
      %v3208 = vsel %vm1552, %v3198, %v3199
      %v3209 = vsel %vm1552, %v3197, %v3198
      %v3210 = vsel %vm1552, %v3196, %v3197
      %v3211 = vsel %vm1552, %v3195, %v3196
      %v3212 = vsel %vm1552, %v3194, %v3195
      %v3213 = vsel %vm1552, %v3193, %v3194
      %v3214 = vsel %vm1552, %v3192, %v3193
      %v3215 = vsel %vm1552, %v3191, %v3192
      %v3216 = vsel %vm1552, %v3190, %v3191
      %v3217 = vsel %vm1552, %v3189, %v3190
      %v3218 = vsel %vm1552, %v3188, %v3189
      %v3219 = vsel %vm1552, %v3187, %v3188
      %v3220 = vsel %vm1552, %v3186, %v3187
      %v3221 = vsel %vm1552, %v3185, %v3186
      %v3222 = vsel %vm1552, %v3184, %v3185
      %v3223 = vsel %vm1552, %v3183, %v3184
      %v3224 = vsel %vm1552, %v3182, %v3183
      %v3225 = vsel %vm1552, %v3181, %v3182
      %v3226 = vsel %vm1552, %v3180, %v3181
      %v3227 = vsel %vm1552, %v3179, %v3180
      %v3228 = vsel %vm1552, %v3178, %v3179
      %v3229 = vsel %vm1552, %v3177, %v3178
      %v3230 = vsel %vm1552, %v3176, %v3177
      %v3231 = vsel %vm1552, %v3175, %v3176
      %v3232 = vsel %vm1552, %v3174, %v3175
      %v3233 = vsel %vm1552, %v3173, %v3174
      %v3234 = vsel %vm1552, %v3172, %v3173
      %v3235 = vsel %vm1552, %v3171, %v3172
      %v3236 = vsel %vm1552, %v3170, %v3171
      %v3237 = vsel %vm1552, %v3169, %v3170
      %v3238 = vsel %vm1552, %v3168, %v3169
      %v3239 = vsel %vm1552, %v3167, %v3168
      %v3240 = vsel %vm1552, %v3166, %v3167
      %v3241 = vsel %vm1552, %v3165, %v3166
      %v3242 = vsel %vm1552, %v3164, %v3165
      %v3243 = vsel %vm1552, %v3163, %v3164
      %v3244 = vsel %vm1552, %v3162, %v3163
      %v3245 = vsel %vm1552, %v3161, %v3162
      %v3246 = vsel %vm1552, %v3160, %v3161
      %v3247 = vsel %vm1552, %v3159, %v3160
      %v3248 = vsel %vm1552, %v3158, %v3159
      %v3249 = vsel %vm1552, %v3157, %v3158
      %v3250 = vsel %vm1552, %v3156, %v3157
      %v3251 = vsel %vm1552, %v3155, %v3156
      %v3252 = vsel %vm1552, %v3154, %v3155
      %v3253 = vsel %vm1552, %v3153, %v3154
      %v3254 = vsel %vm1552, %v3152, %v3153
      %v3255 = vsel %vm1552, %v3151, %v3152
      %v3256 = vsel %vm1552, %v3150, %v3151
      %v3257 = vsel %vm1552, %v3149, %v3150
      %v3258 = vsel %vm1552, %v3148, %v3149
      %v3259 = vsel %vm1552, %v3147, %v3148
      %v3260 = vsel %vm1552, %v3146, %v3147
      %v3261 = vsel %vm1552, %v3145, %v3146
      %v3262 = vsel %vm1552, %v3144, %v3145
      %v3263 = vsel %vm1552, %v3143, %v3144
      %v3264 = vsel %vm1552, %v3142, %v3143
      %v3265 = vsel %vm1552, %v3141, %v3142
      %v3266 = vsel %vm1552, %v3140, %v3141
      %v3267 = vsel %vm1552, %v3203, %v3140
      %v3268 = vadd.f32 %v1874, %v3267
      %v3269 = vadd.f32 %v1875, %v3266
      %v3270 = vadd.f32 %v1876, %v3265
      %v3271 = vadd.f32 %v1877, %v3264
      %v3272 = vadd.f32 %v1878, %v3263
      %v3273 = vadd.f32 %v1879, %v3262
      %v3274 = vadd.f32 %v1880, %v3261
      %v3275 = vadd.f32 %v1881, %v3260
      %v3276 = vadd.f32 %v1882, %v3259
      %v3277 = vadd.f32 %v1883, %v3258
      %v3278 = vadd.f32 %v1884, %v3257
      %v3279 = vadd.f32 %v1885, %v3256
      %v3280 = vadd.f32 %v1886, %v3255
      %v3281 = vadd.f32 %v1887, %v3254
      %v3282 = vadd.f32 %v1888, %v3253
      %v3283 = vadd.f32 %v1889, %v3252
      %v3284 = vadd.f32 %v1890, %v3251
      %v3285 = vadd.f32 %v1891, %v3250
      %v3286 = vadd.f32 %v1892, %v3249
      %v3287 = vadd.f32 %v1893, %v3248
      %v3288 = vadd.f32 %v1894, %v3247
      %v3289 = vadd.f32 %v1895, %v3246
      %v3290 = vadd.f32 %v1896, %v3245
      %v3291 = vadd.f32 %v1897, %v3244
      %v3292 = vadd.f32 %v1898, %v3243
      %v3293 = vadd.f32 %v1899, %v3242
      %v3294 = vadd.f32 %v1900, %v3241
      %v3295 = vadd.f32 %v1901, %v3240
      %v3296 = vadd.f32 %v1902, %v3239
      %v3297 = vadd.f32 %v1903, %v3238
      %v3298 = vadd.f32 %v1904, %v3237
      %v3299 = vadd.f32 %v1905, %v3236
      %v3300 = vadd.f32 %v1906, %v3235
      %v3301 = vadd.f32 %v1907, %v3234
      %v3302 = vadd.f32 %v1908, %v3233
      %v3303 = vadd.f32 %v1909, %v3232
      %v3304 = vadd.f32 %v1910, %v3231
      %v3305 = vadd.f32 %v1911, %v3230
      %v3306 = vadd.f32 %v1912, %v3229
      %v3307 = vadd.f32 %v1913, %v3228
      %v3308 = vadd.f32 %v1914, %v3227
      %v3309 = vadd.f32 %v1915, %v3226
      %v3310 = vadd.f32 %v1916, %v3225
      %v3311 = vadd.f32 %v1917, %v3224
      %v3312 = vadd.f32 %v1918, %v3223
      %v3313 = vadd.f32 %v1919, %v3222
      %v3314 = vadd.f32 %v1920, %v3221
      %v3315 = vadd.f32 %v1921, %v3220
      %v3316 = vadd.f32 %v1922, %v3219
      %v3317 = vadd.f32 %v1923, %v3218
      %v3318 = vadd.f32 %v1924, %v3217
      %v3319 = vadd.f32 %v1925, %v3216
      %v3320 = vadd.f32 %v1926, %v3215
      %v3321 = vadd.f32 %v1927, %v3214
      %v3322 = vadd.f32 %v1928, %v3213
      %v3323 = vadd.f32 %v1929, %v3212
      %v3324 = vadd.f32 %v1930, %v3211
      %v3325 = vadd.f32 %v1931, %v3210
      %v3326 = vadd.f32 %v1932, %v3209
      %v3327 = vadd.f32 %v1933, %v3208
      %v3328 = vadd.f32 %v1934, %v3207
      %v3329 = vadd.f32 %v1935, %v3206
      %v3330 = vadd.f32 %v1936, %v3205
      %v3331 = vadd.f32 %v1937, %v3204
      %v3332 = vadd.f32 %v3268, %v2592
      %v3333 = vadd.f32 %v3269, %v2595
      %v3334 = vadd.f32 %v3270, %v2600
      %v3335 = vadd.f32 %v3271, %v2603
      %v3336 = vadd.f32 %v3272, %v2608
      %v3337 = vadd.f32 %v3273, %v2611
      %v3338 = vadd.f32 %v3274, %v2616
      %v3339 = vadd.f32 %v3275, %v2619
      %v3340 = vadd.f32 %v3276, %v2624
      %v3341 = vadd.f32 %v3277, %v2627
      %v3342 = vadd.f32 %v3278, %v2632
      %v3343 = vadd.f32 %v3279, %v2635
      %v3344 = vadd.f32 %v3280, %v2640
      %v3345 = vadd.f32 %v3281, %v2643
      %v3346 = vadd.f32 %v3282, %v2648
      %v3347 = vadd.f32 %v3283, %v2651
      %v3348 = vadd.f32 %v3284, %v2656
      %v3349 = vadd.f32 %v3285, %v2659
      %v3350 = vadd.f32 %v3286, %v2664
      %v3351 = vadd.f32 %v3287, %v2667
      %v3352 = vadd.f32 %v3288, %v2672
      %v3353 = vadd.f32 %v3289, %v2675
      %v3354 = vadd.f32 %v3290, %v2680
      %v3355 = vadd.f32 %v3291, %v2683
      %v3356 = vadd.f32 %v3292, %v2688
      %v3357 = vadd.f32 %v3293, %v2691
      %v3358 = vadd.f32 %v3294, %v2696
      %v3359 = vadd.f32 %v3295, %v2699
      %v3360 = vadd.f32 %v3296, %v2704
      %v3361 = vadd.f32 %v3297, %v2707
      %v3362 = vadd.f32 %v3298, %v2712
      %v3363 = vadd.f32 %v3299, %v2715
      %v3364 = vadd.f32 %v3300, %v2720
      %v3365 = vadd.f32 %v3301, %v2723
      %v3366 = vadd.f32 %v3302, %v2728
      %v3367 = vadd.f32 %v3303, %v2731
      %v3368 = vadd.f32 %v3304, %v2736
      %v3369 = vadd.f32 %v3305, %v2739
      %v3370 = vadd.f32 %v3306, %v2744
      %v3371 = vadd.f32 %v3307, %v2747
      %v3372 = vadd.f32 %v3308, %v2752
      %v3373 = vadd.f32 %v3309, %v2755
      %v3374 = vadd.f32 %v3310, %v2760
      %v3375 = vadd.f32 %v3311, %v2763
      %v3376 = vadd.f32 %v3312, %v2768
      %v3377 = vadd.f32 %v3313, %v2771
      %v3378 = vadd.f32 %v3314, %v2776
      %v3379 = vadd.f32 %v3315, %v2779
      %v3380 = vadd.f32 %v3316, %v2784
      %v3381 = vadd.f32 %v3317, %v2787
      %v3382 = vadd.f32 %v3318, %v2792
      %v3383 = vadd.f32 %v3319, %v2795
      %v3384 = vadd.f32 %v3320, %v2800
      %v3385 = vadd.f32 %v3321, %v2803
      %v3386 = vadd.f32 %v3322, %v2808
      %v3387 = vadd.f32 %v3323, %v2811
      %v3388 = vadd.f32 %v3324, %v2816
      %v3389 = vadd.f32 %v3325, %v2819
      %v3390 = vadd.f32 %v3326, %v2824
      %v3391 = vadd.f32 %v3327, %v2827
      %v3392 = vadd.f32 %v3328, %v2832
      %v3393 = vadd.f32 %v3329, %v2835
      %v3394 = vadd.f32 %v3330, %v2840
      %v3395 = vadd.f32 %v3331, %v2843
      %v3396 = vrot.slane %v2886, 1
      %v3397 = vrot.slane %v2889, 1
      %v3398 = vrot.slane %v2894, 1
      %v3399 = vrot.slane %v2897, 1
      %v3400 = vrot.slane %v2902, 1
      %v3401 = vrot.slane %v2905, 1
      %v3402 = vrot.slane %v2910, 1
      %v3403 = vrot.slane %v2913, 1
      %v3404 = vrot.slane %v2918, 1
      %v3405 = vrot.slane %v2921, 1
      %v3406 = vrot.slane %v2926, 1
      %v3407 = vrot.slane %v2929, 1
      %v3408 = vrot.slane %v2934, 1
      %v3409 = vrot.slane %v2937, 1
      %v3410 = vrot.slane %v2942, 1
      %v3411 = vrot.slane %v2945, 1
      %v3412 = vrot.slane %v2950, 1
      %v3413 = vrot.slane %v2953, 1
      %v3414 = vrot.slane %v2958, 1
      %v3415 = vrot.slane %v2961, 1
      %v3416 = vrot.slane %v2966, 1
      %v3417 = vrot.slane %v2969, 1
      %v3418 = vrot.slane %v2974, 1
      %v3419 = vrot.slane %v2977, 1
      %v3420 = vrot.slane %v2982, 1
      %v3421 = vrot.slane %v2985, 1
      %v3422 = vrot.slane %v2990, 1
      %v3423 = vrot.slane %v2993, 1
      %v3424 = vrot.slane %v2998, 1
      %v3425 = vrot.slane %v3001, 1
      %v3426 = vrot.slane %v3006, 1
      %v3427 = vrot.slane %v3009, 1
      %v3428 = vrot.slane %v3014, 1
      %v3429 = vrot.slane %v3017, 1
      %v3430 = vrot.slane %v3022, 1
      %v3431 = vrot.slane %v3025, 1
      %v3432 = vrot.slane %v3030, 1
      %v3433 = vrot.slane %v3033, 1
      %v3434 = vrot.slane %v3038, 1
      %v3435 = vrot.slane %v3041, 1
      %v3436 = vrot.slane %v3046, 1
      %v3437 = vrot.slane %v3049, 1
      %v3438 = vrot.slane %v3054, 1
      %v3439 = vrot.slane %v3057, 1
      %v3440 = vrot.slane %v3062, 1
      %v3441 = vrot.slane %v3065, 1
      %v3442 = vrot.slane %v3070, 1
      %v3443 = vrot.slane %v3073, 1
      %v3444 = vrot.slane %v3078, 1
      %v3445 = vrot.slane %v3081, 1
      %v3446 = vrot.slane %v3086, 1
      %v3447 = vrot.slane %v3089, 1
      %v3448 = vrot.slane %v3094, 1
      %v3449 = vrot.slane %v3097, 1
      %v3450 = vrot.slane %v3102, 1
      %v3451 = vrot.slane %v3105, 1
      %v3452 = vrot.slane %v3110, 1
      %v3453 = vrot.slane %v3113, 1
      %v3454 = vrot.slane %v3118, 1
      %v3455 = vrot.slane %v3121, 1
      %v3456 = vrot.slane %v3126, 1
      %v3457 = vrot.slane %v3129, 1
      %v3458 = vrot.slane %v3134, 1
      %v3459 = vrot.slane %v3137, 1
      %v3460 = vsel %vm1809, %v3458, %v3459
      %v3461 = vsel %vm1809, %v3457, %v3458
      %v3462 = vsel %vm1809, %v3456, %v3457
      %v3463 = vsel %vm1809, %v3455, %v3456
      %v3464 = vsel %vm1809, %v3454, %v3455
      %v3465 = vsel %vm1809, %v3453, %v3454
      %v3466 = vsel %vm1809, %v3452, %v3453
      %v3467 = vsel %vm1809, %v3451, %v3452
      %v3468 = vsel %vm1809, %v3450, %v3451
      %v3469 = vsel %vm1809, %v3449, %v3450
      %v3470 = vsel %vm1809, %v3448, %v3449
      %v3471 = vsel %vm1809, %v3447, %v3448
      %v3472 = vsel %vm1809, %v3446, %v3447
      %v3473 = vsel %vm1809, %v3445, %v3446
      %v3474 = vsel %vm1809, %v3444, %v3445
      %v3475 = vsel %vm1809, %v3443, %v3444
      %v3476 = vsel %vm1809, %v3442, %v3443
      %v3477 = vsel %vm1809, %v3441, %v3442
      %v3478 = vsel %vm1809, %v3440, %v3441
      %v3479 = vsel %vm1809, %v3439, %v3440
      %v3480 = vsel %vm1809, %v3438, %v3439
      %v3481 = vsel %vm1809, %v3437, %v3438
      %v3482 = vsel %vm1809, %v3436, %v3437
      %v3483 = vsel %vm1809, %v3435, %v3436
      %v3484 = vsel %vm1809, %v3434, %v3435
      %v3485 = vsel %vm1809, %v3433, %v3434
      %v3486 = vsel %vm1809, %v3432, %v3433
      %v3487 = vsel %vm1809, %v3431, %v3432
      %v3488 = vsel %vm1809, %v3430, %v3431
      %v3489 = vsel %vm1809, %v3429, %v3430
      %v3490 = vsel %vm1809, %v3428, %v3429
      %v3491 = vsel %vm1809, %v3427, %v3428
      %v3492 = vsel %vm1809, %v3426, %v3427
      %v3493 = vsel %vm1809, %v3425, %v3426
      %v3494 = vsel %vm1809, %v3424, %v3425
      %v3495 = vsel %vm1809, %v3423, %v3424
      %v3496 = vsel %vm1809, %v3422, %v3423
      %v3497 = vsel %vm1809, %v3421, %v3422
      %v3498 = vsel %vm1809, %v3420, %v3421
      %v3499 = vsel %vm1809, %v3419, %v3420
      %v3500 = vsel %vm1809, %v3418, %v3419
      %v3501 = vsel %vm1809, %v3417, %v3418
      %v3502 = vsel %vm1809, %v3416, %v3417
      %v3503 = vsel %vm1809, %v3415, %v3416
      %v3504 = vsel %vm1809, %v3414, %v3415
      %v3505 = vsel %vm1809, %v3413, %v3414
      %v3506 = vsel %vm1809, %v3412, %v3413
      %v3507 = vsel %vm1809, %v3411, %v3412
      %v3508 = vsel %vm1809, %v3410, %v3411
      %v3509 = vsel %vm1809, %v3409, %v3410
      %v3510 = vsel %vm1809, %v3408, %v3409
      %v3511 = vsel %vm1809, %v3407, %v3408
      %v3512 = vsel %vm1809, %v3406, %v3407
      %v3513 = vsel %vm1809, %v3405, %v3406
      %v3514 = vsel %vm1809, %v3404, %v3405
      %v3515 = vsel %vm1809, %v3403, %v3404
      %v3516 = vsel %vm1809, %v3402, %v3403
      %v3517 = vsel %vm1809, %v3401, %v3402
      %v3518 = vsel %vm1809, %v3400, %v3401
      %v3519 = vsel %vm1809, %v3399, %v3400
      %v3520 = vsel %vm1809, %v3398, %v3399
      %v3521 = vsel %vm1809, %v3397, %v3398
      %v3522 = vsel %vm1809, %v3396, %v3397
      %v3523 = vsel %vm1809, %v3459, %v3396
      %v3524 = vadd.f32 %v3332, %v3522
      %v3525 = vadd.f32 %v3333, %v3521
      %v3526 = vadd.f32 %v3334, %v3520
      %v3527 = vadd.f32 %v3335, %v3519
      %v3528 = vadd.f32 %v3336, %v3518
      %v3529 = vadd.f32 %v3337, %v3517
      %v3530 = vadd.f32 %v3338, %v3516
      %v3531 = vadd.f32 %v3339, %v3515
      %v3532 = vadd.f32 %v3340, %v3514
      %v3533 = vadd.f32 %v3341, %v3513
      %v3534 = vadd.f32 %v3342, %v3512
      %v3535 = vadd.f32 %v3343, %v3511
      %v3536 = vadd.f32 %v3344, %v3510
      %v3537 = vadd.f32 %v3345, %v3509
      %v3538 = vadd.f32 %v3346, %v3508
      %v3539 = vadd.f32 %v3347, %v3507
      %v3540 = vadd.f32 %v3348, %v3506
      %v3541 = vadd.f32 %v3349, %v3505
      %v3542 = vadd.f32 %v3350, %v3504
      %v3543 = vadd.f32 %v3351, %v3503
      %v3544 = vadd.f32 %v3352, %v3502
      %v3545 = vadd.f32 %v3353, %v3501
      %v3546 = vadd.f32 %v3354, %v3500
      %v3547 = vadd.f32 %v3355, %v3499
      %v3548 = vadd.f32 %v3356, %v3498
      %v3549 = vadd.f32 %v3357, %v3497
      %v3550 = vadd.f32 %v3358, %v3496
      %v3551 = vadd.f32 %v3359, %v3495
      %v3552 = vadd.f32 %v3360, %v3494
      %v3553 = vadd.f32 %v3361, %v3493
      %v3554 = vadd.f32 %v3362, %v3492
      %v3555 = vadd.f32 %v3363, %v3491
      %v3556 = vadd.f32 %v3364, %v3490
      %v3557 = vadd.f32 %v3365, %v3489
      %v3558 = vadd.f32 %v3366, %v3488
      %v3559 = vadd.f32 %v3367, %v3487
      %v3560 = vadd.f32 %v3368, %v3486
      %v3561 = vadd.f32 %v3369, %v3485
      %v3562 = vadd.f32 %v3370, %v3484
      %v3563 = vadd.f32 %v3371, %v3483
      %v3564 = vadd.f32 %v3372, %v3482
      %v3565 = vadd.f32 %v3373, %v3481
      %v3566 = vadd.f32 %v3374, %v3480
      %v3567 = vadd.f32 %v3375, %v3479
      %v3568 = vadd.f32 %v3376, %v3478
      %v3569 = vadd.f32 %v3377, %v3477
      %v3570 = vadd.f32 %v3378, %v3476
      %v3571 = vadd.f32 %v3379, %v3475
      %v3572 = vadd.f32 %v3380, %v3474
      %v3573 = vadd.f32 %v3381, %v3473
      %v3574 = vadd.f32 %v3382, %v3472
      %v3575 = vadd.f32 %v3383, %v3471
      %v3576 = vadd.f32 %v3384, %v3470
      %v3577 = vadd.f32 %v3385, %v3469
      %v3578 = vadd.f32 %v3386, %v3468
      %v3579 = vadd.f32 %v3387, %v3467
      %v3580 = vadd.f32 %v3388, %v3466
      %v3581 = vadd.f32 %v3389, %v3465
      %v3582 = vadd.f32 %v3390, %v3464
      %v3583 = vadd.f32 %v3391, %v3463
      %v3584 = vadd.f32 %v3392, %v3462
      %v3585 = vadd.f32 %v3393, %v3461
      %v3586 = vadd.f32 %v3394, %v3460
      %v3587 = vadd.f32 %v3395, %v3523
      %v3588 = vld [vmem:[%s273 + $0x20] sm:$0xf]
      %v3589 = vld [vmem:[%s273 + $0x24] sm:$0xf]
      %v3590 = vld [vmem:[%s273 + $0x28] sm:$0xf]
      %v3591 = vld [vmem:[%s273 + $0x2c] sm:$0xf]
      %v3592 = vld [vmem:[%s273 + $0x30] sm:$0xf]
      %v3593 = vld [vmem:[%s273 + $0x34] sm:$0xf]
      %v3594 = vld [vmem:[%s273 + $0x38] sm:$0xf]
      %v3595 = vld [vmem:[%s273 + $0x3c] sm:$0xf]
      %v3596 = vld [vmem:[%s273 + $0x40] sm:$0xf]
      %v3597 = vld [vmem:[%s273 + $0x44] sm:$0xf]
      %v3598 = vld [vmem:[%s273 + $0x48] sm:$0xf]
      %v3599 = vld [vmem:[%s273 + $0x4c] sm:$0xf]
      %v3600 = vld [vmem:[%s273 + $0x50] sm:$0xf]
      %v3601 = vld [vmem:[%s273 + $0x54] sm:$0xf]
      %v3602 = vld [vmem:[%s273 + $0x58] sm:$0xf]
      %v3603 = vld [vmem:[%s273 + $0x5c] sm:$0xf]
      %v3604 = vld [vmem:[%s273 + $0x60] sm:$0xf]
      %v3605 = vld [vmem:[%s273 + $0x64] sm:$0xf]
      %v3606 = vld [vmem:[%s273 + $0x68] sm:$0xf]
      %v3607 = vld [vmem:[%s273 + $0x6c] sm:$0xf]
      %v3608 = vld [vmem:[%s273 + $0x70] sm:$0xf]
      %v3609 = vld [vmem:[%s273 + $0x74] sm:$0xf]
      %v3610 = vld [vmem:[%s273 + $0x78] sm:$0xf]
      %v3611 = vld [vmem:[%s273 + $0x7c] sm:$0xf]
      %v3612 = vld [vmem:[%s273 + $0x80] sm:$0xf]
      %v3613 = vld [vmem:[%s273 + $0x84] sm:$0xf]
      %v3614 = vld [vmem:[%s273 + $0x88] sm:$0xf]
      %v3615 = vld [vmem:[%s273 + $0x8c] sm:$0xf]
      %v3616 = vld [vmem:[%s273 + $0x90] sm:$0xf]
      %v3617 = vld [vmem:[%s273 + $0x94] sm:$0xf]
      %v3618 = vld [vmem:[%s273 + $0x98] sm:$0xf]
      %v3619 = vld [vmem:[%s273 + $0x9c] sm:$0xf]
      %v3620 = vld [vmem:[%s273 + $0xa0] sm:$0xf]
      %v3621 = vld [vmem:[%s273 + $0xa4] sm:$0xf]
      %v3622 = vld [vmem:[%s273 + $0xa8] sm:$0xf]
      %v3623 = vld [vmem:[%s273 + $0xac] sm:$0xf]
      %v3624 = vld [vmem:[%s273 + $0xb0] sm:$0xf]
      %v3625 = vld [vmem:[%s273 + $0xb4] sm:$0xf]
      %v3626 = vld [vmem:[%s273 + $0xb8] sm:$0xf]
      %v3627 = vld [vmem:[%s273 + $0xbc] sm:$0xf]
      %v3628 = vld [vmem:[%s273 + $0xc0] sm:$0xf]
      %v3629 = vld [vmem:[%s273 + $0xc4] sm:$0xf]
      %v3630 = vld [vmem:[%s273 + $0xc8] sm:$0xf]
      %v3631 = vld [vmem:[%s273 + $0xcc] sm:$0xf]
      %v3632 = vld [vmem:[%s273 + $0xd0] sm:$0xf]
      %v3633 = vld [vmem:[%s273 + $0xd4] sm:$0xf]
      %v3634 = vld [vmem:[%s273 + $0xd8] sm:$0xf]
      %v3635 = vld [vmem:[%s273 + $0xdc] sm:$0xf]
      %v3636 = vld [vmem:[%s273 + $0xe0] sm:$0xf]
      %v3637 = vld [vmem:[%s273 + $0xe4] sm:$0xf]
      %v3638 = vld [vmem:[%s273 + $0xe8] sm:$0xf]
      %v3639 = vld [vmem:[%s273 + $0xec] sm:$0xf]
      %v3640 = vld [vmem:[%s273 + $0xf0] sm:$0xf]
      %v3641 = vld [vmem:[%s273 + $0xf4] sm:$0xf]
      %v3642 = vld [vmem:[%s273 + $0xf8] sm:$0xf]
      %v3643 = vld [vmem:[%s273 + $0xfc] sm:$0xf]
      %v3644 = vld [vmem:[%s273 + $0x100] sm:$0xf]
      %v3645 = vld [vmem:[%s273 + $0x104] sm:$0xf]
      %v3646 = vld [vmem:[%s273 + $0x108] sm:$0xf]
      %v3647 = vld [vmem:[%s273 + $0x10c] sm:$0xf]
      %v3648 = vld [vmem:[%s273 + $0x110] sm:$0xf]
      %v3649 = vld [vmem:[%s273 + $0x114] sm:$0xf]
      %v3650 = vld [vmem:[%s273 + $0x118] sm:$0xf]
      %v3651 = vld [vmem:[%s273 + $0x11c] sm:$0xf]
      %s3652 = scalar_lea.vmem %s1, 12
      %v3653 = vld [vmem:[%s3652] sm:$0x3]
      %v3718 = vunpack.c.l.b16 %v3588
      %v3719 = vunpack.c.l.b16 %v3589
      %v3720 = vunpack.c.l.b16 %v3590
      %v3721 = vunpack.c.l.b16 %v3591
      %v3722 = vunpack.c.l.b16 %v3592
      %v3723 = vunpack.c.l.b16 %v3593
      %v3724 = vunpack.c.l.b16 %v3594
      %v3725 = vunpack.c.l.b16 %v3595
      %v3726 = vunpack.c.l.b16 %v3596
      %v3727 = vunpack.c.l.b16 %v3597
      %v3728 = vunpack.c.l.b16 %v3598
      %v3729 = vunpack.c.l.b16 %v3599
      %v3730 = vunpack.c.l.b16 %v3600
      %v3731 = vunpack.c.l.b16 %v3601
      %v3732 = vunpack.c.l.b16 %v3602
      %v3733 = vunpack.c.l.b16 %v3603
      %v3734 = vunpack.c.l.b16 %v3604
      %v3735 = vunpack.c.l.b16 %v3605
      %v3736 = vunpack.c.l.b16 %v3606
      %v3737 = vunpack.c.l.b16 %v3607
      %v3738 = vunpack.c.l.b16 %v3608
      %v3739 = vunpack.c.l.b16 %v3609
      %v3740 = vunpack.c.l.b16 %v3610
      %v3741 = vunpack.c.l.b16 %v3611
      %v3742 = vunpack.c.l.b16 %v3612
      %v3743 = vunpack.c.l.b16 %v3613
      %v3744 = vunpack.c.l.b16 %v3614
      %v3745 = vunpack.c.l.b16 %v3615
      %v3746 = vunpack.c.l.b16 %v3616
      %v3747 = vunpack.c.l.b16 %v3617
      %v3748 = vunpack.c.l.b16 %v3618
      %v3749 = vunpack.c.l.b16 %v3619
      %v3750 = vunpack.c.l.b16 %v3620
      %v3751 = vunpack.c.l.b16 %v3621
      %v3752 = vunpack.c.l.b16 %v3622
      %v3753 = vunpack.c.l.b16 %v3623
      %v3754 = vunpack.c.l.b16 %v3624
      %v3755 = vunpack.c.l.b16 %v3625
      %v3756 = vunpack.c.l.b16 %v3626
      %v3757 = vunpack.c.l.b16 %v3627
      %v3758 = vunpack.c.l.b16 %v3628
      %v3759 = vunpack.c.l.b16 %v3629
      %v3760 = vunpack.c.l.b16 %v3630
      %v3761 = vunpack.c.l.b16 %v3631
      %v3762 = vunpack.c.l.b16 %v3632
      %v3763 = vunpack.c.l.b16 %v3633
      %v3764 = vunpack.c.l.b16 %v3634
      %v3765 = vunpack.c.l.b16 %v3635
      %v3766 = vunpack.c.l.b16 %v3636
      %v3767 = vunpack.c.l.b16 %v3637
      %v3768 = vunpack.c.l.b16 %v3638
      %v3769 = vunpack.c.l.b16 %v3639
      %v3770 = vunpack.c.l.b16 %v3640
      %v3771 = vunpack.c.l.b16 %v3641
      %v3772 = vunpack.c.l.b16 %v3642
      %v3773 = vunpack.c.l.b16 %v3643
      %v3774 = vunpack.c.l.b16 %v3644
      %v3775 = vunpack.c.l.b16 %v3645
      %v3776 = vunpack.c.l.b16 %v3646
      %v3777 = vunpack.c.l.b16 %v3647
      %v3778 = vunpack.c.l.b16 %v3648
      %v3779 = vunpack.c.l.b16 %v3649
      %v3780 = vunpack.c.l.b16 %v3650
      %v3781 = vunpack.c.l.b16 %v3651
      %v3782 = vpack.c.b16 %v3719, %v3718
      %v3783 = vpack.c.b16 %v3721, %v3720
      %v3784 = vpack.c.b16 %v3723, %v3722
      %v3785 = vpack.c.b16 %v3725, %v3724
      %v3786 = vpack.c.b16 %v3727, %v3726
      %v3787 = vpack.c.b16 %v3729, %v3728
      %v3788 = vpack.c.b16 %v3731, %v3730
      %v3789 = vpack.c.b16 %v3733, %v3732
      %v3790 = vpack.c.b16 %v3735, %v3734
      %v3791 = vpack.c.b16 %v3737, %v3736
      %v3792 = vpack.c.b16 %v3739, %v3738
      %v3793 = vpack.c.b16 %v3741, %v3740
      %v3794 = vpack.c.b16 %v3743, %v3742
      %v3795 = vpack.c.b16 %v3745, %v3744
      %v3796 = vpack.c.b16 %v3747, %v3746
      %v3797 = vpack.c.b16 %v3749, %v3748
      %v3798 = vpack.c.b16 %v3751, %v3750
      %v3799 = vpack.c.b16 %v3753, %v3752
      %v3800 = vpack.c.b16 %v3755, %v3754
      %v3801 = vpack.c.b16 %v3757, %v3756
      %v3802 = vpack.c.b16 %v3759, %v3758
      %v3803 = vpack.c.b16 %v3761, %v3760
      %v3804 = vpack.c.b16 %v3763, %v3762
      %v3805 = vpack.c.b16 %v3765, %v3764
      %v3806 = vpack.c.b16 %v3767, %v3766
      %v3807 = vpack.c.b16 %v3769, %v3768
      %v3808 = vpack.c.b16 %v3771, %v3770
      %v3809 = vpack.c.b16 %v3773, %v3772
      %v3810 = vpack.c.b16 %v3775, %v3774
      %v3811 = vpack.c.b16 %v3777, %v3776
      %v3812 = vpack.c.b16 %v3779, %v3778
      %v3813 = vpack.c.b16 %v3781, %v3780
      %v3815 = vsel %vm505, %v3782, 0
      %v3818 = vsel %vm505, %v3783, 0
      %v3821 = vsel %vm505, %v3784, 0
      %v3824 = vsel %vm505, %v3785, 0
      %v3827 = vsel %vm505, %v3786, 0
      %v3830 = vsel %vm505, %v3787, 0
      %v3833 = vsel %vm505, %v3788, 0
      %v3836 = vsel %vm505, %v3789, 0
      %v3839 = vsel %vm505, %v3790, 0
      %v3842 = vsel %vm505, %v3791, 0
      %v3845 = vsel %vm505, %v3792, 0
      %v3848 = vsel %vm505, %v3793, 0
      %v3851 = vsel %vm505, %v3794, 0
      %v3854 = vsel %vm505, %v3795, 0
      %v3857 = vsel %vm505, %v3796, 0
      %v3860 = vsel %vm505, %v3797, 0
      %v3863 = vsel %vm505, %v3798, 0
      %v3866 = vsel %vm505, %v3799, 0
      %v3869 = vsel %vm505, %v3800, 0
      %v3872 = vsel %vm505, %v3801, 0
      %v3875 = vsel %vm505, %v3802, 0
      %v3878 = vsel %vm505, %v3803, 0
      %v3881 = vsel %vm505, %v3804, 0
      %v3884 = vsel %vm505, %v3805, 0
      %v3887 = vsel %vm505, %v3806, 0
      %v3890 = vsel %vm505, %v3807, 0
      %v3893 = vsel %vm505, %v3808, 0
      %v3896 = vsel %vm505, %v3809, 0
      %v3899 = vsel %vm505, %v3810, 0
      %v3902 = vsel %vm505, %v3811, 0
      %v3905 = vsel %vm505, %v3812, 0
      %v3908 = vsel %vm505, %v3813, 0
      %v3911 = vand.u32 %v3653, %v605
      %3913 = vmatprep.subr.bf16.mxu0 0
      %3914 = vmatpush1.bf16.msra.mxu0 %v3911
      %3915 = vmatprep.subr.bf16.mxu0 0
      %3916 = vmatpush1.bf16.msra.mxu0 0
      %3917 = vmatprep.subr.bf16.mxu0 0
      %3918 = vmatpush1.bf16.msra.mxu0 0
      %3919 = vmatprep.subr.bf16.mxu0 0
      %3920 = vmatpush1.bf16.msra.mxu0 0
      %3921 = vmatprep.subr.bf16.mxu0 0
      %3922 = vmatpush1.bf16.msra.mxu0 0
      %3923 = vmatprep.subr.bf16.mxu0 0
      %3924 = vmatpush1.bf16.msra.mxu0 0
      %3925 = vmatprep.subr.bf16.mxu0 0
      %3926 = vmatpush1.bf16.msra.mxu0 0
      %3927 = vmatprep.subr.bf16.mxu0 0
      %3928 = vmatpush1.bf16.msra.mxu0 0
      %3929 = vmatprep.subr.bf16.mxu0 0
      %3930 = vmatpush1.bf16.msra.mxu0 0
      %3931 = vmatprep.subr.bf16.mxu0 0
      %3932 = vmatpush1.bf16.msra.mxu0 0
      %3933 = vmatprep.subr.bf16.mxu0 0
      %3934 = vmatpush1.bf16.msra.mxu0 0
      %3935 = vmatprep.subr.bf16.mxu0 0
      %3936 = vmatpush1.bf16.msra.mxu0 0
      %3937 = vmatprep.subr.bf16.mxu0 0
      %3938 = vmatpush1.bf16.msra.mxu0 0
      %3939 = vmatprep.subr.bf16.mxu0 0
      %3940 = vmatpush1.bf16.msra.mxu0 0
      %3941 = vmatprep.subr.bf16.mxu0 0
      %3942 = vmatpush1.bf16.msra.mxu0 0
      %3943 = vmatprep.subr.bf16.mxu0 0
      %3944 = vmatpush1.bf16.msra.mxu0 0
      %3945 = vmatprep.mubr.bf16.mxu0 0
      %3946 = vmatmul.mubr.bf16.gmra.mrb[0].mxu0 %v3815
      %v3947 = vpop.f32.mrb[0].mxu0
      %v3948 = vadd.f32 0.0, %v3947
      %v3949 = vpop.f32.mrb[0].mxu0
      %v3950 = vpop.f32.mrb[0].mxu0
      %v3951 = vadd.f32 0.0, %v3950
      %v3952 = vpop.f32.mrb[0].mxu0
      %3953 = vmatprep.mubr.bf16.mxu0 0
      %3954 = vmatmul.mubr.bf16.gmra.mrb[0].mxu0 %v3818
      %v3955 = vpop.f32.mrb[0].mxu0
      %v3956 = vadd.f32 0.0, %v3955
      %v3957 = vpop.f32.mrb[0].mxu0
      %v3958 = vpop.f32.mrb[0].mxu0
      %v3959 = vadd.f32 0.0, %v3958
      %v3960 = vpop.f32.mrb[0].mxu0
      %3961 = vmatprep.mubr.bf16.mxu0 0
      %3962 = vmatmul.mubr.bf16.gmra.mrb[0].mxu0 %v3821
      %v3963 = vpop.f32.mrb[0].mxu0
      %v3964 = vadd.f32 0.0, %v3963
      %v3965 = vpop.f32.mrb[0].mxu0
      %v3966 = vpop.f32.mrb[0].mxu0
      %v3967 = vadd.f32 0.0, %v3966
      %v3968 = vpop.f32.mrb[0].mxu0
      %3969 = vmatprep.mubr.bf16.mxu0 0
      %3970 = vmatmul.mubr.bf16.gmra.mrb[0].mxu0 %v3824
      %v3971 = vpop.f32.mrb[0].mxu0
      %v3972 = vadd.f32 0.0, %v3971
      %v3973 = vpop.f32.mrb[0].mxu0
      %v3974 = vpop.f32.mrb[0].mxu0
      %v3975 = vadd.f32 0.0, %v3974
      %v3976 = vpop.f32.mrb[0].mxu0
      %3977 = vmatprep.mubr.bf16.mxu0 0
      %3978 = vmatmul.mubr.bf16.gmra.mrb[0].mxu0 %v3827
      %v3979 = vpop.f32.mrb[0].mxu0
      %v3980 = vadd.f32 0.0, %v3979
      %v3981 = vpop.f32.mrb[0].mxu0
      %v3982 = vpop.f32.mrb[0].mxu0
      %v3983 = vadd.f32 0.0, %v3982
      %v3984 = vpop.f32.mrb[0].mxu0
      %3985 = vmatprep.mubr.bf16.mxu0 0
      %3986 = vmatmul.mubr.bf16.gmra.mrb[0].mxu0 %v3830
      %v3987 = vpop.f32.mrb[0].mxu0
      %v3988 = vadd.f32 0.0, %v3987
      %v3989 = vpop.f32.mrb[0].mxu0
      %v3990 = vpop.f32.mrb[0].mxu0
      %v3991 = vadd.f32 0.0, %v3990
      %v3992 = vpop.f32.mrb[0].mxu0
      %3993 = vmatprep.mubr.bf16.mxu0 0
      %3994 = vmatmul.mubr.bf16.gmra.mrb[0].mxu0 %v3833
      %v3995 = vpop.f32.mrb[0].mxu0
      %v3996 = vadd.f32 0.0, %v3995
      %v3997 = vpop.f32.mrb[0].mxu0
      %v3998 = vpop.f32.mrb[0].mxu0
      %v3999 = vadd.f32 0.0, %v3998
      %v4000 = vpop.f32.mrb[0].mxu0
      %4001 = vmatprep.mubr.bf16.mxu0 0
      %4002 = vmatmul.mubr.bf16.gmra.mrb[0].mxu0 %v3836
      %v4003 = vpop.f32.mrb[0].mxu0
      %v4004 = vadd.f32 0.0, %v4003
      %v4005 = vpop.f32.mrb[0].mxu0
      %v4006 = vpop.f32.mrb[0].mxu0
      %v4007 = vadd.f32 0.0, %v4006
      %v4008 = vpop.f32.mrb[0].mxu0
      %4009 = vmatprep.mubr.bf16.mxu0 0
      %4010 = vmatmul.mubr.bf16.gmra.mrb[0].mxu0 %v3839
      %v4011 = vpop.f32.mrb[0].mxu0
      %v4012 = vadd.f32 0.0, %v4011
      %v4013 = vpop.f32.mrb[0].mxu0
      %v4014 = vpop.f32.mrb[0].mxu0
      %v4015 = vadd.f32 0.0, %v4014
      %v4016 = vpop.f32.mrb[0].mxu0
      %4017 = vmatprep.mubr.bf16.mxu0 0
      %4018 = vmatmul.mubr.bf16.gmra.mrb[0].mxu0 %v3842
      %v4019 = vpop.f32.mrb[0].mxu0
      %v4020 = vadd.f32 0.0, %v4019
      %v4021 = vpop.f32.mrb[0].mxu0
      %v4022 = vpop.f32.mrb[0].mxu0
      %v4023 = vadd.f32 0.0, %v4022
      %v4024 = vpop.f32.mrb[0].mxu0
      %4025 = vmatprep.mubr.bf16.mxu0 0
      %4026 = vmatmul.mubr.bf16.gmra.mrb[0].mxu0 %v3845
      %v4027 = vpop.f32.mrb[0].mxu0
      %v4028 = vadd.f32 0.0, %v4027
      %v4029 = vpop.f32.mrb[0].mxu0
      %v4030 = vpop.f32.mrb[0].mxu0
      %v4031 = vadd.f32 0.0, %v4030
      %v4032 = vpop.f32.mrb[0].mxu0
      %4033 = vmatprep.mubr.bf16.mxu0 0
      %4034 = vmatmul.mubr.bf16.gmra.mrb[0].mxu0 %v3848
      %v4035 = vpop.f32.mrb[0].mxu0
      %v4036 = vadd.f32 0.0, %v4035
      %v4037 = vpop.f32.mrb[0].mxu0
      %v4038 = vpop.f32.mrb[0].mxu0
      %v4039 = vadd.f32 0.0, %v4038
      %v4040 = vpop.f32.mrb[0].mxu0
      %4041 = vmatprep.mubr.bf16.mxu0 0
      %4042 = vmatmul.mubr.bf16.gmra.mrb[0].mxu0 %v3851
      %v4043 = vpop.f32.mrb[0].mxu0
      %v4044 = vadd.f32 0.0, %v4043
      %v4045 = vpop.f32.mrb[0].mxu0
      %v4046 = vpop.f32.mrb[0].mxu0
      %v4047 = vadd.f32 0.0, %v4046
      %v4048 = vpop.f32.mrb[0].mxu0
      %4049 = vmatprep.mubr.bf16.mxu0 0
      %4050 = vmatmul.mubr.bf16.gmra.mrb[0].mxu0 %v3854
      %v4051 = vpop.f32.mrb[0].mxu0
      %v4052 = vadd.f32 0.0, %v4051
      %v4053 = vpop.f32.mrb[0].mxu0
      %v4054 = vpop.f32.mrb[0].mxu0
      %v4055 = vadd.f32 0.0, %v4054
      %v4056 = vpop.f32.mrb[0].mxu0
      %4057 = vmatprep.mubr.bf16.mxu0 0
      %4058 = vmatmul.mubr.bf16.gmra.mrb[0].mxu0 %v3857
      %v4059 = vpop.f32.mrb[0].mxu0
      %v4060 = vadd.f32 0.0, %v4059
      %v4061 = vpop.f32.mrb[0].mxu0
      %v4062 = vpop.f32.mrb[0].mxu0
      %v4063 = vadd.f32 0.0, %v4062
      %v4064 = vpop.f32.mrb[0].mxu0
      %4065 = vmatprep.mubr.bf16.mxu0 0
      %4066 = vmatmul.mubr.bf16.gmra.mrb[0].mxu0 %v3860
      %v4067 = vpop.f32.mrb[0].mxu0
      %v4068 = vadd.f32 0.0, %v4067
      %v4069 = vpop.f32.mrb[0].mxu0
      %v4070 = vpop.f32.mrb[0].mxu0
      %v4071 = vadd.f32 0.0, %v4070
      %v4072 = vpop.f32.mrb[0].mxu0
      %4073 = vmatprep.mubr.bf16.mxu0 0
      %4074 = vmatmul.mubr.bf16.gmra.mrb[0].mxu0 %v3863
      %v4075 = vpop.f32.mrb[0].mxu0
      %v4076 = vadd.f32 0.0, %v4075
      %v4077 = vpop.f32.mrb[0].mxu0
      %v4078 = vpop.f32.mrb[0].mxu0
      %v4079 = vadd.f32 0.0, %v4078
      %v4080 = vpop.f32.mrb[0].mxu0
      %4081 = vmatprep.mubr.bf16.mxu0 0
      %4082 = vmatmul.mubr.bf16.gmra.mrb[0].mxu0 %v3866
      %v4083 = vpop.f32.mrb[0].mxu0
      %v4084 = vadd.f32 0.0, %v4083
      %v4085 = vpop.f32.mrb[0].mxu0
      %v4086 = vpop.f32.mrb[0].mxu0
      %v4087 = vadd.f32 0.0, %v4086
      %v4088 = vpop.f32.mrb[0].mxu0
      %4089 = vmatprep.mubr.bf16.mxu0 0
      %4090 = vmatmul.mubr.bf16.gmra.mrb[0].mxu0 %v3869
      %v4091 = vpop.f32.mrb[0].mxu0
      %v4092 = vadd.f32 0.0, %v4091
      %v4093 = vpop.f32.mrb[0].mxu0
      %v4094 = vpop.f32.mrb[0].mxu0
      %v4095 = vadd.f32 0.0, %v4094
      %v4096 = vpop.f32.mrb[0].mxu0
      %4097 = vmatprep.mubr.bf16.mxu0 0
      %4098 = vmatmul.mubr.bf16.gmra.mrb[0].mxu0 %v3872
      %v4099 = vpop.f32.mrb[0].mxu0
      %v4100 = vadd.f32 0.0, %v4099
      %v4101 = vpop.f32.mrb[0].mxu0
      %v4102 = vpop.f32.mrb[0].mxu0
      %v4103 = vadd.f32 0.0, %v4102
      %v4104 = vpop.f32.mrb[0].mxu0
      %4105 = vmatprep.mubr.bf16.mxu0 0
      %4106 = vmatmul.mubr.bf16.gmra.mrb[0].mxu0 %v3875
      %v4107 = vpop.f32.mrb[0].mxu0
      %v4108 = vadd.f32 0.0, %v4107
      %v4109 = vpop.f32.mrb[0].mxu0
      %v4110 = vpop.f32.mrb[0].mxu0
      %v4111 = vadd.f32 0.0, %v4110
      %v4112 = vpop.f32.mrb[0].mxu0
      %4113 = vmatprep.mubr.bf16.mxu0 0
      %4114 = vmatmul.mubr.bf16.gmra.mrb[0].mxu0 %v3878
      %v4115 = vpop.f32.mrb[0].mxu0
      %v4116 = vadd.f32 0.0, %v4115
      %v4117 = vpop.f32.mrb[0].mxu0
      %v4118 = vpop.f32.mrb[0].mxu0
      %v4119 = vadd.f32 0.0, %v4118
      %v4120 = vpop.f32.mrb[0].mxu0
      %4121 = vmatprep.mubr.bf16.mxu0 0
      %4122 = vmatmul.mubr.bf16.gmra.mrb[0].mxu0 %v3881
      %v4123 = vpop.f32.mrb[0].mxu0
      %v4124 = vadd.f32 0.0, %v4123
      %v4125 = vpop.f32.mrb[0].mxu0
      %v4126 = vpop.f32.mrb[0].mxu0
      %v4127 = vadd.f32 0.0, %v4126
      %v4128 = vpop.f32.mrb[0].mxu0
      %4129 = vmatprep.mubr.bf16.mxu0 0
      %4130 = vmatmul.mubr.bf16.gmra.mrb[0].mxu0 %v3884
      %v4131 = vpop.f32.mrb[0].mxu0
      %v4132 = vadd.f32 0.0, %v4131
      %v4133 = vpop.f32.mrb[0].mxu0
      %v4134 = vpop.f32.mrb[0].mxu0
      %v4135 = vadd.f32 0.0, %v4134
      %v4136 = vpop.f32.mrb[0].mxu0
      %4137 = vmatprep.mubr.bf16.mxu0 0
      %4138 = vmatmul.mubr.bf16.gmra.mrb[0].mxu0 %v3887
      %v4139 = vpop.f32.mrb[0].mxu0
      %v4140 = vadd.f32 0.0, %v4139
      %v4141 = vpop.f32.mrb[0].mxu0
      %v4142 = vpop.f32.mrb[0].mxu0
      %v4143 = vadd.f32 0.0, %v4142
      %v4144 = vpop.f32.mrb[0].mxu0
      %4145 = vmatprep.mubr.bf16.mxu0 0
      %4146 = vmatmul.mubr.bf16.gmra.mrb[0].mxu0 %v3890
      %v4147 = vpop.f32.mrb[0].mxu0
      %v4148 = vadd.f32 0.0, %v4147
      %v4149 = vpop.f32.mrb[0].mxu0
      %v4150 = vpop.f32.mrb[0].mxu0
      %v4151 = vadd.f32 0.0, %v4150
      %v4152 = vpop.f32.mrb[0].mxu0
      %4153 = vmatprep.mubr.bf16.mxu0 0
      %4154 = vmatmul.mubr.bf16.gmra.mrb[0].mxu0 %v3893
      %v4155 = vpop.f32.mrb[0].mxu0
      %v4156 = vadd.f32 0.0, %v4155
      %v4157 = vpop.f32.mrb[0].mxu0
      %v4158 = vpop.f32.mrb[0].mxu0
      %v4159 = vadd.f32 0.0, %v4158
      %v4160 = vpop.f32.mrb[0].mxu0
      %4161 = vmatprep.mubr.bf16.mxu0 0
      %4162 = vmatmul.mubr.bf16.gmra.mrb[0].mxu0 %v3896
      %v4163 = vpop.f32.mrb[0].mxu0
      %v4164 = vadd.f32 0.0, %v4163
      %v4165 = vpop.f32.mrb[0].mxu0
      %v4166 = vpop.f32.mrb[0].mxu0
      %v4167 = vadd.f32 0.0, %v4166
      %v4168 = vpop.f32.mrb[0].mxu0
      %4169 = vmatprep.mubr.bf16.mxu0 0
      %4170 = vmatmul.mubr.bf16.gmra.mrb[0].mxu0 %v3899
      %v4171 = vpop.f32.mrb[0].mxu0
      %v4172 = vadd.f32 0.0, %v4171
      %v4173 = vpop.f32.mrb[0].mxu0
      %v4174 = vpop.f32.mrb[0].mxu0
      %v4175 = vadd.f32 0.0, %v4174
      %v4176 = vpop.f32.mrb[0].mxu0
      %4177 = vmatprep.mubr.bf16.mxu0 0
      %4178 = vmatmul.mubr.bf16.gmra.mrb[0].mxu0 %v3902
      %v4179 = vpop.f32.mrb[0].mxu0
      %v4180 = vadd.f32 0.0, %v4179
      %v4181 = vpop.f32.mrb[0].mxu0
      %v4182 = vpop.f32.mrb[0].mxu0
      %v4183 = vadd.f32 0.0, %v4182
      %v4184 = vpop.f32.mrb[0].mxu0
      %4185 = vmatprep.mubr.bf16.mxu0 0
      %4186 = vmatmul.mubr.bf16.gmra.mrb[0].mxu0 %v3905
      %v4187 = vpop.f32.mrb[0].mxu0
      %v4188 = vadd.f32 0.0, %v4187
      %v4189 = vpop.f32.mrb[0].mxu0
      %v4190 = vpop.f32.mrb[0].mxu0
      %v4191 = vadd.f32 0.0, %v4190
      %v4192 = vpop.f32.mrb[0].mxu0
      %4193 = vmatprep.mubr.bf16.mxu0 0
      %4194 = vmatmul.mubr.bf16.gmra.mrb[0].mxu0 %v3908
      %v4195 = vpop.f32.mrb[0].mxu0
      %v4196 = vadd.f32 0.0, %v4195
      %v4197 = vpop.f32.mrb[0].mxu0
      %v4198 = vpop.f32.mrb[0].mxu0
      %v4199 = vadd.f32 0.0, %v4198
      %v4200 = vpop.f32.mrb[0].mxu0
      %4201 = vdwg.mxu0
      %s4202 = scalar_lea.vmem %s1, 14
      %v4203 = vld [vmem:[%s4202] sm:$0x3]
      %v4205 = vand.u32 %v4203, %v605
      %4207 = vmatprep.subr.bf16.mxu0 0
      %4208 = vmatpush1.bf16.msra.mxu0 %v4205
      %4209 = vmatprep.subr.bf16.mxu0 0
      %4210 = vmatpush1.bf16.msra.mxu0 0
      %4211 = vmatprep.subr.bf16.mxu0 0
      %4212 = vmatpush1.bf16.msra.mxu0 0
      %4213 = vmatprep.subr.bf16.mxu0 0
      %4214 = vmatpush1.bf16.msra.mxu0 0
      %4215 = vmatprep.subr.bf16.mxu0 0
      %4216 = vmatpush1.bf16.msra.mxu0 0
      %4217 = vmatprep.subr.bf16.mxu0 0
      %4218 = vmatpush1.bf16.msra.mxu0 0
      %4219 = vmatprep.subr.bf16.mxu0 0
      %4220 = vmatpush1.bf16.msra.mxu0 0
      %4221 = vmatprep.subr.bf16.mxu0 0
      %4222 = vmatpush1.bf16.msra.mxu0 0
      %4223 = vmatprep.subr.bf16.mxu0 0
      %4224 = vmatpush1.bf16.msra.mxu0 0
      %4225 = vmatprep.subr.bf16.mxu0 0
      %4226 = vmatpush1.bf16.msra.mxu0 0
      %4227 = vmatprep.subr.bf16.mxu0 0
      %4228 = vmatpush1.bf16.msra.mxu0 0
      %4229 = vmatprep.subr.bf16.mxu0 0
      %4230 = vmatpush1.bf16.msra.mxu0 0
      %4231 = vmatprep.subr.bf16.mxu0 0
      %4232 = vmatpush1.bf16.msra.mxu0 0
      %4233 = vmatprep.subr.bf16.mxu0 0
      %4234 = vmatpush1.bf16.msra.mxu0 0
      %4235 = vmatprep.subr.bf16.mxu0 0
      %4236 = vmatpush1.bf16.msra.mxu0 0
      %4237 = vmatprep.subr.bf16.mxu0 0
      %4238 = vmatpush1.bf16.msra.mxu0 0
      %4239 = vmatprep.mubr.bf16.mxu0 0
      %4240 = vmatmul.mubr.bf16.gmra.mrb[0].mxu0 %v3815
      %v4241 = vpop.f32.mrb[0].mxu0
      %v4242 = vadd.f32 0.0, %v4241
      %v4243 = vpop.f32.mrb[0].mxu0
      %v4244 = vpop.f32.mrb[0].mxu0
      %v4245 = vadd.f32 0.0, %v4244
      %v4246 = vpop.f32.mrb[0].mxu0
      %4247 = vmatprep.mubr.bf16.mxu0 0
      %4248 = vmatmul.mubr.bf16.gmra.mrb[0].mxu0 %v3818
      %v4249 = vpop.f32.mrb[0].mxu0
      %v4250 = vadd.f32 0.0, %v4249
      %v4251 = vpop.f32.mrb[0].mxu0
      %v4252 = vpop.f32.mrb[0].mxu0
      %v4253 = vadd.f32 0.0, %v4252
      %v4254 = vpop.f32.mrb[0].mxu0
      %4255 = vmatprep.mubr.bf16.mxu0 0
      %4256 = vmatmul.mubr.bf16.gmra.mrb[0].mxu0 %v3821
      %v4257 = vpop.f32.mrb[0].mxu0
      %v4258 = vadd.f32 0.0, %v4257
      %v4259 = vpop.f32.mrb[0].mxu0
      %v4260 = vpop.f32.mrb[0].mxu0
      %v4261 = vadd.f32 0.0, %v4260
      %v4262 = vpop.f32.mrb[0].mxu0
      %4263 = vmatprep.mubr.bf16.mxu0 0
      %4264 = vmatmul.mubr.bf16.gmra.mrb[0].mxu0 %v3824
      %v4265 = vpop.f32.mrb[0].mxu0
      %v4266 = vadd.f32 0.0, %v4265
      %v4267 = vpop.f32.mrb[0].mxu0
      %v4268 = vpop.f32.mrb[0].mxu0
      %v4269 = vadd.f32 0.0, %v4268
      %v4270 = vpop.f32.mrb[0].mxu0
      %4271 = vmatprep.mubr.bf16.mxu0 0
      %4272 = vmatmul.mubr.bf16.gmra.mrb[0].mxu0 %v3827
      %v4273 = vpop.f32.mrb[0].mxu0
      %v4274 = vadd.f32 0.0, %v4273
      %v4275 = vpop.f32.mrb[0].mxu0
      %v4276 = vpop.f32.mrb[0].mxu0
      %v4277 = vadd.f32 0.0, %v4276
      %v4278 = vpop.f32.mrb[0].mxu0
      %4279 = vmatprep.mubr.bf16.mxu0 0
      %4280 = vmatmul.mubr.bf16.gmra.mrb[0].mxu0 %v3830
      %v4281 = vpop.f32.mrb[0].mxu0
      %v4282 = vadd.f32 0.0, %v4281
      %v4283 = vpop.f32.mrb[0].mxu0
      %v4284 = vpop.f32.mrb[0].mxu0
      %v4285 = vadd.f32 0.0, %v4284
      %v4286 = vpop.f32.mrb[0].mxu0
      %4287 = vmatprep.mubr.bf16.mxu0 0
      %4288 = vmatmul.mubr.bf16.gmra.mrb[0].mxu0 %v3833
      %v4289 = vpop.f32.mrb[0].mxu0
      %v4290 = vadd.f32 0.0, %v4289
      %v4291 = vpop.f32.mrb[0].mxu0
      %v4292 = vpop.f32.mrb[0].mxu0
      %v4293 = vadd.f32 0.0, %v4292
      %v4294 = vpop.f32.mrb[0].mxu0
      %4295 = vmatprep.mubr.bf16.mxu0 0
      %4296 = vmatmul.mubr.bf16.gmra.mrb[0].mxu0 %v3836
      %v4297 = vpop.f32.mrb[0].mxu0
      %v4298 = vadd.f32 0.0, %v4297
      %v4299 = vpop.f32.mrb[0].mxu0
      %v4300 = vpop.f32.mrb[0].mxu0
      %v4301 = vadd.f32 0.0, %v4300
      %v4302 = vpop.f32.mrb[0].mxu0
      %4303 = vmatprep.mubr.bf16.mxu0 0
      %4304 = vmatmul.mubr.bf16.gmra.mrb[0].mxu0 %v3839
      %v4305 = vpop.f32.mrb[0].mxu0
      %v4306 = vadd.f32 0.0, %v4305
      %v4307 = vpop.f32.mrb[0].mxu0
      %v4308 = vpop.f32.mrb[0].mxu0
      %v4309 = vadd.f32 0.0, %v4308
      %v4310 = vpop.f32.mrb[0].mxu0
      %4311 = vmatprep.mubr.bf16.mxu0 0
      %4312 = vmatmul.mubr.bf16.gmra.mrb[0].mxu0 %v3842
      %v4313 = vpop.f32.mrb[0].mxu0
      %v4314 = vadd.f32 0.0, %v4313
      %v4315 = vpop.f32.mrb[0].mxu0
      %v4316 = vpop.f32.mrb[0].mxu0
      %v4317 = vadd.f32 0.0, %v4316
      %v4318 = vpop.f32.mrb[0].mxu0
      %4319 = vmatprep.mubr.bf16.mxu0 0
      %4320 = vmatmul.mubr.bf16.gmra.mrb[0].mxu0 %v3845
      %v4321 = vpop.f32.mrb[0].mxu0
      %v4322 = vadd.f32 0.0, %v4321
      %v4323 = vpop.f32.mrb[0].mxu0
      %v4324 = vpop.f32.mrb[0].mxu0
      %v4325 = vadd.f32 0.0, %v4324
      %v4326 = vpop.f32.mrb[0].mxu0
      %4327 = vmatprep.mubr.bf16.mxu0 0
      %4328 = vmatmul.mubr.bf16.gmra.mrb[0].mxu0 %v3848
      %v4329 = vpop.f32.mrb[0].mxu0
      %v4330 = vadd.f32 0.0, %v4329
      %v4331 = vpop.f32.mrb[0].mxu0
      %v4332 = vpop.f32.mrb[0].mxu0
      %v4333 = vadd.f32 0.0, %v4332
      %v4334 = vpop.f32.mrb[0].mxu0
      %4335 = vmatprep.mubr.bf16.mxu0 0
      %4336 = vmatmul.mubr.bf16.gmra.mrb[0].mxu0 %v3851
      %v4337 = vpop.f32.mrb[0].mxu0
      %v4338 = vadd.f32 0.0, %v4337
      %v4339 = vpop.f32.mrb[0].mxu0
      %v4340 = vpop.f32.mrb[0].mxu0
      %v4341 = vadd.f32 0.0, %v4340
      %v4342 = vpop.f32.mrb[0].mxu0
      %4343 = vmatprep.mubr.bf16.mxu0 0
      %4344 = vmatmul.mubr.bf16.gmra.mrb[0].mxu0 %v3854
      %v4345 = vpop.f32.mrb[0].mxu0
      %v4346 = vadd.f32 0.0, %v4345
      %v4347 = vpop.f32.mrb[0].mxu0
      %v4348 = vpop.f32.mrb[0].mxu0
      %v4349 = vadd.f32 0.0, %v4348
      %v4350 = vpop.f32.mrb[0].mxu0
      %4351 = vmatprep.mubr.bf16.mxu0 0
      %4352 = vmatmul.mubr.bf16.gmra.mrb[0].mxu0 %v3857
      %v4353 = vpop.f32.mrb[0].mxu0
      %v4354 = vadd.f32 0.0, %v4353
      %v4355 = vpop.f32.mrb[0].mxu0
      %v4356 = vpop.f32.mrb[0].mxu0
      %v4357 = vadd.f32 0.0, %v4356
      %v4358 = vpop.f32.mrb[0].mxu0
      %4359 = vmatprep.mubr.bf16.mxu0 0
      %4360 = vmatmul.mubr.bf16.gmra.mrb[0].mxu0 %v3860
      %v4361 = vpop.f32.mrb[0].mxu0
      %v4362 = vadd.f32 0.0, %v4361
      %v4363 = vpop.f32.mrb[0].mxu0
      %v4364 = vpop.f32.mrb[0].mxu0
      %v4365 = vadd.f32 0.0, %v4364
      %v4366 = vpop.f32.mrb[0].mxu0
      %4367 = vmatprep.mubr.bf16.mxu0 0
      %4368 = vmatmul.mubr.bf16.gmra.mrb[0].mxu0 %v3863
      %v4369 = vpop.f32.mrb[0].mxu0
      %v4370 = vadd.f32 0.0, %v4369
      %v4371 = vpop.f32.mrb[0].mxu0
      %v4372 = vpop.f32.mrb[0].mxu0
      %v4373 = vadd.f32 0.0, %v4372
      %v4374 = vpop.f32.mrb[0].mxu0
      %4375 = vmatprep.mubr.bf16.mxu0 0
      %4376 = vmatmul.mubr.bf16.gmra.mrb[0].mxu0 %v3866
      %v4377 = vpop.f32.mrb[0].mxu0
      %v4378 = vadd.f32 0.0, %v4377
      %v4379 = vpop.f32.mrb[0].mxu0
      %v4380 = vpop.f32.mrb[0].mxu0
      %v4381 = vadd.f32 0.0, %v4380
      %v4382 = vpop.f32.mrb[0].mxu0
      %4383 = vmatprep.mubr.bf16.mxu0 0
      %4384 = vmatmul.mubr.bf16.gmra.mrb[0].mxu0 %v3869
      %v4385 = vpop.f32.mrb[0].mxu0
      %v4386 = vadd.f32 0.0, %v4385
      %v4387 = vpop.f32.mrb[0].mxu0
      %v4388 = vpop.f32.mrb[0].mxu0
      %v4389 = vadd.f32 0.0, %v4388
      %v4390 = vpop.f32.mrb[0].mxu0
      %4391 = vmatprep.mubr.bf16.mxu0 0
      %4392 = vmatmul.mubr.bf16.gmra.mrb[0].mxu0 %v3872
      %v4393 = vpop.f32.mrb[0].mxu0
      %v4394 = vadd.f32 0.0, %v4393
      %v4395 = vpop.f32.mrb[0].mxu0
      %v4396 = vpop.f32.mrb[0].mxu0
      %v4397 = vadd.f32 0.0, %v4396
      %v4398 = vpop.f32.mrb[0].mxu0
      %4399 = vmatprep.mubr.bf16.mxu0 0
      %4400 = vmatmul.mubr.bf16.gmra.mrb[0].mxu0 %v3875
      %v4401 = vpop.f32.mrb[0].mxu0
      %v4402 = vadd.f32 0.0, %v4401
      %v4403 = vpop.f32.mrb[0].mxu0
      %v4404 = vpop.f32.mrb[0].mxu0
      %v4405 = vadd.f32 0.0, %v4404
      %v4406 = vpop.f32.mrb[0].mxu0
      %4407 = vmatprep.mubr.bf16.mxu0 0
      %4408 = vmatmul.mubr.bf16.gmra.mrb[0].mxu0 %v3878
      %v4409 = vpop.f32.mrb[0].mxu0
      %v4410 = vadd.f32 0.0, %v4409
      %v4411 = vpop.f32.mrb[0].mxu0
      %v4412 = vpop.f32.mrb[0].mxu0
      %v4413 = vadd.f32 0.0, %v4412
      %v4414 = vpop.f32.mrb[0].mxu0
      %4415 = vmatprep.mubr.bf16.mxu0 0
      %4416 = vmatmul.mubr.bf16.gmra.mrb[0].mxu0 %v3881
      %v4417 = vpop.f32.mrb[0].mxu0
      %v4418 = vadd.f32 0.0, %v4417
      %v4419 = vpop.f32.mrb[0].mxu0
      %v4420 = vpop.f32.mrb[0].mxu0
      %v4421 = vadd.f32 0.0, %v4420
      %v4422 = vpop.f32.mrb[0].mxu0
      %4423 = vmatprep.mubr.bf16.mxu0 0
      %4424 = vmatmul.mubr.bf16.gmra.mrb[0].mxu0 %v3884
      %v4425 = vpop.f32.mrb[0].mxu0
      %v4426 = vadd.f32 0.0, %v4425
      %v4427 = vpop.f32.mrb[0].mxu0
      %v4428 = vpop.f32.mrb[0].mxu0
      %v4429 = vadd.f32 0.0, %v4428
      %v4430 = vpop.f32.mrb[0].mxu0
      %4431 = vmatprep.mubr.bf16.mxu0 0
      %4432 = vmatmul.mubr.bf16.gmra.mrb[0].mxu0 %v3887
      %v4433 = vpop.f32.mrb[0].mxu0
      %v4434 = vadd.f32 0.0, %v4433
      %v4435 = vpop.f32.mrb[0].mxu0
      %v4436 = vpop.f32.mrb[0].mxu0
      %v4437 = vadd.f32 0.0, %v4436
      %v4438 = vpop.f32.mrb[0].mxu0
      %4439 = vmatprep.mubr.bf16.mxu0 0
      %4440 = vmatmul.mubr.bf16.gmra.mrb[0].mxu0 %v3890
      %v4441 = vpop.f32.mrb[0].mxu0
      %v4442 = vadd.f32 0.0, %v4441
      %v4443 = vpop.f32.mrb[0].mxu0
      %v4444 = vpop.f32.mrb[0].mxu0
      %v4445 = vadd.f32 0.0, %v4444
      %v4446 = vpop.f32.mrb[0].mxu0
      %4447 = vmatprep.mubr.bf16.mxu0 0
      %4448 = vmatmul.mubr.bf16.gmra.mrb[0].mxu0 %v3893
      %v4449 = vpop.f32.mrb[0].mxu0
      %v4450 = vadd.f32 0.0, %v4449
      %v4451 = vpop.f32.mrb[0].mxu0
      %v4452 = vpop.f32.mrb[0].mxu0
      %v4453 = vadd.f32 0.0, %v4452
      %v4454 = vpop.f32.mrb[0].mxu0
      %4455 = vmatprep.mubr.bf16.mxu0 0
      %4456 = vmatmul.mubr.bf16.gmra.mrb[0].mxu0 %v3896
      %v4457 = vpop.f32.mrb[0].mxu0
      %v4458 = vadd.f32 0.0, %v4457
      %v4459 = vpop.f32.mrb[0].mxu0
      %v4460 = vpop.f32.mrb[0].mxu0
      %v4461 = vadd.f32 0.0, %v4460
      %v4462 = vpop.f32.mrb[0].mxu0
      %4463 = vmatprep.mubr.bf16.mxu0 0
      %4464 = vmatmul.mubr.bf16.gmra.mrb[0].mxu0 %v3899
      %v4465 = vpop.f32.mrb[0].mxu0
      %v4466 = vadd.f32 0.0, %v4465
      %v4467 = vpop.f32.mrb[0].mxu0
      %v4468 = vpop.f32.mrb[0].mxu0
      %v4469 = vadd.f32 0.0, %v4468
      %v4470 = vpop.f32.mrb[0].mxu0
      %4471 = vmatprep.mubr.bf16.mxu0 0
      %4472 = vmatmul.mubr.bf16.gmra.mrb[0].mxu0 %v3902
      %v4473 = vpop.f32.mrb[0].mxu0
      %v4474 = vadd.f32 0.0, %v4473
      %v4475 = vpop.f32.mrb[0].mxu0
      %v4476 = vpop.f32.mrb[0].mxu0
      %v4477 = vadd.f32 0.0, %v4476
      %v4478 = vpop.f32.mrb[0].mxu0
      %4479 = vmatprep.mubr.bf16.mxu0 0
      %4480 = vmatmul.mubr.bf16.gmra.mrb[0].mxu0 %v3905
      %v4481 = vpop.f32.mrb[0].mxu0
      %v4482 = vadd.f32 0.0, %v4481
      %v4483 = vpop.f32.mrb[0].mxu0
      %v4484 = vpop.f32.mrb[0].mxu0
      %v4485 = vadd.f32 0.0, %v4484
      %v4486 = vpop.f32.mrb[0].mxu0
      %4487 = vmatprep.mubr.bf16.mxu0 0
      %4488 = vmatmul.mubr.bf16.gmra.mrb[0].mxu0 %v3908
      %v4489 = vpop.f32.mrb[0].mxu0
      %v4490 = vadd.f32 0.0, %v4489
      %v4491 = vpop.f32.mrb[0].mxu0
      %v4492 = vpop.f32.mrb[0].mxu0
      %v4493 = vadd.f32 0.0, %v4492
      %v4494 = vpop.f32.mrb[0].mxu0
      %4495 = vdwg.mxu0
      %s4496 = scalar_lea.vmem %s1, 16
      %v4497 = vld [vmem:[%s4496] sm:$0x3]
      %v4499 = vand.u32 %v4497, %v605
      %4501 = vmatprep.subr.bf16.mxu0 0
      %4502 = vmatpush1.bf16.msra.mxu0 %v4499
      %4503 = vmatprep.subr.bf16.mxu0 0
      %4504 = vmatpush1.bf16.msra.mxu0 0
      %4505 = vmatprep.subr.bf16.mxu0 0
      %4506 = vmatpush1.bf16.msra.mxu0 0
      %4507 = vmatprep.subr.bf16.mxu0 0
      %4508 = vmatpush1.bf16.msra.mxu0 0
      %4509 = vmatprep.subr.bf16.mxu0 0
      %4510 = vmatpush1.bf16.msra.mxu0 0
      %4511 = vmatprep.subr.bf16.mxu0 0
      %4512 = vmatpush1.bf16.msra.mxu0 0
      %4513 = vmatprep.subr.bf16.mxu0 0
      %4514 = vmatpush1.bf16.msra.mxu0 0
      %4515 = vmatprep.subr.bf16.mxu0 0
      %4516 = vmatpush1.bf16.msra.mxu0 0
      %4517 = vmatprep.subr.bf16.mxu0 0
      %4518 = vmatpush1.bf16.msra.mxu0 0
      %4519 = vmatprep.subr.bf16.mxu0 0
      %4520 = vmatpush1.bf16.msra.mxu0 0
      %4521 = vmatprep.subr.bf16.mxu0 0
      %4522 = vmatpush1.bf16.msra.mxu0 0
      %4523 = vmatprep.subr.bf16.mxu0 0
      %4524 = vmatpush1.bf16.msra.mxu0 0
      %4525 = vmatprep.subr.bf16.mxu0 0
      %4526 = vmatpush1.bf16.msra.mxu0 0
      %4527 = vmatprep.subr.bf16.mxu0 0
      %4528 = vmatpush1.bf16.msra.mxu0 0
      %4529 = vmatprep.subr.bf16.mxu0 0
      %4530 = vmatpush1.bf16.msra.mxu0 0
      %4531 = vmatprep.subr.bf16.mxu0 0
      %4532 = vmatpush1.bf16.msra.mxu0 0
      %4533 = vmatprep.mubr.bf16.mxu0 0
      %4534 = vmatmul.mubr.bf16.gmra.mrb[0].mxu0 %v3815
      %v4535 = vpop.f32.mrb[0].mxu0
      %v4536 = vadd.f32 0.0, %v4535
      %v4537 = vpop.f32.mrb[0].mxu0
      %v4538 = vpop.f32.mrb[0].mxu0
      %v4539 = vadd.f32 0.0, %v4538
      %v4540 = vpop.f32.mrb[0].mxu0
      %4541 = vmatprep.mubr.bf16.mxu0 0
      %4542 = vmatmul.mubr.bf16.gmra.mrb[0].mxu0 %v3818
      %v4543 = vpop.f32.mrb[0].mxu0
      %v4544 = vadd.f32 0.0, %v4543
      %v4545 = vpop.f32.mrb[0].mxu0
      %v4546 = vpop.f32.mrb[0].mxu0
      %v4547 = vadd.f32 0.0, %v4546
      %v4548 = vpop.f32.mrb[0].mxu0
      %4549 = vmatprep.mubr.bf16.mxu0 0
      %4550 = vmatmul.mubr.bf16.gmra.mrb[0].mxu0 %v3821
      %v4551 = vpop.f32.mrb[0].mxu0
      %v4552 = vadd.f32 0.0, %v4551
      %v4553 = vpop.f32.mrb[0].mxu0
      %v4554 = vpop.f32.mrb[0].mxu0
      %v4555 = vadd.f32 0.0, %v4554
      %v4556 = vpop.f32.mrb[0].mxu0
      %4557 = vmatprep.mubr.bf16.mxu0 0
      %4558 = vmatmul.mubr.bf16.gmra.mrb[0].mxu0 %v3824
      %v4559 = vpop.f32.mrb[0].mxu0
      %v4560 = vadd.f32 0.0, %v4559
      %v4561 = vpop.f32.mrb[0].mxu0
      %v4562 = vpop.f32.mrb[0].mxu0
      %v4563 = vadd.f32 0.0, %v4562
      %v4564 = vpop.f32.mrb[0].mxu0
      %4565 = vmatprep.mubr.bf16.mxu0 0
      %4566 = vmatmul.mubr.bf16.gmra.mrb[0].mxu0 %v3827
      %v4567 = vpop.f32.mrb[0].mxu0
      %v4568 = vadd.f32 0.0, %v4567
      %v4569 = vpop.f32.mrb[0].mxu0
      %v4570 = vpop.f32.mrb[0].mxu0
      %v4571 = vadd.f32 0.0, %v4570
      %v4572 = vpop.f32.mrb[0].mxu0
      %4573 = vmatprep.mubr.bf16.mxu0 0
      %4574 = vmatmul.mubr.bf16.gmra.mrb[0].mxu0 %v3830
      %v4575 = vpop.f32.mrb[0].mxu0
      %v4576 = vadd.f32 0.0, %v4575
      %v4577 = vpop.f32.mrb[0].mxu0
      %v4578 = vpop.f32.mrb[0].mxu0
      %v4579 = vadd.f32 0.0, %v4578
      %v4580 = vpop.f32.mrb[0].mxu0
      %4581 = vmatprep.mubr.bf16.mxu0 0
      %4582 = vmatmul.mubr.bf16.gmra.mrb[0].mxu0 %v3833
      %v4583 = vpop.f32.mrb[0].mxu0
      %v4584 = vadd.f32 0.0, %v4583
      %v4585 = vpop.f32.mrb[0].mxu0
      %v4586 = vpop.f32.mrb[0].mxu0
      %v4587 = vadd.f32 0.0, %v4586
      %v4588 = vpop.f32.mrb[0].mxu0
      %4589 = vmatprep.mubr.bf16.mxu0 0
      %4590 = vmatmul.mubr.bf16.gmra.mrb[0].mxu0 %v3836
      %v4591 = vpop.f32.mrb[0].mxu0
      %v4592 = vadd.f32 0.0, %v4591
      %v4593 = vpop.f32.mrb[0].mxu0
      %v4594 = vpop.f32.mrb[0].mxu0
      %v4595 = vadd.f32 0.0, %v4594
      %v4596 = vpop.f32.mrb[0].mxu0
      %4597 = vmatprep.mubr.bf16.mxu0 0
      %4598 = vmatmul.mubr.bf16.gmra.mrb[0].mxu0 %v3839
      %v4599 = vpop.f32.mrb[0].mxu0
      %v4600 = vadd.f32 0.0, %v4599
      %v4601 = vpop.f32.mrb[0].mxu0
      %v4602 = vpop.f32.mrb[0].mxu0
      %v4603 = vadd.f32 0.0, %v4602
      %v4604 = vpop.f32.mrb[0].mxu0
      %4605 = vmatprep.mubr.bf16.mxu0 0
      %4606 = vmatmul.mubr.bf16.gmra.mrb[0].mxu0 %v3842
      %v4607 = vpop.f32.mrb[0].mxu0
      %v4608 = vadd.f32 0.0, %v4607
      %v4609 = vpop.f32.mrb[0].mxu0
      %v4610 = vpop.f32.mrb[0].mxu0
      %v4611 = vadd.f32 0.0, %v4610
      %v4612 = vpop.f32.mrb[0].mxu0
      %4613 = vmatprep.mubr.bf16.mxu0 0
      %4614 = vmatmul.mubr.bf16.gmra.mrb[0].mxu0 %v3845
      %v4615 = vpop.f32.mrb[0].mxu0
      %v4616 = vadd.f32 0.0, %v4615
      %v4617 = vpop.f32.mrb[0].mxu0
      %v4618 = vpop.f32.mrb[0].mxu0
      %v4619 = vadd.f32 0.0, %v4618
      %v4620 = vpop.f32.mrb[0].mxu0
      %4621 = vmatprep.mubr.bf16.mxu0 0
      %4622 = vmatmul.mubr.bf16.gmra.mrb[0].mxu0 %v3848
      %v4623 = vpop.f32.mrb[0].mxu0
      %v4624 = vadd.f32 0.0, %v4623
      %v4625 = vpop.f32.mrb[0].mxu0
      %v4626 = vpop.f32.mrb[0].mxu0
      %v4627 = vadd.f32 0.0, %v4626
      %v4628 = vpop.f32.mrb[0].mxu0
      %4629 = vmatprep.mubr.bf16.mxu0 0
      %4630 = vmatmul.mubr.bf16.gmra.mrb[0].mxu0 %v3851
      %v4631 = vpop.f32.mrb[0].mxu0
      %v4632 = vadd.f32 0.0, %v4631
      %v4633 = vpop.f32.mrb[0].mxu0
      %v4634 = vpop.f32.mrb[0].mxu0
      %v4635 = vadd.f32 0.0, %v4634
      %v4636 = vpop.f32.mrb[0].mxu0
      %4637 = vmatprep.mubr.bf16.mxu0 0
      %4638 = vmatmul.mubr.bf16.gmra.mrb[0].mxu0 %v3854
      %v4639 = vpop.f32.mrb[0].mxu0
      %v4640 = vadd.f32 0.0, %v4639
      %v4641 = vpop.f32.mrb[0].mxu0
      %v4642 = vpop.f32.mrb[0].mxu0
      %v4643 = vadd.f32 0.0, %v4642
      %v4644 = vpop.f32.mrb[0].mxu0
      %4645 = vmatprep.mubr.bf16.mxu0 0
      %4646 = vmatmul.mubr.bf16.gmra.mrb[0].mxu0 %v3857
      %v4647 = vpop.f32.mrb[0].mxu0
      %v4648 = vadd.f32 0.0, %v4647
      %v4649 = vpop.f32.mrb[0].mxu0
      %v4650 = vpop.f32.mrb[0].mxu0
      %v4651 = vadd.f32 0.0, %v4650
      %v4652 = vpop.f32.mrb[0].mxu0
      %4653 = vmatprep.mubr.bf16.mxu0 0
      %4654 = vmatmul.mubr.bf16.gmra.mrb[0].mxu0 %v3860
      %v4655 = vpop.f32.mrb[0].mxu0
      %v4656 = vadd.f32 0.0, %v4655
      %v4657 = vpop.f32.mrb[0].mxu0
      %v4658 = vpop.f32.mrb[0].mxu0
      %v4659 = vadd.f32 0.0, %v4658
      %v4660 = vpop.f32.mrb[0].mxu0
      %4661 = vmatprep.mubr.bf16.mxu0 0
      %4662 = vmatmul.mubr.bf16.gmra.mrb[0].mxu0 %v3863
      %v4663 = vpop.f32.mrb[0].mxu0
      %v4664 = vadd.f32 0.0, %v4663
      %v4665 = vpop.f32.mrb[0].mxu0
      %v4666 = vpop.f32.mrb[0].mxu0
      %v4667 = vadd.f32 0.0, %v4666
      %v4668 = vpop.f32.mrb[0].mxu0
      %4669 = vmatprep.mubr.bf16.mxu0 0
      %4670 = vmatmul.mubr.bf16.gmra.mrb[0].mxu0 %v3866
      %v4671 = vpop.f32.mrb[0].mxu0
      %v4672 = vadd.f32 0.0, %v4671
      %v4673 = vpop.f32.mrb[0].mxu0
      %v4674 = vpop.f32.mrb[0].mxu0
      %v4675 = vadd.f32 0.0, %v4674
      %v4676 = vpop.f32.mrb[0].mxu0
      %4677 = vmatprep.mubr.bf16.mxu0 0
      %4678 = vmatmul.mubr.bf16.gmra.mrb[0].mxu0 %v3869
      %v4679 = vpop.f32.mrb[0].mxu0
      %v4680 = vadd.f32 0.0, %v4679
      %v4681 = vpop.f32.mrb[0].mxu0
      %v4682 = vpop.f32.mrb[0].mxu0
      %v4683 = vadd.f32 0.0, %v4682
      %v4684 = vpop.f32.mrb[0].mxu0
      %4685 = vmatprep.mubr.bf16.mxu0 0
      %4686 = vmatmul.mubr.bf16.gmra.mrb[0].mxu0 %v3872
      %v4687 = vpop.f32.mrb[0].mxu0
      %v4688 = vadd.f32 0.0, %v4687
      %v4689 = vpop.f32.mrb[0].mxu0
      %v4690 = vpop.f32.mrb[0].mxu0
      %v4691 = vadd.f32 0.0, %v4690
      %v4692 = vpop.f32.mrb[0].mxu0
      %4693 = vmatprep.mubr.bf16.mxu0 0
      %4694 = vmatmul.mubr.bf16.gmra.mrb[0].mxu0 %v3875
      %v4695 = vpop.f32.mrb[0].mxu0
      %v4696 = vadd.f32 0.0, %v4695
      %v4697 = vpop.f32.mrb[0].mxu0
      %v4698 = vpop.f32.mrb[0].mxu0
      %v4699 = vadd.f32 0.0, %v4698
      %v4700 = vpop.f32.mrb[0].mxu0
      %4701 = vmatprep.mubr.bf16.mxu0 0
      %4702 = vmatmul.mubr.bf16.gmra.mrb[0].mxu0 %v3878
      %v4703 = vpop.f32.mrb[0].mxu0
      %v4704 = vadd.f32 0.0, %v4703
      %v4705 = vpop.f32.mrb[0].mxu0
      %v4706 = vpop.f32.mrb[0].mxu0
      %v4707 = vadd.f32 0.0, %v4706
      %v4708 = vpop.f32.mrb[0].mxu0
      %4709 = vmatprep.mubr.bf16.mxu0 0
      %4710 = vmatmul.mubr.bf16.gmra.mrb[0].mxu0 %v3881
      %v4711 = vpop.f32.mrb[0].mxu0
      %v4712 = vadd.f32 0.0, %v4711
      %v4713 = vpop.f32.mrb[0].mxu0
      %v4714 = vpop.f32.mrb[0].mxu0
      %v4715 = vadd.f32 0.0, %v4714
      %v4716 = vpop.f32.mrb[0].mxu0
      %4717 = vmatprep.mubr.bf16.mxu0 0
      %4718 = vmatmul.mubr.bf16.gmra.mrb[0].mxu0 %v3884
      %v4719 = vpop.f32.mrb[0].mxu0
      %v4720 = vadd.f32 0.0, %v4719
      %v4721 = vpop.f32.mrb[0].mxu0
      %v4722 = vpop.f32.mrb[0].mxu0
      %v4723 = vadd.f32 0.0, %v4722
      %v4724 = vpop.f32.mrb[0].mxu0
      %4725 = vmatprep.mubr.bf16.mxu0 0
      %4726 = vmatmul.mubr.bf16.gmra.mrb[0].mxu0 %v3887
      %v4727 = vpop.f32.mrb[0].mxu0
      %v4728 = vadd.f32 0.0, %v4727
      %v4729 = vpop.f32.mrb[0].mxu0
      %v4730 = vpop.f32.mrb[0].mxu0
      %v4731 = vadd.f32 0.0, %v4730
      %v4732 = vpop.f32.mrb[0].mxu0
      %4733 = vmatprep.mubr.bf16.mxu0 0
      %4734 = vmatmul.mubr.bf16.gmra.mrb[0].mxu0 %v3890
      %v4735 = vpop.f32.mrb[0].mxu0
      %v4736 = vadd.f32 0.0, %v4735
      %v4737 = vpop.f32.mrb[0].mxu0
      %v4738 = vpop.f32.mrb[0].mxu0
      %v4739 = vadd.f32 0.0, %v4738
      %v4740 = vpop.f32.mrb[0].mxu0
      %4741 = vmatprep.mubr.bf16.mxu0 0
      %4742 = vmatmul.mubr.bf16.gmra.mrb[0].mxu0 %v3893
      %v4743 = vpop.f32.mrb[0].mxu0
      %v4744 = vadd.f32 0.0, %v4743
      %v4745 = vpop.f32.mrb[0].mxu0
      %v4746 = vpop.f32.mrb[0].mxu0
      %v4747 = vadd.f32 0.0, %v4746
      %v4748 = vpop.f32.mrb[0].mxu0
      %4749 = vmatprep.mubr.bf16.mxu0 0
      %4750 = vmatmul.mubr.bf16.gmra.mrb[0].mxu0 %v3896
      %v4751 = vpop.f32.mrb[0].mxu0
      %v4752 = vadd.f32 0.0, %v4751
      %v4753 = vpop.f32.mrb[0].mxu0
      %v4754 = vpop.f32.mrb[0].mxu0
      %v4755 = vadd.f32 0.0, %v4754
      %v4756 = vpop.f32.mrb[0].mxu0
      %4757 = vmatprep.mubr.bf16.mxu0 0
      %4758 = vmatmul.mubr.bf16.gmra.mrb[0].mxu0 %v3899
      %v4759 = vpop.f32.mrb[0].mxu0
      %v4760 = vadd.f32 0.0, %v4759
      %v4761 = vpop.f32.mrb[0].mxu0
      %v4762 = vpop.f32.mrb[0].mxu0
      %v4763 = vadd.f32 0.0, %v4762
      %v4764 = vpop.f32.mrb[0].mxu0
      %4765 = vmatprep.mubr.bf16.mxu0 0
      %4766 = vmatmul.mubr.bf16.gmra.mrb[0].mxu0 %v3902
      %v4767 = vpop.f32.mrb[0].mxu0
      %v4768 = vadd.f32 0.0, %v4767
      %v4769 = vpop.f32.mrb[0].mxu0
      %v4770 = vpop.f32.mrb[0].mxu0
      %v4771 = vadd.f32 0.0, %v4770
      %v4772 = vpop.f32.mrb[0].mxu0
      %4773 = vmatprep.mubr.bf16.mxu0 0
      %4774 = vmatmul.mubr.bf16.gmra.mrb[0].mxu0 %v3905
      %v4775 = vpop.f32.mrb[0].mxu0
      %v4776 = vadd.f32 0.0, %v4775
      %v4777 = vpop.f32.mrb[0].mxu0
      %v4778 = vpop.f32.mrb[0].mxu0
      %v4779 = vadd.f32 0.0, %v4778
      %v4780 = vpop.f32.mrb[0].mxu0
      %4781 = vmatprep.mubr.bf16.mxu0 0
      %4782 = vmatmul.mubr.bf16.gmra.mrb[0].mxu0 %v3908
      %v4783 = vpop.f32.mrb[0].mxu0
      %v4784 = vadd.f32 0.0, %v4783
      %v4785 = vpop.f32.mrb[0].mxu0
      %v4786 = vpop.f32.mrb[0].mxu0
      %v4787 = vadd.f32 0.0, %v4786
      %v4788 = vpop.f32.mrb[0].mxu0
      %4789 = vdwg.mxu0
      %v4790 = vrot.slane %v3948, 7
      %v4791 = vrot.slane %v3951, 7
      %v4792 = vrot.slane %v3956, 7
      %v4793 = vrot.slane %v3959, 7
      %v4794 = vrot.slane %v3964, 7
      %v4795 = vrot.slane %v3967, 7
      %v4796 = vrot.slane %v3972, 7
      %v4797 = vrot.slane %v3975, 7
      %v4798 = vrot.slane %v3980, 7
      %v4799 = vrot.slane %v3983, 7
      %v4800 = vrot.slane %v3988, 7
      %v4801 = vrot.slane %v3991, 7
      %v4802 = vrot.slane %v3996, 7
      %v4803 = vrot.slane %v3999, 7
      %v4804 = vrot.slane %v4004, 7
      %v4805 = vrot.slane %v4007, 7
      %v4806 = vrot.slane %v4012, 7
      %v4807 = vrot.slane %v4015, 7
      %v4808 = vrot.slane %v4020, 7
      %v4809 = vrot.slane %v4023, 7
      %v4810 = vrot.slane %v4028, 7
      %v4811 = vrot.slane %v4031, 7
      %v4812 = vrot.slane %v4036, 7
      %v4813 = vrot.slane %v4039, 7
      %v4814 = vrot.slane %v4044, 7
      %v4815 = vrot.slane %v4047, 7
      %v4816 = vrot.slane %v4052, 7
      %v4817 = vrot.slane %v4055, 7
      %v4818 = vrot.slane %v4060, 7
      %v4819 = vrot.slane %v4063, 7
      %v4820 = vrot.slane %v4068, 7
      %v4821 = vrot.slane %v4071, 7
      %v4822 = vrot.slane %v4076, 7
      %v4823 = vrot.slane %v4079, 7
      %v4824 = vrot.slane %v4084, 7
      %v4825 = vrot.slane %v4087, 7
      %v4826 = vrot.slane %v4092, 7
      %v4827 = vrot.slane %v4095, 7
      %v4828 = vrot.slane %v4100, 7
      %v4829 = vrot.slane %v4103, 7
      %v4830 = vrot.slane %v4108, 7
      %v4831 = vrot.slane %v4111, 7
      %v4832 = vrot.slane %v4116, 7
      %v4833 = vrot.slane %v4119, 7
      %v4834 = vrot.slane %v4124, 7
      %v4835 = vrot.slane %v4127, 7
      %v4836 = vrot.slane %v4132, 7
      %v4837 = vrot.slane %v4135, 7
      %v4838 = vrot.slane %v4140, 7
      %v4839 = vrot.slane %v4143, 7
      %v4840 = vrot.slane %v4148, 7
      %v4841 = vrot.slane %v4151, 7
      %v4842 = vrot.slane %v4156, 7
      %v4843 = vrot.slane %v4159, 7
      %v4844 = vrot.slane %v4164, 7
      %v4845 = vrot.slane %v4167, 7
      %v4846 = vrot.slane %v4172, 7
      %v4847 = vrot.slane %v4175, 7
      %v4848 = vrot.slane %v4180, 7
      %v4849 = vrot.slane %v4183, 7
      %v4850 = vrot.slane %v4188, 7
      %v4851 = vrot.slane %v4191, 7
      %v4852 = vrot.slane %v4196, 7
      %v4853 = vrot.slane %v4199, 7
      %v4854 = vsel %vm1552, %v4852, %v4853
      %v4855 = vsel %vm1552, %v4851, %v4852
      %v4856 = vsel %vm1552, %v4850, %v4851
      %v4857 = vsel %vm1552, %v4849, %v4850
      %v4858 = vsel %vm1552, %v4848, %v4849
      %v4859 = vsel %vm1552, %v4847, %v4848
      %v4860 = vsel %vm1552, %v4846, %v4847
      %v4861 = vsel %vm1552, %v4845, %v4846
      %v4862 = vsel %vm1552, %v4844, %v4845
      %v4863 = vsel %vm1552, %v4843, %v4844
      %v4864 = vsel %vm1552, %v4842, %v4843
      %v4865 = vsel %vm1552, %v4841, %v4842
      %v4866 = vsel %vm1552, %v4840, %v4841
      %v4867 = vsel %vm1552, %v4839, %v4840
      %v4868 = vsel %vm1552, %v4838, %v4839
      %v4869 = vsel %vm1552, %v4837, %v4838
      %v4870 = vsel %vm1552, %v4836, %v4837
      %v4871 = vsel %vm1552, %v4835, %v4836
      %v4872 = vsel %vm1552, %v4834, %v4835
      %v4873 = vsel %vm1552, %v4833, %v4834
      %v4874 = vsel %vm1552, %v4832, %v4833
      %v4875 = vsel %vm1552, %v4831, %v4832
      %v4876 = vsel %vm1552, %v4830, %v4831
      %v4877 = vsel %vm1552, %v4829, %v4830
      %v4878 = vsel %vm1552, %v4828, %v4829
      %v4879 = vsel %vm1552, %v4827, %v4828
      %v4880 = vsel %vm1552, %v4826, %v4827
      %v4881 = vsel %vm1552, %v4825, %v4826
      %v4882 = vsel %vm1552, %v4824, %v4825
      %v4883 = vsel %vm1552, %v4823, %v4824
      %v4884 = vsel %vm1552, %v4822, %v4823
      %v4885 = vsel %vm1552, %v4821, %v4822
      %v4886 = vsel %vm1552, %v4820, %v4821
      %v4887 = vsel %vm1552, %v4819, %v4820
      %v4888 = vsel %vm1552, %v4818, %v4819
      %v4889 = vsel %vm1552, %v4817, %v4818
      %v4890 = vsel %vm1552, %v4816, %v4817
      %v4891 = vsel %vm1552, %v4815, %v4816
      %v4892 = vsel %vm1552, %v4814, %v4815
      %v4893 = vsel %vm1552, %v4813, %v4814
      %v4894 = vsel %vm1552, %v4812, %v4813
      %v4895 = vsel %vm1552, %v4811, %v4812
      %v4896 = vsel %vm1552, %v4810, %v4811
      %v4897 = vsel %vm1552, %v4809, %v4810
      %v4898 = vsel %vm1552, %v4808, %v4809
      %v4899 = vsel %vm1552, %v4807, %v4808
      %v4900 = vsel %vm1552, %v4806, %v4807
      %v4901 = vsel %vm1552, %v4805, %v4806
      %v4902 = vsel %vm1552, %v4804, %v4805
      %v4903 = vsel %vm1552, %v4803, %v4804
      %v4904 = vsel %vm1552, %v4802, %v4803
      %v4905 = vsel %vm1552, %v4801, %v4802
      %v4906 = vsel %vm1552, %v4800, %v4801
      %v4907 = vsel %vm1552, %v4799, %v4800
      %v4908 = vsel %vm1552, %v4798, %v4799
      %v4909 = vsel %vm1552, %v4797, %v4798
      %v4910 = vsel %vm1552, %v4796, %v4797
      %v4911 = vsel %vm1552, %v4795, %v4796
      %v4912 = vsel %vm1552, %v4794, %v4795
      %v4913 = vsel %vm1552, %v4793, %v4794
      %v4914 = vsel %vm1552, %v4792, %v4793
      %v4915 = vsel %vm1552, %v4791, %v4792
      %v4916 = vsel %vm1552, %v4790, %v4791
      %v4917 = vsel %vm1552, %v4853, %v4790
      %v4918 = vadd.f32 %v3524, %v4917
      %v4919 = vadd.f32 %v3525, %v4916
      %v4920 = vadd.f32 %v3526, %v4915
      %v4921 = vadd.f32 %v3527, %v4914
      %v4922 = vadd.f32 %v3528, %v4913
      %v4923 = vadd.f32 %v3529, %v4912
      %v4924 = vadd.f32 %v3530, %v4911
      %v4925 = vadd.f32 %v3531, %v4910
      %v4926 = vadd.f32 %v3532, %v4909
      %v4927 = vadd.f32 %v3533, %v4908
      %v4928 = vadd.f32 %v3534, %v4907
      %v4929 = vadd.f32 %v3535, %v4906
      %v4930 = vadd.f32 %v3536, %v4905
      %v4931 = vadd.f32 %v3537, %v4904
      %v4932 = vadd.f32 %v3538, %v4903
      %v4933 = vadd.f32 %v3539, %v4902
      %v4934 = vadd.f32 %v3540, %v4901
      %v4935 = vadd.f32 %v3541, %v4900
      %v4936 = vadd.f32 %v3542, %v4899
      %v4937 = vadd.f32 %v3543, %v4898
      %v4938 = vadd.f32 %v3544, %v4897
      %v4939 = vadd.f32 %v3545, %v4896
      %v4940 = vadd.f32 %v3546, %v4895
      %v4941 = vadd.f32 %v3547, %v4894
      %v4942 = vadd.f32 %v3548, %v4893
      %v4943 = vadd.f32 %v3549, %v4892
      %v4944 = vadd.f32 %v3550, %v4891
      %v4945 = vadd.f32 %v3551, %v4890
      %v4946 = vadd.f32 %v3552, %v4889
      %v4947 = vadd.f32 %v3553, %v4888
      %v4948 = vadd.f32 %v3554, %v4887
      %v4949 = vadd.f32 %v3555, %v4886
      %v4950 = vadd.f32 %v3556, %v4885
      %v4951 = vadd.f32 %v3557, %v4884
      %v4952 = vadd.f32 %v3558, %v4883
      %v4953 = vadd.f32 %v3559, %v4882
      %v4954 = vadd.f32 %v3560, %v4881
      %v4955 = vadd.f32 %v3561, %v4880
      %v4956 = vadd.f32 %v3562, %v4879
      %v4957 = vadd.f32 %v3563, %v4878
      %v4958 = vadd.f32 %v3564, %v4877
      %v4959 = vadd.f32 %v3565, %v4876
      %v4960 = vadd.f32 %v3566, %v4875
      %v4961 = vadd.f32 %v3567, %v4874
      %v4962 = vadd.f32 %v3568, %v4873
      %v4963 = vadd.f32 %v3569, %v4872
      %v4964 = vadd.f32 %v3570, %v4871
      %v4965 = vadd.f32 %v3571, %v4870
      %v4966 = vadd.f32 %v3572, %v4869
      %v4967 = vadd.f32 %v3573, %v4868
      %v4968 = vadd.f32 %v3574, %v4867
      %v4969 = vadd.f32 %v3575, %v4866
      %v4970 = vadd.f32 %v3576, %v4865
      %v4971 = vadd.f32 %v3577, %v4864
      %v4972 = vadd.f32 %v3578, %v4863
      %v4973 = vadd.f32 %v3579, %v4862
      %v4974 = vadd.f32 %v3580, %v4861
      %v4975 = vadd.f32 %v3581, %v4860
      %v4976 = vadd.f32 %v3582, %v4859
      %v4977 = vadd.f32 %v3583, %v4858
      %v4978 = vadd.f32 %v3584, %v4857
      %v4979 = vadd.f32 %v3585, %v4856
      %v4980 = vadd.f32 %v3586, %v4855
      %v4981 = vadd.f32 %v3587, %v4854
      %v4982 = vadd.f32 %v4918, %v4242
      %v4983 = vadd.f32 %v4919, %v4245
      %v4984 = vadd.f32 %v4920, %v4250
      %v4985 = vadd.f32 %v4921, %v4253
      %v4986 = vadd.f32 %v4922, %v4258
      %v4987 = vadd.f32 %v4923, %v4261
      %v4988 = vadd.f32 %v4924, %v4266
      %v4989 = vadd.f32 %v4925, %v4269
      %v4990 = vadd.f32 %v4926, %v4274
      %v4991 = vadd.f32 %v4927, %v4277
      %v4992 = vadd.f32 %v4928, %v4282
      %v4993 = vadd.f32 %v4929, %v4285
      %v4994 = vadd.f32 %v4930, %v4290
      %v4995 = vadd.f32 %v4931, %v4293
      %v4996 = vadd.f32 %v4932, %v4298
      %v4997 = vadd.f32 %v4933, %v4301
      %v4998 = vadd.f32 %v4934, %v4306
      %v4999 = vadd.f32 %v4935, %v4309
      %v5000 = vadd.f32 %v4936, %v4314
      %v5001 = vadd.f32 %v4937, %v4317
      %v5002 = vadd.f32 %v4938, %v4322
      %v5003 = vadd.f32 %v4939, %v4325
      %v5004 = vadd.f32 %v4940, %v4330
      %v5005 = vadd.f32 %v4941, %v4333
      %v5006 = vadd.f32 %v4942, %v4338
      %v5007 = vadd.f32 %v4943, %v4341
      %v5008 = vadd.f32 %v4944, %v4346
      %v5009 = vadd.f32 %v4945, %v4349
      %v5010 = vadd.f32 %v4946, %v4354
      %v5011 = vadd.f32 %v4947, %v4357
      %v5012 = vadd.f32 %v4948, %v4362
      %v5013 = vadd.f32 %v4949, %v4365
      %v5014 = vadd.f32 %v4950, %v4370
      %v5015 = vadd.f32 %v4951, %v4373
      %v5016 = vadd.f32 %v4952, %v4378
      %v5017 = vadd.f32 %v4953, %v4381
      %v5018 = vadd.f32 %v4954, %v4386
      %v5019 = vadd.f32 %v4955, %v4389
      %v5020 = vadd.f32 %v4956, %v4394
      %v5021 = vadd.f32 %v4957, %v4397
      %v5022 = vadd.f32 %v4958, %v4402
      %v5023 = vadd.f32 %v4959, %v4405
      %v5024 = vadd.f32 %v4960, %v4410
      %v5025 = vadd.f32 %v4961, %v4413
      %v5026 = vadd.f32 %v4962, %v4418
      %v5027 = vadd.f32 %v4963, %v4421
      %v5028 = vadd.f32 %v4964, %v4426
      %v5029 = vadd.f32 %v4965, %v4429
      %v5030 = vadd.f32 %v4966, %v4434
      %v5031 = vadd.f32 %v4967, %v4437
      %v5032 = vadd.f32 %v4968, %v4442
      %v5033 = vadd.f32 %v4969, %v4445
      %v5034 = vadd.f32 %v4970, %v4450
      %v5035 = vadd.f32 %v4971, %v4453
      %v5036 = vadd.f32 %v4972, %v4458
      %v5037 = vadd.f32 %v4973, %v4461
      %v5038 = vadd.f32 %v4974, %v4466
      %v5039 = vadd.f32 %v4975, %v4469
      %v5040 = vadd.f32 %v4976, %v4474
      %v5041 = vadd.f32 %v4977, %v4477
      %v5042 = vadd.f32 %v4978, %v4482
      %v5043 = vadd.f32 %v4979, %v4485
      %v5044 = vadd.f32 %v4980, %v4490
      %v5045 = vadd.f32 %v4981, %v4493
      %v5046 = vrot.slane %v4536, 1
      %v5047 = vrot.slane %v4539, 1
      %v5048 = vrot.slane %v4544, 1
      %v5049 = vrot.slane %v4547, 1
      %v5050 = vrot.slane %v4552, 1
      %v5051 = vrot.slane %v4555, 1
      %v5052 = vrot.slane %v4560, 1
      %v5053 = vrot.slane %v4563, 1
      %v5054 = vrot.slane %v4568, 1
      %v5055 = vrot.slane %v4571, 1
      %v5056 = vrot.slane %v4576, 1
      %v5057 = vrot.slane %v4579, 1
      %v5058 = vrot.slane %v4584, 1
      %v5059 = vrot.slane %v4587, 1
      %v5060 = vrot.slane %v4592, 1
      %v5061 = vrot.slane %v4595, 1
      %v5062 = vrot.slane %v4600, 1
      %v5063 = vrot.slane %v4603, 1
      %v5064 = vrot.slane %v4608, 1
      %v5065 = vrot.slane %v4611, 1
      %v5066 = vrot.slane %v4616, 1
      %v5067 = vrot.slane %v4619, 1
      %v5068 = vrot.slane %v4624, 1
      %v5069 = vrot.slane %v4627, 1
      %v5070 = vrot.slane %v4632, 1
      %v5071 = vrot.slane %v4635, 1
      %v5072 = vrot.slane %v4640, 1
      %v5073 = vrot.slane %v4643, 1
      %v5074 = vrot.slane %v4648, 1
      %v5075 = vrot.slane %v4651, 1
      %v5076 = vrot.slane %v4656, 1
      %v5077 = vrot.slane %v4659, 1
      %v5078 = vrot.slane %v4664, 1
      %v5079 = vrot.slane %v4667, 1
      %v5080 = vrot.slane %v4672, 1
      %v5081 = vrot.slane %v4675, 1
      %v5082 = vrot.slane %v4680, 1
      %v5083 = vrot.slane %v4683, 1
      %v5084 = vrot.slane %v4688, 1
      %v5085 = vrot.slane %v4691, 1
      %v5086 = vrot.slane %v4696, 1
      %v5087 = vrot.slane %v4699, 1
      %v5088 = vrot.slane %v4704, 1
      %v5089 = vrot.slane %v4707, 1
      %v5090 = vrot.slane %v4712, 1
      %v5091 = vrot.slane %v4715, 1
      %v5092 = vrot.slane %v4720, 1
      %v5093 = vrot.slane %v4723, 1
      %v5094 = vrot.slane %v4728, 1
      %v5095 = vrot.slane %v4731, 1
      %v5096 = vrot.slane %v4736, 1
      %v5097 = vrot.slane %v4739, 1
      %v5098 = vrot.slane %v4744, 1
      %v5099 = vrot.slane %v4747, 1
      %v5100 = vrot.slane %v4752, 1
      %v5101 = vrot.slane %v4755, 1
      %v5102 = vrot.slane %v4760, 1
      %v5103 = vrot.slane %v4763, 1
      %v5104 = vrot.slane %v4768, 1
      %v5105 = vrot.slane %v4771, 1
      %v5106 = vrot.slane %v4776, 1
      %v5107 = vrot.slane %v4779, 1
      %v5108 = vrot.slane %v4784, 1
      %v5109 = vrot.slane %v4787, 1
      %v5110 = vsel %vm1809, %v5108, %v5109
      %v5111 = vsel %vm1809, %v5107, %v5108
      %v5112 = vsel %vm1809, %v5106, %v5107
      %v5113 = vsel %vm1809, %v5105, %v5106
      %v5114 = vsel %vm1809, %v5104, %v5105
      %v5115 = vsel %vm1809, %v5103, %v5104
      %v5116 = vsel %vm1809, %v5102, %v5103
      %v5117 = vsel %vm1809, %v5101, %v5102
      %v5118 = vsel %vm1809, %v5100, %v5101
      %v5119 = vsel %vm1809, %v5099, %v5100
      %v5120 = vsel %vm1809, %v5098, %v5099
      %v5121 = vsel %vm1809, %v5097, %v5098
      %v5122 = vsel %vm1809, %v5096, %v5097
      %v5123 = vsel %vm1809, %v5095, %v5096
      %v5124 = vsel %vm1809, %v5094, %v5095
      %v5125 = vsel %vm1809, %v5093, %v5094
      %v5126 = vsel %vm1809, %v5092, %v5093
      %v5127 = vsel %vm1809, %v5091, %v5092
      %v5128 = vsel %vm1809, %v5090, %v5091
      %v5129 = vsel %vm1809, %v5089, %v5090
      %v5130 = vsel %vm1809, %v5088, %v5089
      %v5131 = vsel %vm1809, %v5087, %v5088
      %v5132 = vsel %vm1809, %v5086, %v5087
      %v5133 = vsel %vm1809, %v5085, %v5086
      %v5134 = vsel %vm1809, %v5084, %v5085
      %v5135 = vsel %vm1809, %v5083, %v5084
      %v5136 = vsel %vm1809, %v5082, %v5083
      %v5137 = vsel %vm1809, %v5081, %v5082
      %v5138 = vsel %vm1809, %v5080, %v5081
      %v5139 = vsel %vm1809, %v5079, %v5080
      %v5140 = vsel %vm1809, %v5078, %v5079
      %v5141 = vsel %vm1809, %v5077, %v5078
      %v5142 = vsel %vm1809, %v5076, %v5077
      %v5143 = vsel %vm1809, %v5075, %v5076
      %v5144 = vsel %vm1809, %v5074, %v5075
      %v5145 = vsel %vm1809, %v5073, %v5074
      %v5146 = vsel %vm1809, %v5072, %v5073
      %v5147 = vsel %vm1809, %v5071, %v5072
      %v5148 = vsel %vm1809, %v5070, %v5071
      %v5149 = vsel %vm1809, %v5069, %v5070
      %v5150 = vsel %vm1809, %v5068, %v5069
      %v5151 = vsel %vm1809, %v5067, %v5068
      %v5152 = vsel %vm1809, %v5066, %v5067
      %v5153 = vsel %vm1809, %v5065, %v5066
      %v5154 = vsel %vm1809, %v5064, %v5065
      %v5155 = vsel %vm1809, %v5063, %v5064
      %v5156 = vsel %vm1809, %v5062, %v5063
      %v5157 = vsel %vm1809, %v5061, %v5062
      %v5158 = vsel %vm1809, %v5060, %v5061
      %v5159 = vsel %vm1809, %v5059, %v5060
      %v5160 = vsel %vm1809, %v5058, %v5059
      %v5161 = vsel %vm1809, %v5057, %v5058
      %v5162 = vsel %vm1809, %v5056, %v5057
      %v5163 = vsel %vm1809, %v5055, %v5056
      %v5164 = vsel %vm1809, %v5054, %v5055
      %v5165 = vsel %vm1809, %v5053, %v5054
      %v5166 = vsel %vm1809, %v5052, %v5053
      %v5167 = vsel %vm1809, %v5051, %v5052
      %v5168 = vsel %vm1809, %v5050, %v5051
      %v5169 = vsel %vm1809, %v5049, %v5050
      %v5170 = vsel %vm1809, %v5048, %v5049
      %v5171 = vsel %vm1809, %v5047, %v5048
      %v5172 = vsel %vm1809, %v5046, %v5047
      %v5173 = vsel %vm1809, %v5109, %v5046
      %v5174 = vadd.f32 %v4982, %v5172
      %v5175 = vadd.f32 %v4983, %v5171
      %v5176 = vadd.f32 %v4984, %v5170
      %v5177 = vadd.f32 %v4985, %v5169
      %v5178 = vadd.f32 %v4986, %v5168
      %v5179 = vadd.f32 %v4987, %v5167
      %v5180 = vadd.f32 %v4988, %v5166
      %v5181 = vadd.f32 %v4989, %v5165
      %v5182 = vadd.f32 %v4990, %v5164
      %v5183 = vadd.f32 %v4991, %v5163
      %v5184 = vadd.f32 %v4992, %v5162
      %v5185 = vadd.f32 %v4993, %v5161
      %v5186 = vadd.f32 %v4994, %v5160
      %v5187 = vadd.f32 %v4995, %v5159
      %v5188 = vadd.f32 %v4996, %v5158
      %v5189 = vadd.f32 %v4997, %v5157
      %v5190 = vadd.f32 %v4998, %v5156
      %v5191 = vadd.f32 %v4999, %v5155
      %v5192 = vadd.f32 %v5000, %v5154
      %v5193 = vadd.f32 %v5001, %v5153
      %v5194 = vadd.f32 %v5002, %v5152
      %v5195 = vadd.f32 %v5003, %v5151
      %v5196 = vadd.f32 %v5004, %v5150
      %v5197 = vadd.f32 %v5005, %v5149
      %v5198 = vadd.f32 %v5006, %v5148
      %v5199 = vadd.f32 %v5007, %v5147
      %v5200 = vadd.f32 %v5008, %v5146
      %v5201 = vadd.f32 %v5009, %v5145
      %v5202 = vadd.f32 %v5010, %v5144
      %v5203 = vadd.f32 %v5011, %v5143
      %v5204 = vadd.f32 %v5012, %v5142
      %v5205 = vadd.f32 %v5013, %v5141
      %v5206 = vadd.f32 %v5014, %v5140
      %v5207 = vadd.f32 %v5015, %v5139
      %v5208 = vadd.f32 %v5016, %v5138
      %v5209 = vadd.f32 %v5017, %v5137
      %v5210 = vadd.f32 %v5018, %v5136
      %v5211 = vadd.f32 %v5019, %v5135
      %v5212 = vadd.f32 %v5020, %v5134
      %v5213 = vadd.f32 %v5021, %v5133
      %v5214 = vadd.f32 %v5022, %v5132
      %v5215 = vadd.f32 %v5023, %v5131
      %v5216 = vadd.f32 %v5024, %v5130
      %v5217 = vadd.f32 %v5025, %v5129
      %v5218 = vadd.f32 %v5026, %v5128
      %v5219 = vadd.f32 %v5027, %v5127
      %v5220 = vadd.f32 %v5028, %v5126
      %v5221 = vadd.f32 %v5029, %v5125
      %v5222 = vadd.f32 %v5030, %v5124
      %v5223 = vadd.f32 %v5031, %v5123
      %v5224 = vadd.f32 %v5032, %v5122
      %v5225 = vadd.f32 %v5033, %v5121
      %v5226 = vadd.f32 %v5034, %v5120
      %v5227 = vadd.f32 %v5035, %v5119
      %v5228 = vadd.f32 %v5036, %v5118
      %v5229 = vadd.f32 %v5037, %v5117
      %v5230 = vadd.f32 %v5038, %v5116
      %v5231 = vadd.f32 %v5039, %v5115
      %v5232 = vadd.f32 %v5040, %v5114
      %v5233 = vadd.f32 %v5041, %v5113
      %v5234 = vadd.f32 %v5042, %v5112
      %v5235 = vadd.f32 %v5043, %v5111
      %v5236 = vadd.f32 %v5044, %v5110
      %v5237 = vadd.f32 %v5045, %v5173
      %v5238 = vld [vmem:[%s2] sm:$0x1]
      %v5240 = vlaneseq
      %v5241 = vshrl.u32 %v5240, 7
      %v5242 = vsub.s32 0, %v5241
      %v5243 = vrot.slane %v5238, %v5242
      %v5245 = vadd.f32 %v5174, %v5243
      %v5246 = vadd.f32 %v5175, %v5243
      %v5247 = vadd.f32 %v5176, %v5243
      %v5248 = vadd.f32 %v5177, %v5243
      %v5249 = vadd.f32 %v5178, %v5243
      %v5250 = vadd.f32 %v5179, %v5243
      %v5251 = vadd.f32 %v5180, %v5243
      %v5252 = vadd.f32 %v5181, %v5243
      %v5253 = vadd.f32 %v5182, %v5243
      %v5254 = vadd.f32 %v5183, %v5243
      %v5255 = vadd.f32 %v5184, %v5243
      %v5256 = vadd.f32 %v5185, %v5243
      %v5257 = vadd.f32 %v5186, %v5243
      %v5258 = vadd.f32 %v5187, %v5243
      %v5259 = vadd.f32 %v5188, %v5243
      %v5260 = vadd.f32 %v5189, %v5243
      %v5261 = vadd.f32 %v5190, %v5243
      %v5262 = vadd.f32 %v5191, %v5243
      %v5263 = vadd.f32 %v5192, %v5243
      %v5264 = vadd.f32 %v5193, %v5243
      %v5265 = vadd.f32 %v5194, %v5243
      %v5266 = vadd.f32 %v5195, %v5243
      %v5267 = vadd.f32 %v5196, %v5243
      %v5268 = vadd.f32 %v5197, %v5243
      %v5269 = vadd.f32 %v5198, %v5243
      %v5270 = vadd.f32 %v5199, %v5243
      %v5271 = vadd.f32 %v5200, %v5243
      %v5272 = vadd.f32 %v5201, %v5243
      %v5273 = vadd.f32 %v5202, %v5243
      %v5274 = vadd.f32 %v5203, %v5243
      %v5275 = vadd.f32 %v5204, %v5243
      %v5276 = vadd.f32 %v5205, %v5243
      %v5277 = vadd.f32 %v5206, %v5243
      %v5278 = vadd.f32 %v5207, %v5243
      %v5279 = vadd.f32 %v5208, %v5243
      %v5280 = vadd.f32 %v5209, %v5243
      %v5281 = vadd.f32 %v5210, %v5243
      %v5282 = vadd.f32 %v5211, %v5243
      %v5283 = vadd.f32 %v5212, %v5243
      %v5284 = vadd.f32 %v5213, %v5243
      %v5285 = vadd.f32 %v5214, %v5243
      %v5286 = vadd.f32 %v5215, %v5243
      %v5287 = vadd.f32 %v5216, %v5243
      %v5288 = vadd.f32 %v5217, %v5243
      %v5289 = vadd.f32 %v5218, %v5243
      %v5290 = vadd.f32 %v5219, %v5243
      %v5291 = vadd.f32 %v5220, %v5243
      %v5292 = vadd.f32 %v5221, %v5243
      %v5293 = vadd.f32 %v5222, %v5243
      %v5294 = vadd.f32 %v5223, %v5243
      %v5295 = vadd.f32 %v5224, %v5243
      %v5296 = vadd.f32 %v5225, %v5243
      %v5297 = vadd.f32 %v5226, %v5243
      %v5298 = vadd.f32 %v5227, %v5243
      %v5299 = vadd.f32 %v5228, %v5243
      %v5300 = vadd.f32 %v5229, %v5243
      %v5301 = vadd.f32 %v5230, %v5243
      %v5302 = vadd.f32 %v5231, %v5243
      %v5303 = vadd.f32 %v5232, %v5243
      %v5304 = vadd.f32 %v5233, %v5243
      %v5305 = vadd.f32 %v5234, %v5243
      %v5306 = vadd.f32 %v5235, %v5243
      %v5307 = vadd.f32 %v5236, %v5243
      %v5308 = vadd.f32 %v5237, %v5243
      %v5309 = vmax.f32 %v5245, 0.0
      %v5310 = vmax.f32 %v5246, 0.0
      %v5311 = vmax.f32 %v5247, 0.0
      %v5312 = vmax.f32 %v5248, 0.0
      %v5313 = vmax.f32 %v5249, 0.0
      %v5314 = vmax.f32 %v5250, 0.0
      %v5315 = vmax.f32 %v5251, 0.0
      %v5316 = vmax.f32 %v5252, 0.0
      %v5317 = vmax.f32 %v5253, 0.0
      %v5318 = vmax.f32 %v5254, 0.0
      %v5319 = vmax.f32 %v5255, 0.0
      %v5320 = vmax.f32 %v5256, 0.0
      %v5321 = vmax.f32 %v5257, 0.0
      %v5322 = vmax.f32 %v5258, 0.0
      %v5323 = vmax.f32 %v5259, 0.0
      %v5324 = vmax.f32 %v5260, 0.0
      %v5325 = vmax.f32 %v5261, 0.0
      %v5326 = vmax.f32 %v5262, 0.0
      %v5327 = vmax.f32 %v5263, 0.0
      %v5328 = vmax.f32 %v5264, 0.0
      %v5329 = vmax.f32 %v5265, 0.0
      %v5330 = vmax.f32 %v5266, 0.0
      %v5331 = vmax.f32 %v5267, 0.0
      %v5332 = vmax.f32 %v5268, 0.0
      %v5333 = vmax.f32 %v5269, 0.0
      %v5334 = vmax.f32 %v5270, 0.0
      %v5335 = vmax.f32 %v5271, 0.0
      %v5336 = vmax.f32 %v5272, 0.0
      %v5337 = vmax.f32 %v5273, 0.0
      %v5338 = vmax.f32 %v5274, 0.0
      %v5339 = vmax.f32 %v5275, 0.0
      %v5340 = vmax.f32 %v5276, 0.0
      %v5341 = vmax.f32 %v5277, 0.0
      %v5342 = vmax.f32 %v5278, 0.0
      %v5343 = vmax.f32 %v5279, 0.0
      %v5344 = vmax.f32 %v5280, 0.0
      %v5345 = vmax.f32 %v5281, 0.0
      %v5346 = vmax.f32 %v5282, 0.0
      %v5347 = vmax.f32 %v5283, 0.0
      %v5348 = vmax.f32 %v5284, 0.0
      %v5349 = vmax.f32 %v5285, 0.0
      %v5350 = vmax.f32 %v5286, 0.0
      %v5351 = vmax.f32 %v5287, 0.0
      %v5352 = vmax.f32 %v5288, 0.0
      %v5353 = vmax.f32 %v5289, 0.0
      %v5354 = vmax.f32 %v5290, 0.0
      %v5355 = vmax.f32 %v5291, 0.0
      %v5356 = vmax.f32 %v5292, 0.0
      %v5357 = vmax.f32 %v5293, 0.0
      %v5358 = vmax.f32 %v5294, 0.0
      %v5359 = vmax.f32 %v5295, 0.0
      %v5360 = vmax.f32 %v5296, 0.0
      %v5361 = vmax.f32 %v5297, 0.0
      %v5362 = vmax.f32 %v5298, 0.0
      %v5363 = vmax.f32 %v5299, 0.0
      %v5364 = vmax.f32 %v5300, 0.0
      %v5365 = vmax.f32 %v5301, 0.0
      %v5366 = vmax.f32 %v5302, 0.0
      %v5367 = vmax.f32 %v5303, 0.0
      %v5368 = vmax.f32 %v5304, 0.0
      %v5369 = vmax.f32 %v5305, 0.0
      %v5370 = vmax.f32 %v5306, 0.0
      %v5371 = vmax.f32 %v5307, 0.0
      %v5372 = vmax.f32 %v5308, 0.0
      %v5373 = vadd.s32 %v1551, 8
      %v5374 = vadd.s32 %v1551, 16
      %v5375 = vadd.s32 %v1551, 24
      %v5376 = vadd.s32 %v1551, 32
      %v5377 = vadd.s32 %v1551, 40
      %v5378 = vadd.s32 %v1551, 48
      %v5379 = vadd.s32 %v1551, 56
      %v5380 = vadd.s32 %v1551, 64
      %v5381 = vadd.s32 %v1551, 72
      %v5382 = vadd.s32 %v1551, 80
      %v5383 = vadd.s32 %v1551, 88
      %v5384 = vadd.s32 %v1551, 96
      %v5385 = vadd.s32 %v1551, 104
      %v5386 = vadd.s32 %v1551, 112
      %v5387 = vadd.s32 %v1551, 120
      %v5388 = vadd.s32 %v1551, 128
      %v5389 = vadd.s32 %v1551, 136
      %v5390 = vadd.s32 %v1551, 144
      %v5391 = vadd.s32 %v1551, 152
      %v5392 = vadd.s32 %v1551, 160
      %v5393 = vadd.s32 %v1551, 168
      %v5394 = vadd.s32 %v1551, 176
      %v5395 = vadd.s32 %v1551, 184
      %v5396 = vadd.s32 %v1551, 192
      %v5397 = vadd.s32 %v1551, 200
      %v5398 = vadd.s32 %v1551, 208
      %v5399 = vadd.s32 %v1551, 216
      %v5400 = vadd.s32 %v1551, 224
      %v5401 = vadd.s32 %v1551, 232
      %v5402 = vadd.s32 %v1551, 240
      %v5403 = vadd.s32 %v1551, 248
      %v5404 = vadd.s32 %v1551, 256
      %v5405 = vadd.s32 %v1551, 264
      %v5406 = vadd.s32 %v1551, 272
      %v5407 = vadd.s32 %v1551, 280
      %v5408 = vadd.s32 %v1551, 288
      %v5409 = vadd.s32 %v1551, 296
      %v5410 = vadd.s32 %v1551, 304
      %v5411 = vadd.s32 %v1551, 312
      %v5412 = vadd.s32 %v1551, 320
      %v5413 = vadd.s32 %v1551, 328
      %v5414 = vadd.s32 %v1551, 336
      %v5415 = vadd.s32 %v1551, 344
      %v5416 = vadd.s32 %v1551, 352
      %v5417 = vadd.s32 %v1551, 360
      %v5418 = vadd.s32 %v1551, 368
      %v5419 = vadd.s32 %v1551, 376
      %v5420 = vadd.s32 %v1551, 384
      %v5421 = vadd.s32 %v1551, 392
      %v5422 = vadd.s32 %v1551, 400
      %v5423 = vadd.s32 %v1551, 408
      %v5424 = vadd.s32 %v1551, 416
      %v5425 = vadd.s32 %v1551, 424
      %v5426 = vadd.s32 %v1551, 432
      %v5427 = vadd.s32 %v1551, 440
      %v5428 = vadd.s32 %v1551, 448
      %v5429 = vadd.s32 %v1551, 456
      %v5430 = vadd.s32 %v1551, 464
      %v5431 = vadd.s32 %v1551, 472
      %v5432 = vadd.s32 %v1551, 480
      %v5433 = vadd.s32 %v1551, 488
      %v5434 = vadd.s32 %v1551, 496
      %v5435 = vadd.s32 %v1551, 504
      %vm5436 = vcmp.lt.s32.totalorder %v1551, 0
      %v5437 = vsub.s32 0, %v1551
      %v5438 = vsel %vm5436, %v5437, %v1551
      %v5439 = vshrl.u32 %v5438, 5
      %v5440 = vand.u32 %v5438, 31
      %v5441 = vsub.s32 0, %v5440
      %v5442 = vsel %vm5436, %v5441, %v5440
      %vm5443 = vcmp.lt.s32.totalorder %v5373, 0
      %v5444 = vsub.s32 0, %v5373
      %v5445 = vsel %vm5443, %v5444, %v5373
      %v5446 = vshrl.u32 %v5445, 5
      %v5447 = vand.u32 %v5445, 31
      %v5448 = vsub.s32 0, %v5447
      %v5449 = vsel %vm5443, %v5448, %v5447
      %vm5450 = vcmp.lt.s32.totalorder %v5374, 0
      %v5451 = vsub.s32 0, %v5374
      %v5452 = vsel %vm5450, %v5451, %v5374
      %v5453 = vshrl.u32 %v5452, 5
      %v5454 = vand.u32 %v5452, 31
      %v5455 = vsub.s32 0, %v5454
      %v5456 = vsel %vm5450, %v5455, %v5454
      %vm5457 = vcmp.lt.s32.totalorder %v5375, 0
      %v5458 = vsub.s32 0, %v5375
      %v5459 = vsel %vm5457, %v5458, %v5375
      %v5460 = vshrl.u32 %v5459, 5
      %v5461 = vand.u32 %v5459, 31
      %v5462 = vsub.s32 0, %v5461
      %v5463 = vsel %vm5457, %v5462, %v5461
      %vm5464 = vcmp.lt.s32.totalorder %v5376, 0
      %v5465 = vsub.s32 0, %v5376
      %v5466 = vsel %vm5464, %v5465, %v5376
      %v5467 = vshrl.u32 %v5466, 5
      %v5468 = vand.u32 %v5466, 31
      %v5469 = vsub.s32 0, %v5468
      %v5470 = vsel %vm5464, %v5469, %v5468
      %vm5471 = vcmp.lt.s32.totalorder %v5377, 0
      %v5472 = vsub.s32 0, %v5377
      %v5473 = vsel %vm5471, %v5472, %v5377
      %v5474 = vshrl.u32 %v5473, 5
      %v5475 = vand.u32 %v5473, 31
      %v5476 = vsub.s32 0, %v5475
      %v5477 = vsel %vm5471, %v5476, %v5475
      %vm5478 = vcmp.lt.s32.totalorder %v5378, 0
      %v5479 = vsub.s32 0, %v5378
      %v5480 = vsel %vm5478, %v5479, %v5378
      %v5481 = vshrl.u32 %v5480, 5
      %v5482 = vand.u32 %v5480, 31
      %v5483 = vsub.s32 0, %v5482
      %v5484 = vsel %vm5478, %v5483, %v5482
      %vm5485 = vcmp.lt.s32.totalorder %v5379, 0
      %v5486 = vsub.s32 0, %v5379
      %v5487 = vsel %vm5485, %v5486, %v5379
      %v5488 = vshrl.u32 %v5487, 5
      %v5489 = vand.u32 %v5487, 31
      %v5490 = vsub.s32 0, %v5489
      %v5491 = vsel %vm5485, %v5490, %v5489
      %vm5492 = vcmp.lt.s32.totalorder %v5380, 0
      %v5493 = vsub.s32 0, %v5380
      %v5494 = vsel %vm5492, %v5493, %v5380
      %v5495 = vshrl.u32 %v5494, 5
      %v5496 = vand.u32 %v5494, 31
      %v5497 = vsub.s32 0, %v5496
      %v5498 = vsel %vm5492, %v5497, %v5496
      %vm5499 = vcmp.lt.s32.totalorder %v5381, 0
      %v5500 = vsub.s32 0, %v5381
      %v5501 = vsel %vm5499, %v5500, %v5381
      %v5502 = vshrl.u32 %v5501, 5
      %v5503 = vand.u32 %v5501, 31
      %v5504 = vsub.s32 0, %v5503
      %v5505 = vsel %vm5499, %v5504, %v5503
      %vm5506 = vcmp.lt.s32.totalorder %v5382, 0
      %v5507 = vsub.s32 0, %v5382
      %v5508 = vsel %vm5506, %v5507, %v5382
      %v5509 = vshrl.u32 %v5508, 5
      %v5510 = vand.u32 %v5508, 31
      %v5511 = vsub.s32 0, %v5510
      %v5512 = vsel %vm5506, %v5511, %v5510
      %vm5513 = vcmp.lt.s32.totalorder %v5383, 0
      %v5514 = vsub.s32 0, %v5383
      %v5515 = vsel %vm5513, %v5514, %v5383
      %v5516 = vshrl.u32 %v5515, 5
      %v5517 = vand.u32 %v5515, 31
      %v5518 = vsub.s32 0, %v5517
      %v5519 = vsel %vm5513, %v5518, %v5517
      %vm5520 = vcmp.lt.s32.totalorder %v5384, 0
      %v5521 = vsub.s32 0, %v5384
      %v5522 = vsel %vm5520, %v5521, %v5384
      %v5523 = vshrl.u32 %v5522, 5
      %v5524 = vand.u32 %v5522, 31
      %v5525 = vsub.s32 0, %v5524
      %v5526 = vsel %vm5520, %v5525, %v5524
      %vm5527 = vcmp.lt.s32.totalorder %v5385, 0
      %v5528 = vsub.s32 0, %v5385
      %v5529 = vsel %vm5527, %v5528, %v5385
      %v5530 = vshrl.u32 %v5529, 5
      %v5531 = vand.u32 %v5529, 31
      %v5532 = vsub.s32 0, %v5531
      %v5533 = vsel %vm5527, %v5532, %v5531
      %vm5534 = vcmp.lt.s32.totalorder %v5386, 0
      %v5535 = vsub.s32 0, %v5386
      %v5536 = vsel %vm5534, %v5535, %v5386
      %v5537 = vshrl.u32 %v5536, 5
      %v5538 = vand.u32 %v5536, 31
      %v5539 = vsub.s32 0, %v5538
      %v5540 = vsel %vm5534, %v5539, %v5538
      %vm5541 = vcmp.lt.s32.totalorder %v5387, 0
      %v5542 = vsub.s32 0, %v5387
      %v5543 = vsel %vm5541, %v5542, %v5387
      %v5544 = vshrl.u32 %v5543, 5
      %v5545 = vand.u32 %v5543, 31
      %v5546 = vsub.s32 0, %v5545
      %v5547 = vsel %vm5541, %v5546, %v5545
      %vm5548 = vcmp.lt.s32.totalorder %v5388, 0
      %v5549 = vsub.s32 0, %v5388
      %v5550 = vsel %vm5548, %v5549, %v5388
      %v5551 = vshrl.u32 %v5550, 5
      %v5552 = vand.u32 %v5550, 31
      %v5553 = vsub.s32 0, %v5552
      %v5554 = vsel %vm5548, %v5553, %v5552
      %vm5555 = vcmp.lt.s32.totalorder %v5389, 0
      %v5556 = vsub.s32 0, %v5389
      %v5557 = vsel %vm5555, %v5556, %v5389
      %v5558 = vshrl.u32 %v5557, 5
      %v5559 = vand.u32 %v5557, 31
      %v5560 = vsub.s32 0, %v5559
      %v5561 = vsel %vm5555, %v5560, %v5559
      %vm5562 = vcmp.lt.s32.totalorder %v5390, 0
      %v5563 = vsub.s32 0, %v5390
      %v5564 = vsel %vm5562, %v5563, %v5390
      %v5565 = vshrl.u32 %v5564, 5
      %v5566 = vand.u32 %v5564, 31
      %v5567 = vsub.s32 0, %v5566
      %v5568 = vsel %vm5562, %v5567, %v5566
      %vm5569 = vcmp.lt.s32.totalorder %v5391, 0
      %v5570 = vsub.s32 0, %v5391
      %v5571 = vsel %vm5569, %v5570, %v5391
      %v5572 = vshrl.u32 %v5571, 5
      %v5573 = vand.u32 %v5571, 31
      %v5574 = vsub.s32 0, %v5573
      %v5575 = vsel %vm5569, %v5574, %v5573
      %vm5576 = vcmp.lt.s32.totalorder %v5392, 0
      %v5577 = vsub.s32 0, %v5392
      %v5578 = vsel %vm5576, %v5577, %v5392
      %v5579 = vshrl.u32 %v5578, 5
      %v5580 = vand.u32 %v5578, 31
      %v5581 = vsub.s32 0, %v5580
      %v5582 = vsel %vm5576, %v5581, %v5580
      %vm5583 = vcmp.lt.s32.totalorder %v5393, 0
      %v5584 = vsub.s32 0, %v5393
      %v5585 = vsel %vm5583, %v5584, %v5393
      %v5586 = vshrl.u32 %v5585, 5
      %v5587 = vand.u32 %v5585, 31
      %v5588 = vsub.s32 0, %v5587
      %v5589 = vsel %vm5583, %v5588, %v5587
      %vm5590 = vcmp.lt.s32.totalorder %v5394, 0
      %v5591 = vsub.s32 0, %v5394
      %v5592 = vsel %vm5590, %v5591, %v5394
      %v5593 = vshrl.u32 %v5592, 5
      %v5594 = vand.u32 %v5592, 31
      %v5595 = vsub.s32 0, %v5594
      %v5596 = vsel %vm5590, %v5595, %v5594
      %vm5597 = vcmp.lt.s32.totalorder %v5395, 0
      %v5598 = vsub.s32 0, %v5395
      %v5599 = vsel %vm5597, %v5598, %v5395
      %v5600 = vshrl.u32 %v5599, 5
      %v5601 = vand.u32 %v5599, 31
      %v5602 = vsub.s32 0, %v5601
      %v5603 = vsel %vm5597, %v5602, %v5601
      %vm5604 = vcmp.lt.s32.totalorder %v5396, 0
      %v5605 = vsub.s32 0, %v5396
      %v5606 = vsel %vm5604, %v5605, %v5396
      %v5607 = vshrl.u32 %v5606, 5
      %v5608 = vand.u32 %v5606, 31
      %v5609 = vsub.s32 0, %v5608
      %v5610 = vsel %vm5604, %v5609, %v5608
      %vm5611 = vcmp.lt.s32.totalorder %v5397, 0
      %v5612 = vsub.s32 0, %v5397
      %v5613 = vsel %vm5611, %v5612, %v5397
      %v5614 = vshrl.u32 %v5613, 5
      %v5615 = vand.u32 %v5613, 31
      %v5616 = vsub.s32 0, %v5615
      %v5617 = vsel %vm5611, %v5616, %v5615
      %vm5618 = vcmp.lt.s32.totalorder %v5398, 0
      %v5619 = vsub.s32 0, %v5398
      %v5620 = vsel %vm5618, %v5619, %v5398
      %v5621 = vshrl.u32 %v5620, 5
      %v5622 = vand.u32 %v5620, 31
      %v5623 = vsub.s32 0, %v5622
      %v5624 = vsel %vm5618, %v5623, %v5622
      %vm5625 = vcmp.lt.s32.totalorder %v5399, 0
      %v5626 = vsub.s32 0, %v5399
      %v5627 = vsel %vm5625, %v5626, %v5399
      %v5628 = vshrl.u32 %v5627, 5
      %v5629 = vand.u32 %v5627, 31
      %v5630 = vsub.s32 0, %v5629
      %v5631 = vsel %vm5625, %v5630, %v5629
      %vm5632 = vcmp.lt.s32.totalorder %v5400, 0
      %v5633 = vsub.s32 0, %v5400
      %v5634 = vsel %vm5632, %v5633, %v5400
      %v5635 = vshrl.u32 %v5634, 5
      %v5636 = vand.u32 %v5634, 31
      %v5637 = vsub.s32 0, %v5636
      %v5638 = vsel %vm5632, %v5637, %v5636
      %vm5639 = vcmp.lt.s32.totalorder %v5401, 0
      %v5640 = vsub.s32 0, %v5401
      %v5641 = vsel %vm5639, %v5640, %v5401
      %v5642 = vshrl.u32 %v5641, 5
      %v5643 = vand.u32 %v5641, 31
      %v5644 = vsub.s32 0, %v5643
      %v5645 = vsel %vm5639, %v5644, %v5643
      %vm5646 = vcmp.lt.s32.totalorder %v5402, 0
      %v5647 = vsub.s32 0, %v5402
      %v5648 = vsel %vm5646, %v5647, %v5402
      %v5649 = vshrl.u32 %v5648, 5
      %v5650 = vand.u32 %v5648, 31
      %v5651 = vsub.s32 0, %v5650
      %v5652 = vsel %vm5646, %v5651, %v5650
      %vm5653 = vcmp.lt.s32.totalorder %v5403, 0
      %v5654 = vsub.s32 0, %v5403
      %v5655 = vsel %vm5653, %v5654, %v5403
      %v5656 = vshrl.u32 %v5655, 5
      %v5657 = vand.u32 %v5655, 31
      %v5658 = vsub.s32 0, %v5657
      %v5659 = vsel %vm5653, %v5658, %v5657
      %vm5660 = vcmp.lt.s32.totalorder %v5404, 0
      %v5661 = vsub.s32 0, %v5404
      %v5662 = vsel %vm5660, %v5661, %v5404
      %v5663 = vshrl.u32 %v5662, 5
      %v5664 = vand.u32 %v5662, 31
      %v5665 = vsub.s32 0, %v5664
      %v5666 = vsel %vm5660, %v5665, %v5664
      %vm5667 = vcmp.lt.s32.totalorder %v5405, 0
      %v5668 = vsub.s32 0, %v5405
      %v5669 = vsel %vm5667, %v5668, %v5405
      %v5670 = vshrl.u32 %v5669, 5
      %v5671 = vand.u32 %v5669, 31
      %v5672 = vsub.s32 0, %v5671
      %v5673 = vsel %vm5667, %v5672, %v5671
      %vm5674 = vcmp.lt.s32.totalorder %v5406, 0
      %v5675 = vsub.s32 0, %v5406
      %v5676 = vsel %vm5674, %v5675, %v5406
      %v5677 = vshrl.u32 %v5676, 5
      %v5678 = vand.u32 %v5676, 31
      %v5679 = vsub.s32 0, %v5678
      %v5680 = vsel %vm5674, %v5679, %v5678
      %vm5681 = vcmp.lt.s32.totalorder %v5407, 0
      %v5682 = vsub.s32 0, %v5407
      %v5683 = vsel %vm5681, %v5682, %v5407
      %v5684 = vshrl.u32 %v5683, 5
      %v5685 = vand.u32 %v5683, 31
      %v5686 = vsub.s32 0, %v5685
      %v5687 = vsel %vm5681, %v5686, %v5685
      %vm5688 = vcmp.lt.s32.totalorder %v5408, 0
      %v5689 = vsub.s32 0, %v5408
      %v5690 = vsel %vm5688, %v5689, %v5408
      %v5691 = vshrl.u32 %v5690, 5
      %v5692 = vand.u32 %v5690, 31
      %v5693 = vsub.s32 0, %v5692
      %v5694 = vsel %vm5688, %v5693, %v5692
      %vm5695 = vcmp.lt.s32.totalorder %v5409, 0
      %v5696 = vsub.s32 0, %v5409
      %v5697 = vsel %vm5695, %v5696, %v5409
      %v5698 = vshrl.u32 %v5697, 5
      %v5699 = vand.u32 %v5697, 31
      %v5700 = vsub.s32 0, %v5699
      %v5701 = vsel %vm5695, %v5700, %v5699
      %vm5702 = vcmp.lt.s32.totalorder %v5410, 0
      %v5703 = vsub.s32 0, %v5410
      %v5704 = vsel %vm5702, %v5703, %v5410
      %v5705 = vshrl.u32 %v5704, 5
      %v5706 = vand.u32 %v5704, 31
      %v5707 = vsub.s32 0, %v5706
      %v5708 = vsel %vm5702, %v5707, %v5706
      %vm5709 = vcmp.lt.s32.totalorder %v5411, 0
      %v5710 = vsub.s32 0, %v5411
      %v5711 = vsel %vm5709, %v5710, %v5411
      %v5712 = vshrl.u32 %v5711, 5
      %v5713 = vand.u32 %v5711, 31
      %v5714 = vsub.s32 0, %v5713
      %v5715 = vsel %vm5709, %v5714, %v5713
      %vm5716 = vcmp.lt.s32.totalorder %v5412, 0
      %v5717 = vsub.s32 0, %v5412
      %v5718 = vsel %vm5716, %v5717, %v5412
      %v5719 = vshrl.u32 %v5718, 5
      %v5720 = vand.u32 %v5718, 31
      %v5721 = vsub.s32 0, %v5720
      %v5722 = vsel %vm5716, %v5721, %v5720
      %vm5723 = vcmp.lt.s32.totalorder %v5413, 0
      %v5724 = vsub.s32 0, %v5413
      %v5725 = vsel %vm5723, %v5724, %v5413
      %v5726 = vshrl.u32 %v5725, 5
      %v5727 = vand.u32 %v5725, 31
      %v5728 = vsub.s32 0, %v5727
      %v5729 = vsel %vm5723, %v5728, %v5727
      %vm5730 = vcmp.lt.s32.totalorder %v5414, 0
      %v5731 = vsub.s32 0, %v5414
      %v5732 = vsel %vm5730, %v5731, %v5414
      %v5733 = vshrl.u32 %v5732, 5
      %v5734 = vand.u32 %v5732, 31
      %v5735 = vsub.s32 0, %v5734
      %v5736 = vsel %vm5730, %v5735, %v5734
      %vm5737 = vcmp.lt.s32.totalorder %v5415, 0
      %v5738 = vsub.s32 0, %v5415
      %v5739 = vsel %vm5737, %v5738, %v5415
      %v5740 = vshrl.u32 %v5739, 5
      %v5741 = vand.u32 %v5739, 31
      %v5742 = vsub.s32 0, %v5741
      %v5743 = vsel %vm5737, %v5742, %v5741
      %vm5744 = vcmp.lt.s32.totalorder %v5416, 0
      %v5745 = vsub.s32 0, %v5416
      %v5746 = vsel %vm5744, %v5745, %v5416
      %v5747 = vshrl.u32 %v5746, 5
      %v5748 = vand.u32 %v5746, 31
      %v5749 = vsub.s32 0, %v5748
      %v5750 = vsel %vm5744, %v5749, %v5748
      %vm5751 = vcmp.lt.s32.totalorder %v5417, 0
      %v5752 = vsub.s32 0, %v5417
      %v5753 = vsel %vm5751, %v5752, %v5417
      %v5754 = vshrl.u32 %v5753, 5
      %v5755 = vand.u32 %v5753, 31
      %v5756 = vsub.s32 0, %v5755
      %v5757 = vsel %vm5751, %v5756, %v5755
      %vm5758 = vcmp.lt.s32.totalorder %v5418, 0
      %v5759 = vsub.s32 0, %v5418
      %v5760 = vsel %vm5758, %v5759, %v5418
      %v5761 = vshrl.u32 %v5760, 5
      %v5762 = vand.u32 %v5760, 31
      %v5763 = vsub.s32 0, %v5762
      %v5764 = vsel %vm5758, %v5763, %v5762
      %vm5765 = vcmp.lt.s32.totalorder %v5419, 0
      %v5766 = vsub.s32 0, %v5419
      %v5767 = vsel %vm5765, %v5766, %v5419
      %v5768 = vshrl.u32 %v5767, 5
      %v5769 = vand.u32 %v5767, 31
      %v5770 = vsub.s32 0, %v5769
      %v5771 = vsel %vm5765, %v5770, %v5769
      %vm5772 = vcmp.lt.s32.totalorder %v5420, 0
      %v5773 = vsub.s32 0, %v5420
      %v5774 = vsel %vm5772, %v5773, %v5420
      %v5775 = vshrl.u32 %v5774, 5
      %v5776 = vand.u32 %v5774, 31
      %v5777 = vsub.s32 0, %v5776
      %v5778 = vsel %vm5772, %v5777, %v5776
      %vm5779 = vcmp.lt.s32.totalorder %v5421, 0
      %v5780 = vsub.s32 0, %v5421
      %v5781 = vsel %vm5779, %v5780, %v5421
      %v5782 = vshrl.u32 %v5781, 5
      %v5783 = vand.u32 %v5781, 31
      %v5784 = vsub.s32 0, %v5783
      %v5785 = vsel %vm5779, %v5784, %v5783
      %vm5786 = vcmp.lt.s32.totalorder %v5422, 0
      %v5787 = vsub.s32 0, %v5422
      %v5788 = vsel %vm5786, %v5787, %v5422
      %v5789 = vshrl.u32 %v5788, 5
      %v5790 = vand.u32 %v5788, 31
      %v5791 = vsub.s32 0, %v5790
      %v5792 = vsel %vm5786, %v5791, %v5790
      %vm5793 = vcmp.lt.s32.totalorder %v5423, 0
      %v5794 = vsub.s32 0, %v5423
      %v5795 = vsel %vm5793, %v5794, %v5423
      %v5796 = vshrl.u32 %v5795, 5
      %v5797 = vand.u32 %v5795, 31
      %v5798 = vsub.s32 0, %v5797
      %v5799 = vsel %vm5793, %v5798, %v5797
      %vm5800 = vcmp.lt.s32.totalorder %v5424, 0
      %v5801 = vsub.s32 0, %v5424
      %v5802 = vsel %vm5800, %v5801, %v5424
      %v5803 = vshrl.u32 %v5802, 5
      %v5804 = vand.u32 %v5802, 31
      %v5805 = vsub.s32 0, %v5804
      %v5806 = vsel %vm5800, %v5805, %v5804
      %vm5807 = vcmp.lt.s32.totalorder %v5425, 0
      %v5808 = vsub.s32 0, %v5425
      %v5809 = vsel %vm5807, %v5808, %v5425
      %v5810 = vshrl.u32 %v5809, 5
      %v5811 = vand.u32 %v5809, 31
      %v5812 = vsub.s32 0, %v5811
      %v5813 = vsel %vm5807, %v5812, %v5811
      %vm5814 = vcmp.lt.s32.totalorder %v5426, 0
      %v5815 = vsub.s32 0, %v5426
      %v5816 = vsel %vm5814, %v5815, %v5426
      %v5817 = vshrl.u32 %v5816, 5
      %v5818 = vand.u32 %v5816, 31
      %v5819 = vsub.s32 0, %v5818
      %v5820 = vsel %vm5814, %v5819, %v5818
      %vm5821 = vcmp.lt.s32.totalorder %v5427, 0
      %v5822 = vsub.s32 0, %v5427
      %v5823 = vsel %vm5821, %v5822, %v5427
      %v5824 = vshrl.u32 %v5823, 5
      %v5825 = vand.u32 %v5823, 31
      %v5826 = vsub.s32 0, %v5825
      %v5827 = vsel %vm5821, %v5826, %v5825
      %vm5828 = vcmp.lt.s32.totalorder %v5428, 0
      %v5829 = vsub.s32 0, %v5428
      %v5830 = vsel %vm5828, %v5829, %v5428
      %v5831 = vshrl.u32 %v5830, 5
      %v5832 = vand.u32 %v5830, 31
      %v5833 = vsub.s32 0, %v5832
      %v5834 = vsel %vm5828, %v5833, %v5832
      %vm5835 = vcmp.lt.s32.totalorder %v5429, 0
      %v5836 = vsub.s32 0, %v5429
      %v5837 = vsel %vm5835, %v5836, %v5429
      %v5838 = vshrl.u32 %v5837, 5
      %v5839 = vand.u32 %v5837, 31
      %v5840 = vsub.s32 0, %v5839
      %v5841 = vsel %vm5835, %v5840, %v5839
      %vm5842 = vcmp.lt.s32.totalorder %v5430, 0
      %v5843 = vsub.s32 0, %v5430
      %v5844 = vsel %vm5842, %v5843, %v5430
      %v5845 = vshrl.u32 %v5844, 5
      %v5846 = vand.u32 %v5844, 31
      %v5847 = vsub.s32 0, %v5846
      %v5848 = vsel %vm5842, %v5847, %v5846
      %vm5849 = vcmp.lt.s32.totalorder %v5431, 0
      %v5850 = vsub.s32 0, %v5431
      %v5851 = vsel %vm5849, %v5850, %v5431
      %v5852 = vshrl.u32 %v5851, 5
      %v5853 = vand.u32 %v5851, 31
      %v5854 = vsub.s32 0, %v5853
      %v5855 = vsel %vm5849, %v5854, %v5853
      %vm5856 = vcmp.lt.s32.totalorder %v5432, 0
      %v5857 = vsub.s32 0, %v5432
      %v5858 = vsel %vm5856, %v5857, %v5432
      %v5859 = vshrl.u32 %v5858, 5
      %v5860 = vand.u32 %v5858, 31
      %v5861 = vsub.s32 0, %v5860
      %v5862 = vsel %vm5856, %v5861, %v5860
      %vm5863 = vcmp.lt.s32.totalorder %v5433, 0
      %v5864 = vsub.s32 0, %v5433
      %v5865 = vsel %vm5863, %v5864, %v5433
      %v5866 = vshrl.u32 %v5865, 5
      %v5867 = vand.u32 %v5865, 31
      %v5868 = vsub.s32 0, %v5867
      %v5869 = vsel %vm5863, %v5868, %v5867
      %vm5870 = vcmp.lt.s32.totalorder %v5434, 0
      %v5871 = vsub.s32 0, %v5434
      %v5872 = vsel %vm5870, %v5871, %v5434
      %v5873 = vshrl.u32 %v5872, 5
      %v5874 = vand.u32 %v5872, 31
      %v5875 = vsub.s32 0, %v5874
      %v5876 = vsel %vm5870, %v5875, %v5874
      %vm5877 = vcmp.lt.s32.totalorder %v5435, 0
      %v5878 = vsub.s32 0, %v5435
      %v5879 = vsel %vm5877, %v5878, %v5435
      %v5880 = vshrl.u32 %v5879, 5
      %v5881 = vand.u32 %v5879, 31
      %v5882 = vsub.s32 0, %v5881
      %v5883 = vsel %vm5877, %v5882, %v5881
      %vm5884 = vcmp.ne.s32.totalorder %v5442, 0
      %vm5885 = vcmp.ne.s32.totalorder %v5449, 0
      %vm5886 = vcmp.ne.s32.totalorder %v5456, 0
      %vm5887 = vcmp.ne.s32.totalorder %v5463, 0
      %vm5888 = vcmp.ne.s32.totalorder %v5470, 0
      %vm5889 = vcmp.ne.s32.totalorder %v5477, 0
      %vm5890 = vcmp.ne.s32.totalorder %v5484, 0
      %vm5891 = vcmp.ne.s32.totalorder %v5491, 0
      %vm5892 = vcmp.ne.s32.totalorder %v5498, 0
      %vm5893 = vcmp.ne.s32.totalorder %v5505, 0
      %vm5894 = vcmp.ne.s32.totalorder %v5512, 0
      %vm5895 = vcmp.ne.s32.totalorder %v5519, 0
      %vm5896 = vcmp.ne.s32.totalorder %v5526, 0
      %vm5897 = vcmp.ne.s32.totalorder %v5533, 0
      %vm5898 = vcmp.ne.s32.totalorder %v5540, 0
      %vm5899 = vcmp.ne.s32.totalorder %v5547, 0
      %vm5900 = vcmp.ne.s32.totalorder %v5554, 0
      %vm5901 = vcmp.ne.s32.totalorder %v5561, 0
      %vm5902 = vcmp.ne.s32.totalorder %v5568, 0
      %vm5903 = vcmp.ne.s32.totalorder %v5575, 0
      %vm5904 = vcmp.ne.s32.totalorder %v5582, 0
      %vm5905 = vcmp.ne.s32.totalorder %v5589, 0
      %vm5906 = vcmp.ne.s32.totalorder %v5596, 0
      %vm5907 = vcmp.ne.s32.totalorder %v5603, 0
      %vm5908 = vcmp.ne.s32.totalorder %v5610, 0
      %vm5909 = vcmp.ne.s32.totalorder %v5617, 0
      %vm5910 = vcmp.ne.s32.totalorder %v5624, 0
      %vm5911 = vcmp.ne.s32.totalorder %v5631, 0
      %vm5912 = vcmp.ne.s32.totalorder %v5638, 0
      %vm5913 = vcmp.ne.s32.totalorder %v5645, 0
      %vm5914 = vcmp.ne.s32.totalorder %v5652, 0
      %vm5915 = vcmp.ne.s32.totalorder %v5659, 0
      %vm5916 = vcmp.ne.s32.totalorder %v5666, 0
      %vm5917 = vcmp.ne.s32.totalorder %v5673, 0
      %vm5918 = vcmp.ne.s32.totalorder %v5680, 0
      %vm5919 = vcmp.ne.s32.totalorder %v5687, 0
      %vm5920 = vcmp.ne.s32.totalorder %v5694, 0
      %vm5921 = vcmp.ne.s32.totalorder %v5701, 0
      %vm5922 = vcmp.ne.s32.totalorder %v5708, 0
      %vm5923 = vcmp.ne.s32.totalorder %v5715, 0
      %vm5924 = vcmp.ne.s32.totalorder %v5722, 0
      %vm5925 = vcmp.ne.s32.totalorder %v5729, 0
      %vm5926 = vcmp.ne.s32.totalorder %v5736, 0
      %vm5927 = vcmp.ne.s32.totalorder %v5743, 0
      %vm5928 = vcmp.ne.s32.totalorder %v5750, 0
      %vm5929 = vcmp.ne.s32.totalorder %v5757, 0
      %vm5930 = vcmp.ne.s32.totalorder %v5764, 0
      %vm5931 = vcmp.ne.s32.totalorder %v5771, 0
      %vm5932 = vcmp.ne.s32.totalorder %v5778, 0
      %vm5933 = vcmp.ne.s32.totalorder %v5785, 0
      %vm5934 = vcmp.ne.s32.totalorder %v5792, 0
      %vm5935 = vcmp.ne.s32.totalorder %v5799, 0
      %vm5936 = vcmp.ne.s32.totalorder %v5806, 0
      %vm5937 = vcmp.ne.s32.totalorder %v5813, 0
      %vm5938 = vcmp.ne.s32.totalorder %v5820, 0
      %vm5939 = vcmp.ne.s32.totalorder %v5827, 0
      %vm5940 = vcmp.ne.s32.totalorder %v5834, 0
      %vm5941 = vcmp.ne.s32.totalorder %v5841, 0
      %vm5942 = vcmp.ne.s32.totalorder %v5848, 0
      %vm5943 = vcmp.ne.s32.totalorder %v5855, 0
      %vm5944 = vcmp.ne.s32.totalorder %v5862, 0
      %vm5945 = vcmp.ne.s32.totalorder %v5869, 0
      %vm5946 = vcmp.ne.s32.totalorder %v5876, 0
      %vm5947 = vcmp.ne.s32.totalorder %v5883, 0
      %vm5948 = vcmp.lt.s32.totalorder %v5442, 0
      %vm5949 = vcmp.lt.s32.totalorder %v5449, 0
      %vm5950 = vcmp.lt.s32.totalorder %v5456, 0
      %vm5951 = vcmp.lt.s32.totalorder %v5463, 0
      %vm5952 = vcmp.lt.s32.totalorder %v5470, 0
      %vm5953 = vcmp.lt.s32.totalorder %v5477, 0
      %vm5954 = vcmp.lt.s32.totalorder %v5484, 0
      %vm5955 = vcmp.lt.s32.totalorder %v5491, 0
      %vm5956 = vcmp.lt.s32.totalorder %v5498, 0
      %vm5957 = vcmp.lt.s32.totalorder %v5505, 0
      %vm5958 = vcmp.lt.s32.totalorder %v5512, 0
      %vm5959 = vcmp.lt.s32.totalorder %v5519, 0
      %vm5960 = vcmp.lt.s32.totalorder %v5526, 0
      %vm5961 = vcmp.lt.s32.totalorder %v5533, 0
      %vm5962 = vcmp.lt.s32.totalorder %v5540, 0
      %vm5963 = vcmp.lt.s32.totalorder %v5547, 0
      %vm5964 = vcmp.lt.s32.totalorder %v5554, 0
      %vm5965 = vcmp.lt.s32.totalorder %v5561, 0
      %vm5966 = vcmp.lt.s32.totalorder %v5568, 0
      %vm5967 = vcmp.lt.s32.totalorder %v5575, 0
      %vm5968 = vcmp.lt.s32.totalorder %v5582, 0
      %vm5969 = vcmp.lt.s32.totalorder %v5589, 0
      %vm5970 = vcmp.lt.s32.totalorder %v5596, 0
      %vm5971 = vcmp.lt.s32.totalorder %v5603, 0
      %vm5972 = vcmp.lt.s32.totalorder %v5610, 0
      %vm5973 = vcmp.lt.s32.totalorder %v5617, 0
      %vm5974 = vcmp.lt.s32.totalorder %v5624, 0
      %vm5975 = vcmp.lt.s32.totalorder %v5631, 0
      %vm5976 = vcmp.lt.s32.totalorder %v5638, 0
      %vm5977 = vcmp.lt.s32.totalorder %v5645, 0
      %vm5978 = vcmp.lt.s32.totalorder %v5652, 0
      %vm5979 = vcmp.lt.s32.totalorder %v5659, 0
      %vm5980 = vcmp.lt.s32.totalorder %v5666, 0
      %vm5981 = vcmp.lt.s32.totalorder %v5673, 0
      %vm5982 = vcmp.lt.s32.totalorder %v5680, 0
      %vm5983 = vcmp.lt.s32.totalorder %v5687, 0
      %vm5984 = vcmp.lt.s32.totalorder %v5694, 0
      %vm5985 = vcmp.lt.s32.totalorder %v5701, 0
      %vm5986 = vcmp.lt.s32.totalorder %v5708, 0
      %vm5987 = vcmp.lt.s32.totalorder %v5715, 0
      %vm5988 = vcmp.lt.s32.totalorder %v5722, 0
      %vm5989 = vcmp.lt.s32.totalorder %v5729, 0
      %vm5990 = vcmp.lt.s32.totalorder %v5736, 0
      %vm5991 = vcmp.lt.s32.totalorder %v5743, 0
      %vm5992 = vcmp.lt.s32.totalorder %v5750, 0
      %vm5993 = vcmp.lt.s32.totalorder %v5757, 0
      %vm5994 = vcmp.lt.s32.totalorder %v5764, 0
      %vm5995 = vcmp.lt.s32.totalorder %v5771, 0
      %vm5996 = vcmp.lt.s32.totalorder %v5778, 0
      %vm5997 = vcmp.lt.s32.totalorder %v5785, 0
      %vm5998 = vcmp.lt.s32.totalorder %v5792, 0
      %vm5999 = vcmp.lt.s32.totalorder %v5799, 0
      %vm6000 = vcmp.lt.s32.totalorder %v5806, 0
      %vm6001 = vcmp.lt.s32.totalorder %v5813, 0
      %vm6002 = vcmp.lt.s32.totalorder %v5820, 0
      %vm6003 = vcmp.lt.s32.totalorder %v5827, 0
      %vm6004 = vcmp.lt.s32.totalorder %v5834, 0
      %vm6005 = vcmp.lt.s32.totalorder %v5841, 0
      %vm6006 = vcmp.lt.s32.totalorder %v5848, 0
      %vm6007 = vcmp.lt.s32.totalorder %v5855, 0
      %vm6008 = vcmp.lt.s32.totalorder %v5862, 0
      %vm6009 = vcmp.lt.s32.totalorder %v5869, 0
      %vm6010 = vcmp.lt.s32.totalorder %v5876, 0
      %vm6011 = vcmp.lt.s32.totalorder %v5883, 0
      %vm6012 = vmand %vm5948, %vm5884
      %vm6013 = vmand %vm5949, %vm5885
      %vm6014 = vmand %vm5950, %vm5886
      %vm6015 = vmand %vm5951, %vm5887
      %vm6016 = vmand %vm5952, %vm5888
      %vm6017 = vmand %vm5953, %vm5889
      %vm6018 = vmand %vm5954, %vm5890
      %vm6019 = vmand %vm5955, %vm5891
      %vm6020 = vmand %vm5956, %vm5892
      %vm6021 = vmand %vm5957, %vm5893
      %vm6022 = vmand %vm5958, %vm5894
      %vm6023 = vmand %vm5959, %vm5895
      %vm6024 = vmand %vm5960, %vm5896
      %vm6025 = vmand %vm5961, %vm5897
      %vm6026 = vmand %vm5962, %vm5898
      %vm6027 = vmand %vm5963, %vm5899
      %vm6028 = vmand %vm5964, %vm5900
      %vm6029 = vmand %vm5965, %vm5901
      %vm6030 = vmand %vm5966, %vm5902
      %vm6031 = vmand %vm5967, %vm5903
      %vm6032 = vmand %vm5968, %vm5904
      %vm6033 = vmand %vm5969, %vm5905
      %vm6034 = vmand %vm5970, %vm5906
      %vm6035 = vmand %vm5971, %vm5907
      %vm6036 = vmand %vm5972, %vm5908
      %vm6037 = vmand %vm5973, %vm5909
      %vm6038 = vmand %vm5974, %vm5910
      %vm6039 = vmand %vm5975, %vm5911
      %vm6040 = vmand %vm5976, %vm5912
      %vm6041 = vmand %vm5977, %vm5913
      %vm6042 = vmand %vm5978, %vm5914
      %vm6043 = vmand %vm5979, %vm5915
      %vm6044 = vmand %vm5980, %vm5916
      %vm6045 = vmand %vm5981, %vm5917
      %vm6046 = vmand %vm5982, %vm5918
      %vm6047 = vmand %vm5983, %vm5919
      %vm6048 = vmand %vm5984, %vm5920
      %vm6049 = vmand %vm5985, %vm5921
      %vm6050 = vmand %vm5986, %vm5922
      %vm6051 = vmand %vm5987, %vm5923
      %vm6052 = vmand %vm5988, %vm5924
      %vm6053 = vmand %vm5989, %vm5925
      %vm6054 = vmand %vm5990, %vm5926
      %vm6055 = vmand %vm5991, %vm5927
      %vm6056 = vmand %vm5992, %vm5928
      %vm6057 = vmand %vm5993, %vm5929
      %vm6058 = vmand %vm5994, %vm5930
      %vm6059 = vmand %vm5995, %vm5931
      %vm6060 = vmand %vm5996, %vm5932
      %vm6061 = vmand %vm5997, %vm5933
      %vm6062 = vmand %vm5998, %vm5934
      %vm6063 = vmand %vm5999, %vm5935
      %vm6064 = vmand %vm6000, %vm5936
      %vm6065 = vmand %vm6001, %vm5937
      %vm6066 = vmand %vm6002, %vm5938
      %vm6067 = vmand %vm6003, %vm5939
      %vm6068 = vmand %vm6004, %vm5940
      %vm6069 = vmand %vm6005, %vm5941
      %vm6070 = vmand %vm6006, %vm5942
      %vm6071 = vmand %vm6007, %vm5943
      %vm6072 = vmand %vm6008, %vm5944
      %vm6073 = vmand %vm6009, %vm5945
      %vm6074 = vmand %vm6010, %vm5946
      %vm6075 = vmand %vm6011, %vm5947
      %v6076 = vadd.s32 %v5442, 32
      %v6077 = vadd.s32 %v5449, 32
      %v6078 = vadd.s32 %v5456, 32
      %v6079 = vadd.s32 %v5463, 32
      %v6080 = vadd.s32 %v5470, 32
      %v6081 = vadd.s32 %v5477, 32
      %v6082 = vadd.s32 %v5484, 32
      %v6083 = vadd.s32 %v5491, 32
      %v6084 = vadd.s32 %v5498, 32
      %v6085 = vadd.s32 %v5505, 32
      %v6086 = vadd.s32 %v5512, 32
      %v6087 = vadd.s32 %v5519, 32
      %v6088 = vadd.s32 %v5526, 32
      %v6089 = vadd.s32 %v5533, 32
      %v6090 = vadd.s32 %v5540, 32
      %v6091 = vadd.s32 %v5547, 32
      %v6092 = vadd.s32 %v5554, 32
      %v6093 = vadd.s32 %v5561, 32
      %v6094 = vadd.s32 %v5568, 32
      %v6095 = vadd.s32 %v5575, 32
      %v6096 = vadd.s32 %v5582, 32
      %v6097 = vadd.s32 %v5589, 32
      %v6098 = vadd.s32 %v5596, 32
      %v6099 = vadd.s32 %v5603, 32
      %v6100 = vadd.s32 %v5610, 32
      %v6101 = vadd.s32 %v5617, 32
      %v6102 = vadd.s32 %v5624, 32
      %v6103 = vadd.s32 %v5631, 32
      %v6104 = vadd.s32 %v5638, 32
      %v6105 = vadd.s32 %v5645, 32
      %v6106 = vadd.s32 %v5652, 32
      %v6107 = vadd.s32 %v5659, 32
      %v6108 = vadd.s32 %v5666, 32
      %v6109 = vadd.s32 %v5673, 32
      %v6110 = vadd.s32 %v5680, 32
      %v6111 = vadd.s32 %v5687, 32
      %v6112 = vadd.s32 %v5694, 32
      %v6113 = vadd.s32 %v5701, 32
      %v6114 = vadd.s32 %v5708, 32
      %v6115 = vadd.s32 %v5715, 32
      %v6116 = vadd.s32 %v5722, 32
      %v6117 = vadd.s32 %v5729, 32
      %v6118 = vadd.s32 %v5736, 32
      %v6119 = vadd.s32 %v5743, 32
      %v6120 = vadd.s32 %v5750, 32
      %v6121 = vadd.s32 %v5757, 32
      %v6122 = vadd.s32 %v5764, 32
      %v6123 = vadd.s32 %v5771, 32
      %v6124 = vadd.s32 %v5778, 32
      %v6125 = vadd.s32 %v5785, 32
      %v6126 = vadd.s32 %v5792, 32
      %v6127 = vadd.s32 %v5799, 32
      %v6128 = vadd.s32 %v5806, 32
      %v6129 = vadd.s32 %v5813, 32
      %v6130 = vadd.s32 %v5820, 32
      %v6131 = vadd.s32 %v5827, 32
      %v6132 = vadd.s32 %v5834, 32
      %v6133 = vadd.s32 %v5841, 32
      %v6134 = vadd.s32 %v5848, 32
      %v6135 = vadd.s32 %v5855, 32
      %v6136 = vadd.s32 %v5862, 32
      %v6137 = vadd.s32 %v5869, 32
      %v6138 = vadd.s32 %v5876, 32
      %v6139 = vadd.s32 %v5883, 32
      %v6140 = vsel %vm6012, %v6076, %v5442
      %v6141 = vsel %vm6013, %v6077, %v5449
      %v6142 = vsel %vm6014, %v6078, %v5456
      %v6143 = vsel %vm6015, %v6079, %v5463
      %v6144 = vsel %vm6016, %v6080, %v5470
      %v6145 = vsel %vm6017, %v6081, %v5477
      %v6146 = vsel %vm6018, %v6082, %v5484
      %v6147 = vsel %vm6019, %v6083, %v5491
      %v6148 = vsel %vm6020, %v6084, %v5498
      %v6149 = vsel %vm6021, %v6085, %v5505
      %v6150 = vsel %vm6022, %v6086, %v5512
      %v6151 = vsel %vm6023, %v6087, %v5519
      %v6152 = vsel %vm6024, %v6088, %v5526
      %v6153 = vsel %vm6025, %v6089, %v5533
      %v6154 = vsel %vm6026, %v6090, %v5540
      %v6155 = vsel %vm6027, %v6091, %v5547
      %v6156 = vsel %vm6028, %v6092, %v5554
      %v6157 = vsel %vm6029, %v6093, %v5561
      %v6158 = vsel %vm6030, %v6094, %v5568
      %v6159 = vsel %vm6031, %v6095, %v5575
      %v6160 = vsel %vm6032, %v6096, %v5582
      %v6161 = vsel %vm6033, %v6097, %v5589
      %v6162 = vsel %vm6034, %v6098, %v5596
      %v6163 = vsel %vm6035, %v6099, %v5603
      %v6164 = vsel %vm6036, %v6100, %v5610
      %v6165 = vsel %vm6037, %v6101, %v5617
      %v6166 = vsel %vm6038, %v6102, %v5624
      %v6167 = vsel %vm6039, %v6103, %v5631
      %v6168 = vsel %vm6040, %v6104, %v5638
      %v6169 = vsel %vm6041, %v6105, %v5645
      %v6170 = vsel %vm6042, %v6106, %v5652
      %v6171 = vsel %vm6043, %v6107, %v5659
      %v6172 = vsel %vm6044, %v6108, %v5666
      %v6173 = vsel %vm6045, %v6109, %v5673
      %v6174 = vsel %vm6046, %v6110, %v5680
      %v6175 = vsel %vm6047, %v6111, %v5687
      %v6176 = vsel %vm6048, %v6112, %v5694
      %v6177 = vsel %vm6049, %v6113, %v5701
      %v6178 = vsel %vm6050, %v6114, %v5708
      %v6179 = vsel %vm6051, %v6115, %v5715
      %v6180 = vsel %vm6052, %v6116, %v5722
      %v6181 = vsel %vm6053, %v6117, %v5729
      %v6182 = vsel %vm6054, %v6118, %v5736
      %v6183 = vsel %vm6055, %v6119, %v5743
      %v6184 = vsel %vm6056, %v6120, %v5750
      %v6185 = vsel %vm6057, %v6121, %v5757
      %v6186 = vsel %vm6058, %v6122, %v5764
      %v6187 = vsel %vm6059, %v6123, %v5771
      %v6188 = vsel %vm6060, %v6124, %v5778
      %v6189 = vsel %vm6061, %v6125, %v5785
      %v6190 = vsel %vm6062, %v6126, %v5792
      %v6191 = vsel %vm6063, %v6127, %v5799
      %v6192 = vsel %vm6064, %v6128, %v5806
      %v6193 = vsel %vm6065, %v6129, %v5813
      %v6194 = vsel %vm6066, %v6130, %v5820
      %v6195 = vsel %vm6067, %v6131, %v5827
      %v6196 = vsel %vm6068, %v6132, %v5834
      %v6197 = vsel %vm6069, %v6133, %v5841
      %v6198 = vsel %vm6070, %v6134, %v5848
      %v6199 = vsel %vm6071, %v6135, %v5855
      %v6200 = vsel %vm6072, %v6136, %v5862
      %v6201 = vsel %vm6073, %v6137, %v5869
      %v6202 = vsel %vm6074, %v6138, %v5876
      %v6203 = vsel %vm6075, %v6139, %v5883
      %vm6204 = vcmp.lt.s32.totalorder %v6140, 16
      %vm6205 = vcmp.lt.s32.totalorder %v6141, 16
      %vm6206 = vcmp.lt.s32.totalorder %v6142, 16
      %vm6207 = vcmp.lt.s32.totalorder %v6143, 16
      %vm6208 = vcmp.lt.s32.totalorder %v6144, 16
      %vm6209 = vcmp.lt.s32.totalorder %v6145, 16
      %vm6210 = vcmp.lt.s32.totalorder %v6146, 16
      %vm6211 = vcmp.lt.s32.totalorder %v6147, 16
      %vm6212 = vcmp.lt.s32.totalorder %v6148, 16
      %vm6213 = vcmp.lt.s32.totalorder %v6149, 16
      %vm6214 = vcmp.lt.s32.totalorder %v6150, 16
      %vm6215 = vcmp.lt.s32.totalorder %v6151, 16
      %vm6216 = vcmp.lt.s32.totalorder %v6152, 16
      %vm6217 = vcmp.lt.s32.totalorder %v6153, 16
      %vm6218 = vcmp.lt.s32.totalorder %v6154, 16
      %vm6219 = vcmp.lt.s32.totalorder %v6155, 16
      %vm6220 = vcmp.lt.s32.totalorder %v6156, 16
      %vm6221 = vcmp.lt.s32.totalorder %v6157, 16
      %vm6222 = vcmp.lt.s32.totalorder %v6158, 16
      %vm6223 = vcmp.lt.s32.totalorder %v6159, 16
      %vm6224 = vcmp.lt.s32.totalorder %v6160, 16
      %vm6225 = vcmp.lt.s32.totalorder %v6161, 16
      %vm6226 = vcmp.lt.s32.totalorder %v6162, 16
      %vm6227 = vcmp.lt.s32.totalorder %v6163, 16
      %vm6228 = vcmp.lt.s32.totalorder %v6164, 16
      %vm6229 = vcmp.lt.s32.totalorder %v6165, 16
      %vm6230 = vcmp.lt.s32.totalorder %v6166, 16
      %vm6231 = vcmp.lt.s32.totalorder %v6167, 16
      %vm6232 = vcmp.lt.s32.totalorder %v6168, 16
      %vm6233 = vcmp.lt.s32.totalorder %v6169, 16
      %vm6234 = vcmp.lt.s32.totalorder %v6170, 16
      %vm6235 = vcmp.lt.s32.totalorder %v6171, 16
      %vm6236 = vcmp.lt.s32.totalorder %v6172, 16
      %vm6237 = vcmp.lt.s32.totalorder %v6173, 16
      %vm6238 = vcmp.lt.s32.totalorder %v6174, 16
      %vm6239 = vcmp.lt.s32.totalorder %v6175, 16
      %vm6240 = vcmp.lt.s32.totalorder %v6176, 16
      %vm6241 = vcmp.lt.s32.totalorder %v6177, 16
      %vm6242 = vcmp.lt.s32.totalorder %v6178, 16
      %vm6243 = vcmp.lt.s32.totalorder %v6179, 16
      %vm6244 = vcmp.lt.s32.totalorder %v6180, 16
      %vm6245 = vcmp.lt.s32.totalorder %v6181, 16
      %vm6246 = vcmp.lt.s32.totalorder %v6182, 16
      %vm6247 = vcmp.lt.s32.totalorder %v6183, 16
      %vm6248 = vcmp.lt.s32.totalorder %v6184, 16
      %vm6249 = vcmp.lt.s32.totalorder %v6185, 16
      %vm6250 = vcmp.lt.s32.totalorder %v6186, 16
      %vm6251 = vcmp.lt.s32.totalorder %v6187, 16
      %vm6252 = vcmp.lt.s32.totalorder %v6188, 16
      %vm6253 = vcmp.lt.s32.totalorder %v6189, 16
      %vm6254 = vcmp.lt.s32.totalorder %v6190, 16
      %vm6255 = vcmp.lt.s32.totalorder %v6191, 16
      %vm6256 = vcmp.lt.s32.totalorder %v6192, 16
      %vm6257 = vcmp.lt.s32.totalorder %v6193, 16
      %vm6258 = vcmp.lt.s32.totalorder %v6194, 16
      %vm6259 = vcmp.lt.s32.totalorder %v6195, 16
      %vm6260 = vcmp.lt.s32.totalorder %v6196, 16
      %vm6261 = vcmp.lt.s32.totalorder %v6197, 16
      %vm6262 = vcmp.lt.s32.totalorder %v6198, 16
      %vm6263 = vcmp.lt.s32.totalorder %v6199, 16
      %vm6264 = vcmp.lt.s32.totalorder %v6200, 16
      %vm6265 = vcmp.lt.s32.totalorder %v6201, 16
      %vm6266 = vcmp.lt.s32.totalorder %v6202, 16
      %vm6267 = vcmp.lt.s32.totalorder %v6203, 16
      %v6268 = vsel %vm6204, 1, 0
      %v6269 = vsel %vm6205, 1, 0
      %v6270 = vsel %vm6206, 1, 0
      %v6271 = vsel %vm6207, 1, 0
      %v6272 = vsel %vm6208, 1, 0
      %v6273 = vsel %vm6209, 1, 0
      %v6274 = vsel %vm6210, 1, 0
      %v6275 = vsel %vm6211, 1, 0
      %v6276 = vsel %vm6212, 1, 0
      %v6277 = vsel %vm6213, 1, 0
      %v6278 = vsel %vm6214, 1, 0
      %v6279 = vsel %vm6215, 1, 0
      %v6280 = vsel %vm6216, 1, 0
      %v6281 = vsel %vm6217, 1, 0
      %v6282 = vsel %vm6218, 1, 0
      %v6283 = vsel %vm6219, 1, 0
      %v6284 = vsel %vm6220, 1, 0
      %v6285 = vsel %vm6221, 1, 0
      %v6286 = vsel %vm6222, 1, 0
      %v6287 = vsel %vm6223, 1, 0
      %v6288 = vsel %vm6224, 1, 0
      %v6289 = vsel %vm6225, 1, 0
      %v6290 = vsel %vm6226, 1, 0
      %v6291 = vsel %vm6227, 1, 0
      %v6292 = vsel %vm6228, 1, 0
      %v6293 = vsel %vm6229, 1, 0
      %v6294 = vsel %vm6230, 1, 0
      %v6295 = vsel %vm6231, 1, 0
      %v6296 = vsel %vm6232, 1, 0
      %v6297 = vsel %vm6233, 1, 0
      %v6298 = vsel %vm6234, 1, 0
      %v6299 = vsel %vm6235, 1, 0
      %v6300 = vsel %vm6236, 1, 0
      %v6301 = vsel %vm6237, 1, 0
      %v6302 = vsel %vm6238, 1, 0
      %v6303 = vsel %vm6239, 1, 0
      %v6304 = vsel %vm6240, 1, 0
      %v6305 = vsel %vm6241, 1, 0
      %v6306 = vsel %vm6242, 1, 0
      %v6307 = vsel %vm6243, 1, 0
      %v6308 = vsel %vm6244, 1, 0
      %v6309 = vsel %vm6245, 1, 0
      %v6310 = vsel %vm6246, 1, 0
      %v6311 = vsel %vm6247, 1, 0
      %v6312 = vsel %vm6248, 1, 0
      %v6313 = vsel %vm6249, 1, 0
      %v6314 = vsel %vm6250, 1, 0
      %v6315 = vsel %vm6251, 1, 0
      %v6316 = vsel %vm6252, 1, 0
      %v6317 = vsel %vm6253, 1, 0
      %v6318 = vsel %vm6254, 1, 0
      %v6319 = vsel %vm6255, 1, 0
      %v6320 = vsel %vm6256, 1, 0
      %v6321 = vsel %vm6257, 1, 0
      %v6322 = vsel %vm6258, 1, 0
      %v6323 = vsel %vm6259, 1, 0
      %v6324 = vsel %vm6260, 1, 0
      %v6325 = vsel %vm6261, 1, 0
      %v6326 = vsel %vm6262, 1, 0
      %v6327 = vsel %vm6263, 1, 0
      %v6328 = vsel %vm6264, 1, 0
      %v6329 = vsel %vm6265, 1, 0
      %v6330 = vsel %vm6266, 1, 0
      %v6331 = vsel %vm6267, 1, 0
      %vm6332 = vcmp.eq.s32.totalorder %v6268, 1
      %vm6333 = vcmp.eq.s32.totalorder %v6269, 1
      %vm6334 = vcmp.eq.s32.totalorder %v6270, 1
      %vm6335 = vcmp.eq.s32.totalorder %v6271, 1
      %vm6336 = vcmp.eq.s32.totalorder %v6272, 1
      %vm6337 = vcmp.eq.s32.totalorder %v6273, 1
      %vm6338 = vcmp.eq.s32.totalorder %v6274, 1
      %vm6339 = vcmp.eq.s32.totalorder %v6275, 1
      %vm6340 = vcmp.eq.s32.totalorder %v6276, 1
      %vm6341 = vcmp.eq.s32.totalorder %v6277, 1
      %vm6342 = vcmp.eq.s32.totalorder %v6278, 1
      %vm6343 = vcmp.eq.s32.totalorder %v6279, 1
      %vm6344 = vcmp.eq.s32.totalorder %v6280, 1
      %vm6345 = vcmp.eq.s32.totalorder %v6281, 1
      %vm6346 = vcmp.eq.s32.totalorder %v6282, 1
      %vm6347 = vcmp.eq.s32.totalorder %v6283, 1
      %vm6348 = vcmp.eq.s32.totalorder %v6284, 1
      %vm6349 = vcmp.eq.s32.totalorder %v6285, 1
      %vm6350 = vcmp.eq.s32.totalorder %v6286, 1
      %vm6351 = vcmp.eq.s32.totalorder %v6287, 1
      %vm6352 = vcmp.eq.s32.totalorder %v6288, 1
      %vm6353 = vcmp.eq.s32.totalorder %v6289, 1
      %vm6354 = vcmp.eq.s32.totalorder %v6290, 1
      %vm6355 = vcmp.eq.s32.totalorder %v6291, 1
      %vm6356 = vcmp.eq.s32.totalorder %v6292, 1
      %vm6357 = vcmp.eq.s32.totalorder %v6293, 1
      %vm6358 = vcmp.eq.s32.totalorder %v6294, 1
      %vm6359 = vcmp.eq.s32.totalorder %v6295, 1
      %vm6360 = vcmp.eq.s32.totalorder %v6296, 1
      %vm6361 = vcmp.eq.s32.totalorder %v6297, 1
      %vm6362 = vcmp.eq.s32.totalorder %v6298, 1
      %vm6363 = vcmp.eq.s32.totalorder %v6299, 1
      %vm6364 = vcmp.eq.s32.totalorder %v6300, 1
      %vm6365 = vcmp.eq.s32.totalorder %v6301, 1
      %vm6366 = vcmp.eq.s32.totalorder %v6302, 1
      %vm6367 = vcmp.eq.s32.totalorder %v6303, 1
      %vm6368 = vcmp.eq.s32.totalorder %v6304, 1
      %vm6369 = vcmp.eq.s32.totalorder %v6305, 1
      %vm6370 = vcmp.eq.s32.totalorder %v6306, 1
      %vm6371 = vcmp.eq.s32.totalorder %v6307, 1
      %vm6372 = vcmp.eq.s32.totalorder %v6308, 1
      %vm6373 = vcmp.eq.s32.totalorder %v6309, 1
      %vm6374 = vcmp.eq.s32.totalorder %v6310, 1
      %vm6375 = vcmp.eq.s32.totalorder %v6311, 1
      %vm6376 = vcmp.eq.s32.totalorder %v6312, 1
      %vm6377 = vcmp.eq.s32.totalorder %v6313, 1
      %vm6378 = vcmp.eq.s32.totalorder %v6314, 1
      %vm6379 = vcmp.eq.s32.totalorder %v6315, 1
      %vm6380 = vcmp.eq.s32.totalorder %v6316, 1
      %vm6381 = vcmp.eq.s32.totalorder %v6317, 1
      %vm6382 = vcmp.eq.s32.totalorder %v6318, 1
      %vm6383 = vcmp.eq.s32.totalorder %v6319, 1
      %vm6384 = vcmp.eq.s32.totalorder %v6320, 1
      %vm6385 = vcmp.eq.s32.totalorder %v6321, 1
      %vm6386 = vcmp.eq.s32.totalorder %v6322, 1
      %vm6387 = vcmp.eq.s32.totalorder %v6323, 1
      %vm6388 = vcmp.eq.s32.totalorder %v6324, 1
      %vm6389 = vcmp.eq.s32.totalorder %v6325, 1
      %vm6390 = vcmp.eq.s32.totalorder %v6326, 1
      %vm6391 = vcmp.eq.s32.totalorder %v6327, 1
      %vm6392 = vcmp.eq.s32.totalorder %v6328, 1
      %vm6393 = vcmp.eq.s32.totalorder %v6329, 1
      %vm6394 = vcmp.eq.s32.totalorder %v6330, 1
      %vm6395 = vcmp.eq.s32.totalorder %v6331, 1
      %v6396 = vsel %vm6332, %v5309, 0.0
      %v6397 = vsel %vm6333, %v5310, 0.0
      %v6398 = vsel %vm6334, %v5311, 0.0
      %v6399 = vsel %vm6335, %v5312, 0.0
      %v6400 = vsel %vm6336, %v5313, 0.0
      %v6401 = vsel %vm6337, %v5314, 0.0
      %v6402 = vsel %vm6338, %v5315, 0.0
      %v6403 = vsel %vm6339, %v5316, 0.0
      %v6404 = vsel %vm6340, %v5317, 0.0
      %v6405 = vsel %vm6341, %v5318, 0.0
      %v6406 = vsel %vm6342, %v5319, 0.0
      %v6407 = vsel %vm6343, %v5320, 0.0
      %v6408 = vsel %vm6344, %v5321, 0.0
      %v6409 = vsel %vm6345, %v5322, 0.0
      %v6410 = vsel %vm6346, %v5323, 0.0
      %v6411 = vsel %vm6347, %v5324, 0.0
      %v6412 = vsel %vm6348, %v5325, 0.0
      %v6413 = vsel %vm6349, %v5326, 0.0
      %v6414 = vsel %vm6350, %v5327, 0.0
      %v6415 = vsel %vm6351, %v5328, 0.0
      %v6416 = vsel %vm6352, %v5329, 0.0
      %v6417 = vsel %vm6353, %v5330, 0.0
      %v6418 = vsel %vm6354, %v5331, 0.0
      %v6419 = vsel %vm6355, %v5332, 0.0
      %v6420 = vsel %vm6356, %v5333, 0.0
      %v6421 = vsel %vm6357, %v5334, 0.0
      %v6422 = vsel %vm6358, %v5335, 0.0
      %v6423 = vsel %vm6359, %v5336, 0.0
      %v6424 = vsel %vm6360, %v5337, 0.0
      %v6425 = vsel %vm6361, %v5338, 0.0
      %v6426 = vsel %vm6362, %v5339, 0.0
      %v6427 = vsel %vm6363, %v5340, 0.0
      %v6428 = vsel %vm6364, %v5341, 0.0
      %v6429 = vsel %vm6365, %v5342, 0.0
      %v6430 = vsel %vm6366, %v5343, 0.0
      %v6431 = vsel %vm6367, %v5344, 0.0
      %v6432 = vsel %vm6368, %v5345, 0.0
      %v6433 = vsel %vm6369, %v5346, 0.0
      %v6434 = vsel %vm6370, %v5347, 0.0
      %v6435 = vsel %vm6371, %v5348, 0.0
      %v6436 = vsel %vm6372, %v5349, 0.0
      %v6437 = vsel %vm6373, %v5350, 0.0
      %v6438 = vsel %vm6374, %v5351, 0.0
      %v6439 = vsel %vm6375, %v5352, 0.0
      %v6440 = vsel %vm6376, %v5353, 0.0
      %v6441 = vsel %vm6377, %v5354, 0.0
      %v6442 = vsel %vm6378, %v5355, 0.0
      %v6443 = vsel %vm6379, %v5356, 0.0
      %v6444 = vsel %vm6380, %v5357, 0.0
      %v6445 = vsel %vm6381, %v5358, 0.0
      %v6446 = vsel %vm6382, %v5359, 0.0
      %v6447 = vsel %vm6383, %v5360, 0.0
      %v6448 = vsel %vm6384, %v5361, 0.0
      %v6449 = vsel %vm6385, %v5362, 0.0
      %v6450 = vsel %vm6386, %v5363, 0.0
      %v6451 = vsel %vm6387, %v5364, 0.0
      %v6452 = vsel %vm6388, %v5365, 0.0
      %v6453 = vsel %vm6389, %v5366, 0.0
      %v6454 = vsel %vm6390, %v5367, 0.0
      %v6455 = vsel %vm6391, %v5368, 0.0
      %v6456 = vsel %vm6392, %v5369, 0.0
      %v6457 = vsel %vm6393, %v5370, 0.0
      %v6458 = vsel %vm6394, %v5371, 0.0
      %v6459 = vsel %vm6395, %v5372, 0.0
      %vm6460 = vcmask 261120
      %6461 = vst.msk [vmem:[#allocation2] sm:$0xff] %vm6460, 0
      %6462 = vst.msk [vmem:[#allocation2 + $0x8] sm:$0xff] %vm6460, 0
      %6463 = vst.msk [vmem:[#allocation2 + $0x110] sm:$0xff] %vm6460, 0
      %6464 = vst.msk [vmem:[#allocation2 + $0x118] sm:$0xff] %vm6460, 0
      %v6465 = vpack.c.bf16 %v6397, %v6396
      %v6466 = vpack.c.bf16 %v6399, %v6398
      %v6467 = vpack.c.bf16 %v6401, %v6400
      %v6468 = vpack.c.bf16 %v6403, %v6402
      %v6469 = vpack.c.bf16 %v6405, %v6404
      %v6470 = vpack.c.bf16 %v6407, %v6406
      %v6471 = vpack.c.bf16 %v6409, %v6408
      %v6472 = vpack.c.bf16 %v6411, %v6410
      %v6473 = vpack.c.bf16 %v6413, %v6412
      %v6474 = vpack.c.bf16 %v6415, %v6414
      %v6475 = vpack.c.bf16 %v6417, %v6416
      %v6476 = vpack.c.bf16 %v6419, %v6418
      %v6477 = vpack.c.bf16 %v6421, %v6420
      %v6478 = vpack.c.bf16 %v6423, %v6422
      %v6479 = vpack.c.bf16 %v6425, %v6424
      %v6480 = vpack.c.bf16 %v6427, %v6426
      %v6481 = vpack.c.bf16 %v6429, %v6428
      %v6482 = vpack.c.bf16 %v6431, %v6430
      %v6483 = vpack.c.bf16 %v6433, %v6432
      %v6484 = vpack.c.bf16 %v6435, %v6434
      %v6485 = vpack.c.bf16 %v6437, %v6436
      %v6486 = vpack.c.bf16 %v6439, %v6438
      %v6487 = vpack.c.bf16 %v6441, %v6440
      %v6488 = vpack.c.bf16 %v6443, %v6442
      %v6489 = vpack.c.bf16 %v6445, %v6444
      %v6490 = vpack.c.bf16 %v6447, %v6446
      %v6491 = vpack.c.bf16 %v6449, %v6448
      %v6492 = vpack.c.bf16 %v6451, %v6450
      %v6493 = vpack.c.bf16 %v6453, %v6452
      %v6494 = vpack.c.bf16 %v6455, %v6454
      %v6495 = vpack.c.bf16 %v6457, %v6456
      %v6496 = vpack.c.bf16 %v6459, %v6458
      %6497 = vst.msk [vmem:[#allocation2 + $0x10] sm:$0xff] %vm6460, %v6465
      %6498 = vst.msk [vmem:[#allocation2 + $0x18] sm:$0xff] %vm6460, %v6466
      %6499 = vst.msk [vmem:[#allocation2 + $0x20] sm:$0xff] %vm6460, %v6467
      %6500 = vst.msk [vmem:[#allocation2 + $0x28] sm:$0xff] %vm6460, %v6468
      %6501 = vst.msk [vmem:[#allocation2 + $0x30] sm:$0xff] %vm6460, %v6469
      %6502 = vst.msk [vmem:[#allocation2 + $0x38] sm:$0xff] %vm6460, %v6470
      %6503 = vst.msk [vmem:[#allocation2 + $0x40] sm:$0xff] %vm6460, %v6471
      %6504 = vst.msk [vmem:[#allocation2 + $0x48] sm:$0xff] %vm6460, %v6472
      %6505 = vst.msk [vmem:[#allocation2 + $0x50] sm:$0xff] %vm6460, %v6473
      %6506 = vst.msk [vmem:[#allocation2 + $0x58] sm:$0xff] %vm6460, %v6474
      %6507 = vst.msk [vmem:[#allocation2 + $0x60] sm:$0xff] %vm6460, %v6475
      %6508 = vst.msk [vmem:[#allocation2 + $0x68] sm:$0xff] %vm6460, %v6476
      %6509 = vst.msk [vmem:[#allocation2 + $0x70] sm:$0xff] %vm6460, %v6477
      %6510 = vst.msk [vmem:[#allocation2 + $0x78] sm:$0xff] %vm6460, %v6478
      %6511 = vst.msk [vmem:[#allocation2 + $0x80] sm:$0xff] %vm6460, %v6479
      %6512 = vst.msk [vmem:[#allocation2 + $0x88] sm:$0xff] %vm6460, %v6480
      %6513 = vst.msk [vmem:[#allocation2 + $0x90] sm:$0xff] %vm6460, %v6481
      %6514 = vst.msk [vmem:[#allocation2 + $0x98] sm:$0xff] %vm6460, %v6482
      %6515 = vst.msk [vmem:[#allocation2 + $0xa0] sm:$0xff] %vm6460, %v6483
      %6516 = vst.msk [vmem:[#allocation2 + $0xa8] sm:$0xff] %vm6460, %v6484
      %6517 = vst.msk [vmem:[#allocation2 + $0xb0] sm:$0xff] %vm6460, %v6485
      %6518 = vst.msk [vmem:[#allocation2 + $0xb8] sm:$0xff] %vm6460, %v6486
      %6519 = vst.msk [vmem:[#allocation2 + $0xc0] sm:$0xff] %vm6460, %v6487
      %6520 = vst.msk [vmem:[#allocation2 + $0xc8] sm:$0xff] %vm6460, %v6488
      %6521 = vst.msk [vmem:[#allocation2 + $0xd0] sm:$0xff] %vm6460, %v6489
      %6522 = vst.msk [vmem:[#allocation2 + $0xd8] sm:$0xff] %vm6460, %v6490
      %6523 = vst.msk [vmem:[#allocation2 + $0xe0] sm:$0xff] %vm6460, %v6491
      %6524 = vst.msk [vmem:[#allocation2 + $0xe8] sm:$0xff] %vm6460, %v6492
      %6525 = vst.msk [vmem:[#allocation2 + $0xf0] sm:$0xff] %vm6460, %v6493
      %6526 = vst.msk [vmem:[#allocation2 + $0xf8] sm:$0xff] %vm6460, %v6494
      %6527 = vst.msk [vmem:[#allocation2 + $0x100] sm:$0xff] %vm6460, %v6495
      %6528 = vst.msk [vmem:[#allocation2 + $0x108] sm:$0xff] %vm6460, %v6496
      %v6529 = vld [vmem:[#allocation2] sm:$0xff]
      %v6530 = vld [vmem:[#allocation2 + $0x8] sm:$0xff]
      %v6531 = vld [vmem:[#allocation2 + $0x10] sm:$0xff]
      %v6532 = vld [vmem:[#allocation2 + $0x18] sm:$0xff]
      %v6533 = vld [vmem:[#allocation2 + $0x20] sm:$0xff]
      %v6534 = vld [vmem:[#allocation2 + $0x28] sm:$0xff]
      %v6535 = vld [vmem:[#allocation2 + $0x30] sm:$0xff]
      %v6536 = vld [vmem:[#allocation2 + $0x38] sm:$0xff]
      %v6537 = vld [vmem:[#allocation2 + $0x40] sm:$0xff]
      %v6538 = vld [vmem:[#allocation2 + $0x48] sm:$0xff]
      %v6539 = vld [vmem:[#allocation2 + $0x50] sm:$0xff]
      %v6540 = vld [vmem:[#allocation2 + $0x58] sm:$0xff]
      %v6541 = vld [vmem:[#allocation2 + $0x60] sm:$0xff]
      %v6542 = vld [vmem:[#allocation2 + $0x68] sm:$0xff]
      %v6543 = vld [vmem:[#allocation2 + $0x70] sm:$0xff]
      %v6544 = vld [vmem:[#allocation2 + $0x78] sm:$0xff]
      %v6545 = vld [vmem:[#allocation2 + $0x80] sm:$0xff]
      %v6546 = vld [vmem:[#allocation2 + $0x88] sm:$0xff]
      %v6547 = vld [vmem:[#allocation2 + $0x90] sm:$0xff]
      %v6548 = vld [vmem:[#allocation2 + $0x98] sm:$0xff]
      %v6549 = vld [vmem:[#allocation2 + $0xa0] sm:$0xff]
      %v6550 = vld [vmem:[#allocation2 + $0xa8] sm:$0xff]
      %v6551 = vld [vmem:[#allocation2 + $0xb0] sm:$0xff]
      %v6552 = vld [vmem:[#allocation2 + $0xb8] sm:$0xff]
      %v6553 = vld [vmem:[#allocation2 + $0xc0] sm:$0xff]
      %v6554 = vld [vmem:[#allocation2 + $0xc8] sm:$0xff]
      %v6555 = vld [vmem:[#allocation2 + $0xd0] sm:$0xff]
      %v6556 = vld [vmem:[#allocation2 + $0xd8] sm:$0xff]
      %v6557 = vld [vmem:[#allocation2 + $0xe0] sm:$0xff]
      %v6558 = vld [vmem:[#allocation2 + $0xe8] sm:$0xff]
      %v6559 = vld [vmem:[#allocation2 + $0xf0] sm:$0xff]
      %v6560 = vld [vmem:[#allocation2 + $0xf8] sm:$0xff]
      %v6561 = vld [vmem:[%s3] sm:$0xf]
      %v6562 = vld [vmem:[%s3 + $0x4] sm:$0xf]
      %v6563 = vld [vmem:[%s3 + $0x8] sm:$0xf]
      %v6564 = vld [vmem:[%s3 + $0xc] sm:$0xf]
      %v6569 = vunpack.c.l.b16 %v6561
      %v6570 = vunpack.c.l.b16 %v6562
      %v6571 = vunpack.c.l.b16 %v6563
      %v6572 = vunpack.c.l.b16 %v6564
      %v6573 = vpack.c.b16 %v6570, %v6569
      %v6574 = vpack.c.b16 %v6572, %v6571
      %v6578 = vsel %vm6460, %v6529, 0
      %v6581 = vsel %vm6460, %v6530, 0
      %v6584 = vsel %vm6460, %v6531, 0
      %v6587 = vsel %vm6460, %v6532, 0
      %v6590 = vsel %vm6460, %v6533, 0
      %v6593 = vsel %vm6460, %v6534, 0
      %v6596 = vsel %vm6460, %v6535, 0
      %v6599 = vsel %vm6460, %v6536, 0
      %v6602 = vsel %vm6460, %v6537, 0
      %v6605 = vsel %vm6460, %v6538, 0
      %v6608 = vsel %vm6460, %v6539, 0
      %v6611 = vsel %vm6460, %v6540, 0
      %v6614 = vsel %vm6460, %v6541, 0
      %v6617 = vsel %vm6460, %v6542, 0
      %v6620 = vsel %vm6460, %v6543, 0
      %v6623 = vsel %vm6460, %v6544, 0
      %v6626 = vsel %vm6460, %v6545, 0
      %v6629 = vsel %vm6460, %v6546, 0
      %v6632 = vsel %vm6460, %v6547, 0
      %v6635 = vsel %vm6460, %v6548, 0
      %v6638 = vsel %vm6460, %v6549, 0
      %v6641 = vsel %vm6460, %v6550, 0
      %v6644 = vsel %vm6460, %v6551, 0
      %v6647 = vsel %vm6460, %v6552, 0
      %v6650 = vsel %vm6460, %v6553, 0
      %v6653 = vsel %vm6460, %v6554, 0
      %v6656 = vsel %vm6460, %v6555, 0
      %v6659 = vsel %vm6460, %v6556, 0
      %v6662 = vsel %vm6460, %v6557, 0
      %v6665 = vsel %vm6460, %v6558, 0
      %v6668 = vsel %vm6460, %v6559, 0
      %v6671 = vsel %vm6460, %v6560, 0
      %6673 = vmatprep.subr.bf16.mxu0 0
      %6674 = vmatpush1.bf16.msra.mxu0 %v6573
      %6675 = vmatprep.subr.bf16.mxu0 0
      %6676 = vmatpush1.bf16.msra.mxu0 %v6574
      %6677 = vmatprep.subr.bf16.mxu0 0
      %6678 = vmatpush1.bf16.msra.mxu0 0
      %6679 = vmatprep.subr.bf16.mxu0 0
      %6680 = vmatpush1.bf16.msra.mxu0 0
      %6681 = vmatprep.subr.bf16.mxu0 0
      %6682 = vmatpush1.bf16.msra.mxu0 0
      %6683 = vmatprep.subr.bf16.mxu0 0
      %6684 = vmatpush1.bf16.msra.mxu0 0
      %6685 = vmatprep.subr.bf16.mxu0 0
      %6686 = vmatpush1.bf16.msra.mxu0 0
      %6687 = vmatprep.subr.bf16.mxu0 0
      %6688 = vmatpush1.bf16.msra.mxu0 0
      %6689 = vmatprep.subr.bf16.mxu0 0
      %6690 = vmatpush1.bf16.msra.mxu0 0
      %6691 = vmatprep.subr.bf16.mxu0 0
      %6692 = vmatpush1.bf16.msra.mxu0 0
      %6693 = vmatprep.subr.bf16.mxu0 0
      %6694 = vmatpush1.bf16.msra.mxu0 0
      %6695 = vmatprep.subr.bf16.mxu0 0
      %6696 = vmatpush1.bf16.msra.mxu0 0
      %6697 = vmatprep.subr.bf16.mxu0 0
      %6698 = vmatpush1.bf16.msra.mxu0 0
      %6699 = vmatprep.subr.bf16.mxu0 0
      %6700 = vmatpush1.bf16.msra.mxu0 0
      %6701 = vmatprep.subr.bf16.mxu0 0
      %6702 = vmatpush1.bf16.msra.mxu0 0
      %6703 = vmatprep.subr.bf16.mxu0 0
      %6704 = vmatpush1.bf16.msra.mxu0 0
      %6705 = vmatprep.mubr.bf16.mxu0 0
      %6706 = vmatmul.mubr.bf16.gmra.mrb[0].mxu0 %v6578
      %v6707 = vpop.f32.mrb[0].mxu0
      %v6708 = vadd.f32 0.0, %v6707
      %v6709 = vpop.f32.mrb[0].mxu0
      %v6710 = vpop.f32.mrb[0].mxu0
      %v6711 = vadd.f32 0.0, %v6710
      %v6712 = vpop.f32.mrb[0].mxu0
      %6713 = vmatprep.mubr.bf16.mxu0 0
      %6714 = vmatmul.mubr.bf16.gmra.mrb[0].mxu0 %v6581
      %v6715 = vpop.f32.mrb[0].mxu0
      %v6716 = vadd.f32 0.0, %v6715
      %v6717 = vpop.f32.mrb[0].mxu0
      %v6718 = vpop.f32.mrb[0].mxu0
      %v6719 = vadd.f32 0.0, %v6718
      %v6720 = vpop.f32.mrb[0].mxu0
      %6721 = vmatprep.mubr.bf16.mxu0 0
      %6722 = vmatmul.mubr.bf16.gmra.mrb[0].mxu0 %v6584
      %v6723 = vpop.f32.mrb[0].mxu0
      %v6724 = vadd.f32 0.0, %v6723
      %v6725 = vpop.f32.mrb[0].mxu0
      %v6726 = vpop.f32.mrb[0].mxu0
      %v6727 = vadd.f32 0.0, %v6726
      %v6728 = vpop.f32.mrb[0].mxu0
      %6729 = vmatprep.mubr.bf16.mxu0 0
      %6730 = vmatmul.mubr.bf16.gmra.mrb[0].mxu0 %v6587
      %v6731 = vpop.f32.mrb[0].mxu0
      %v6732 = vadd.f32 0.0, %v6731
      %v6733 = vpop.f32.mrb[0].mxu0
      %v6734 = vpop.f32.mrb[0].mxu0
      %v6735 = vadd.f32 0.0, %v6734
      %v6736 = vpop.f32.mrb[0].mxu0
      %6737 = vmatprep.mubr.bf16.mxu0 0
      %6738 = vmatmul.mubr.bf16.gmra.mrb[0].mxu0 %v6590
      %v6739 = vpop.f32.mrb[0].mxu0
      %v6740 = vadd.f32 0.0, %v6739
      %v6741 = vpop.f32.mrb[0].mxu0
      %v6742 = vpop.f32.mrb[0].mxu0
      %v6743 = vadd.f32 0.0, %v6742
      %v6744 = vpop.f32.mrb[0].mxu0
      %6745 = vmatprep.mubr.bf16.mxu0 0
      %6746 = vmatmul.mubr.bf16.gmra.mrb[0].mxu0 %v6593
      %v6747 = vpop.f32.mrb[0].mxu0
      %v6748 = vadd.f32 0.0, %v6747
      %v6749 = vpop.f32.mrb[0].mxu0
      %v6750 = vpop.f32.mrb[0].mxu0
      %v6751 = vadd.f32 0.0, %v6750
      %v6752 = vpop.f32.mrb[0].mxu0
      %6753 = vmatprep.mubr.bf16.mxu0 0
      %6754 = vmatmul.mubr.bf16.gmra.mrb[0].mxu0 %v6596
      %v6755 = vpop.f32.mrb[0].mxu0
      %v6756 = vadd.f32 0.0, %v6755
      %v6757 = vpop.f32.mrb[0].mxu0
      %v6758 = vpop.f32.mrb[0].mxu0
      %v6759 = vadd.f32 0.0, %v6758
      %v6760 = vpop.f32.mrb[0].mxu0
      %6761 = vmatprep.mubr.bf16.mxu0 0
      %6762 = vmatmul.mubr.bf16.gmra.mrb[0].mxu0 %v6599
      %v6763 = vpop.f32.mrb[0].mxu0
      %v6764 = vadd.f32 0.0, %v6763
      %v6765 = vpop.f32.mrb[0].mxu0
      %v6766 = vpop.f32.mrb[0].mxu0
      %v6767 = vadd.f32 0.0, %v6766
      %v6768 = vpop.f32.mrb[0].mxu0
      %6769 = vmatprep.mubr.bf16.mxu0 0
      %6770 = vmatmul.mubr.bf16.gmra.mrb[0].mxu0 %v6602
      %v6771 = vpop.f32.mrb[0].mxu0
      %v6772 = vadd.f32 0.0, %v6771
      %v6773 = vpop.f32.mrb[0].mxu0
      %v6774 = vpop.f32.mrb[0].mxu0
      %v6775 = vadd.f32 0.0, %v6774
      %v6776 = vpop.f32.mrb[0].mxu0
      %6777 = vmatprep.mubr.bf16.mxu0 0
      %6778 = vmatmul.mubr.bf16.gmra.mrb[0].mxu0 %v6605
      %v6779 = vpop.f32.mrb[0].mxu0
      %v6780 = vadd.f32 0.0, %v6779
      %v6781 = vpop.f32.mrb[0].mxu0
      %v6782 = vpop.f32.mrb[0].mxu0
      %v6783 = vadd.f32 0.0, %v6782
      %v6784 = vpop.f32.mrb[0].mxu0
      %6785 = vmatprep.mubr.bf16.mxu0 0
      %6786 = vmatmul.mubr.bf16.gmra.mrb[0].mxu0 %v6608
      %v6787 = vpop.f32.mrb[0].mxu0
      %v6788 = vadd.f32 0.0, %v6787
      %v6789 = vpop.f32.mrb[0].mxu0
      %v6790 = vpop.f32.mrb[0].mxu0
      %v6791 = vadd.f32 0.0, %v6790
      %v6792 = vpop.f32.mrb[0].mxu0
      %6793 = vmatprep.mubr.bf16.mxu0 0
      %6794 = vmatmul.mubr.bf16.gmra.mrb[0].mxu0 %v6611
      %v6795 = vpop.f32.mrb[0].mxu0
      %v6796 = vadd.f32 0.0, %v6795
      %v6797 = vpop.f32.mrb[0].mxu0
      %v6798 = vpop.f32.mrb[0].mxu0
      %v6799 = vadd.f32 0.0, %v6798
      %v6800 = vpop.f32.mrb[0].mxu0
      %6801 = vmatprep.mubr.bf16.mxu0 0
      %6802 = vmatmul.mubr.bf16.gmra.mrb[0].mxu0 %v6614
      %v6803 = vpop.f32.mrb[0].mxu0
      %v6804 = vadd.f32 0.0, %v6803
      %v6805 = vpop.f32.mrb[0].mxu0
      %v6806 = vpop.f32.mrb[0].mxu0
      %v6807 = vadd.f32 0.0, %v6806
      %v6808 = vpop.f32.mrb[0].mxu0
      %6809 = vmatprep.mubr.bf16.mxu0 0
      %6810 = vmatmul.mubr.bf16.gmra.mrb[0].mxu0 %v6617
      %v6811 = vpop.f32.mrb[0].mxu0
      %v6812 = vadd.f32 0.0, %v6811
      %v6813 = vpop.f32.mrb[0].mxu0
      %v6814 = vpop.f32.mrb[0].mxu0
      %v6815 = vadd.f32 0.0, %v6814
      %v6816 = vpop.f32.mrb[0].mxu0
      %6817 = vmatprep.mubr.bf16.mxu0 0
      %6818 = vmatmul.mubr.bf16.gmra.mrb[0].mxu0 %v6620
      %v6819 = vpop.f32.mrb[0].mxu0
      %v6820 = vadd.f32 0.0, %v6819
      %v6821 = vpop.f32.mrb[0].mxu0
      %v6822 = vpop.f32.mrb[0].mxu0
      %v6823 = vadd.f32 0.0, %v6822
      %v6824 = vpop.f32.mrb[0].mxu0
      %6825 = vmatprep.mubr.bf16.mxu0 0
      %6826 = vmatmul.mubr.bf16.gmra.mrb[0].mxu0 %v6623
      %v6827 = vpop.f32.mrb[0].mxu0
      %v6828 = vadd.f32 0.0, %v6827
      %v6829 = vpop.f32.mrb[0].mxu0
      %v6830 = vpop.f32.mrb[0].mxu0
      %v6831 = vadd.f32 0.0, %v6830
      %v6832 = vpop.f32.mrb[0].mxu0
      %6833 = vmatprep.mubr.bf16.mxu0 0
      %6834 = vmatmul.mubr.bf16.gmra.mrb[0].mxu0 %v6626
      %v6835 = vpop.f32.mrb[0].mxu0
      %v6836 = vadd.f32 0.0, %v6835
      %v6837 = vpop.f32.mrb[0].mxu0
      %v6838 = vpop.f32.mrb[0].mxu0
      %v6839 = vadd.f32 0.0, %v6838
      %v6840 = vpop.f32.mrb[0].mxu0
      %6841 = vmatprep.mubr.bf16.mxu0 0
      %6842 = vmatmul.mubr.bf16.gmra.mrb[0].mxu0 %v6629
      %v6843 = vpop.f32.mrb[0].mxu0
      %v6844 = vadd.f32 0.0, %v6843
      %v6845 = vpop.f32.mrb[0].mxu0
      %v6846 = vpop.f32.mrb[0].mxu0
      %v6847 = vadd.f32 0.0, %v6846
      %v6848 = vpop.f32.mrb[0].mxu0
      %6849 = vmatprep.mubr.bf16.mxu0 0
      %6850 = vmatmul.mubr.bf16.gmra.mrb[0].mxu0 %v6632
      %v6851 = vpop.f32.mrb[0].mxu0
      %v6852 = vadd.f32 0.0, %v6851
      %v6853 = vpop.f32.mrb[0].mxu0
      %v6854 = vpop.f32.mrb[0].mxu0
      %v6855 = vadd.f32 0.0, %v6854
      %v6856 = vpop.f32.mrb[0].mxu0
      %6857 = vmatprep.mubr.bf16.mxu0 0
      %6858 = vmatmul.mubr.bf16.gmra.mrb[0].mxu0 %v6635
      %v6859 = vpop.f32.mrb[0].mxu0
      %v6860 = vadd.f32 0.0, %v6859
      %v6861 = vpop.f32.mrb[0].mxu0
      %v6862 = vpop.f32.mrb[0].mxu0
      %v6863 = vadd.f32 0.0, %v6862
      %v6864 = vpop.f32.mrb[0].mxu0
      %6865 = vmatprep.mubr.bf16.mxu0 0
      %6866 = vmatmul.mubr.bf16.gmra.mrb[0].mxu0 %v6638
      %v6867 = vpop.f32.mrb[0].mxu0
      %v6868 = vadd.f32 0.0, %v6867
      %v6869 = vpop.f32.mrb[0].mxu0
      %v6870 = vpop.f32.mrb[0].mxu0
      %v6871 = vadd.f32 0.0, %v6870
      %v6872 = vpop.f32.mrb[0].mxu0
      %6873 = vmatprep.mubr.bf16.mxu0 0
      %6874 = vmatmul.mubr.bf16.gmra.mrb[0].mxu0 %v6641
      %v6875 = vpop.f32.mrb[0].mxu0
      %v6876 = vadd.f32 0.0, %v6875
      %v6877 = vpop.f32.mrb[0].mxu0
      %v6878 = vpop.f32.mrb[0].mxu0
      %v6879 = vadd.f32 0.0, %v6878
      %v6880 = vpop.f32.mrb[0].mxu0
      %6881 = vmatprep.mubr.bf16.mxu0 0
      %6882 = vmatmul.mubr.bf16.gmra.mrb[0].mxu0 %v6644
      %v6883 = vpop.f32.mrb[0].mxu0
      %v6884 = vadd.f32 0.0, %v6883
      %v6885 = vpop.f32.mrb[0].mxu0
      %v6886 = vpop.f32.mrb[0].mxu0
      %v6887 = vadd.f32 0.0, %v6886
      %v6888 = vpop.f32.mrb[0].mxu0
      %6889 = vmatprep.mubr.bf16.mxu0 0
      %6890 = vmatmul.mubr.bf16.gmra.mrb[0].mxu0 %v6647
      %v6891 = vpop.f32.mrb[0].mxu0
      %v6892 = vadd.f32 0.0, %v6891
      %v6893 = vpop.f32.mrb[0].mxu0
      %v6894 = vpop.f32.mrb[0].mxu0
      %v6895 = vadd.f32 0.0, %v6894
      %v6896 = vpop.f32.mrb[0].mxu0
      %6897 = vmatprep.mubr.bf16.mxu0 0
      %6898 = vmatmul.mubr.bf16.gmra.mrb[0].mxu0 %v6650
      %v6899 = vpop.f32.mrb[0].mxu0
      %v6900 = vadd.f32 0.0, %v6899
      %v6901 = vpop.f32.mrb[0].mxu0
      %v6902 = vpop.f32.mrb[0].mxu0
      %v6903 = vadd.f32 0.0, %v6902
      %v6904 = vpop.f32.mrb[0].mxu0
      %6905 = vmatprep.mubr.bf16.mxu0 0
      %6906 = vmatmul.mubr.bf16.gmra.mrb[0].mxu0 %v6653
      %v6907 = vpop.f32.mrb[0].mxu0
      %v6908 = vadd.f32 0.0, %v6907
      %v6909 = vpop.f32.mrb[0].mxu0
      %v6910 = vpop.f32.mrb[0].mxu0
      %v6911 = vadd.f32 0.0, %v6910
      %v6912 = vpop.f32.mrb[0].mxu0
      %6913 = vmatprep.mubr.bf16.mxu0 0
      %6914 = vmatmul.mubr.bf16.gmra.mrb[0].mxu0 %v6656
      %v6915 = vpop.f32.mrb[0].mxu0
      %v6916 = vadd.f32 0.0, %v6915
      %v6917 = vpop.f32.mrb[0].mxu0
      %v6918 = vpop.f32.mrb[0].mxu0
      %v6919 = vadd.f32 0.0, %v6918
      %v6920 = vpop.f32.mrb[0].mxu0
      %6921 = vmatprep.mubr.bf16.mxu0 0
      %6922 = vmatmul.mubr.bf16.gmra.mrb[0].mxu0 %v6659
      %v6923 = vpop.f32.mrb[0].mxu0
      %v6924 = vadd.f32 0.0, %v6923
      %v6925 = vpop.f32.mrb[0].mxu0
      %v6926 = vpop.f32.mrb[0].mxu0
      %v6927 = vadd.f32 0.0, %v6926
      %v6928 = vpop.f32.mrb[0].mxu0
      %6929 = vmatprep.mubr.bf16.mxu0 0
      %6930 = vmatmul.mubr.bf16.gmra.mrb[0].mxu0 %v6662
      %v6931 = vpop.f32.mrb[0].mxu0
      %v6932 = vadd.f32 0.0, %v6931
      %v6933 = vpop.f32.mrb[0].mxu0
      %v6934 = vpop.f32.mrb[0].mxu0
      %v6935 = vadd.f32 0.0, %v6934
      %v6936 = vpop.f32.mrb[0].mxu0
      %6937 = vmatprep.mubr.bf16.mxu0 0
      %6938 = vmatmul.mubr.bf16.gmra.mrb[0].mxu0 %v6665
      %v6939 = vpop.f32.mrb[0].mxu0
      %v6940 = vadd.f32 0.0, %v6939
      %v6941 = vpop.f32.mrb[0].mxu0
      %v6942 = vpop.f32.mrb[0].mxu0
      %v6943 = vadd.f32 0.0, %v6942
      %v6944 = vpop.f32.mrb[0].mxu0
      %6945 = vmatprep.mubr.bf16.mxu0 0
      %6946 = vmatmul.mubr.bf16.gmra.mrb[0].mxu0 %v6668
      %v6947 = vpop.f32.mrb[0].mxu0
      %v6948 = vadd.f32 0.0, %v6947
      %v6949 = vpop.f32.mrb[0].mxu0
      %v6950 = vpop.f32.mrb[0].mxu0
      %v6951 = vadd.f32 0.0, %v6950
      %v6952 = vpop.f32.mrb[0].mxu0
      %6953 = vmatprep.mubr.bf16.mxu0 0
      %6954 = vmatmul.mubr.bf16.gmra.mrb[0].mxu0 %v6671
      %v6955 = vpop.f32.mrb[0].mxu0
      %v6956 = vadd.f32 0.0, %v6955
      %v6957 = vpop.f32.mrb[0].mxu0
      %v6958 = vpop.f32.mrb[0].mxu0
      %v6959 = vadd.f32 0.0, %v6958
      %v6960 = vpop.f32.mrb[0].mxu0
      %6961 = vdwg.mxu0
      %s6962 = scalar_lea.vmem %s3, 16
      %v6963 = vld [vmem:[%s6962] sm:$0xf]
      %v6964 = vld [vmem:[%s6962 + $0x4] sm:$0xf]
      %v6965 = vld [vmem:[%s6962 + $0x8] sm:$0xf]
      %v6966 = vld [vmem:[%s6962 + $0xc] sm:$0xf]
      %v6971 = vunpack.c.l.b16 %v6963
      %v6972 = vunpack.c.l.b16 %v6964
      %v6973 = vunpack.c.l.b16 %v6965
      %v6974 = vunpack.c.l.b16 %v6966
      %v6975 = vpack.c.b16 %v6972, %v6971
      %v6976 = vpack.c.b16 %v6974, %v6973
      %6979 = vmatprep.subr.bf16.mxu0 0
      %6980 = vmatpush1.bf16.msra.mxu0 %v6975
      %6981 = vmatprep.subr.bf16.mxu0 0
      %6982 = vmatpush1.bf16.msra.mxu0 %v6976
      %6983 = vmatprep.subr.bf16.mxu0 0
      %6984 = vmatpush1.bf16.msra.mxu0 0
      %6985 = vmatprep.subr.bf16.mxu0 0
      %6986 = vmatpush1.bf16.msra.mxu0 0
      %6987 = vmatprep.subr.bf16.mxu0 0
      %6988 = vmatpush1.bf16.msra.mxu0 0
      %6989 = vmatprep.subr.bf16.mxu0 0
      %6990 = vmatpush1.bf16.msra.mxu0 0
      %6991 = vmatprep.subr.bf16.mxu0 0
      %6992 = vmatpush1.bf16.msra.mxu0 0
      %6993 = vmatprep.subr.bf16.mxu0 0
      %6994 = vmatpush1.bf16.msra.mxu0 0
      %6995 = vmatprep.subr.bf16.mxu0 0
      %6996 = vmatpush1.bf16.msra.mxu0 0
      %6997 = vmatprep.subr.bf16.mxu0 0
      %6998 = vmatpush1.bf16.msra.mxu0 0
      %6999 = vmatprep.subr.bf16.mxu0 0
      %7000 = vmatpush1.bf16.msra.mxu0 0
      %7001 = vmatprep.subr.bf16.mxu0 0
      %7002 = vmatpush1.bf16.msra.mxu0 0
      %7003 = vmatprep.subr.bf16.mxu0 0
      %7004 = vmatpush1.bf16.msra.mxu0 0
      %7005 = vmatprep.subr.bf16.mxu0 0
      %7006 = vmatpush1.bf16.msra.mxu0 0
      %7007 = vmatprep.subr.bf16.mxu0 0
      %7008 = vmatpush1.bf16.msra.mxu0 0
      %7009 = vmatprep.subr.bf16.mxu0 0
      %7010 = vmatpush1.bf16.msra.mxu0 0
      %7011 = vmatprep.mubr.bf16.mxu0 0
      %7012 = vmatmul.mubr.bf16.gmra.mrb[0].mxu0 %v6578
      %v7013 = vpop.f32.mrb[0].mxu0
      %v7014 = vadd.f32 0.0, %v7013
      %v7015 = vpop.f32.mrb[0].mxu0
      %v7016 = vpop.f32.mrb[0].mxu0
      %v7017 = vadd.f32 0.0, %v7016
      %v7018 = vpop.f32.mrb[0].mxu0
      %7019 = vmatprep.mubr.bf16.mxu0 0
      %7020 = vmatmul.mubr.bf16.gmra.mrb[0].mxu0 %v6581
      %v7021 = vpop.f32.mrb[0].mxu0
      %v7022 = vadd.f32 0.0, %v7021
      %v7023 = vpop.f32.mrb[0].mxu0
      %v7024 = vpop.f32.mrb[0].mxu0
      %v7025 = vadd.f32 0.0, %v7024
      %v7026 = vpop.f32.mrb[0].mxu0
      %7027 = vmatprep.mubr.bf16.mxu0 0
      %7028 = vmatmul.mubr.bf16.gmra.mrb[0].mxu0 %v6584
      %v7029 = vpop.f32.mrb[0].mxu0
      %v7030 = vadd.f32 0.0, %v7029
      %v7031 = vpop.f32.mrb[0].mxu0
      %v7032 = vpop.f32.mrb[0].mxu0
      %v7033 = vadd.f32 0.0, %v7032
      %v7034 = vpop.f32.mrb[0].mxu0
      %7035 = vmatprep.mubr.bf16.mxu0 0
      %7036 = vmatmul.mubr.bf16.gmra.mrb[0].mxu0 %v6587
      %v7037 = vpop.f32.mrb[0].mxu0
      %v7038 = vadd.f32 0.0, %v7037
      %v7039 = vpop.f32.mrb[0].mxu0
      %v7040 = vpop.f32.mrb[0].mxu0
      %v7041 = vadd.f32 0.0, %v7040
      %v7042 = vpop.f32.mrb[0].mxu0
      %7043 = vmatprep.mubr.bf16.mxu0 0
      %7044 = vmatmul.mubr.bf16.gmra.mrb[0].mxu0 %v6590
      %v7045 = vpop.f32.mrb[0].mxu0
      %v7046 = vadd.f32 0.0, %v7045
      %v7047 = vpop.f32.mrb[0].mxu0
      %v7048 = vpop.f32.mrb[0].mxu0
      %v7049 = vadd.f32 0.0, %v7048
      %v7050 = vpop.f32.mrb[0].mxu0
      %7051 = vmatprep.mubr.bf16.mxu0 0
      %7052 = vmatmul.mubr.bf16.gmra.mrb[0].mxu0 %v6593
      %v7053 = vpop.f32.mrb[0].mxu0
      %v7054 = vadd.f32 0.0, %v7053
      %v7055 = vpop.f32.mrb[0].mxu0
      %v7056 = vpop.f32.mrb[0].mxu0
      %v7057 = vadd.f32 0.0, %v7056
      %v7058 = vpop.f32.mrb[0].mxu0
      %7059 = vmatprep.mubr.bf16.mxu0 0
      %7060 = vmatmul.mubr.bf16.gmra.mrb[0].mxu0 %v6596
      %v7061 = vpop.f32.mrb[0].mxu0
      %v7062 = vadd.f32 0.0, %v7061
      %v7063 = vpop.f32.mrb[0].mxu0
      %v7064 = vpop.f32.mrb[0].mxu0
      %v7065 = vadd.f32 0.0, %v7064
      %v7066 = vpop.f32.mrb[0].mxu0
      %7067 = vmatprep.mubr.bf16.mxu0 0
      %7068 = vmatmul.mubr.bf16.gmra.mrb[0].mxu0 %v6599
      %v7069 = vpop.f32.mrb[0].mxu0
      %v7070 = vadd.f32 0.0, %v7069
      %v7071 = vpop.f32.mrb[0].mxu0
      %v7072 = vpop.f32.mrb[0].mxu0
      %v7073 = vadd.f32 0.0, %v7072
      %v7074 = vpop.f32.mrb[0].mxu0
      %7075 = vmatprep.mubr.bf16.mxu0 0
      %7076 = vmatmul.mubr.bf16.gmra.mrb[0].mxu0 %v6602
      %v7077 = vpop.f32.mrb[0].mxu0
      %v7078 = vadd.f32 0.0, %v7077
      %v7079 = vpop.f32.mrb[0].mxu0
      %v7080 = vpop.f32.mrb[0].mxu0
      %v7081 = vadd.f32 0.0, %v7080
      %v7082 = vpop.f32.mrb[0].mxu0
      %7083 = vmatprep.mubr.bf16.mxu0 0
      %7084 = vmatmul.mubr.bf16.gmra.mrb[0].mxu0 %v6605
      %v7085 = vpop.f32.mrb[0].mxu0
      %v7086 = vadd.f32 0.0, %v7085
      %v7087 = vpop.f32.mrb[0].mxu0
      %v7088 = vpop.f32.mrb[0].mxu0
      %v7089 = vadd.f32 0.0, %v7088
      %v7090 = vpop.f32.mrb[0].mxu0
      %7091 = vmatprep.mubr.bf16.mxu0 0
      %7092 = vmatmul.mubr.bf16.gmra.mrb[0].mxu0 %v6608
      %v7093 = vpop.f32.mrb[0].mxu0
      %v7094 = vadd.f32 0.0, %v7093
      %v7095 = vpop.f32.mrb[0].mxu0
      %v7096 = vpop.f32.mrb[0].mxu0
      %v7097 = vadd.f32 0.0, %v7096
      %v7098 = vpop.f32.mrb[0].mxu0
      %7099 = vmatprep.mubr.bf16.mxu0 0
      %7100 = vmatmul.mubr.bf16.gmra.mrb[0].mxu0 %v6611
      %v7101 = vpop.f32.mrb[0].mxu0
      %v7102 = vadd.f32 0.0, %v7101
      %v7103 = vpop.f32.mrb[0].mxu0
      %v7104 = vpop.f32.mrb[0].mxu0
      %v7105 = vadd.f32 0.0, %v7104
      %v7106 = vpop.f32.mrb[0].mxu0
      %7107 = vmatprep.mubr.bf16.mxu0 0
      %7108 = vmatmul.mubr.bf16.gmra.mrb[0].mxu0 %v6614
      %v7109 = vpop.f32.mrb[0].mxu0
      %v7110 = vadd.f32 0.0, %v7109
      %v7111 = vpop.f32.mrb[0].mxu0
      %v7112 = vpop.f32.mrb[0].mxu0
      %v7113 = vadd.f32 0.0, %v7112
      %v7114 = vpop.f32.mrb[0].mxu0
      %7115 = vmatprep.mubr.bf16.mxu0 0
      %7116 = vmatmul.mubr.bf16.gmra.mrb[0].mxu0 %v6617
      %v7117 = vpop.f32.mrb[0].mxu0
      %v7118 = vadd.f32 0.0, %v7117
      %v7119 = vpop.f32.mrb[0].mxu0
      %v7120 = vpop.f32.mrb[0].mxu0
      %v7121 = vadd.f32 0.0, %v7120
      %v7122 = vpop.f32.mrb[0].mxu0
      %7123 = vmatprep.mubr.bf16.mxu0 0
      %7124 = vmatmul.mubr.bf16.gmra.mrb[0].mxu0 %v6620
      %v7125 = vpop.f32.mrb[0].mxu0
      %v7126 = vadd.f32 0.0, %v7125
      %v7127 = vpop.f32.mrb[0].mxu0
      %v7128 = vpop.f32.mrb[0].mxu0
      %v7129 = vadd.f32 0.0, %v7128
      %v7130 = vpop.f32.mrb[0].mxu0
      %7131 = vmatprep.mubr.bf16.mxu0 0
      %7132 = vmatmul.mubr.bf16.gmra.mrb[0].mxu0 %v6623
      %v7133 = vpop.f32.mrb[0].mxu0
      %v7134 = vadd.f32 0.0, %v7133
      %v7135 = vpop.f32.mrb[0].mxu0
      %v7136 = vpop.f32.mrb[0].mxu0
      %v7137 = vadd.f32 0.0, %v7136
      %v7138 = vpop.f32.mrb[0].mxu0
      %7139 = vmatprep.mubr.bf16.mxu0 0
      %7140 = vmatmul.mubr.bf16.gmra.mrb[0].mxu0 %v6626
      %v7141 = vpop.f32.mrb[0].mxu0
      %v7142 = vadd.f32 0.0, %v7141
      %v7143 = vpop.f32.mrb[0].mxu0
      %v7144 = vpop.f32.mrb[0].mxu0
      %v7145 = vadd.f32 0.0, %v7144
      %v7146 = vpop.f32.mrb[0].mxu0
      %7147 = vmatprep.mubr.bf16.mxu0 0
      %7148 = vmatmul.mubr.bf16.gmra.mrb[0].mxu0 %v6629
      %v7149 = vpop.f32.mrb[0].mxu0
      %v7150 = vadd.f32 0.0, %v7149
      %v7151 = vpop.f32.mrb[0].mxu0
      %v7152 = vpop.f32.mrb[0].mxu0
      %v7153 = vadd.f32 0.0, %v7152
      %v7154 = vpop.f32.mrb[0].mxu0
      %7155 = vmatprep.mubr.bf16.mxu0 0
      %7156 = vmatmul.mubr.bf16.gmra.mrb[0].mxu0 %v6632
      %v7157 = vpop.f32.mrb[0].mxu0
      %v7158 = vadd.f32 0.0, %v7157
      %v7159 = vpop.f32.mrb[0].mxu0
      %v7160 = vpop.f32.mrb[0].mxu0
      %v7161 = vadd.f32 0.0, %v7160
      %v7162 = vpop.f32.mrb[0].mxu0
      %7163 = vmatprep.mubr.bf16.mxu0 0
      %7164 = vmatmul.mubr.bf16.gmra.mrb[0].mxu0 %v6635
      %v7165 = vpop.f32.mrb[0].mxu0
      %v7166 = vadd.f32 0.0, %v7165
      %v7167 = vpop.f32.mrb[0].mxu0
      %v7168 = vpop.f32.mrb[0].mxu0
      %v7169 = vadd.f32 0.0, %v7168
      %v7170 = vpop.f32.mrb[0].mxu0
      %7171 = vmatprep.mubr.bf16.mxu0 0
      %7172 = vmatmul.mubr.bf16.gmra.mrb[0].mxu0 %v6638
      %v7173 = vpop.f32.mrb[0].mxu0
      %v7174 = vadd.f32 0.0, %v7173
      %v7175 = vpop.f32.mrb[0].mxu0
      %v7176 = vpop.f32.mrb[0].mxu0
      %v7177 = vadd.f32 0.0, %v7176
      %v7178 = vpop.f32.mrb[0].mxu0
      %7179 = vmatprep.mubr.bf16.mxu0 0
      %7180 = vmatmul.mubr.bf16.gmra.mrb[0].mxu0 %v6641
      %v7181 = vpop.f32.mrb[0].mxu0
      %v7182 = vadd.f32 0.0, %v7181
      %v7183 = vpop.f32.mrb[0].mxu0
      %v7184 = vpop.f32.mrb[0].mxu0
      %v7185 = vadd.f32 0.0, %v7184
      %v7186 = vpop.f32.mrb[0].mxu0
      %7187 = vmatprep.mubr.bf16.mxu0 0
      %7188 = vmatmul.mubr.bf16.gmra.mrb[0].mxu0 %v6644
      %v7189 = vpop.f32.mrb[0].mxu0
      %v7190 = vadd.f32 0.0, %v7189
      %v7191 = vpop.f32.mrb[0].mxu0
      %v7192 = vpop.f32.mrb[0].mxu0
      %v7193 = vadd.f32 0.0, %v7192
      %v7194 = vpop.f32.mrb[0].mxu0
      %7195 = vmatprep.mubr.bf16.mxu0 0
      %7196 = vmatmul.mubr.bf16.gmra.mrb[0].mxu0 %v6647
      %v7197 = vpop.f32.mrb[0].mxu0
      %v7198 = vadd.f32 0.0, %v7197
      %v7199 = vpop.f32.mrb[0].mxu0
      %v7200 = vpop.f32.mrb[0].mxu0
      %v7201 = vadd.f32 0.0, %v7200
      %v7202 = vpop.f32.mrb[0].mxu0
      %7203 = vmatprep.mubr.bf16.mxu0 0
      %7204 = vmatmul.mubr.bf16.gmra.mrb[0].mxu0 %v6650
      %v7205 = vpop.f32.mrb[0].mxu0
      %v7206 = vadd.f32 0.0, %v7205
      %v7207 = vpop.f32.mrb[0].mxu0
      %v7208 = vpop.f32.mrb[0].mxu0
      %v7209 = vadd.f32 0.0, %v7208
      %v7210 = vpop.f32.mrb[0].mxu0
      %7211 = vmatprep.mubr.bf16.mxu0 0
      %7212 = vmatmul.mubr.bf16.gmra.mrb[0].mxu0 %v6653
      %v7213 = vpop.f32.mrb[0].mxu0
      %v7214 = vadd.f32 0.0, %v7213
      %v7215 = vpop.f32.mrb[0].mxu0
      %v7216 = vpop.f32.mrb[0].mxu0
      %v7217 = vadd.f32 0.0, %v7216
      %v7218 = vpop.f32.mrb[0].mxu0
      %7219 = vmatprep.mubr.bf16.mxu0 0
      %7220 = vmatmul.mubr.bf16.gmra.mrb[0].mxu0 %v6656
      %v7221 = vpop.f32.mrb[0].mxu0
      %v7222 = vadd.f32 0.0, %v7221
      %v7223 = vpop.f32.mrb[0].mxu0
      %v7224 = vpop.f32.mrb[0].mxu0
      %v7225 = vadd.f32 0.0, %v7224
      %v7226 = vpop.f32.mrb[0].mxu0
      %7227 = vmatprep.mubr.bf16.mxu0 0
      %7228 = vmatmul.mubr.bf16.gmra.mrb[0].mxu0 %v6659
      %v7229 = vpop.f32.mrb[0].mxu0
      %v7230 = vadd.f32 0.0, %v7229
      %v7231 = vpop.f32.mrb[0].mxu0
      %v7232 = vpop.f32.mrb[0].mxu0
      %v7233 = vadd.f32 0.0, %v7232
      %v7234 = vpop.f32.mrb[0].mxu0
      %7235 = vmatprep.mubr.bf16.mxu0 0
      %7236 = vmatmul.mubr.bf16.gmra.mrb[0].mxu0 %v6662
      %v7237 = vpop.f32.mrb[0].mxu0
      %v7238 = vadd.f32 0.0, %v7237
      %v7239 = vpop.f32.mrb[0].mxu0
      %v7240 = vpop.f32.mrb[0].mxu0
      %v7241 = vadd.f32 0.0, %v7240
      %v7242 = vpop.f32.mrb[0].mxu0
      %7243 = vmatprep.mubr.bf16.mxu0 0
      %7244 = vmatmul.mubr.bf16.gmra.mrb[0].mxu0 %v6665
      %v7245 = vpop.f32.mrb[0].mxu0
      %v7246 = vadd.f32 0.0, %v7245
      %v7247 = vpop.f32.mrb[0].mxu0
      %v7248 = vpop.f32.mrb[0].mxu0
      %v7249 = vadd.f32 0.0, %v7248
      %v7250 = vpop.f32.mrb[0].mxu0
      %7251 = vmatprep.mubr.bf16.mxu0 0
      %7252 = vmatmul.mubr.bf16.gmra.mrb[0].mxu0 %v6668
      %v7253 = vpop.f32.mrb[0].mxu0
      %v7254 = vadd.f32 0.0, %v7253
      %v7255 = vpop.f32.mrb[0].mxu0
      %v7256 = vpop.f32.mrb[0].mxu0
      %v7257 = vadd.f32 0.0, %v7256
      %v7258 = vpop.f32.mrb[0].mxu0
      %7259 = vmatprep.mubr.bf16.mxu0 0
      %7260 = vmatmul.mubr.bf16.gmra.mrb[0].mxu0 %v6671
      %v7261 = vpop.f32.mrb[0].mxu0
      %v7262 = vadd.f32 0.0, %v7261
      %v7263 = vpop.f32.mrb[0].mxu0
      %v7264 = vpop.f32.mrb[0].mxu0
      %v7265 = vadd.f32 0.0, %v7264
      %v7266 = vpop.f32.mrb[0].mxu0
      %7267 = vdwg.mxu0
      %s7268 = scalar_lea.vmem %s3, 32
      %v7269 = vld [vmem:[%s7268] sm:$0xf]
      %v7270 = vld [vmem:[%s7268 + $0x4] sm:$0xf]
      %v7271 = vld [vmem:[%s7268 + $0x8] sm:$0xf]
      %v7272 = vld [vmem:[%s7268 + $0xc] sm:$0xf]
      %v7277 = vunpack.c.l.b16 %v7269
      %v7278 = vunpack.c.l.b16 %v7270
      %v7279 = vunpack.c.l.b16 %v7271
      %v7280 = vunpack.c.l.b16 %v7272
      %v7281 = vpack.c.b16 %v7278, %v7277
      %v7282 = vpack.c.b16 %v7280, %v7279
      %7285 = vmatprep.subr.bf16.mxu0 0
      %7286 = vmatpush1.bf16.msra.mxu0 %v7281
      %7287 = vmatprep.subr.bf16.mxu0 0
      %7288 = vmatpush1.bf16.msra.mxu0 %v7282
      %7289 = vmatprep.subr.bf16.mxu0 0
      %7290 = vmatpush1.bf16.msra.mxu0 0
      %7291 = vmatprep.subr.bf16.mxu0 0
      %7292 = vmatpush1.bf16.msra.mxu0 0
      %7293 = vmatprep.subr.bf16.mxu0 0
      %7294 = vmatpush1.bf16.msra.mxu0 0
      %7295 = vmatprep.subr.bf16.mxu0 0
      %7296 = vmatpush1.bf16.msra.mxu0 0
      %7297 = vmatprep.subr.bf16.mxu0 0
      %7298 = vmatpush1.bf16.msra.mxu0 0
      %7299 = vmatprep.subr.bf16.mxu0 0
      %7300 = vmatpush1.bf16.msra.mxu0 0
      %7301 = vmatprep.subr.bf16.mxu0 0
      %7302 = vmatpush1.bf16.msra.mxu0 0
      %7303 = vmatprep.subr.bf16.mxu0 0
      %7304 = vmatpush1.bf16.msra.mxu0 0
      %7305 = vmatprep.subr.bf16.mxu0 0
      %7306 = vmatpush1.bf16.msra.mxu0 0
      %7307 = vmatprep.subr.bf16.mxu0 0
      %7308 = vmatpush1.bf16.msra.mxu0 0
      %7309 = vmatprep.subr.bf16.mxu0 0
      %7310 = vmatpush1.bf16.msra.mxu0 0
      %7311 = vmatprep.subr.bf16.mxu0 0
      %7312 = vmatpush1.bf16.msra.mxu0 0
      %7313 = vmatprep.subr.bf16.mxu0 0
      %7314 = vmatpush1.bf16.msra.mxu0 0
      %7315 = vmatprep.subr.bf16.mxu0 0
      %7316 = vmatpush1.bf16.msra.mxu0 0
      %7317 = vmatprep.mubr.bf16.mxu0 0
      %7318 = vmatmul.mubr.bf16.gmra.mrb[0].mxu0 %v6578
      %v7319 = vpop.f32.mrb[0].mxu0
      %v7320 = vadd.f32 0.0, %v7319
      %v7321 = vpop.f32.mrb[0].mxu0
      %v7322 = vpop.f32.mrb[0].mxu0
      %v7323 = vadd.f32 0.0, %v7322
      %v7324 = vpop.f32.mrb[0].mxu0
      %7325 = vmatprep.mubr.bf16.mxu0 0
      %7326 = vmatmul.mubr.bf16.gmra.mrb[0].mxu0 %v6581
      %v7327 = vpop.f32.mrb[0].mxu0
      %v7328 = vadd.f32 0.0, %v7327
      %v7329 = vpop.f32.mrb[0].mxu0
      %v7330 = vpop.f32.mrb[0].mxu0
      %v7331 = vadd.f32 0.0, %v7330
      %v7332 = vpop.f32.mrb[0].mxu0
      %7333 = vmatprep.mubr.bf16.mxu0 0
      %7334 = vmatmul.mubr.bf16.gmra.mrb[0].mxu0 %v6584
      %v7335 = vpop.f32.mrb[0].mxu0
      %v7336 = vadd.f32 0.0, %v7335
      %v7337 = vpop.f32.mrb[0].mxu0
      %v7338 = vpop.f32.mrb[0].mxu0
      %v7339 = vadd.f32 0.0, %v7338
      %v7340 = vpop.f32.mrb[0].mxu0
      %7341 = vmatprep.mubr.bf16.mxu0 0
      %7342 = vmatmul.mubr.bf16.gmra.mrb[0].mxu0 %v6587
      %v7343 = vpop.f32.mrb[0].mxu0
      %v7344 = vadd.f32 0.0, %v7343
      %v7345 = vpop.f32.mrb[0].mxu0
      %v7346 = vpop.f32.mrb[0].mxu0
      %v7347 = vadd.f32 0.0, %v7346
      %v7348 = vpop.f32.mrb[0].mxu0
      %7349 = vmatprep.mubr.bf16.mxu0 0
      %7350 = vmatmul.mubr.bf16.gmra.mrb[0].mxu0 %v6590
      %v7351 = vpop.f32.mrb[0].mxu0
      %v7352 = vadd.f32 0.0, %v7351
      %v7353 = vpop.f32.mrb[0].mxu0
      %v7354 = vpop.f32.mrb[0].mxu0
      %v7355 = vadd.f32 0.0, %v7354
      %v7356 = vpop.f32.mrb[0].mxu0
      %7357 = vmatprep.mubr.bf16.mxu0 0
      %7358 = vmatmul.mubr.bf16.gmra.mrb[0].mxu0 %v6593
      %v7359 = vpop.f32.mrb[0].mxu0
      %v7360 = vadd.f32 0.0, %v7359
      %v7361 = vpop.f32.mrb[0].mxu0
      %v7362 = vpop.f32.mrb[0].mxu0
      %v7363 = vadd.f32 0.0, %v7362
      %v7364 = vpop.f32.mrb[0].mxu0
      %7365 = vmatprep.mubr.bf16.mxu0 0
      %7366 = vmatmul.mubr.bf16.gmra.mrb[0].mxu0 %v6596
      %v7367 = vpop.f32.mrb[0].mxu0
      %v7368 = vadd.f32 0.0, %v7367
      %v7369 = vpop.f32.mrb[0].mxu0
      %v7370 = vpop.f32.mrb[0].mxu0
      %v7371 = vadd.f32 0.0, %v7370
      %v7372 = vpop.f32.mrb[0].mxu0
      %7373 = vmatprep.mubr.bf16.mxu0 0
      %7374 = vmatmul.mubr.bf16.gmra.mrb[0].mxu0 %v6599
      %v7375 = vpop.f32.mrb[0].mxu0
      %v7376 = vadd.f32 0.0, %v7375
      %v7377 = vpop.f32.mrb[0].mxu0
      %v7378 = vpop.f32.mrb[0].mxu0
      %v7379 = vadd.f32 0.0, %v7378
      %v7380 = vpop.f32.mrb[0].mxu0
      %7381 = vmatprep.mubr.bf16.mxu0 0
      %7382 = vmatmul.mubr.bf16.gmra.mrb[0].mxu0 %v6602
      %v7383 = vpop.f32.mrb[0].mxu0
      %v7384 = vadd.f32 0.0, %v7383
      %v7385 = vpop.f32.mrb[0].mxu0
      %v7386 = vpop.f32.mrb[0].mxu0
      %v7387 = vadd.f32 0.0, %v7386
      %v7388 = vpop.f32.mrb[0].mxu0
      %7389 = vmatprep.mubr.bf16.mxu0 0
      %7390 = vmatmul.mubr.bf16.gmra.mrb[0].mxu0 %v6605
      %v7391 = vpop.f32.mrb[0].mxu0
      %v7392 = vadd.f32 0.0, %v7391
      %v7393 = vpop.f32.mrb[0].mxu0
      %v7394 = vpop.f32.mrb[0].mxu0
      %v7395 = vadd.f32 0.0, %v7394
      %v7396 = vpop.f32.mrb[0].mxu0
      %7397 = vmatprep.mubr.bf16.mxu0 0
      %7398 = vmatmul.mubr.bf16.gmra.mrb[0].mxu0 %v6608
      %v7399 = vpop.f32.mrb[0].mxu0
      %v7400 = vadd.f32 0.0, %v7399
      %v7401 = vpop.f32.mrb[0].mxu0
      %v7402 = vpop.f32.mrb[0].mxu0
      %v7403 = vadd.f32 0.0, %v7402
      %v7404 = vpop.f32.mrb[0].mxu0
      %7405 = vmatprep.mubr.bf16.mxu0 0
      %7406 = vmatmul.mubr.bf16.gmra.mrb[0].mxu0 %v6611
      %v7407 = vpop.f32.mrb[0].mxu0
      %v7408 = vadd.f32 0.0, %v7407
      %v7409 = vpop.f32.mrb[0].mxu0
      %v7410 = vpop.f32.mrb[0].mxu0
      %v7411 = vadd.f32 0.0, %v7410
      %v7412 = vpop.f32.mrb[0].mxu0
      %7413 = vmatprep.mubr.bf16.mxu0 0
      %7414 = vmatmul.mubr.bf16.gmra.mrb[0].mxu0 %v6614
      %v7415 = vpop.f32.mrb[0].mxu0
      %v7416 = vadd.f32 0.0, %v7415
      %v7417 = vpop.f32.mrb[0].mxu0
      %v7418 = vpop.f32.mrb[0].mxu0
      %v7419 = vadd.f32 0.0, %v7418
      %v7420 = vpop.f32.mrb[0].mxu0
      %7421 = vmatprep.mubr.bf16.mxu0 0
      %7422 = vmatmul.mubr.bf16.gmra.mrb[0].mxu0 %v6617
      %v7423 = vpop.f32.mrb[0].mxu0
      %v7424 = vadd.f32 0.0, %v7423
      %v7425 = vpop.f32.mrb[0].mxu0
      %v7426 = vpop.f32.mrb[0].mxu0
      %v7427 = vadd.f32 0.0, %v7426
      %v7428 = vpop.f32.mrb[0].mxu0
      %7429 = vmatprep.mubr.bf16.mxu0 0
      %7430 = vmatmul.mubr.bf16.gmra.mrb[0].mxu0 %v6620
      %v7431 = vpop.f32.mrb[0].mxu0
      %v7432 = vadd.f32 0.0, %v7431
      %v7433 = vpop.f32.mrb[0].mxu0
      %v7434 = vpop.f32.mrb[0].mxu0
      %v7435 = vadd.f32 0.0, %v7434
      %v7436 = vpop.f32.mrb[0].mxu0
      %7437 = vmatprep.mubr.bf16.mxu0 0
      %7438 = vmatmul.mubr.bf16.gmra.mrb[0].mxu0 %v6623
      %v7439 = vpop.f32.mrb[0].mxu0
      %v7440 = vadd.f32 0.0, %v7439
      %v7441 = vpop.f32.mrb[0].mxu0
      %v7442 = vpop.f32.mrb[0].mxu0
      %v7443 = vadd.f32 0.0, %v7442
      %v7444 = vpop.f32.mrb[0].mxu0
      %7445 = vmatprep.mubr.bf16.mxu0 0
      %7446 = vmatmul.mubr.bf16.gmra.mrb[0].mxu0 %v6626
      %v7447 = vpop.f32.mrb[0].mxu0
      %v7448 = vadd.f32 0.0, %v7447
      %v7449 = vpop.f32.mrb[0].mxu0
      %v7450 = vpop.f32.mrb[0].mxu0
      %v7451 = vadd.f32 0.0, %v7450
      %v7452 = vpop.f32.mrb[0].mxu0
      %7453 = vmatprep.mubr.bf16.mxu0 0
      %7454 = vmatmul.mubr.bf16.gmra.mrb[0].mxu0 %v6629
      %v7455 = vpop.f32.mrb[0].mxu0
      %v7456 = vadd.f32 0.0, %v7455
      %v7457 = vpop.f32.mrb[0].mxu0
      %v7458 = vpop.f32.mrb[0].mxu0
      %v7459 = vadd.f32 0.0, %v7458
      %v7460 = vpop.f32.mrb[0].mxu0
      %7461 = vmatprep.mubr.bf16.mxu0 0
      %7462 = vmatmul.mubr.bf16.gmra.mrb[0].mxu0 %v6632
      %v7463 = vpop.f32.mrb[0].mxu0
      %v7464 = vadd.f32 0.0, %v7463
      %v7465 = vpop.f32.mrb[0].mxu0
      %v7466 = vpop.f32.mrb[0].mxu0
      %v7467 = vadd.f32 0.0, %v7466
      %v7468 = vpop.f32.mrb[0].mxu0
      %7469 = vmatprep.mubr.bf16.mxu0 0
      %7470 = vmatmul.mubr.bf16.gmra.mrb[0].mxu0 %v6635
      %v7471 = vpop.f32.mrb[0].mxu0
      %v7472 = vadd.f32 0.0, %v7471
      %v7473 = vpop.f32.mrb[0].mxu0
      %v7474 = vpop.f32.mrb[0].mxu0
      %v7475 = vadd.f32 0.0, %v7474
      %v7476 = vpop.f32.mrb[0].mxu0
      %7477 = vmatprep.mubr.bf16.mxu0 0
      %7478 = vmatmul.mubr.bf16.gmra.mrb[0].mxu0 %v6638
      %v7479 = vpop.f32.mrb[0].mxu0
      %v7480 = vadd.f32 0.0, %v7479
      %v7481 = vpop.f32.mrb[0].mxu0
      %v7482 = vpop.f32.mrb[0].mxu0
      %v7483 = vadd.f32 0.0, %v7482
      %v7484 = vpop.f32.mrb[0].mxu0
      %7485 = vmatprep.mubr.bf16.mxu0 0
      %7486 = vmatmul.mubr.bf16.gmra.mrb[0].mxu0 %v6641
      %v7487 = vpop.f32.mrb[0].mxu0
      %v7488 = vadd.f32 0.0, %v7487
      %v7489 = vpop.f32.mrb[0].mxu0
      %v7490 = vpop.f32.mrb[0].mxu0
      %v7491 = vadd.f32 0.0, %v7490
      %v7492 = vpop.f32.mrb[0].mxu0
      %7493 = vmatprep.mubr.bf16.mxu0 0
      %7494 = vmatmul.mubr.bf16.gmra.mrb[0].mxu0 %v6644
      %v7495 = vpop.f32.mrb[0].mxu0
      %v7496 = vadd.f32 0.0, %v7495
      %v7497 = vpop.f32.mrb[0].mxu0
      %v7498 = vpop.f32.mrb[0].mxu0
      %v7499 = vadd.f32 0.0, %v7498
      %v7500 = vpop.f32.mrb[0].mxu0
      %7501 = vmatprep.mubr.bf16.mxu0 0
      %7502 = vmatmul.mubr.bf16.gmra.mrb[0].mxu0 %v6647
      %v7503 = vpop.f32.mrb[0].mxu0
      %v7504 = vadd.f32 0.0, %v7503
      %v7505 = vpop.f32.mrb[0].mxu0
      %v7506 = vpop.f32.mrb[0].mxu0
      %v7507 = vadd.f32 0.0, %v7506
      %v7508 = vpop.f32.mrb[0].mxu0
      %7509 = vmatprep.mubr.bf16.mxu0 0
      %7510 = vmatmul.mubr.bf16.gmra.mrb[0].mxu0 %v6650
      %v7511 = vpop.f32.mrb[0].mxu0
      %v7512 = vadd.f32 0.0, %v7511
      %v7513 = vpop.f32.mrb[0].mxu0
      %v7514 = vpop.f32.mrb[0].mxu0
      %v7515 = vadd.f32 0.0, %v7514
      %v7516 = vpop.f32.mrb[0].mxu0
      %7517 = vmatprep.mubr.bf16.mxu0 0
      %7518 = vmatmul.mubr.bf16.gmra.mrb[0].mxu0 %v6653
      %v7519 = vpop.f32.mrb[0].mxu0
      %v7520 = vadd.f32 0.0, %v7519
      %v7521 = vpop.f32.mrb[0].mxu0
      %v7522 = vpop.f32.mrb[0].mxu0
      %v7523 = vadd.f32 0.0, %v7522
      %v7524 = vpop.f32.mrb[0].mxu0
      %7525 = vmatprep.mubr.bf16.mxu0 0
      %7526 = vmatmul.mubr.bf16.gmra.mrb[0].mxu0 %v6656
      %v7527 = vpop.f32.mrb[0].mxu0
      %v7528 = vadd.f32 0.0, %v7527
      %v7529 = vpop.f32.mrb[0].mxu0
      %v7530 = vpop.f32.mrb[0].mxu0
      %v7531 = vadd.f32 0.0, %v7530
      %v7532 = vpop.f32.mrb[0].mxu0
      %7533 = vmatprep.mubr.bf16.mxu0 0
      %7534 = vmatmul.mubr.bf16.gmra.mrb[0].mxu0 %v6659
      %v7535 = vpop.f32.mrb[0].mxu0
      %v7536 = vadd.f32 0.0, %v7535
      %v7537 = vpop.f32.mrb[0].mxu0
      %v7538 = vpop.f32.mrb[0].mxu0
      %v7539 = vadd.f32 0.0, %v7538
      %v7540 = vpop.f32.mrb[0].mxu0
      %7541 = vmatprep.mubr.bf16.mxu0 0
      %7542 = vmatmul.mubr.bf16.gmra.mrb[0].mxu0 %v6662
      %v7543 = vpop.f32.mrb[0].mxu0
      %v7544 = vadd.f32 0.0, %v7543
      %v7545 = vpop.f32.mrb[0].mxu0
      %v7546 = vpop.f32.mrb[0].mxu0
      %v7547 = vadd.f32 0.0, %v7546
      %v7548 = vpop.f32.mrb[0].mxu0
      %7549 = vmatprep.mubr.bf16.mxu0 0
      %7550 = vmatmul.mubr.bf16.gmra.mrb[0].mxu0 %v6665
      %v7551 = vpop.f32.mrb[0].mxu0
      %v7552 = vadd.f32 0.0, %v7551
      %v7553 = vpop.f32.mrb[0].mxu0
      %v7554 = vpop.f32.mrb[0].mxu0
      %v7555 = vadd.f32 0.0, %v7554
      %v7556 = vpop.f32.mrb[0].mxu0
      %7557 = vmatprep.mubr.bf16.mxu0 0
      %7558 = vmatmul.mubr.bf16.gmra.mrb[0].mxu0 %v6668
      %v7559 = vpop.f32.mrb[0].mxu0
      %v7560 = vadd.f32 0.0, %v7559
      %v7561 = vpop.f32.mrb[0].mxu0
      %v7562 = vpop.f32.mrb[0].mxu0
      %v7563 = vadd.f32 0.0, %v7562
      %v7564 = vpop.f32.mrb[0].mxu0
      %7565 = vmatprep.mubr.bf16.mxu0 0
      %7566 = vmatmul.mubr.bf16.gmra.mrb[0].mxu0 %v6671
      %v7567 = vpop.f32.mrb[0].mxu0
      %v7568 = vadd.f32 0.0, %v7567
      %v7569 = vpop.f32.mrb[0].mxu0
      %v7570 = vpop.f32.mrb[0].mxu0
      %v7571 = vadd.f32 0.0, %v7570
      %v7572 = vpop.f32.mrb[0].mxu0
      %7573 = vdwg.mxu0
      %v7574 = vrot.slane %v6708, 7
      %v7575 = vrot.slane %v6711, 7
      %v7576 = vrot.slane %v6716, 7
      %v7577 = vrot.slane %v6719, 7
      %v7578 = vrot.slane %v6724, 7
      %v7579 = vrot.slane %v6727, 7
      %v7580 = vrot.slane %v6732, 7
      %v7581 = vrot.slane %v6735, 7
      %v7582 = vrot.slane %v6740, 7
      %v7583 = vrot.slane %v6743, 7
      %v7584 = vrot.slane %v6748, 7
      %v7585 = vrot.slane %v6751, 7
      %v7586 = vrot.slane %v6756, 7
      %v7587 = vrot.slane %v6759, 7
      %v7588 = vrot.slane %v6764, 7
      %v7589 = vrot.slane %v6767, 7
      %v7590 = vrot.slane %v6772, 7
      %v7591 = vrot.slane %v6775, 7
      %v7592 = vrot.slane %v6780, 7
      %v7593 = vrot.slane %v6783, 7
      %v7594 = vrot.slane %v6788, 7
      %v7595 = vrot.slane %v6791, 7
      %v7596 = vrot.slane %v6796, 7
      %v7597 = vrot.slane %v6799, 7
      %v7598 = vrot.slane %v6804, 7
      %v7599 = vrot.slane %v6807, 7
      %v7600 = vrot.slane %v6812, 7
      %v7601 = vrot.slane %v6815, 7
      %v7602 = vrot.slane %v6820, 7
      %v7603 = vrot.slane %v6823, 7
      %v7604 = vrot.slane %v6828, 7
      %v7605 = vrot.slane %v6831, 7
      %v7606 = vrot.slane %v6836, 7
      %v7607 = vrot.slane %v6839, 7
      %v7608 = vrot.slane %v6844, 7
      %v7609 = vrot.slane %v6847, 7
      %v7610 = vrot.slane %v6852, 7
      %v7611 = vrot.slane %v6855, 7
      %v7612 = vrot.slane %v6860, 7
      %v7613 = vrot.slane %v6863, 7
      %v7614 = vrot.slane %v6868, 7
      %v7615 = vrot.slane %v6871, 7
      %v7616 = vrot.slane %v6876, 7
      %v7617 = vrot.slane %v6879, 7
      %v7618 = vrot.slane %v6884, 7
      %v7619 = vrot.slane %v6887, 7
      %v7620 = vrot.slane %v6892, 7
      %v7621 = vrot.slane %v6895, 7
      %v7622 = vrot.slane %v6900, 7
      %v7623 = vrot.slane %v6903, 7
      %v7624 = vrot.slane %v6908, 7
      %v7625 = vrot.slane %v6911, 7
      %v7626 = vrot.slane %v6916, 7
      %v7627 = vrot.slane %v6919, 7
      %v7628 = vrot.slane %v6924, 7
      %v7629 = vrot.slane %v6927, 7
      %v7630 = vrot.slane %v6932, 7
      %v7631 = vrot.slane %v6935, 7
      %v7632 = vrot.slane %v6940, 7
      %v7633 = vrot.slane %v6943, 7
      %v7634 = vrot.slane %v6948, 7
      %v7635 = vrot.slane %v6951, 7
      %v7636 = vrot.slane %v6956, 7
      %v7637 = vrot.slane %v6959, 7
      %v7638 = vsel %vm1552, %v7636, %v7637
      %v7639 = vsel %vm1552, %v7635, %v7636
      %v7640 = vsel %vm1552, %v7634, %v7635
      %v7641 = vsel %vm1552, %v7633, %v7634
      %v7642 = vsel %vm1552, %v7632, %v7633
      %v7643 = vsel %vm1552, %v7631, %v7632
      %v7644 = vsel %vm1552, %v7630, %v7631
      %v7645 = vsel %vm1552, %v7629, %v7630
      %v7646 = vsel %vm1552, %v7628, %v7629
      %v7647 = vsel %vm1552, %v7627, %v7628
      %v7648 = vsel %vm1552, %v7626, %v7627
      %v7649 = vsel %vm1552, %v7625, %v7626
      %v7650 = vsel %vm1552, %v7624, %v7625
      %v7651 = vsel %vm1552, %v7623, %v7624
      %v7652 = vsel %vm1552, %v7622, %v7623
      %v7653 = vsel %vm1552, %v7621, %v7622
      %v7654 = vsel %vm1552, %v7620, %v7621
      %v7655 = vsel %vm1552, %v7619, %v7620
      %v7656 = vsel %vm1552, %v7618, %v7619
      %v7657 = vsel %vm1552, %v7617, %v7618
      %v7658 = vsel %vm1552, %v7616, %v7617
      %v7659 = vsel %vm1552, %v7615, %v7616
      %v7660 = vsel %vm1552, %v7614, %v7615
      %v7661 = vsel %vm1552, %v7613, %v7614
      %v7662 = vsel %vm1552, %v7612, %v7613
      %v7663 = vsel %vm1552, %v7611, %v7612
      %v7664 = vsel %vm1552, %v7610, %v7611
      %v7665 = vsel %vm1552, %v7609, %v7610
      %v7666 = vsel %vm1552, %v7608, %v7609
      %v7667 = vsel %vm1552, %v7607, %v7608
      %v7668 = vsel %vm1552, %v7606, %v7607
      %v7669 = vsel %vm1552, %v7605, %v7606
      %v7670 = vsel %vm1552, %v7604, %v7605
      %v7671 = vsel %vm1552, %v7603, %v7604
      %v7672 = vsel %vm1552, %v7602, %v7603
      %v7673 = vsel %vm1552, %v7601, %v7602
      %v7674 = vsel %vm1552, %v7600, %v7601
      %v7675 = vsel %vm1552, %v7599, %v7600
      %v7676 = vsel %vm1552, %v7598, %v7599
      %v7677 = vsel %vm1552, %v7597, %v7598
      %v7678 = vsel %vm1552, %v7596, %v7597
      %v7679 = vsel %vm1552, %v7595, %v7596
      %v7680 = vsel %vm1552, %v7594, %v7595
      %v7681 = vsel %vm1552, %v7593, %v7594
      %v7682 = vsel %vm1552, %v7592, %v7593
      %v7683 = vsel %vm1552, %v7591, %v7592
      %v7684 = vsel %vm1552, %v7590, %v7591
      %v7685 = vsel %vm1552, %v7589, %v7590
      %v7686 = vsel %vm1552, %v7588, %v7589
      %v7687 = vsel %vm1552, %v7587, %v7588
      %v7688 = vsel %vm1552, %v7586, %v7587
      %v7689 = vsel %vm1552, %v7585, %v7586
      %v7690 = vsel %vm1552, %v7584, %v7585
      %v7691 = vsel %vm1552, %v7583, %v7584
      %v7692 = vsel %vm1552, %v7582, %v7583
      %v7693 = vsel %vm1552, %v7581, %v7582
      %v7694 = vsel %vm1552, %v7580, %v7581
      %v7695 = vsel %vm1552, %v7579, %v7580
      %v7696 = vsel %vm1552, %v7578, %v7579
      %v7697 = vsel %vm1552, %v7577, %v7578
      %v7698 = vsel %vm1552, %v7576, %v7577
      %v7699 = vsel %vm1552, %v7575, %v7576
      %v7700 = vsel %vm1552, %v7574, %v7575
      %v7701 = vsel %vm1552, %v7637, %v7574
      %v7702 = vadd.f32 %v7701, 0.0
      %v7703 = vadd.f32 %v7700, 0.0
      %v7704 = vadd.f32 %v7699, 0.0
      %v7705 = vadd.f32 %v7698, 0.0
      %v7706 = vadd.f32 %v7697, 0.0
      %v7707 = vadd.f32 %v7696, 0.0
      %v7708 = vadd.f32 %v7695, 0.0
      %v7709 = vadd.f32 %v7694, 0.0
      %v7710 = vadd.f32 %v7693, 0.0
      %v7711 = vadd.f32 %v7692, 0.0
      %v7712 = vadd.f32 %v7691, 0.0
      %v7713 = vadd.f32 %v7690, 0.0
      %v7714 = vadd.f32 %v7689, 0.0
      %v7715 = vadd.f32 %v7688, 0.0
      %v7716 = vadd.f32 %v7687, 0.0
      %v7717 = vadd.f32 %v7686, 0.0
      %v7718 = vadd.f32 %v7685, 0.0
      %v7719 = vadd.f32 %v7684, 0.0
      %v7720 = vadd.f32 %v7683, 0.0
      %v7721 = vadd.f32 %v7682, 0.0
      %v7722 = vadd.f32 %v7681, 0.0
      %v7723 = vadd.f32 %v7680, 0.0
      %v7724 = vadd.f32 %v7679, 0.0
      %v7725 = vadd.f32 %v7678, 0.0
      %v7726 = vadd.f32 %v7677, 0.0
      %v7727 = vadd.f32 %v7676, 0.0
      %v7728 = vadd.f32 %v7675, 0.0
      %v7729 = vadd.f32 %v7674, 0.0
      %v7730 = vadd.f32 %v7673, 0.0
      %v7731 = vadd.f32 %v7672, 0.0
      %v7732 = vadd.f32 %v7671, 0.0
      %v7733 = vadd.f32 %v7670, 0.0
      %v7734 = vadd.f32 %v7669, 0.0
      %v7735 = vadd.f32 %v7668, 0.0
      %v7736 = vadd.f32 %v7667, 0.0
      %v7737 = vadd.f32 %v7666, 0.0
      %v7738 = vadd.f32 %v7665, 0.0
      %v7739 = vadd.f32 %v7664, 0.0
      %v7740 = vadd.f32 %v7663, 0.0
      %v7741 = vadd.f32 %v7662, 0.0
      %v7742 = vadd.f32 %v7661, 0.0
      %v7743 = vadd.f32 %v7660, 0.0
      %v7744 = vadd.f32 %v7659, 0.0
      %v7745 = vadd.f32 %v7658, 0.0
      %v7746 = vadd.f32 %v7657, 0.0
      %v7747 = vadd.f32 %v7656, 0.0
      %v7748 = vadd.f32 %v7655, 0.0
      %v7749 = vadd.f32 %v7654, 0.0
      %v7750 = vadd.f32 %v7653, 0.0
      %v7751 = vadd.f32 %v7652, 0.0
      %v7752 = vadd.f32 %v7651, 0.0
      %v7753 = vadd.f32 %v7650, 0.0
      %v7754 = vadd.f32 %v7649, 0.0
      %v7755 = vadd.f32 %v7648, 0.0
      %v7756 = vadd.f32 %v7647, 0.0
      %v7757 = vadd.f32 %v7646, 0.0
      %v7758 = vadd.f32 %v7645, 0.0
      %v7759 = vadd.f32 %v7644, 0.0
      %v7760 = vadd.f32 %v7643, 0.0
      %v7761 = vadd.f32 %v7642, 0.0
      %v7762 = vadd.f32 %v7641, 0.0
      %v7763 = vadd.f32 %v7640, 0.0
      %v7764 = vadd.f32 %v7639, 0.0
      %v7765 = vadd.f32 %v7638, 0.0
      %v7766 = vadd.f32 %v7702, %v7014
      %v7767 = vadd.f32 %v7703, %v7017
      %v7768 = vadd.f32 %v7704, %v7022
      %v7769 = vadd.f32 %v7705, %v7025
      %v7770 = vadd.f32 %v7706, %v7030
      %v7771 = vadd.f32 %v7707, %v7033
      %v7772 = vadd.f32 %v7708, %v7038
      %v7773 = vadd.f32 %v7709, %v7041
      %v7774 = vadd.f32 %v7710, %v7046
      %v7775 = vadd.f32 %v7711, %v7049
      %v7776 = vadd.f32 %v7712, %v7054
      %v7777 = vadd.f32 %v7713, %v7057
      %v7778 = vadd.f32 %v7714, %v7062
      %v7779 = vadd.f32 %v7715, %v7065
      %v7780 = vadd.f32 %v7716, %v7070
      %v7781 = vadd.f32 %v7717, %v7073
      %v7782 = vadd.f32 %v7718, %v7078
      %v7783 = vadd.f32 %v7719, %v7081
      %v7784 = vadd.f32 %v7720, %v7086
      %v7785 = vadd.f32 %v7721, %v7089
      %v7786 = vadd.f32 %v7722, %v7094
      %v7787 = vadd.f32 %v7723, %v7097
      %v7788 = vadd.f32 %v7724, %v7102
      %v7789 = vadd.f32 %v7725, %v7105
      %v7790 = vadd.f32 %v7726, %v7110
      %v7791 = vadd.f32 %v7727, %v7113
      %v7792 = vadd.f32 %v7728, %v7118
      %v7793 = vadd.f32 %v7729, %v7121
      %v7794 = vadd.f32 %v7730, %v7126
      %v7795 = vadd.f32 %v7731, %v7129
      %v7796 = vadd.f32 %v7732, %v7134
      %v7797 = vadd.f32 %v7733, %v7137
      %v7798 = vadd.f32 %v7734, %v7142
      %v7799 = vadd.f32 %v7735, %v7145
      %v7800 = vadd.f32 %v7736, %v7150
      %v7801 = vadd.f32 %v7737, %v7153
      %v7802 = vadd.f32 %v7738, %v7158
      %v7803 = vadd.f32 %v7739, %v7161
      %v7804 = vadd.f32 %v7740, %v7166
      %v7805 = vadd.f32 %v7741, %v7169
      %v7806 = vadd.f32 %v7742, %v7174
      %v7807 = vadd.f32 %v7743, %v7177
      %v7808 = vadd.f32 %v7744, %v7182
      %v7809 = vadd.f32 %v7745, %v7185
      %v7810 = vadd.f32 %v7746, %v7190
      %v7811 = vadd.f32 %v7747, %v7193
      %v7812 = vadd.f32 %v7748, %v7198
      %v7813 = vadd.f32 %v7749, %v7201
      %v7814 = vadd.f32 %v7750, %v7206
      %v7815 = vadd.f32 %v7751, %v7209
      %v7816 = vadd.f32 %v7752, %v7214
      %v7817 = vadd.f32 %v7753, %v7217
      %v7818 = vadd.f32 %v7754, %v7222
      %v7819 = vadd.f32 %v7755, %v7225
      %v7820 = vadd.f32 %v7756, %v7230
      %v7821 = vadd.f32 %v7757, %v7233
      %v7822 = vadd.f32 %v7758, %v7238
      %v7823 = vadd.f32 %v7759, %v7241
      %v7824 = vadd.f32 %v7760, %v7246
      %v7825 = vadd.f32 %v7761, %v7249
      %v7826 = vadd.f32 %v7762, %v7254
      %v7827 = vadd.f32 %v7763, %v7257
      %v7828 = vadd.f32 %v7764, %v7262
      %v7829 = vadd.f32 %v7765, %v7265
      %v7830 = vrot.slane %v7320, 1
      %v7831 = vrot.slane %v7323, 1
      %v7832 = vrot.slane %v7328, 1
      %v7833 = vrot.slane %v7331, 1
      %v7834 = vrot.slane %v7336, 1
      %v7835 = vrot.slane %v7339, 1
      %v7836 = vrot.slane %v7344, 1
      %v7837 = vrot.slane %v7347, 1
      %v7838 = vrot.slane %v7352, 1
      %v7839 = vrot.slane %v7355, 1
      %v7840 = vrot.slane %v7360, 1
      %v7841 = vrot.slane %v7363, 1
      %v7842 = vrot.slane %v7368, 1
      %v7843 = vrot.slane %v7371, 1
      %v7844 = vrot.slane %v7376, 1
      %v7845 = vrot.slane %v7379, 1
      %v7846 = vrot.slane %v7384, 1
      %v7847 = vrot.slane %v7387, 1
      %v7848 = vrot.slane %v7392, 1
      %v7849 = vrot.slane %v7395, 1
      %v7850 = vrot.slane %v7400, 1
      %v7851 = vrot.slane %v7403, 1
      %v7852 = vrot.slane %v7408, 1
      %v7853 = vrot.slane %v7411, 1
      %v7854 = vrot.slane %v7416, 1
      %v7855 = vrot.slane %v7419, 1
      %v7856 = vrot.slane %v7424, 1
      %v7857 = vrot.slane %v7427, 1
      %v7858 = vrot.slane %v7432, 1
      %v7859 = vrot.slane %v7435, 1
      %v7860 = vrot.slane %v7440, 1
      %v7861 = vrot.slane %v7443, 1
      %v7862 = vrot.slane %v7448, 1
      %v7863 = vrot.slane %v7451, 1
      %v7864 = vrot.slane %v7456, 1
      %v7865 = vrot.slane %v7459, 1
      %v7866 = vrot.slane %v7464, 1
      %v7867 = vrot.slane %v7467, 1
      %v7868 = vrot.slane %v7472, 1
      %v7869 = vrot.slane %v7475, 1
      %v7870 = vrot.slane %v7480, 1
      %v7871 = vrot.slane %v7483, 1
      %v7872 = vrot.slane %v7488, 1
      %v7873 = vrot.slane %v7491, 1
      %v7874 = vrot.slane %v7496, 1
      %v7875 = vrot.slane %v7499, 1
      %v7876 = vrot.slane %v7504, 1
      %v7877 = vrot.slane %v7507, 1
      %v7878 = vrot.slane %v7512, 1
      %v7879 = vrot.slane %v7515, 1
      %v7880 = vrot.slane %v7520, 1
      %v7881 = vrot.slane %v7523, 1
      %v7882 = vrot.slane %v7528, 1
      %v7883 = vrot.slane %v7531, 1
      %v7884 = vrot.slane %v7536, 1
      %v7885 = vrot.slane %v7539, 1
      %v7886 = vrot.slane %v7544, 1
      %v7887 = vrot.slane %v7547, 1
      %v7888 = vrot.slane %v7552, 1
      %v7889 = vrot.slane %v7555, 1
      %v7890 = vrot.slane %v7560, 1
      %v7891 = vrot.slane %v7563, 1
      %v7892 = vrot.slane %v7568, 1
      %v7893 = vrot.slane %v7571, 1
      %v7894 = vsel %vm1809, %v7892, %v7893
      %v7895 = vsel %vm1809, %v7891, %v7892
      %v7896 = vsel %vm1809, %v7890, %v7891
      %v7897 = vsel %vm1809, %v7889, %v7890
      %v7898 = vsel %vm1809, %v7888, %v7889
      %v7899 = vsel %vm1809, %v7887, %v7888
      %v7900 = vsel %vm1809, %v7886, %v7887
      %v7901 = vsel %vm1809, %v7885, %v7886
      %v7902 = vsel %vm1809, %v7884, %v7885
      %v7903 = vsel %vm1809, %v7883, %v7884
      %v7904 = vsel %vm1809, %v7882, %v7883
      %v7905 = vsel %vm1809, %v7881, %v7882
      %v7906 = vsel %vm1809, %v7880, %v7881
      %v7907 = vsel %vm1809, %v7879, %v7880
      %v7908 = vsel %vm1809, %v7878, %v7879
      %v7909 = vsel %vm1809, %v7877, %v7878
      %v7910 = vsel %vm1809, %v7876, %v7877
      %v7911 = vsel %vm1809, %v7875, %v7876
      %v7912 = vsel %vm1809, %v7874, %v7875
      %v7913 = vsel %vm1809, %v7873, %v7874
      %v7914 = vsel %vm1809, %v7872, %v7873
      %v7915 = vsel %vm1809, %v7871, %v7872
      %v7916 = vsel %vm1809, %v7870, %v7871
      %v7917 = vsel %vm1809, %v7869, %v7870
      %v7918 = vsel %vm1809, %v7868, %v7869
      %v7919 = vsel %vm1809, %v7867, %v7868
      %v7920 = vsel %vm1809, %v7866, %v7867
      %v7921 = vsel %vm1809, %v7865, %v7866
      %v7922 = vsel %vm1809, %v7864, %v7865
      %v7923 = vsel %vm1809, %v7863, %v7864
      %v7924 = vsel %vm1809, %v7862, %v7863
      %v7925 = vsel %vm1809, %v7861, %v7862
      %v7926 = vsel %vm1809, %v7860, %v7861
      %v7927 = vsel %vm1809, %v7859, %v7860
      %v7928 = vsel %vm1809, %v7858, %v7859
      %v7929 = vsel %vm1809, %v7857, %v7858
      %v7930 = vsel %vm1809, %v7856, %v7857
      %v7931 = vsel %vm1809, %v7855, %v7856
      %v7932 = vsel %vm1809, %v7854, %v7855
      %v7933 = vsel %vm1809, %v7853, %v7854
      %v7934 = vsel %vm1809, %v7852, %v7853
      %v7935 = vsel %vm1809, %v7851, %v7852
      %v7936 = vsel %vm1809, %v7850, %v7851
      %v7937 = vsel %vm1809, %v7849, %v7850
      %v7938 = vsel %vm1809, %v7848, %v7849
      %v7939 = vsel %vm1809, %v7847, %v7848
      %v7940 = vsel %vm1809, %v7846, %v7847
      %v7941 = vsel %vm1809, %v7845, %v7846
      %v7942 = vsel %vm1809, %v7844, %v7845
      %v7943 = vsel %vm1809, %v7843, %v7844
      %v7944 = vsel %vm1809, %v7842, %v7843
      %v7945 = vsel %vm1809, %v7841, %v7842
      %v7946 = vsel %vm1809, %v7840, %v7841
      %v7947 = vsel %vm1809, %v7839, %v7840
      %v7948 = vsel %vm1809, %v7838, %v7839
      %v7949 = vsel %vm1809, %v7837, %v7838
      %v7950 = vsel %vm1809, %v7836, %v7837
      %v7951 = vsel %vm1809, %v7835, %v7836
      %v7952 = vsel %vm1809, %v7834, %v7835
      %v7953 = vsel %vm1809, %v7833, %v7834
      %v7954 = vsel %vm1809, %v7832, %v7833
      %v7955 = vsel %vm1809, %v7831, %v7832
      %v7956 = vsel %vm1809, %v7830, %v7831
      %v7957 = vsel %vm1809, %v7893, %v7830
      %v7958 = vadd.f32 %v7766, %v7956
      %v7959 = vadd.f32 %v7767, %v7955
      %v7960 = vadd.f32 %v7768, %v7954
      %v7961 = vadd.f32 %v7769, %v7953
      %v7962 = vadd.f32 %v7770, %v7952
      %v7963 = vadd.f32 %v7771, %v7951
      %v7964 = vadd.f32 %v7772, %v7950
      %v7965 = vadd.f32 %v7773, %v7949
      %v7966 = vadd.f32 %v7774, %v7948
      %v7967 = vadd.f32 %v7775, %v7947
      %v7968 = vadd.f32 %v7776, %v7946
      %v7969 = vadd.f32 %v7777, %v7945
      %v7970 = vadd.f32 %v7778, %v7944
      %v7971 = vadd.f32 %v7779, %v7943
      %v7972 = vadd.f32 %v7780, %v7942
      %v7973 = vadd.f32 %v7781, %v7941
      %v7974 = vadd.f32 %v7782, %v7940
      %v7975 = vadd.f32 %v7783, %v7939
      %v7976 = vadd.f32 %v7784, %v7938
      %v7977 = vadd.f32 %v7785, %v7937
      %v7978 = vadd.f32 %v7786, %v7936
      %v7979 = vadd.f32 %v7787, %v7935
      %v7980 = vadd.f32 %v7788, %v7934
      %v7981 = vadd.f32 %v7789, %v7933
      %v7982 = vadd.f32 %v7790, %v7932
      %v7983 = vadd.f32 %v7791, %v7931
      %v7984 = vadd.f32 %v7792, %v7930
      %v7985 = vadd.f32 %v7793, %v7929
      %v7986 = vadd.f32 %v7794, %v7928
      %v7987 = vadd.f32 %v7795, %v7927
      %v7988 = vadd.f32 %v7796, %v7926
      %v7989 = vadd.f32 %v7797, %v7925
      %v7990 = vadd.f32 %v7798, %v7924
      %v7991 = vadd.f32 %v7799, %v7923
      %v7992 = vadd.f32 %v7800, %v7922
      %v7993 = vadd.f32 %v7801, %v7921
      %v7994 = vadd.f32 %v7802, %v7920
      %v7995 = vadd.f32 %v7803, %v7919
      %v7996 = vadd.f32 %v7804, %v7918
      %v7997 = vadd.f32 %v7805, %v7917
      %v7998 = vadd.f32 %v7806, %v7916
      %v7999 = vadd.f32 %v7807, %v7915
      %v8000 = vadd.f32 %v7808, %v7914
      %v8001 = vadd.f32 %v7809, %v7913
      %v8002 = vadd.f32 %v7810, %v7912
      %v8003 = vadd.f32 %v7811, %v7911
      %v8004 = vadd.f32 %v7812, %v7910
      %v8005 = vadd.f32 %v7813, %v7909
      %v8006 = vadd.f32 %v7814, %v7908
      %v8007 = vadd.f32 %v7815, %v7907
      %v8008 = vadd.f32 %v7816, %v7906
      %v8009 = vadd.f32 %v7817, %v7905
      %v8010 = vadd.f32 %v7818, %v7904
      %v8011 = vadd.f32 %v7819, %v7903
      %v8012 = vadd.f32 %v7820, %v7902
      %v8013 = vadd.f32 %v7821, %v7901
      %v8014 = vadd.f32 %v7822, %v7900
      %v8015 = vadd.f32 %v7823, %v7899
      %v8016 = vadd.f32 %v7824, %v7898
      %v8017 = vadd.f32 %v7825, %v7897
      %v8018 = vadd.f32 %v7826, %v7896
      %v8019 = vadd.f32 %v7827, %v7895
      %v8020 = vadd.f32 %v7828, %v7894
      %v8021 = vadd.f32 %v7829, %v7957
      %v8022 = vld [vmem:[#allocation2 + $0x10] sm:$0xff]
      %v8023 = vld [vmem:[#allocation2 + $0x18] sm:$0xff]
      %v8024 = vld [vmem:[#allocation2 + $0x20] sm:$0xff]
      %v8025 = vld [vmem:[#allocation2 + $0x28] sm:$0xff]
      %v8026 = vld [vmem:[#allocation2 + $0x30] sm:$0xff]
      %v8027 = vld [vmem:[#allocation2 + $0x38] sm:$0xff]
      %v8028 = vld [vmem:[#allocation2 + $0x40] sm:$0xff]
      %v8029 = vld [vmem:[#allocation2 + $0x48] sm:$0xff]
      %v8030 = vld [vmem:[#allocation2 + $0x50] sm:$0xff]
      %v8031 = vld [vmem:[#allocation2 + $0x58] sm:$0xff]
      %v8032 = vld [vmem:[#allocation2 + $0x60] sm:$0xff]
      %v8033 = vld [vmem:[#allocation2 + $0x68] sm:$0xff]
      %v8034 = vld [vmem:[#allocation2 + $0x70] sm:$0xff]
      %v8035 = vld [vmem:[#allocation2 + $0x78] sm:$0xff]
      %v8036 = vld [vmem:[#allocation2 + $0x80] sm:$0xff]
      %v8037 = vld [vmem:[#allocation2 + $0x88] sm:$0xff]
      %v8038 = vld [vmem:[#allocation2 + $0x90] sm:$0xff]
      %v8039 = vld [vmem:[#allocation2 + $0x98] sm:$0xff]
      %v8040 = vld [vmem:[#allocation2 + $0xa0] sm:$0xff]
      %v8041 = vld [vmem:[#allocation2 + $0xa8] sm:$0xff]
      %v8042 = vld [vmem:[#allocation2 + $0xb0] sm:$0xff]
      %v8043 = vld [vmem:[#allocation2 + $0xb8] sm:$0xff]
      %v8044 = vld [vmem:[#allocation2 + $0xc0] sm:$0xff]
      %v8045 = vld [vmem:[#allocation2 + $0xc8] sm:$0xff]
      %v8046 = vld [vmem:[#allocation2 + $0xd0] sm:$0xff]
      %v8047 = vld [vmem:[#allocation2 + $0xd8] sm:$0xff]
      %v8048 = vld [vmem:[#allocation2 + $0xe0] sm:$0xff]
      %v8049 = vld [vmem:[#allocation2 + $0xe8] sm:$0xff]
      %v8050 = vld [vmem:[#allocation2 + $0xf0] sm:$0xff]
      %v8051 = vld [vmem:[#allocation2 + $0xf8] sm:$0xff]
      %v8052 = vld [vmem:[#allocation2 + $0x100] sm:$0xff]
      %v8053 = vld [vmem:[#allocation2 + $0x108] sm:$0xff]
      %s8054 = scalar_lea.vmem %s3, 48
      %v8055 = vld [vmem:[%s8054] sm:$0xf]
      %v8056 = vld [vmem:[%s8054 + $0x4] sm:$0xf]
      %v8057 = vld [vmem:[%s8054 + $0x8] sm:$0xf]
      %v8058 = vld [vmem:[%s8054 + $0xc] sm:$0xf]
      %v8063 = vunpack.c.l.b16 %v8055
      %v8064 = vunpack.c.l.b16 %v8056
      %v8065 = vunpack.c.l.b16 %v8057
      %v8066 = vunpack.c.l.b16 %v8058
      %v8067 = vpack.c.b16 %v8064, %v8063
      %v8068 = vpack.c.b16 %v8066, %v8065
      %v8072 = vsel %vm6460, %v8022, 0
      %v8075 = vsel %vm6460, %v8023, 0
      %v8078 = vsel %vm6460, %v8024, 0
      %v8081 = vsel %vm6460, %v8025, 0
      %v8084 = vsel %vm6460, %v8026, 0
      %v8087 = vsel %vm6460, %v8027, 0
      %v8090 = vsel %vm6460, %v8028, 0
      %v8093 = vsel %vm6460, %v8029, 0
      %v8096 = vsel %vm6460, %v8030, 0
      %v8099 = vsel %vm6460, %v8031, 0
      %v8102 = vsel %vm6460, %v8032, 0
      %v8105 = vsel %vm6460, %v8033, 0
      %v8108 = vsel %vm6460, %v8034, 0
      %v8111 = vsel %vm6460, %v8035, 0
      %v8114 = vsel %vm6460, %v8036, 0
      %v8117 = vsel %vm6460, %v8037, 0
      %v8120 = vsel %vm6460, %v8038, 0
      %v8123 = vsel %vm6460, %v8039, 0
      %v8126 = vsel %vm6460, %v8040, 0
      %v8129 = vsel %vm6460, %v8041, 0
      %v8132 = vsel %vm6460, %v8042, 0
      %v8135 = vsel %vm6460, %v8043, 0
      %v8138 = vsel %vm6460, %v8044, 0
      %v8141 = vsel %vm6460, %v8045, 0
      %v8144 = vsel %vm6460, %v8046, 0
      %v8147 = vsel %vm6460, %v8047, 0
      %v8150 = vsel %vm6460, %v8048, 0
      %v8153 = vsel %vm6460, %v8049, 0
      %v8156 = vsel %vm6460, %v8050, 0
      %v8159 = vsel %vm6460, %v8051, 0
      %v8162 = vsel %vm6460, %v8052, 0
      %v8165 = vsel %vm6460, %v8053, 0
      %8167 = vmatprep.subr.bf16.mxu0 0
      %8168 = vmatpush1.bf16.msra.mxu0 %v8067
      %8169 = vmatprep.subr.bf16.mxu0 0
      %8170 = vmatpush1.bf16.msra.mxu0 %v8068
      %8171 = vmatprep.subr.bf16.mxu0 0
      %8172 = vmatpush1.bf16.msra.mxu0 0
      %8173 = vmatprep.subr.bf16.mxu0 0
      %8174 = vmatpush1.bf16.msra.mxu0 0
      %8175 = vmatprep.subr.bf16.mxu0 0
      %8176 = vmatpush1.bf16.msra.mxu0 0
      %8177 = vmatprep.subr.bf16.mxu0 0
      %8178 = vmatpush1.bf16.msra.mxu0 0
      %8179 = vmatprep.subr.bf16.mxu0 0
      %8180 = vmatpush1.bf16.msra.mxu0 0
      %8181 = vmatprep.subr.bf16.mxu0 0
      %8182 = vmatpush1.bf16.msra.mxu0 0
      %8183 = vmatprep.subr.bf16.mxu0 0
      %8184 = vmatpush1.bf16.msra.mxu0 0
      %8185 = vmatprep.subr.bf16.mxu0 0
      %8186 = vmatpush1.bf16.msra.mxu0 0
      %8187 = vmatprep.subr.bf16.mxu0 0
      %8188 = vmatpush1.bf16.msra.mxu0 0
      %8189 = vmatprep.subr.bf16.mxu0 0
      %8190 = vmatpush1.bf16.msra.mxu0 0
      %8191 = vmatprep.subr.bf16.mxu0 0
      %8192 = vmatpush1.bf16.msra.mxu0 0
      %8193 = vmatprep.subr.bf16.mxu0 0
      %8194 = vmatpush1.bf16.msra.mxu0 0
      %8195 = vmatprep.subr.bf16.mxu0 0
      %8196 = vmatpush1.bf16.msra.mxu0 0
      %8197 = vmatprep.subr.bf16.mxu0 0
      %8198 = vmatpush1.bf16.msra.mxu0 0
      %8199 = vmatprep.mubr.bf16.mxu0 0
      %8200 = vmatmul.mubr.bf16.gmra.mrb[0].mxu0 %v8072
      %v8201 = vpop.f32.mrb[0].mxu0
      %v8202 = vadd.f32 0.0, %v8201
      %v8203 = vpop.f32.mrb[0].mxu0
      %v8204 = vpop.f32.mrb[0].mxu0
      %v8205 = vadd.f32 0.0, %v8204
      %v8206 = vpop.f32.mrb[0].mxu0
      %8207 = vmatprep.mubr.bf16.mxu0 0
      %8208 = vmatmul.mubr.bf16.gmra.mrb[0].mxu0 %v8075
      %v8209 = vpop.f32.mrb[0].mxu0
      %v8210 = vadd.f32 0.0, %v8209
      %v8211 = vpop.f32.mrb[0].mxu0
      %v8212 = vpop.f32.mrb[0].mxu0
      %v8213 = vadd.f32 0.0, %v8212
      %v8214 = vpop.f32.mrb[0].mxu0
      %8215 = vmatprep.mubr.bf16.mxu0 0
      %8216 = vmatmul.mubr.bf16.gmra.mrb[0].mxu0 %v8078
      %v8217 = vpop.f32.mrb[0].mxu0
      %v8218 = vadd.f32 0.0, %v8217
      %v8219 = vpop.f32.mrb[0].mxu0
      %v8220 = vpop.f32.mrb[0].mxu0
      %v8221 = vadd.f32 0.0, %v8220
      %v8222 = vpop.f32.mrb[0].mxu0
      %8223 = vmatprep.mubr.bf16.mxu0 0
      %8224 = vmatmul.mubr.bf16.gmra.mrb[0].mxu0 %v8081
      %v8225 = vpop.f32.mrb[0].mxu0
      %v8226 = vadd.f32 0.0, %v8225
      %v8227 = vpop.f32.mrb[0].mxu0
      %v8228 = vpop.f32.mrb[0].mxu0
      %v8229 = vadd.f32 0.0, %v8228
      %v8230 = vpop.f32.mrb[0].mxu0
      %8231 = vmatprep.mubr.bf16.mxu0 0
      %8232 = vmatmul.mubr.bf16.gmra.mrb[0].mxu0 %v8084
      %v8233 = vpop.f32.mrb[0].mxu0
      %v8234 = vadd.f32 0.0, %v8233
      %v8235 = vpop.f32.mrb[0].mxu0
      %v8236 = vpop.f32.mrb[0].mxu0
      %v8237 = vadd.f32 0.0, %v8236
      %v8238 = vpop.f32.mrb[0].mxu0
      %8239 = vmatprep.mubr.bf16.mxu0 0
      %8240 = vmatmul.mubr.bf16.gmra.mrb[0].mxu0 %v8087
      %v8241 = vpop.f32.mrb[0].mxu0
      %v8242 = vadd.f32 0.0, %v8241
      %v8243 = vpop.f32.mrb[0].mxu0
      %v8244 = vpop.f32.mrb[0].mxu0
      %v8245 = vadd.f32 0.0, %v8244
      %v8246 = vpop.f32.mrb[0].mxu0
      %8247 = vmatprep.mubr.bf16.mxu0 0
      %8248 = vmatmul.mubr.bf16.gmra.mrb[0].mxu0 %v8090
      %v8249 = vpop.f32.mrb[0].mxu0
      %v8250 = vadd.f32 0.0, %v8249
      %v8251 = vpop.f32.mrb[0].mxu0
      %v8252 = vpop.f32.mrb[0].mxu0
      %v8253 = vadd.f32 0.0, %v8252
      %v8254 = vpop.f32.mrb[0].mxu0
      %8255 = vmatprep.mubr.bf16.mxu0 0
      %8256 = vmatmul.mubr.bf16.gmra.mrb[0].mxu0 %v8093
      %v8257 = vpop.f32.mrb[0].mxu0
      %v8258 = vadd.f32 0.0, %v8257
      %v8259 = vpop.f32.mrb[0].mxu0
      %v8260 = vpop.f32.mrb[0].mxu0
      %v8261 = vadd.f32 0.0, %v8260
      %v8262 = vpop.f32.mrb[0].mxu0
      %8263 = vmatprep.mubr.bf16.mxu0 0
      %8264 = vmatmul.mubr.bf16.gmra.mrb[0].mxu0 %v8096
      %v8265 = vpop.f32.mrb[0].mxu0
      %v8266 = vadd.f32 0.0, %v8265
      %v8267 = vpop.f32.mrb[0].mxu0
      %v8268 = vpop.f32.mrb[0].mxu0
      %v8269 = vadd.f32 0.0, %v8268
      %v8270 = vpop.f32.mrb[0].mxu0
      %8271 = vmatprep.mubr.bf16.mxu0 0
      %8272 = vmatmul.mubr.bf16.gmra.mrb[0].mxu0 %v8099
      %v8273 = vpop.f32.mrb[0].mxu0
      %v8274 = vadd.f32 0.0, %v8273
      %v8275 = vpop.f32.mrb[0].mxu0
      %v8276 = vpop.f32.mrb[0].mxu0
      %v8277 = vadd.f32 0.0, %v8276
      %v8278 = vpop.f32.mrb[0].mxu0
      %8279 = vmatprep.mubr.bf16.mxu0 0
      %8280 = vmatmul.mubr.bf16.gmra.mrb[0].mxu0 %v8102
      %v8281 = vpop.f32.mrb[0].mxu0
      %v8282 = vadd.f32 0.0, %v8281
      %v8283 = vpop.f32.mrb[0].mxu0
      %v8284 = vpop.f32.mrb[0].mxu0
      %v8285 = vadd.f32 0.0, %v8284
      %v8286 = vpop.f32.mrb[0].mxu0
      %8287 = vmatprep.mubr.bf16.mxu0 0
      %8288 = vmatmul.mubr.bf16.gmra.mrb[0].mxu0 %v8105
      %v8289 = vpop.f32.mrb[0].mxu0
      %v8290 = vadd.f32 0.0, %v8289
      %v8291 = vpop.f32.mrb[0].mxu0
      %v8292 = vpop.f32.mrb[0].mxu0
      %v8293 = vadd.f32 0.0, %v8292
      %v8294 = vpop.f32.mrb[0].mxu0
      %8295 = vmatprep.mubr.bf16.mxu0 0
      %8296 = vmatmul.mubr.bf16.gmra.mrb[0].mxu0 %v8108
      %v8297 = vpop.f32.mrb[0].mxu0
      %v8298 = vadd.f32 0.0, %v8297
      %v8299 = vpop.f32.mrb[0].mxu0
      %v8300 = vpop.f32.mrb[0].mxu0
      %v8301 = vadd.f32 0.0, %v8300
      %v8302 = vpop.f32.mrb[0].mxu0
      %8303 = vmatprep.mubr.bf16.mxu0 0
      %8304 = vmatmul.mubr.bf16.gmra.mrb[0].mxu0 %v8111
      %v8305 = vpop.f32.mrb[0].mxu0
      %v8306 = vadd.f32 0.0, %v8305
      %v8307 = vpop.f32.mrb[0].mxu0
      %v8308 = vpop.f32.mrb[0].mxu0
      %v8309 = vadd.f32 0.0, %v8308
      %v8310 = vpop.f32.mrb[0].mxu0
      %8311 = vmatprep.mubr.bf16.mxu0 0
      %8312 = vmatmul.mubr.bf16.gmra.mrb[0].mxu0 %v8114
      %v8313 = vpop.f32.mrb[0].mxu0
      %v8314 = vadd.f32 0.0, %v8313
      %v8315 = vpop.f32.mrb[0].mxu0
      %v8316 = vpop.f32.mrb[0].mxu0
      %v8317 = vadd.f32 0.0, %v8316
      %v8318 = vpop.f32.mrb[0].mxu0
      %8319 = vmatprep.mubr.bf16.mxu0 0
      %8320 = vmatmul.mubr.bf16.gmra.mrb[0].mxu0 %v8117
      %v8321 = vpop.f32.mrb[0].mxu0
      %v8322 = vadd.f32 0.0, %v8321
      %v8323 = vpop.f32.mrb[0].mxu0
      %v8324 = vpop.f32.mrb[0].mxu0
      %v8325 = vadd.f32 0.0, %v8324
      %v8326 = vpop.f32.mrb[0].mxu0
      %8327 = vmatprep.mubr.bf16.mxu0 0
      %8328 = vmatmul.mubr.bf16.gmra.mrb[0].mxu0 %v8120
      %v8329 = vpop.f32.mrb[0].mxu0
      %v8330 = vadd.f32 0.0, %v8329
      %v8331 = vpop.f32.mrb[0].mxu0
      %v8332 = vpop.f32.mrb[0].mxu0
      %v8333 = vadd.f32 0.0, %v8332
      %v8334 = vpop.f32.mrb[0].mxu0
      %8335 = vmatprep.mubr.bf16.mxu0 0
      %8336 = vmatmul.mubr.bf16.gmra.mrb[0].mxu0 %v8123
      %v8337 = vpop.f32.mrb[0].mxu0
      %v8338 = vadd.f32 0.0, %v8337
      %v8339 = vpop.f32.mrb[0].mxu0
      %v8340 = vpop.f32.mrb[0].mxu0
      %v8341 = vadd.f32 0.0, %v8340
      %v8342 = vpop.f32.mrb[0].mxu0
      %8343 = vmatprep.mubr.bf16.mxu0 0
      %8344 = vmatmul.mubr.bf16.gmra.mrb[0].mxu0 %v8126
      %v8345 = vpop.f32.mrb[0].mxu0
      %v8346 = vadd.f32 0.0, %v8345
      %v8347 = vpop.f32.mrb[0].mxu0
      %v8348 = vpop.f32.mrb[0].mxu0
      %v8349 = vadd.f32 0.0, %v8348
      %v8350 = vpop.f32.mrb[0].mxu0
      %8351 = vmatprep.mubr.bf16.mxu0 0
      %8352 = vmatmul.mubr.bf16.gmra.mrb[0].mxu0 %v8129
      %v8353 = vpop.f32.mrb[0].mxu0
      %v8354 = vadd.f32 0.0, %v8353
      %v8355 = vpop.f32.mrb[0].mxu0
      %v8356 = vpop.f32.mrb[0].mxu0
      %v8357 = vadd.f32 0.0, %v8356
      %v8358 = vpop.f32.mrb[0].mxu0
      %8359 = vmatprep.mubr.bf16.mxu0 0
      %8360 = vmatmul.mubr.bf16.gmra.mrb[0].mxu0 %v8132
      %v8361 = vpop.f32.mrb[0].mxu0
      %v8362 = vadd.f32 0.0, %v8361
      %v8363 = vpop.f32.mrb[0].mxu0
      %v8364 = vpop.f32.mrb[0].mxu0
      %v8365 = vadd.f32 0.0, %v8364
      %v8366 = vpop.f32.mrb[0].mxu0
      %8367 = vmatprep.mubr.bf16.mxu0 0
      %8368 = vmatmul.mubr.bf16.gmra.mrb[0].mxu0 %v8135
      %v8369 = vpop.f32.mrb[0].mxu0
      %v8370 = vadd.f32 0.0, %v8369
      %v8371 = vpop.f32.mrb[0].mxu0
      %v8372 = vpop.f32.mrb[0].mxu0
      %v8373 = vadd.f32 0.0, %v8372
      %v8374 = vpop.f32.mrb[0].mxu0
      %8375 = vmatprep.mubr.bf16.mxu0 0
      %8376 = vmatmul.mubr.bf16.gmra.mrb[0].mxu0 %v8138
      %v8377 = vpop.f32.mrb[0].mxu0
      %v8378 = vadd.f32 0.0, %v8377
      %v8379 = vpop.f32.mrb[0].mxu0
      %v8380 = vpop.f32.mrb[0].mxu0
      %v8381 = vadd.f32 0.0, %v8380
      %v8382 = vpop.f32.mrb[0].mxu0
      %8383 = vmatprep.mubr.bf16.mxu0 0
      %8384 = vmatmul.mubr.bf16.gmra.mrb[0].mxu0 %v8141
      %v8385 = vpop.f32.mrb[0].mxu0
      %v8386 = vadd.f32 0.0, %v8385
      %v8387 = vpop.f32.mrb[0].mxu0
      %v8388 = vpop.f32.mrb[0].mxu0
      %v8389 = vadd.f32 0.0, %v8388
      %v8390 = vpop.f32.mrb[0].mxu0
      %8391 = vmatprep.mubr.bf16.mxu0 0
      %8392 = vmatmul.mubr.bf16.gmra.mrb[0].mxu0 %v8144
      %v8393 = vpop.f32.mrb[0].mxu0
      %v8394 = vadd.f32 0.0, %v8393
      %v8395 = vpop.f32.mrb[0].mxu0
      %v8396 = vpop.f32.mrb[0].mxu0
      %v8397 = vadd.f32 0.0, %v8396
      %v8398 = vpop.f32.mrb[0].mxu0
      %8399 = vmatprep.mubr.bf16.mxu0 0
      %8400 = vmatmul.mubr.bf16.gmra.mrb[0].mxu0 %v8147
      %v8401 = vpop.f32.mrb[0].mxu0
      %v8402 = vadd.f32 0.0, %v8401
      %v8403 = vpop.f32.mrb[0].mxu0
      %v8404 = vpop.f32.mrb[0].mxu0
      %v8405 = vadd.f32 0.0, %v8404
      %v8406 = vpop.f32.mrb[0].mxu0
      %8407 = vmatprep.mubr.bf16.mxu0 0
      %8408 = vmatmul.mubr.bf16.gmra.mrb[0].mxu0 %v8150
      %v8409 = vpop.f32.mrb[0].mxu0
      %v8410 = vadd.f32 0.0, %v8409
      %v8411 = vpop.f32.mrb[0].mxu0
      %v8412 = vpop.f32.mrb[0].mxu0
      %v8413 = vadd.f32 0.0, %v8412
      %v8414 = vpop.f32.mrb[0].mxu0
      %8415 = vmatprep.mubr.bf16.mxu0 0
      %8416 = vmatmul.mubr.bf16.gmra.mrb[0].mxu0 %v8153
      %v8417 = vpop.f32.mrb[0].mxu0
      %v8418 = vadd.f32 0.0, %v8417
      %v8419 = vpop.f32.mrb[0].mxu0
      %v8420 = vpop.f32.mrb[0].mxu0
      %v8421 = vadd.f32 0.0, %v8420
      %v8422 = vpop.f32.mrb[0].mxu0
      %8423 = vmatprep.mubr.bf16.mxu0 0
      %8424 = vmatmul.mubr.bf16.gmra.mrb[0].mxu0 %v8156
      %v8425 = vpop.f32.mrb[0].mxu0
      %v8426 = vadd.f32 0.0, %v8425
      %v8427 = vpop.f32.mrb[0].mxu0
      %v8428 = vpop.f32.mrb[0].mxu0
      %v8429 = vadd.f32 0.0, %v8428
      %v8430 = vpop.f32.mrb[0].mxu0
      %8431 = vmatprep.mubr.bf16.mxu0 0
      %8432 = vmatmul.mubr.bf16.gmra.mrb[0].mxu0 %v8159
      %v8433 = vpop.f32.mrb[0].mxu0
      %v8434 = vadd.f32 0.0, %v8433
      %v8435 = vpop.f32.mrb[0].mxu0
      %v8436 = vpop.f32.mrb[0].mxu0
      %v8437 = vadd.f32 0.0, %v8436
      %v8438 = vpop.f32.mrb[0].mxu0
      %8439 = vmatprep.mubr.bf16.mxu0 0
      %8440 = vmatmul.mubr.bf16.gmra.mrb[0].mxu0 %v8162
      %v8441 = vpop.f32.mrb[0].mxu0
      %v8442 = vadd.f32 0.0, %v8441
      %v8443 = vpop.f32.mrb[0].mxu0
      %v8444 = vpop.f32.mrb[0].mxu0
      %v8445 = vadd.f32 0.0, %v8444
      %v8446 = vpop.f32.mrb[0].mxu0
      %8447 = vmatprep.mubr.bf16.mxu0 0
      %8448 = vmatmul.mubr.bf16.gmra.mrb[0].mxu0 %v8165
      %v8449 = vpop.f32.mrb[0].mxu0
      %v8450 = vadd.f32 0.0, %v8449
      %v8451 = vpop.f32.mrb[0].mxu0
      %v8452 = vpop.f32.mrb[0].mxu0
      %v8453 = vadd.f32 0.0, %v8452
      %v8454 = vpop.f32.mrb[0].mxu0
      %8455 = vdwg.mxu0
      %s8456 = scalar_lea.vmem %s3, 64
      %v8457 = vld [vmem:[%s8456] sm:$0xf]
      %v8458 = vld [vmem:[%s8456 + $0x4] sm:$0xf]
      %v8459 = vld [vmem:[%s8456 + $0x8] sm:$0xf]
      %v8460 = vld [vmem:[%s8456 + $0xc] sm:$0xf]
      %v8465 = vunpack.c.l.b16 %v8457
      %v8466 = vunpack.c.l.b16 %v8458
      %v8467 = vunpack.c.l.b16 %v8459
      %v8468 = vunpack.c.l.b16 %v8460
      %v8469 = vpack.c.b16 %v8466, %v8465
      %v8470 = vpack.c.b16 %v8468, %v8467
      %8473 = vmatprep.subr.bf16.mxu0 0
      %8474 = vmatpush1.bf16.msra.mxu0 %v8469
      %8475 = vmatprep.subr.bf16.mxu0 0
      %8476 = vmatpush1.bf16.msra.mxu0 %v8470
      %8477 = vmatprep.subr.bf16.mxu0 0
      %8478 = vmatpush1.bf16.msra.mxu0 0
      %8479 = vmatprep.subr.bf16.mxu0 0
      %8480 = vmatpush1.bf16.msra.mxu0 0
      %8481 = vmatprep.subr.bf16.mxu0 0
      %8482 = vmatpush1.bf16.msra.mxu0 0
      %8483 = vmatprep.subr.bf16.mxu0 0
      %8484 = vmatpush1.bf16.msra.mxu0 0
      %8485 = vmatprep.subr.bf16.mxu0 0
      %8486 = vmatpush1.bf16.msra.mxu0 0
      %8487 = vmatprep.subr.bf16.mxu0 0
      %8488 = vmatpush1.bf16.msra.mxu0 0
      %8489 = vmatprep.subr.bf16.mxu0 0
      %8490 = vmatpush1.bf16.msra.mxu0 0
      %8491 = vmatprep.subr.bf16.mxu0 0
      %8492 = vmatpush1.bf16.msra.mxu0 0
      %8493 = vmatprep.subr.bf16.mxu0 0
      %8494 = vmatpush1.bf16.msra.mxu0 0
      %8495 = vmatprep.subr.bf16.mxu0 0
      %8496 = vmatpush1.bf16.msra.mxu0 0
      %8497 = vmatprep.subr.bf16.mxu0 0
      %8498 = vmatpush1.bf16.msra.mxu0 0
      %8499 = vmatprep.subr.bf16.mxu0 0
      %8500 = vmatpush1.bf16.msra.mxu0 0
      %8501 = vmatprep.subr.bf16.mxu0 0
      %8502 = vmatpush1.bf16.msra.mxu0 0
      %8503 = vmatprep.subr.bf16.mxu0 0
      %8504 = vmatpush1.bf16.msra.mxu0 0
      %8505 = vmatprep.mubr.bf16.mxu0 0
      %8506 = vmatmul.mubr.bf16.gmra.mrb[0].mxu0 %v8072
      %v8507 = vpop.f32.mrb[0].mxu0
      %v8508 = vadd.f32 0.0, %v8507
      %v8509 = vpop.f32.mrb[0].mxu0
      %v8510 = vpop.f32.mrb[0].mxu0
      %v8511 = vadd.f32 0.0, %v8510
      %v8512 = vpop.f32.mrb[0].mxu0
      %8513 = vmatprep.mubr.bf16.mxu0 0
      %8514 = vmatmul.mubr.bf16.gmra.mrb[0].mxu0 %v8075
      %v8515 = vpop.f32.mrb[0].mxu0
      %v8516 = vadd.f32 0.0, %v8515
      %v8517 = vpop.f32.mrb[0].mxu0
      %v8518 = vpop.f32.mrb[0].mxu0
      %v8519 = vadd.f32 0.0, %v8518
      %v8520 = vpop.f32.mrb[0].mxu0
      %8521 = vmatprep.mubr.bf16.mxu0 0
      %8522 = vmatmul.mubr.bf16.gmra.mrb[0].mxu0 %v8078
      %v8523 = vpop.f32.mrb[0].mxu0
      %v8524 = vadd.f32 0.0, %v8523
      %v8525 = vpop.f32.mrb[0].mxu0
      %v8526 = vpop.f32.mrb[0].mxu0
      %v8527 = vadd.f32 0.0, %v8526
      %v8528 = vpop.f32.mrb[0].mxu0
      %8529 = vmatprep.mubr.bf16.mxu0 0
      %8530 = vmatmul.mubr.bf16.gmra.mrb[0].mxu0 %v8081
      %v8531 = vpop.f32.mrb[0].mxu0
      %v8532 = vadd.f32 0.0, %v8531
      %v8533 = vpop.f32.mrb[0].mxu0
      %v8534 = vpop.f32.mrb[0].mxu0
      %v8535 = vadd.f32 0.0, %v8534
      %v8536 = vpop.f32.mrb[0].mxu0
      %8537 = vmatprep.mubr.bf16.mxu0 0
      %8538 = vmatmul.mubr.bf16.gmra.mrb[0].mxu0 %v8084
      %v8539 = vpop.f32.mrb[0].mxu0
      %v8540 = vadd.f32 0.0, %v8539
      %v8541 = vpop.f32.mrb[0].mxu0
      %v8542 = vpop.f32.mrb[0].mxu0
      %v8543 = vadd.f32 0.0, %v8542
      %v8544 = vpop.f32.mrb[0].mxu0
      %8545 = vmatprep.mubr.bf16.mxu0 0
      %8546 = vmatmul.mubr.bf16.gmra.mrb[0].mxu0 %v8087
      %v8547 = vpop.f32.mrb[0].mxu0
      %v8548 = vadd.f32 0.0, %v8547
      %v8549 = vpop.f32.mrb[0].mxu0
      %v8550 = vpop.f32.mrb[0].mxu0
      %v8551 = vadd.f32 0.0, %v8550
      %v8552 = vpop.f32.mrb[0].mxu0
      %8553 = vmatprep.mubr.bf16.mxu0 0
      %8554 = vmatmul.mubr.bf16.gmra.mrb[0].mxu0 %v8090
      %v8555 = vpop.f32.mrb[0].mxu0
      %v8556 = vadd.f32 0.0, %v8555
      %v8557 = vpop.f32.mrb[0].mxu0
      %v8558 = vpop.f32.mrb[0].mxu0
      %v8559 = vadd.f32 0.0, %v8558
      %v8560 = vpop.f32.mrb[0].mxu0
      %8561 = vmatprep.mubr.bf16.mxu0 0
      %8562 = vmatmul.mubr.bf16.gmra.mrb[0].mxu0 %v8093
      %v8563 = vpop.f32.mrb[0].mxu0
      %v8564 = vadd.f32 0.0, %v8563
      %v8565 = vpop.f32.mrb[0].mxu0
      %v8566 = vpop.f32.mrb[0].mxu0
      %v8567 = vadd.f32 0.0, %v8566
      %v8568 = vpop.f32.mrb[0].mxu0
      %8569 = vmatprep.mubr.bf16.mxu0 0
      %8570 = vmatmul.mubr.bf16.gmra.mrb[0].mxu0 %v8096
      %v8571 = vpop.f32.mrb[0].mxu0
      %v8572 = vadd.f32 0.0, %v8571
      %v8573 = vpop.f32.mrb[0].mxu0
      %v8574 = vpop.f32.mrb[0].mxu0
      %v8575 = vadd.f32 0.0, %v8574
      %v8576 = vpop.f32.mrb[0].mxu0
      %8577 = vmatprep.mubr.bf16.mxu0 0
      %8578 = vmatmul.mubr.bf16.gmra.mrb[0].mxu0 %v8099
      %v8579 = vpop.f32.mrb[0].mxu0
      %v8580 = vadd.f32 0.0, %v8579
      %v8581 = vpop.f32.mrb[0].mxu0
      %v8582 = vpop.f32.mrb[0].mxu0
      %v8583 = vadd.f32 0.0, %v8582
      %v8584 = vpop.f32.mrb[0].mxu0
      %8585 = vmatprep.mubr.bf16.mxu0 0
      %8586 = vmatmul.mubr.bf16.gmra.mrb[0].mxu0 %v8102
      %v8587 = vpop.f32.mrb[0].mxu0
      %v8588 = vadd.f32 0.0, %v8587
      %v8589 = vpop.f32.mrb[0].mxu0
      %v8590 = vpop.f32.mrb[0].mxu0
      %v8591 = vadd.f32 0.0, %v8590
      %v8592 = vpop.f32.mrb[0].mxu0
      %8593 = vmatprep.mubr.bf16.mxu0 0
      %8594 = vmatmul.mubr.bf16.gmra.mrb[0].mxu0 %v8105
      %v8595 = vpop.f32.mrb[0].mxu0
      %v8596 = vadd.f32 0.0, %v8595
      %v8597 = vpop.f32.mrb[0].mxu0
      %v8598 = vpop.f32.mrb[0].mxu0
      %v8599 = vadd.f32 0.0, %v8598
      %v8600 = vpop.f32.mrb[0].mxu0
      %8601 = vmatprep.mubr.bf16.mxu0 0
      %8602 = vmatmul.mubr.bf16.gmra.mrb[0].mxu0 %v8108
      %v8603 = vpop.f32.mrb[0].mxu0
      %v8604 = vadd.f32 0.0, %v8603
      %v8605 = vpop.f32.mrb[0].mxu0
      %v8606 = vpop.f32.mrb[0].mxu0
      %v8607 = vadd.f32 0.0, %v8606
      %v8608 = vpop.f32.mrb[0].mxu0
      %8609 = vmatprep.mubr.bf16.mxu0 0
      %8610 = vmatmul.mubr.bf16.gmra.mrb[0].mxu0 %v8111
      %v8611 = vpop.f32.mrb[0].mxu0
      %v8612 = vadd.f32 0.0, %v8611
      %v8613 = vpop.f32.mrb[0].mxu0
      %v8614 = vpop.f32.mrb[0].mxu0
      %v8615 = vadd.f32 0.0, %v8614
      %v8616 = vpop.f32.mrb[0].mxu0
      %8617 = vmatprep.mubr.bf16.mxu0 0
      %8618 = vmatmul.mubr.bf16.gmra.mrb[0].mxu0 %v8114
      %v8619 = vpop.f32.mrb[0].mxu0
      %v8620 = vadd.f32 0.0, %v8619
      %v8621 = vpop.f32.mrb[0].mxu0
      %v8622 = vpop.f32.mrb[0].mxu0
      %v8623 = vadd.f32 0.0, %v8622
      %v8624 = vpop.f32.mrb[0].mxu0
      %8625 = vmatprep.mubr.bf16.mxu0 0
      %8626 = vmatmul.mubr.bf16.gmra.mrb[0].mxu0 %v8117
      %v8627 = vpop.f32.mrb[0].mxu0
      %v8628 = vadd.f32 0.0, %v8627
      %v8629 = vpop.f32.mrb[0].mxu0
      %v8630 = vpop.f32.mrb[0].mxu0
      %v8631 = vadd.f32 0.0, %v8630
      %v8632 = vpop.f32.mrb[0].mxu0
      %8633 = vmatprep.mubr.bf16.mxu0 0
      %8634 = vmatmul.mubr.bf16.gmra.mrb[0].mxu0 %v8120
      %v8635 = vpop.f32.mrb[0].mxu0
      %v8636 = vadd.f32 0.0, %v8635
      %v8637 = vpop.f32.mrb[0].mxu0
      %v8638 = vpop.f32.mrb[0].mxu0
      %v8639 = vadd.f32 0.0, %v8638
      %v8640 = vpop.f32.mrb[0].mxu0
      %8641 = vmatprep.mubr.bf16.mxu0 0
      %8642 = vmatmul.mubr.bf16.gmra.mrb[0].mxu0 %v8123
      %v8643 = vpop.f32.mrb[0].mxu0
      %v8644 = vadd.f32 0.0, %v8643
      %v8645 = vpop.f32.mrb[0].mxu0
      %v8646 = vpop.f32.mrb[0].mxu0
      %v8647 = vadd.f32 0.0, %v8646
      %v8648 = vpop.f32.mrb[0].mxu0
      %8649 = vmatprep.mubr.bf16.mxu0 0
      %8650 = vmatmul.mubr.bf16.gmra.mrb[0].mxu0 %v8126
      %v8651 = vpop.f32.mrb[0].mxu0
      %v8652 = vadd.f32 0.0, %v8651
      %v8653 = vpop.f32.mrb[0].mxu0
      %v8654 = vpop.f32.mrb[0].mxu0
      %v8655 = vadd.f32 0.0, %v8654
      %v8656 = vpop.f32.mrb[0].mxu0
      %8657 = vmatprep.mubr.bf16.mxu0 0
      %8658 = vmatmul.mubr.bf16.gmra.mrb[0].mxu0 %v8129
      %v8659 = vpop.f32.mrb[0].mxu0
      %v8660 = vadd.f32 0.0, %v8659
      %v8661 = vpop.f32.mrb[0].mxu0
      %v8662 = vpop.f32.mrb[0].mxu0
      %v8663 = vadd.f32 0.0, %v8662
      %v8664 = vpop.f32.mrb[0].mxu0
      %8665 = vmatprep.mubr.bf16.mxu0 0
      %8666 = vmatmul.mubr.bf16.gmra.mrb[0].mxu0 %v8132
      %v8667 = vpop.f32.mrb[0].mxu0
      %v8668 = vadd.f32 0.0, %v8667
      %v8669 = vpop.f32.mrb[0].mxu0
      %v8670 = vpop.f32.mrb[0].mxu0
      %v8671 = vadd.f32 0.0, %v8670
      %v8672 = vpop.f32.mrb[0].mxu0
      %8673 = vmatprep.mubr.bf16.mxu0 0
      %8674 = vmatmul.mubr.bf16.gmra.mrb[0].mxu0 %v8135
      %v8675 = vpop.f32.mrb[0].mxu0
      %v8676 = vadd.f32 0.0, %v8675
      %v8677 = vpop.f32.mrb[0].mxu0
      %v8678 = vpop.f32.mrb[0].mxu0
      %v8679 = vadd.f32 0.0, %v8678
      %v8680 = vpop.f32.mrb[0].mxu0
      %8681 = vmatprep.mubr.bf16.mxu0 0
      %8682 = vmatmul.mubr.bf16.gmra.mrb[0].mxu0 %v8138
      %v8683 = vpop.f32.mrb[0].mxu0
      %v8684 = vadd.f32 0.0, %v8683
      %v8685 = vpop.f32.mrb[0].mxu0
      %v8686 = vpop.f32.mrb[0].mxu0
      %v8687 = vadd.f32 0.0, %v8686
      %v8688 = vpop.f32.mrb[0].mxu0
      %8689 = vmatprep.mubr.bf16.mxu0 0
      %8690 = vmatmul.mubr.bf16.gmra.mrb[0].mxu0 %v8141
      %v8691 = vpop.f32.mrb[0].mxu0
      %v8692 = vadd.f32 0.0, %v8691
      %v8693 = vpop.f32.mrb[0].mxu0
      %v8694 = vpop.f32.mrb[0].mxu0
      %v8695 = vadd.f32 0.0, %v8694
      %v8696 = vpop.f32.mrb[0].mxu0
      %8697 = vmatprep.mubr.bf16.mxu0 0
      %8698 = vmatmul.mubr.bf16.gmra.mrb[0].mxu0 %v8144
      %v8699 = vpop.f32.mrb[0].mxu0
      %v8700 = vadd.f32 0.0, %v8699
      %v8701 = vpop.f32.mrb[0].mxu0
      %v8702 = vpop.f32.mrb[0].mxu0
      %v8703 = vadd.f32 0.0, %v8702
      %v8704 = vpop.f32.mrb[0].mxu0
      %8705 = vmatprep.mubr.bf16.mxu0 0
      %8706 = vmatmul.mubr.bf16.gmra.mrb[0].mxu0 %v8147
      %v8707 = vpop.f32.mrb[0].mxu0
      %v8708 = vadd.f32 0.0, %v8707
      %v8709 = vpop.f32.mrb[0].mxu0
      %v8710 = vpop.f32.mrb[0].mxu0
      %v8711 = vadd.f32 0.0, %v8710
      %v8712 = vpop.f32.mrb[0].mxu0
      %8713 = vmatprep.mubr.bf16.mxu0 0
      %8714 = vmatmul.mubr.bf16.gmra.mrb[0].mxu0 %v8150
      %v8715 = vpop.f32.mrb[0].mxu0
      %v8716 = vadd.f32 0.0, %v8715
      %v8717 = vpop.f32.mrb[0].mxu0
      %v8718 = vpop.f32.mrb[0].mxu0
      %v8719 = vadd.f32 0.0, %v8718
      %v8720 = vpop.f32.mrb[0].mxu0
      %8721 = vmatprep.mubr.bf16.mxu0 0
      %8722 = vmatmul.mubr.bf16.gmra.mrb[0].mxu0 %v8153
      %v8723 = vpop.f32.mrb[0].mxu0
      %v8724 = vadd.f32 0.0, %v8723
      %v8725 = vpop.f32.mrb[0].mxu0
      %v8726 = vpop.f32.mrb[0].mxu0
      %v8727 = vadd.f32 0.0, %v8726
      %v8728 = vpop.f32.mrb[0].mxu0
      %8729 = vmatprep.mubr.bf16.mxu0 0
      %8730 = vmatmul.mubr.bf16.gmra.mrb[0].mxu0 %v8156
      %v8731 = vpop.f32.mrb[0].mxu0
      %v8732 = vadd.f32 0.0, %v8731
      %v8733 = vpop.f32.mrb[0].mxu0
      %v8734 = vpop.f32.mrb[0].mxu0
      %v8735 = vadd.f32 0.0, %v8734
      %v8736 = vpop.f32.mrb[0].mxu0
      %8737 = vmatprep.mubr.bf16.mxu0 0
      %8738 = vmatmul.mubr.bf16.gmra.mrb[0].mxu0 %v8159
      %v8739 = vpop.f32.mrb[0].mxu0
      %v8740 = vadd.f32 0.0, %v8739
      %v8741 = vpop.f32.mrb[0].mxu0
      %v8742 = vpop.f32.mrb[0].mxu0
      %v8743 = vadd.f32 0.0, %v8742
      %v8744 = vpop.f32.mrb[0].mxu0
      %8745 = vmatprep.mubr.bf16.mxu0 0
      %8746 = vmatmul.mubr.bf16.gmra.mrb[0].mxu0 %v8162
      %v8747 = vpop.f32.mrb[0].mxu0
      %v8748 = vadd.f32 0.0, %v8747
      %v8749 = vpop.f32.mrb[0].mxu0
      %v8750 = vpop.f32.mrb[0].mxu0
      %v8751 = vadd.f32 0.0, %v8750
      %v8752 = vpop.f32.mrb[0].mxu0
      %8753 = vmatprep.mubr.bf16.mxu0 0
      %8754 = vmatmul.mubr.bf16.gmra.mrb[0].mxu0 %v8165
      %v8755 = vpop.f32.mrb[0].mxu0
      %v8756 = vadd.f32 0.0, %v8755
      %v8757 = vpop.f32.mrb[0].mxu0
      %v8758 = vpop.f32.mrb[0].mxu0
      %v8759 = vadd.f32 0.0, %v8758
      %v8760 = vpop.f32.mrb[0].mxu0
      %8761 = vdwg.mxu0
      %s8762 = scalar_lea.vmem %s3, 80
      %v8763 = vld [vmem:[%s8762] sm:$0xf]
      %v8764 = vld [vmem:[%s8762 + $0x4] sm:$0xf]
      %v8765 = vld [vmem:[%s8762 + $0x8] sm:$0xf]
      %v8766 = vld [vmem:[%s8762 + $0xc] sm:$0xf]
      %v8771 = vunpack.c.l.b16 %v8763
      %v8772 = vunpack.c.l.b16 %v8764
      %v8773 = vunpack.c.l.b16 %v8765
      %v8774 = vunpack.c.l.b16 %v8766
      %v8775 = vpack.c.b16 %v8772, %v8771
      %v8776 = vpack.c.b16 %v8774, %v8773
      %8779 = vmatprep.subr.bf16.mxu0 0
      %8780 = vmatpush1.bf16.msra.mxu0 %v8775
      %8781 = vmatprep.subr.bf16.mxu0 0
      %8782 = vmatpush1.bf16.msra.mxu0 %v8776
      %8783 = vmatprep.subr.bf16.mxu0 0
      %8784 = vmatpush1.bf16.msra.mxu0 0
      %8785 = vmatprep.subr.bf16.mxu0 0
      %8786 = vmatpush1.bf16.msra.mxu0 0
      %8787 = vmatprep.subr.bf16.mxu0 0
      %8788 = vmatpush1.bf16.msra.mxu0 0
      %8789 = vmatprep.subr.bf16.mxu0 0
      %8790 = vmatpush1.bf16.msra.mxu0 0
      %8791 = vmatprep.subr.bf16.mxu0 0
      %8792 = vmatpush1.bf16.msra.mxu0 0
      %8793 = vmatprep.subr.bf16.mxu0 0
      %8794 = vmatpush1.bf16.msra.mxu0 0
      %8795 = vmatprep.subr.bf16.mxu0 0
      %8796 = vmatpush1.bf16.msra.mxu0 0
      %8797 = vmatprep.subr.bf16.mxu0 0
      %8798 = vmatpush1.bf16.msra.mxu0 0
      %8799 = vmatprep.subr.bf16.mxu0 0
      %8800 = vmatpush1.bf16.msra.mxu0 0
      %8801 = vmatprep.subr.bf16.mxu0 0
      %8802 = vmatpush1.bf16.msra.mxu0 0
      %8803 = vmatprep.subr.bf16.mxu0 0
      %8804 = vmatpush1.bf16.msra.mxu0 0
      %8805 = vmatprep.subr.bf16.mxu0 0
      %8806 = vmatpush1.bf16.msra.mxu0 0
      %8807 = vmatprep.subr.bf16.mxu0 0
      %8808 = vmatpush1.bf16.msra.mxu0 0
      %8809 = vmatprep.subr.bf16.mxu0 0
      %8810 = vmatpush1.bf16.msra.mxu0 0
      %8811 = vmatprep.mubr.bf16.mxu0 0
      %8812 = vmatmul.mubr.bf16.gmra.mrb[0].mxu0 %v8072
      %v8813 = vpop.f32.mrb[0].mxu0
      %v8814 = vadd.f32 0.0, %v8813
      %v8815 = vpop.f32.mrb[0].mxu0
      %v8816 = vpop.f32.mrb[0].mxu0
      %v8817 = vadd.f32 0.0, %v8816
      %v8818 = vpop.f32.mrb[0].mxu0
      %8819 = vmatprep.mubr.bf16.mxu0 0
      %8820 = vmatmul.mubr.bf16.gmra.mrb[0].mxu0 %v8075
      %v8821 = vpop.f32.mrb[0].mxu0
      %v8822 = vadd.f32 0.0, %v8821
      %v8823 = vpop.f32.mrb[0].mxu0
      %v8824 = vpop.f32.mrb[0].mxu0
      %v8825 = vadd.f32 0.0, %v8824
      %v8826 = vpop.f32.mrb[0].mxu0
      %8827 = vmatprep.mubr.bf16.mxu0 0
      %8828 = vmatmul.mubr.bf16.gmra.mrb[0].mxu0 %v8078
      %v8829 = vpop.f32.mrb[0].mxu0
      %v8830 = vadd.f32 0.0, %v8829
      %v8831 = vpop.f32.mrb[0].mxu0
      %v8832 = vpop.f32.mrb[0].mxu0
      %v8833 = vadd.f32 0.0, %v8832
      %v8834 = vpop.f32.mrb[0].mxu0
      %8835 = vmatprep.mubr.bf16.mxu0 0
      %8836 = vmatmul.mubr.bf16.gmra.mrb[0].mxu0 %v8081
      %v8837 = vpop.f32.mrb[0].mxu0
      %v8838 = vadd.f32 0.0, %v8837
      %v8839 = vpop.f32.mrb[0].mxu0
      %v8840 = vpop.f32.mrb[0].mxu0
      %v8841 = vadd.f32 0.0, %v8840
      %v8842 = vpop.f32.mrb[0].mxu0
      %8843 = vmatprep.mubr.bf16.mxu0 0
      %8844 = vmatmul.mubr.bf16.gmra.mrb[0].mxu0 %v8084
      %v8845 = vpop.f32.mrb[0].mxu0
      %v8846 = vadd.f32 0.0, %v8845
      %v8847 = vpop.f32.mrb[0].mxu0
      %v8848 = vpop.f32.mrb[0].mxu0
      %v8849 = vadd.f32 0.0, %v8848
      %v8850 = vpop.f32.mrb[0].mxu0
      %8851 = vmatprep.mubr.bf16.mxu0 0
      %8852 = vmatmul.mubr.bf16.gmra.mrb[0].mxu0 %v8087
      %v8853 = vpop.f32.mrb[0].mxu0
      %v8854 = vadd.f32 0.0, %v8853
      %v8855 = vpop.f32.mrb[0].mxu0
      %v8856 = vpop.f32.mrb[0].mxu0
      %v8857 = vadd.f32 0.0, %v8856
      %v8858 = vpop.f32.mrb[0].mxu0
      %8859 = vmatprep.mubr.bf16.mxu0 0
      %8860 = vmatmul.mubr.bf16.gmra.mrb[0].mxu0 %v8090
      %v8861 = vpop.f32.mrb[0].mxu0
      %v8862 = vadd.f32 0.0, %v8861
      %v8863 = vpop.f32.mrb[0].mxu0
      %v8864 = vpop.f32.mrb[0].mxu0
      %v8865 = vadd.f32 0.0, %v8864
      %v8866 = vpop.f32.mrb[0].mxu0
      %8867 = vmatprep.mubr.bf16.mxu0 0
      %8868 = vmatmul.mubr.bf16.gmra.mrb[0].mxu0 %v8093
      %v8869 = vpop.f32.mrb[0].mxu0
      %v8870 = vadd.f32 0.0, %v8869
      %v8871 = vpop.f32.mrb[0].mxu0
      %v8872 = vpop.f32.mrb[0].mxu0
      %v8873 = vadd.f32 0.0, %v8872
      %v8874 = vpop.f32.mrb[0].mxu0
      %8875 = vmatprep.mubr.bf16.mxu0 0
      %8876 = vmatmul.mubr.bf16.gmra.mrb[0].mxu0 %v8096
      %v8877 = vpop.f32.mrb[0].mxu0
      %v8878 = vadd.f32 0.0, %v8877
      %v8879 = vpop.f32.mrb[0].mxu0
      %v8880 = vpop.f32.mrb[0].mxu0
      %v8881 = vadd.f32 0.0, %v8880
      %v8882 = vpop.f32.mrb[0].mxu0
      %8883 = vmatprep.mubr.bf16.mxu0 0
      %8884 = vmatmul.mubr.bf16.gmra.mrb[0].mxu0 %v8099
      %v8885 = vpop.f32.mrb[0].mxu0
      %v8886 = vadd.f32 0.0, %v8885
      %v8887 = vpop.f32.mrb[0].mxu0
      %v8888 = vpop.f32.mrb[0].mxu0
      %v8889 = vadd.f32 0.0, %v8888
      %v8890 = vpop.f32.mrb[0].mxu0
      %8891 = vmatprep.mubr.bf16.mxu0 0
      %8892 = vmatmul.mubr.bf16.gmra.mrb[0].mxu0 %v8102
      %v8893 = vpop.f32.mrb[0].mxu0
      %v8894 = vadd.f32 0.0, %v8893
      %v8895 = vpop.f32.mrb[0].mxu0
      %v8896 = vpop.f32.mrb[0].mxu0
      %v8897 = vadd.f32 0.0, %v8896
      %v8898 = vpop.f32.mrb[0].mxu0
      %8899 = vmatprep.mubr.bf16.mxu0 0
      %8900 = vmatmul.mubr.bf16.gmra.mrb[0].mxu0 %v8105
      %v8901 = vpop.f32.mrb[0].mxu0
      %v8902 = vadd.f32 0.0, %v8901
      %v8903 = vpop.f32.mrb[0].mxu0
      %v8904 = vpop.f32.mrb[0].mxu0
      %v8905 = vadd.f32 0.0, %v8904
      %v8906 = vpop.f32.mrb[0].mxu0
      %8907 = vmatprep.mubr.bf16.mxu0 0
      %8908 = vmatmul.mubr.bf16.gmra.mrb[0].mxu0 %v8108
      %v8909 = vpop.f32.mrb[0].mxu0
      %v8910 = vadd.f32 0.0, %v8909
      %v8911 = vpop.f32.mrb[0].mxu0
      %v8912 = vpop.f32.mrb[0].mxu0
      %v8913 = vadd.f32 0.0, %v8912
      %v8914 = vpop.f32.mrb[0].mxu0
      %8915 = vmatprep.mubr.bf16.mxu0 0
      %8916 = vmatmul.mubr.bf16.gmra.mrb[0].mxu0 %v8111
      %v8917 = vpop.f32.mrb[0].mxu0
      %v8918 = vadd.f32 0.0, %v8917
      %v8919 = vpop.f32.mrb[0].mxu0
      %v8920 = vpop.f32.mrb[0].mxu0
      %v8921 = vadd.f32 0.0, %v8920
      %v8922 = vpop.f32.mrb[0].mxu0
      %8923 = vmatprep.mubr.bf16.mxu0 0
      %8924 = vmatmul.mubr.bf16.gmra.mrb[0].mxu0 %v8114
      %v8925 = vpop.f32.mrb[0].mxu0
      %v8926 = vadd.f32 0.0, %v8925
      %v8927 = vpop.f32.mrb[0].mxu0
      %v8928 = vpop.f32.mrb[0].mxu0
      %v8929 = vadd.f32 0.0, %v8928
      %v8930 = vpop.f32.mrb[0].mxu0
      %8931 = vmatprep.mubr.bf16.mxu0 0
      %8932 = vmatmul.mubr.bf16.gmra.mrb[0].mxu0 %v8117
      %v8933 = vpop.f32.mrb[0].mxu0
      %v8934 = vadd.f32 0.0, %v8933
      %v8935 = vpop.f32.mrb[0].mxu0
      %v8936 = vpop.f32.mrb[0].mxu0
      %v8937 = vadd.f32 0.0, %v8936
      %v8938 = vpop.f32.mrb[0].mxu0
      %8939 = vmatprep.mubr.bf16.mxu0 0
      %8940 = vmatmul.mubr.bf16.gmra.mrb[0].mxu0 %v8120
      %v8941 = vpop.f32.mrb[0].mxu0
      %v8942 = vadd.f32 0.0, %v8941
      %v8943 = vpop.f32.mrb[0].mxu0
      %v8944 = vpop.f32.mrb[0].mxu0
      %v8945 = vadd.f32 0.0, %v8944
      %v8946 = vpop.f32.mrb[0].mxu0
      %8947 = vmatprep.mubr.bf16.mxu0 0
      %8948 = vmatmul.mubr.bf16.gmra.mrb[0].mxu0 %v8123
      %v8949 = vpop.f32.mrb[0].mxu0
      %v8950 = vadd.f32 0.0, %v8949
      %v8951 = vpop.f32.mrb[0].mxu0
      %v8952 = vpop.f32.mrb[0].mxu0
      %v8953 = vadd.f32 0.0, %v8952
      %v8954 = vpop.f32.mrb[0].mxu0
      %8955 = vmatprep.mubr.bf16.mxu0 0
      %8956 = vmatmul.mubr.bf16.gmra.mrb[0].mxu0 %v8126
      %v8957 = vpop.f32.mrb[0].mxu0
      %v8958 = vadd.f32 0.0, %v8957
      %v8959 = vpop.f32.mrb[0].mxu0
      %v8960 = vpop.f32.mrb[0].mxu0
      %v8961 = vadd.f32 0.0, %v8960
      %v8962 = vpop.f32.mrb[0].mxu0
      %8963 = vmatprep.mubr.bf16.mxu0 0
      %8964 = vmatmul.mubr.bf16.gmra.mrb[0].mxu0 %v8129
      %v8965 = vpop.f32.mrb[0].mxu0
      %v8966 = vadd.f32 0.0, %v8965
      %v8967 = vpop.f32.mrb[0].mxu0
      %v8968 = vpop.f32.mrb[0].mxu0
      %v8969 = vadd.f32 0.0, %v8968
      %v8970 = vpop.f32.mrb[0].mxu0
      %8971 = vmatprep.mubr.bf16.mxu0 0
      %8972 = vmatmul.mubr.bf16.gmra.mrb[0].mxu0 %v8132
      %v8973 = vpop.f32.mrb[0].mxu0
      %v8974 = vadd.f32 0.0, %v8973
      %v8975 = vpop.f32.mrb[0].mxu0
      %v8976 = vpop.f32.mrb[0].mxu0
      %v8977 = vadd.f32 0.0, %v8976
      %v8978 = vpop.f32.mrb[0].mxu0
      %8979 = vmatprep.mubr.bf16.mxu0 0
      %8980 = vmatmul.mubr.bf16.gmra.mrb[0].mxu0 %v8135
      %v8981 = vpop.f32.mrb[0].mxu0
      %v8982 = vadd.f32 0.0, %v8981
      %v8983 = vpop.f32.mrb[0].mxu0
      %v8984 = vpop.f32.mrb[0].mxu0
      %v8985 = vadd.f32 0.0, %v8984
      %v8986 = vpop.f32.mrb[0].mxu0
      %8987 = vmatprep.mubr.bf16.mxu0 0
      %8988 = vmatmul.mubr.bf16.gmra.mrb[0].mxu0 %v8138
      %v8989 = vpop.f32.mrb[0].mxu0
      %v8990 = vadd.f32 0.0, %v8989
      %v8991 = vpop.f32.mrb[0].mxu0
      %v8992 = vpop.f32.mrb[0].mxu0
      %v8993 = vadd.f32 0.0, %v8992
      %v8994 = vpop.f32.mrb[0].mxu0
      %8995 = vmatprep.mubr.bf16.mxu0 0
      %8996 = vmatmul.mubr.bf16.gmra.mrb[0].mxu0 %v8141
      %v8997 = vpop.f32.mrb[0].mxu0
      %v8998 = vadd.f32 0.0, %v8997
      %v8999 = vpop.f32.mrb[0].mxu0
      %v9000 = vpop.f32.mrb[0].mxu0
      %v9001 = vadd.f32 0.0, %v9000
      %v9002 = vpop.f32.mrb[0].mxu0
      %9003 = vmatprep.mubr.bf16.mxu0 0
      %9004 = vmatmul.mubr.bf16.gmra.mrb[0].mxu0 %v8144
      %v9005 = vpop.f32.mrb[0].mxu0
      %v9006 = vadd.f32 0.0, %v9005
      %v9007 = vpop.f32.mrb[0].mxu0
      %v9008 = vpop.f32.mrb[0].mxu0
      %v9009 = vadd.f32 0.0, %v9008
      %v9010 = vpop.f32.mrb[0].mxu0
      %9011 = vmatprep.mubr.bf16.mxu0 0
      %9012 = vmatmul.mubr.bf16.gmra.mrb[0].mxu0 %v8147
      %v9013 = vpop.f32.mrb[0].mxu0
      %v9014 = vadd.f32 0.0, %v9013
      %v9015 = vpop.f32.mrb[0].mxu0
      %v9016 = vpop.f32.mrb[0].mxu0
      %v9017 = vadd.f32 0.0, %v9016
      %v9018 = vpop.f32.mrb[0].mxu0
      %9019 = vmatprep.mubr.bf16.mxu0 0
      %9020 = vmatmul.mubr.bf16.gmra.mrb[0].mxu0 %v8150
      %v9021 = vpop.f32.mrb[0].mxu0
      %v9022 = vadd.f32 0.0, %v9021
      %v9023 = vpop.f32.mrb[0].mxu0
      %v9024 = vpop.f32.mrb[0].mxu0
      %v9025 = vadd.f32 0.0, %v9024
      %v9026 = vpop.f32.mrb[0].mxu0
      %9027 = vmatprep.mubr.bf16.mxu0 0
      %9028 = vmatmul.mubr.bf16.gmra.mrb[0].mxu0 %v8153
      %v9029 = vpop.f32.mrb[0].mxu0
      %v9030 = vadd.f32 0.0, %v9029
      %v9031 = vpop.f32.mrb[0].mxu0
      %v9032 = vpop.f32.mrb[0].mxu0
      %v9033 = vadd.f32 0.0, %v9032
      %v9034 = vpop.f32.mrb[0].mxu0
      %9035 = vmatprep.mubr.bf16.mxu0 0
      %9036 = vmatmul.mubr.bf16.gmra.mrb[0].mxu0 %v8156
      %v9037 = vpop.f32.mrb[0].mxu0
      %v9038 = vadd.f32 0.0, %v9037
      %v9039 = vpop.f32.mrb[0].mxu0
      %v9040 = vpop.f32.mrb[0].mxu0
      %v9041 = vadd.f32 0.0, %v9040
      %v9042 = vpop.f32.mrb[0].mxu0
      %9043 = vmatprep.mubr.bf16.mxu0 0
      %9044 = vmatmul.mubr.bf16.gmra.mrb[0].mxu0 %v8159
      %v9045 = vpop.f32.mrb[0].mxu0
      %v9046 = vadd.f32 0.0, %v9045
      %v9047 = vpop.f32.mrb[0].mxu0
      %v9048 = vpop.f32.mrb[0].mxu0
      %v9049 = vadd.f32 0.0, %v9048
      %v9050 = vpop.f32.mrb[0].mxu0
      %9051 = vmatprep.mubr.bf16.mxu0 0
      %9052 = vmatmul.mubr.bf16.gmra.mrb[0].mxu0 %v8162
      %v9053 = vpop.f32.mrb[0].mxu0
      %v9054 = vadd.f32 0.0, %v9053
      %v9055 = vpop.f32.mrb[0].mxu0
      %v9056 = vpop.f32.mrb[0].mxu0
      %v9057 = vadd.f32 0.0, %v9056
      %v9058 = vpop.f32.mrb[0].mxu0
      %9059 = vmatprep.mubr.bf16.mxu0 0
      %9060 = vmatmul.mubr.bf16.gmra.mrb[0].mxu0 %v8165
      %v9061 = vpop.f32.mrb[0].mxu0
      %v9062 = vadd.f32 0.0, %v9061
      %v9063 = vpop.f32.mrb[0].mxu0
      %v9064 = vpop.f32.mrb[0].mxu0
      %v9065 = vadd.f32 0.0, %v9064
      %v9066 = vpop.f32.mrb[0].mxu0
      %9067 = vdwg.mxu0
      %v9068 = vrot.slane %v8202, 7
      %v9069 = vrot.slane %v8205, 7
      %v9070 = vrot.slane %v8210, 7
      %v9071 = vrot.slane %v8213, 7
      %v9072 = vrot.slane %v8218, 7
      %v9073 = vrot.slane %v8221, 7
      %v9074 = vrot.slane %v8226, 7
      %v9075 = vrot.slane %v8229, 7
      %v9076 = vrot.slane %v8234, 7
      %v9077 = vrot.slane %v8237, 7
      %v9078 = vrot.slane %v8242, 7
      %v9079 = vrot.slane %v8245, 7
      %v9080 = vrot.slane %v8250, 7
      %v9081 = vrot.slane %v8253, 7
      %v9082 = vrot.slane %v8258, 7
      %v9083 = vrot.slane %v8261, 7
      %v9084 = vrot.slane %v8266, 7
      %v9085 = vrot.slane %v8269, 7
      %v9086 = vrot.slane %v8274, 7
      %v9087 = vrot.slane %v8277, 7
      %v9088 = vrot.slane %v8282, 7
      %v9089 = vrot.slane %v8285, 7
      %v9090 = vrot.slane %v8290, 7
      %v9091 = vrot.slane %v8293, 7
      %v9092 = vrot.slane %v8298, 7
      %v9093 = vrot.slane %v8301, 7
      %v9094 = vrot.slane %v8306, 7
      %v9095 = vrot.slane %v8309, 7
      %v9096 = vrot.slane %v8314, 7
      %v9097 = vrot.slane %v8317, 7
      %v9098 = vrot.slane %v8322, 7
      %v9099 = vrot.slane %v8325, 7
      %v9100 = vrot.slane %v8330, 7
      %v9101 = vrot.slane %v8333, 7
      %v9102 = vrot.slane %v8338, 7
      %v9103 = vrot.slane %v8341, 7
      %v9104 = vrot.slane %v8346, 7
      %v9105 = vrot.slane %v8349, 7
      %v9106 = vrot.slane %v8354, 7
      %v9107 = vrot.slane %v8357, 7
      %v9108 = vrot.slane %v8362, 7
      %v9109 = vrot.slane %v8365, 7
      %v9110 = vrot.slane %v8370, 7
      %v9111 = vrot.slane %v8373, 7
      %v9112 = vrot.slane %v8378, 7
      %v9113 = vrot.slane %v8381, 7
      %v9114 = vrot.slane %v8386, 7
      %v9115 = vrot.slane %v8389, 7
      %v9116 = vrot.slane %v8394, 7
      %v9117 = vrot.slane %v8397, 7
      %v9118 = vrot.slane %v8402, 7
      %v9119 = vrot.slane %v8405, 7
      %v9120 = vrot.slane %v8410, 7
      %v9121 = vrot.slane %v8413, 7
      %v9122 = vrot.slane %v8418, 7
      %v9123 = vrot.slane %v8421, 7
      %v9124 = vrot.slane %v8426, 7
      %v9125 = vrot.slane %v8429, 7
      %v9126 = vrot.slane %v8434, 7
      %v9127 = vrot.slane %v8437, 7
      %v9128 = vrot.slane %v8442, 7
      %v9129 = vrot.slane %v8445, 7
      %v9130 = vrot.slane %v8450, 7
      %v9131 = vrot.slane %v8453, 7
      %v9132 = vsel %vm1552, %v9130, %v9131
      %v9133 = vsel %vm1552, %v9129, %v9130
      %v9134 = vsel %vm1552, %v9128, %v9129
      %v9135 = vsel %vm1552, %v9127, %v9128
      %v9136 = vsel %vm1552, %v9126, %v9127
      %v9137 = vsel %vm1552, %v9125, %v9126
      %v9138 = vsel %vm1552, %v9124, %v9125
      %v9139 = vsel %vm1552, %v9123, %v9124
      %v9140 = vsel %vm1552, %v9122, %v9123
      %v9141 = vsel %vm1552, %v9121, %v9122
      %v9142 = vsel %vm1552, %v9120, %v9121
      %v9143 = vsel %vm1552, %v9119, %v9120
      %v9144 = vsel %vm1552, %v9118, %v9119
      %v9145 = vsel %vm1552, %v9117, %v9118
      %v9146 = vsel %vm1552, %v9116, %v9117
      %v9147 = vsel %vm1552, %v9115, %v9116
      %v9148 = vsel %vm1552, %v9114, %v9115
      %v9149 = vsel %vm1552, %v9113, %v9114
      %v9150 = vsel %vm1552, %v9112, %v9113
      %v9151 = vsel %vm1552, %v9111, %v9112
      %v9152 = vsel %vm1552, %v9110, %v9111
      %v9153 = vsel %vm1552, %v9109, %v9110
      %v9154 = vsel %vm1552, %v9108, %v9109
      %v9155 = vsel %vm1552, %v9107, %v9108
      %v9156 = vsel %vm1552, %v9106, %v9107
      %v9157 = vsel %vm1552, %v9105, %v9106
      %v9158 = vsel %vm1552, %v9104, %v9105
      %v9159 = vsel %vm1552, %v9103, %v9104
      %v9160 = vsel %vm1552, %v9102, %v9103
      %v9161 = vsel %vm1552, %v9101, %v9102
      %v9162 = vsel %vm1552, %v9100, %v9101
      %v9163 = vsel %vm1552, %v9099, %v9100
      %v9164 = vsel %vm1552, %v9098, %v9099
      %v9165 = vsel %vm1552, %v9097, %v9098
      %v9166 = vsel %vm1552, %v9096, %v9097
      %v9167 = vsel %vm1552, %v9095, %v9096
      %v9168 = vsel %vm1552, %v9094, %v9095
      %v9169 = vsel %vm1552, %v9093, %v9094
      %v9170 = vsel %vm1552, %v9092, %v9093
      %v9171 = vsel %vm1552, %v9091, %v9092
      %v9172 = vsel %vm1552, %v9090, %v9091
      %v9173 = vsel %vm1552, %v9089, %v9090
      %v9174 = vsel %vm1552, %v9088, %v9089
      %v9175 = vsel %vm1552, %v9087, %v9088
      %v9176 = vsel %vm1552, %v9086, %v9087
      %v9177 = vsel %vm1552, %v9085, %v9086
      %v9178 = vsel %vm1552, %v9084, %v9085
      %v9179 = vsel %vm1552, %v9083, %v9084
      %v9180 = vsel %vm1552, %v9082, %v9083
      %v9181 = vsel %vm1552, %v9081, %v9082
      %v9182 = vsel %vm1552, %v9080, %v9081
      %v9183 = vsel %vm1552, %v9079, %v9080
      %v9184 = vsel %vm1552, %v9078, %v9079
      %v9185 = vsel %vm1552, %v9077, %v9078
      %v9186 = vsel %vm1552, %v9076, %v9077
      %v9187 = vsel %vm1552, %v9075, %v9076
      %v9188 = vsel %vm1552, %v9074, %v9075
      %v9189 = vsel %vm1552, %v9073, %v9074
      %v9190 = vsel %vm1552, %v9072, %v9073
      %v9191 = vsel %vm1552, %v9071, %v9072
      %v9192 = vsel %vm1552, %v9070, %v9071
      %v9193 = vsel %vm1552, %v9069, %v9070
      %v9194 = vsel %vm1552, %v9068, %v9069
      %v9195 = vsel %vm1552, %v9131, %v9068
      %v9196 = vadd.f32 %v7958, %v9195
      %v9197 = vadd.f32 %v7959, %v9194
      %v9198 = vadd.f32 %v7960, %v9193
      %v9199 = vadd.f32 %v7961, %v9192
      %v9200 = vadd.f32 %v7962, %v9191
      %v9201 = vadd.f32 %v7963, %v9190
      %v9202 = vadd.f32 %v7964, %v9189
      %v9203 = vadd.f32 %v7965, %v9188
      %v9204 = vadd.f32 %v7966, %v9187
      %v9205 = vadd.f32 %v7967, %v9186
      %v9206 = vadd.f32 %v7968, %v9185
      %v9207 = vadd.f32 %v7969, %v9184
      %v9208 = vadd.f32 %v7970, %v9183
      %v9209 = vadd.f32 %v7971, %v9182
      %v9210 = vadd.f32 %v7972, %v9181
      %v9211 = vadd.f32 %v7973, %v9180
      %v9212 = vadd.f32 %v7974, %v9179
      %v9213 = vadd.f32 %v7975, %v9178
      %v9214 = vadd.f32 %v7976, %v9177
      %v9215 = vadd.f32 %v7977, %v9176
      %v9216 = vadd.f32 %v7978, %v9175
      %v9217 = vadd.f32 %v7979, %v9174
      %v9218 = vadd.f32 %v7980, %v9173
      %v9219 = vadd.f32 %v7981, %v9172
      %v9220 = vadd.f32 %v7982, %v9171
      %v9221 = vadd.f32 %v7983, %v9170
      %v9222 = vadd.f32 %v7984, %v9169
      %v9223 = vadd.f32 %v7985, %v9168
      %v9224 = vadd.f32 %v7986, %v9167
      %v9225 = vadd.f32 %v7987, %v9166
      %v9226 = vadd.f32 %v7988, %v9165
      %v9227 = vadd.f32 %v7989, %v9164
      %v9228 = vadd.f32 %v7990, %v9163
      %v9229 = vadd.f32 %v7991, %v9162
      %v9230 = vadd.f32 %v7992, %v9161
      %v9231 = vadd.f32 %v7993, %v9160
      %v9232 = vadd.f32 %v7994, %v9159
      %v9233 = vadd.f32 %v7995, %v9158
      %v9234 = vadd.f32 %v7996, %v9157
      %v9235 = vadd.f32 %v7997, %v9156
      %v9236 = vadd.f32 %v7998, %v9155
      %v9237 = vadd.f32 %v7999, %v9154
      %v9238 = vadd.f32 %v8000, %v9153
      %v9239 = vadd.f32 %v8001, %v9152
      %v9240 = vadd.f32 %v8002, %v9151
      %v9241 = vadd.f32 %v8003, %v9150
      %v9242 = vadd.f32 %v8004, %v9149
      %v9243 = vadd.f32 %v8005, %v9148
      %v9244 = vadd.f32 %v8006, %v9147
      %v9245 = vadd.f32 %v8007, %v9146
      %v9246 = vadd.f32 %v8008, %v9145
      %v9247 = vadd.f32 %v8009, %v9144
      %v9248 = vadd.f32 %v8010, %v9143
      %v9249 = vadd.f32 %v8011, %v9142
      %v9250 = vadd.f32 %v8012, %v9141
      %v9251 = vadd.f32 %v8013, %v9140
      %v9252 = vadd.f32 %v8014, %v9139
      %v9253 = vadd.f32 %v8015, %v9138
      %v9254 = vadd.f32 %v8016, %v9137
      %v9255 = vadd.f32 %v8017, %v9136
      %v9256 = vadd.f32 %v8018, %v9135
      %v9257 = vadd.f32 %v8019, %v9134
      %v9258 = vadd.f32 %v8020, %v9133
      %v9259 = vadd.f32 %v8021, %v9132
      %v9260 = vadd.f32 %v9196, %v8508
      %v9261 = vadd.f32 %v9197, %v8511
      %v9262 = vadd.f32 %v9198, %v8516
      %v9263 = vadd.f32 %v9199, %v8519
      %v9264 = vadd.f32 %v9200, %v8524
      %v9265 = vadd.f32 %v9201, %v8527
      %v9266 = vadd.f32 %v9202, %v8532
      %v9267 = vadd.f32 %v9203, %v8535
      %v9268 = vadd.f32 %v9204, %v8540
      %v9269 = vadd.f32 %v9205, %v8543
      %v9270 = vadd.f32 %v9206, %v8548
      %v9271 = vadd.f32 %v9207, %v8551
      %v9272 = vadd.f32 %v9208, %v8556
      %v9273 = vadd.f32 %v9209, %v8559
      %v9274 = vadd.f32 %v9210, %v8564
      %v9275 = vadd.f32 %v9211, %v8567
      %v9276 = vadd.f32 %v9212, %v8572
      %v9277 = vadd.f32 %v9213, %v8575
      %v9278 = vadd.f32 %v9214, %v8580
      %v9279 = vadd.f32 %v9215, %v8583
      %v9280 = vadd.f32 %v9216, %v8588
      %v9281 = vadd.f32 %v9217, %v8591
      %v9282 = vadd.f32 %v9218, %v8596
      %v9283 = vadd.f32 %v9219, %v8599
      %v9284 = vadd.f32 %v9220, %v8604
      %v9285 = vadd.f32 %v9221, %v8607
      %v9286 = vadd.f32 %v9222, %v8612
      %v9287 = vadd.f32 %v9223, %v8615
      %v9288 = vadd.f32 %v9224, %v8620
      %v9289 = vadd.f32 %v9225, %v8623
      %v9290 = vadd.f32 %v9226, %v8628
      %v9291 = vadd.f32 %v9227, %v8631
      %v9292 = vadd.f32 %v9228, %v8636
      %v9293 = vadd.f32 %v9229, %v8639
      %v9294 = vadd.f32 %v9230, %v8644
      %v9295 = vadd.f32 %v9231, %v8647
      %v9296 = vadd.f32 %v9232, %v8652
      %v9297 = vadd.f32 %v9233, %v8655
      %v9298 = vadd.f32 %v9234, %v8660
      %v9299 = vadd.f32 %v9235, %v8663
      %v9300 = vadd.f32 %v9236, %v8668
      %v9301 = vadd.f32 %v9237, %v8671
      %v9302 = vadd.f32 %v9238, %v8676
      %v9303 = vadd.f32 %v9239, %v8679
      %v9304 = vadd.f32 %v9240, %v8684
      %v9305 = vadd.f32 %v9241, %v8687
      %v9306 = vadd.f32 %v9242, %v8692
      %v9307 = vadd.f32 %v9243, %v8695
      %v9308 = vadd.f32 %v9244, %v8700
      %v9309 = vadd.f32 %v9245, %v8703
      %v9310 = vadd.f32 %v9246, %v8708
      %v9311 = vadd.f32 %v9247, %v8711
      %v9312 = vadd.f32 %v9248, %v8716
      %v9313 = vadd.f32 %v9249, %v8719
      %v9314 = vadd.f32 %v9250, %v8724
      %v9315 = vadd.f32 %v9251, %v8727
      %v9316 = vadd.f32 %v9252, %v8732
      %v9317 = vadd.f32 %v9253, %v8735
      %v9318 = vadd.f32 %v9254, %v8740
      %v9319 = vadd.f32 %v9255, %v8743
      %v9320 = vadd.f32 %v9256, %v8748
      %v9321 = vadd.f32 %v9257, %v8751
      %v9322 = vadd.f32 %v9258, %v8756
      %v9323 = vadd.f32 %v9259, %v8759
      %v9324 = vrot.slane %v8814, 1
      %v9325 = vrot.slane %v8817, 1
      %v9326 = vrot.slane %v8822, 1
      %v9327 = vrot.slane %v8825, 1
      %v9328 = vrot.slane %v8830, 1
      %v9329 = vrot.slane %v8833, 1
      %v9330 = vrot.slane %v8838, 1
      %v9331 = vrot.slane %v8841, 1
      %v9332 = vrot.slane %v8846, 1
      %v9333 = vrot.slane %v8849, 1
      %v9334 = vrot.slane %v8854, 1
      %v9335 = vrot.slane %v8857, 1
      %v9336 = vrot.slane %v8862, 1
      %v9337 = vrot.slane %v8865, 1
      %v9338 = vrot.slane %v8870, 1
      %v9339 = vrot.slane %v8873, 1
      %v9340 = vrot.slane %v8878, 1
      %v9341 = vrot.slane %v8881, 1
      %v9342 = vrot.slane %v8886, 1
      %v9343 = vrot.slane %v8889, 1
      %v9344 = vrot.slane %v8894, 1
      %v9345 = vrot.slane %v8897, 1
      %v9346 = vrot.slane %v8902, 1
      %v9347 = vrot.slane %v8905, 1
      %v9348 = vrot.slane %v8910, 1
      %v9349 = vrot.slane %v8913, 1
      %v9350 = vrot.slane %v8918, 1
      %v9351 = vrot.slane %v8921, 1
      %v9352 = vrot.slane %v8926, 1
      %v9353 = vrot.slane %v8929, 1
      %v9354 = vrot.slane %v8934, 1
      %v9355 = vrot.slane %v8937, 1
      %v9356 = vrot.slane %v8942, 1
      %v9357 = vrot.slane %v8945, 1
      %v9358 = vrot.slane %v8950, 1
      %v9359 = vrot.slane %v8953, 1
      %v9360 = vrot.slane %v8958, 1
      %v9361 = vrot.slane %v8961, 1
      %v9362 = vrot.slane %v8966, 1
      %v9363 = vrot.slane %v8969, 1
      %v9364 = vrot.slane %v8974, 1
      %v9365 = vrot.slane %v8977, 1
      %v9366 = vrot.slane %v8982, 1
      %v9367 = vrot.slane %v8985, 1
      %v9368 = vrot.slane %v8990, 1
      %v9369 = vrot.slane %v8993, 1
      %v9370 = vrot.slane %v8998, 1
      %v9371 = vrot.slane %v9001, 1
      %v9372 = vrot.slane %v9006, 1
      %v9373 = vrot.slane %v9009, 1
      %v9374 = vrot.slane %v9014, 1
      %v9375 = vrot.slane %v9017, 1
      %v9376 = vrot.slane %v9022, 1
      %v9377 = vrot.slane %v9025, 1
      %v9378 = vrot.slane %v9030, 1
      %v9379 = vrot.slane %v9033, 1
      %v9380 = vrot.slane %v9038, 1
      %v9381 = vrot.slane %v9041, 1
      %v9382 = vrot.slane %v9046, 1
      %v9383 = vrot.slane %v9049, 1
      %v9384 = vrot.slane %v9054, 1
      %v9385 = vrot.slane %v9057, 1
      %v9386 = vrot.slane %v9062, 1
      %v9387 = vrot.slane %v9065, 1
      %v9388 = vsel %vm1809, %v9386, %v9387
      %v9389 = vsel %vm1809, %v9385, %v9386
      %v9390 = vsel %vm1809, %v9384, %v9385
      %v9391 = vsel %vm1809, %v9383, %v9384
      %v9392 = vsel %vm1809, %v9382, %v9383
      %v9393 = vsel %vm1809, %v9381, %v9382
      %v9394 = vsel %vm1809, %v9380, %v9381
      %v9395 = vsel %vm1809, %v9379, %v9380
      %v9396 = vsel %vm1809, %v9378, %v9379
      %v9397 = vsel %vm1809, %v9377, %v9378
      %v9398 = vsel %vm1809, %v9376, %v9377
      %v9399 = vsel %vm1809, %v9375, %v9376
      %v9400 = vsel %vm1809, %v9374, %v9375
      %v9401 = vsel %vm1809, %v9373, %v9374
      %v9402 = vsel %vm1809, %v9372, %v9373
      %v9403 = vsel %vm1809, %v9371, %v9372
      %v9404 = vsel %vm1809, %v9370, %v9371
      %v9405 = vsel %vm1809, %v9369, %v9370
      %v9406 = vsel %vm1809, %v9368, %v9369
      %v9407 = vsel %vm1809, %v9367, %v9368
      %v9408 = vsel %vm1809, %v9366, %v9367
      %v9409 = vsel %vm1809, %v9365, %v9366
      %v9410 = vsel %vm1809, %v9364, %v9365
      %v9411 = vsel %vm1809, %v9363, %v9364
      %v9412 = vsel %vm1809, %v9362, %v9363
      %v9413 = vsel %vm1809, %v9361, %v9362
      %v9414 = vsel %vm1809, %v9360, %v9361
      %v9415 = vsel %vm1809, %v9359, %v9360
      %v9416 = vsel %vm1809, %v9358, %v9359
      %v9417 = vsel %vm1809, %v9357, %v9358
      %v9418 = vsel %vm1809, %v9356, %v9357
      %v9419 = vsel %vm1809, %v9355, %v9356
      %v9420 = vsel %vm1809, %v9354, %v9355
      %v9421 = vsel %vm1809, %v9353, %v9354
      %v9422 = vsel %vm1809, %v9352, %v9353
      %v9423 = vsel %vm1809, %v9351, %v9352
      %v9424 = vsel %vm1809, %v9350, %v9351
      %v9425 = vsel %vm1809, %v9349, %v9350
      %v9426 = vsel %vm1809, %v9348, %v9349
      %v9427 = vsel %vm1809, %v9347, %v9348
      %v9428 = vsel %vm1809, %v9346, %v9347
      %v9429 = vsel %vm1809, %v9345, %v9346
      %v9430 = vsel %vm1809, %v9344, %v9345
      %v9431 = vsel %vm1809, %v9343, %v9344
      %v9432 = vsel %vm1809, %v9342, %v9343
      %v9433 = vsel %vm1809, %v9341, %v9342
      %v9434 = vsel %vm1809, %v9340, %v9341
      %v9435 = vsel %vm1809, %v9339, %v9340
      %v9436 = vsel %vm1809, %v9338, %v9339
      %v9437 = vsel %vm1809, %v9337, %v9338
      %v9438 = vsel %vm1809, %v9336, %v9337
      %v9439 = vsel %vm1809, %v9335, %v9336
      %v9440 = vsel %vm1809, %v9334, %v9335
      %v9441 = vsel %vm1809, %v9333, %v9334
      %v9442 = vsel %vm1809, %v9332, %v9333
      %v9443 = vsel %vm1809, %v9331, %v9332
      %v9444 = vsel %vm1809, %v9330, %v9331
      %v9445 = vsel %vm1809, %v9329, %v9330
      %v9446 = vsel %vm1809, %v9328, %v9329
      %v9447 = vsel %vm1809, %v9327, %v9328
      %v9448 = vsel %vm1809, %v9326, %v9327
      %v9449 = vsel %vm1809, %v9325, %v9326
      %v9450 = vsel %vm1809, %v9324, %v9325
      %v9451 = vsel %vm1809, %v9387, %v9324
      %v9452 = vadd.f32 %v9260, %v9450
      %v9453 = vadd.f32 %v9261, %v9449
      %v9454 = vadd.f32 %v9262, %v9448
      %v9455 = vadd.f32 %v9263, %v9447
      %v9456 = vadd.f32 %v9264, %v9446
      %v9457 = vadd.f32 %v9265, %v9445
      %v9458 = vadd.f32 %v9266, %v9444
      %v9459 = vadd.f32 %v9267, %v9443
      %v9460 = vadd.f32 %v9268, %v9442
      %v9461 = vadd.f32 %v9269, %v9441
      %v9462 = vadd.f32 %v9270, %v9440
      %v9463 = vadd.f32 %v9271, %v9439
      %v9464 = vadd.f32 %v9272, %v9438
      %v9465 = vadd.f32 %v9273, %v9437
      %v9466 = vadd.f32 %v9274, %v9436
      %v9467 = vadd.f32 %v9275, %v9435
      %v9468 = vadd.f32 %v9276, %v9434
      %v9469 = vadd.f32 %v9277, %v9433
      %v9470 = vadd.f32 %v9278, %v9432
      %v9471 = vadd.f32 %v9279, %v9431
      %v9472 = vadd.f32 %v9280, %v9430
      %v9473 = vadd.f32 %v9281, %v9429
      %v9474 = vadd.f32 %v9282, %v9428
      %v9475 = vadd.f32 %v9283, %v9427
      %v9476 = vadd.f32 %v9284, %v9426
      %v9477 = vadd.f32 %v9285, %v9425
      %v9478 = vadd.f32 %v9286, %v9424
      %v9479 = vadd.f32 %v9287, %v9423
      %v9480 = vadd.f32 %v9288, %v9422
      %v9481 = vadd.f32 %v9289, %v9421
      %v9482 = vadd.f32 %v9290, %v9420
      %v9483 = vadd.f32 %v9291, %v9419
      %v9484 = vadd.f32 %v9292, %v9418
      %v9485 = vadd.f32 %v9293, %v9417
      %v9486 = vadd.f32 %v9294, %v9416
      %v9487 = vadd.f32 %v9295, %v9415
      %v9488 = vadd.f32 %v9296, %v9414
      %v9489 = vadd.f32 %v9297, %v9413
      %v9490 = vadd.f32 %v9298, %v9412
      %v9491 = vadd.f32 %v9299, %v9411
      %v9492 = vadd.f32 %v9300, %v9410
      %v9493 = vadd.f32 %v9301, %v9409
      %v9494 = vadd.f32 %v9302, %v9408
      %v9495 = vadd.f32 %v9303, %v9407
      %v9496 = vadd.f32 %v9304, %v9406
      %v9497 = vadd.f32 %v9305, %v9405
      %v9498 = vadd.f32 %v9306, %v9404
      %v9499 = vadd.f32 %v9307, %v9403
      %v9500 = vadd.f32 %v9308, %v9402
      %v9501 = vadd.f32 %v9309, %v9401
      %v9502 = vadd.f32 %v9310, %v9400
      %v9503 = vadd.f32 %v9311, %v9399
      %v9504 = vadd.f32 %v9312, %v9398
      %v9505 = vadd.f32 %v9313, %v9397
      %v9506 = vadd.f32 %v9314, %v9396
      %v9507 = vadd.f32 %v9315, %v9395
      %v9508 = vadd.f32 %v9316, %v9394
      %v9509 = vadd.f32 %v9317, %v9393
      %v9510 = vadd.f32 %v9318, %v9392
      %v9511 = vadd.f32 %v9319, %v9391
      %v9512 = vadd.f32 %v9320, %v9390
      %v9513 = vadd.f32 %v9321, %v9389
      %v9514 = vadd.f32 %v9322, %v9388
      %v9515 = vadd.f32 %v9323, %v9451
      %v9516 = vld [vmem:[#allocation2 + $0x20] sm:$0xff]
      %v9517 = vld [vmem:[#allocation2 + $0x28] sm:$0xff]
      %v9518 = vld [vmem:[#allocation2 + $0x30] sm:$0xff]
      %v9519 = vld [vmem:[#allocation2 + $0x38] sm:$0xff]
      %v9520 = vld [vmem:[#allocation2 + $0x40] sm:$0xff]
      %v9521 = vld [vmem:[#allocation2 + $0x48] sm:$0xff]
      %v9522 = vld [vmem:[#allocation2 + $0x50] sm:$0xff]
      %v9523 = vld [vmem:[#allocation2 + $0x58] sm:$0xff]
      %v9524 = vld [vmem:[#allocation2 + $0x60] sm:$0xff]
      %v9525 = vld [vmem:[#allocation2 + $0x68] sm:$0xff]
      %v9526 = vld [vmem:[#allocation2 + $0x70] sm:$0xff]
      %v9527 = vld [vmem:[#allocation2 + $0x78] sm:$0xff]
      %v9528 = vld [vmem:[#allocation2 + $0x80] sm:$0xff]
      %v9529 = vld [vmem:[#allocation2 + $0x88] sm:$0xff]
      %v9530 = vld [vmem:[#allocation2 + $0x90] sm:$0xff]
      %v9531 = vld [vmem:[#allocation2 + $0x98] sm:$0xff]
      %v9532 = vld [vmem:[#allocation2 + $0xa0] sm:$0xff]
      %v9533 = vld [vmem:[#allocation2 + $0xa8] sm:$0xff]
      %v9534 = vld [vmem:[#allocation2 + $0xb0] sm:$0xff]
      %v9535 = vld [vmem:[#allocation2 + $0xb8] sm:$0xff]
      %v9536 = vld [vmem:[#allocation2 + $0xc0] sm:$0xff]
      %v9537 = vld [vmem:[#allocation2 + $0xc8] sm:$0xff]
      %v9538 = vld [vmem:[#allocation2 + $0xd0] sm:$0xff]
      %v9539 = vld [vmem:[#allocation2 + $0xd8] sm:$0xff]
      %v9540 = vld [vmem:[#allocation2 + $0xe0] sm:$0xff]
      %v9541 = vld [vmem:[#allocation2 + $0xe8] sm:$0xff]
      %v9542 = vld [vmem:[#allocation2 + $0xf0] sm:$0xff]
      %v9543 = vld [vmem:[#allocation2 + $0xf8] sm:$0xff]
      %v9544 = vld [vmem:[#allocation2 + $0x100] sm:$0xff]
      %v9545 = vld [vmem:[#allocation2 + $0x108] sm:$0xff]
      %v9546 = vld [vmem:[#allocation2 + $0x110] sm:$0xff]
      %v9547 = vld [vmem:[#allocation2 + $0x118] sm:$0xff]
      %s9548 = scalar_lea.vmem %s3, 96
      %v9549 = vld [vmem:[%s9548] sm:$0xf]
      %v9550 = vld [vmem:[%s9548 + $0x4] sm:$0xf]
      %v9551 = vld [vmem:[%s9548 + $0x8] sm:$0xf]
      %v9552 = vld [vmem:[%s9548 + $0xc] sm:$0xf]
      %v9557 = vunpack.c.l.b16 %v9549
      %v9558 = vunpack.c.l.b16 %v9550
      %v9559 = vunpack.c.l.b16 %v9551
      %v9560 = vunpack.c.l.b16 %v9552
      %v9561 = vpack.c.b16 %v9558, %v9557
      %v9562 = vpack.c.b16 %v9560, %v9559
      %v9566 = vsel %vm6460, %v9516, 0
      %v9569 = vsel %vm6460, %v9517, 0
      %v9572 = vsel %vm6460, %v9518, 0
      %v9575 = vsel %vm6460, %v9519, 0
      %v9578 = vsel %vm6460, %v9520, 0
      %v9581 = vsel %vm6460, %v9521, 0
      %v9584 = vsel %vm6460, %v9522, 0
      %v9587 = vsel %vm6460, %v9523, 0
      %v9590 = vsel %vm6460, %v9524, 0
      %v9593 = vsel %vm6460, %v9525, 0
      %v9596 = vsel %vm6460, %v9526, 0
      %v9599 = vsel %vm6460, %v9527, 0
      %v9602 = vsel %vm6460, %v9528, 0
      %v9605 = vsel %vm6460, %v9529, 0
      %v9608 = vsel %vm6460, %v9530, 0
      %v9611 = vsel %vm6460, %v9531, 0
      %v9614 = vsel %vm6460, %v9532, 0
      %v9617 = vsel %vm6460, %v9533, 0
      %v9620 = vsel %vm6460, %v9534, 0
      %v9623 = vsel %vm6460, %v9535, 0
      %v9626 = vsel %vm6460, %v9536, 0
      %v9629 = vsel %vm6460, %v9537, 0
      %v9632 = vsel %vm6460, %v9538, 0
      %v9635 = vsel %vm6460, %v9539, 0
      %v9638 = vsel %vm6460, %v9540, 0
      %v9641 = vsel %vm6460, %v9541, 0
      %v9644 = vsel %vm6460, %v9542, 0
      %v9647 = vsel %vm6460, %v9543, 0
      %v9650 = vsel %vm6460, %v9544, 0
      %v9653 = vsel %vm6460, %v9545, 0
      %v9656 = vsel %vm6460, %v9546, 0
      %v9659 = vsel %vm6460, %v9547, 0
      %9661 = vmatprep.subr.bf16.mxu0 0
      %9662 = vmatpush1.bf16.msra.mxu0 %v9561
      %9663 = vmatprep.subr.bf16.mxu0 0
      %9664 = vmatpush1.bf16.msra.mxu0 %v9562
      %9665 = vmatprep.subr.bf16.mxu0 0
      %9666 = vmatpush1.bf16.msra.mxu0 0
      %9667 = vmatprep.subr.bf16.mxu0 0
      %9668 = vmatpush1.bf16.msra.mxu0 0
      %9669 = vmatprep.subr.bf16.mxu0 0
      %9670 = vmatpush1.bf16.msra.mxu0 0
      %9671 = vmatprep.subr.bf16.mxu0 0
      %9672 = vmatpush1.bf16.msra.mxu0 0
      %9673 = vmatprep.subr.bf16.mxu0 0
      %9674 = vmatpush1.bf16.msra.mxu0 0
      %9675 = vmatprep.subr.bf16.mxu0 0
      %9676 = vmatpush1.bf16.msra.mxu0 0
      %9677 = vmatprep.subr.bf16.mxu0 0
      %9678 = vmatpush1.bf16.msra.mxu0 0
      %9679 = vmatprep.subr.bf16.mxu0 0
      %9680 = vmatpush1.bf16.msra.mxu0 0
      %9681 = vmatprep.subr.bf16.mxu0 0
      %9682 = vmatpush1.bf16.msra.mxu0 0
      %9683 = vmatprep.subr.bf16.mxu0 0
      %9684 = vmatpush1.bf16.msra.mxu0 0
      %9685 = vmatprep.subr.bf16.mxu0 0
      %9686 = vmatpush1.bf16.msra.mxu0 0
      %9687 = vmatprep.subr.bf16.mxu0 0
      %9688 = vmatpush1.bf16.msra.mxu0 0
      %9689 = vmatprep.subr.bf16.mxu0 0
      %9690 = vmatpush1.bf16.msra.mxu0 0
      %9691 = vmatprep.subr.bf16.mxu0 0
      %9692 = vmatpush1.bf16.msra.mxu0 0
      %9693 = vmatprep.mubr.bf16.mxu0 0
      %9694 = vmatmul.mubr.bf16.gmra.mrb[0].mxu0 %v9566
      %v9695 = vpop.f32.mrb[0].mxu0
      %v9696 = vadd.f32 0.0, %v9695
      %v9697 = vpop.f32.mrb[0].mxu0
      %v9698 = vpop.f32.mrb[0].mxu0
      %v9699 = vadd.f32 0.0, %v9698
      %v9700 = vpop.f32.mrb[0].mxu0
      %9701 = vmatprep.mubr.bf16.mxu0 0
      %9702 = vmatmul.mubr.bf16.gmra.mrb[0].mxu0 %v9569
      %v9703 = vpop.f32.mrb[0].mxu0
      %v9704 = vadd.f32 0.0, %v9703
      %v9705 = vpop.f32.mrb[0].mxu0
      %v9706 = vpop.f32.mrb[0].mxu0
      %v9707 = vadd.f32 0.0, %v9706
      %v9708 = vpop.f32.mrb[0].mxu0
      %9709 = vmatprep.mubr.bf16.mxu0 0
      %9710 = vmatmul.mubr.bf16.gmra.mrb[0].mxu0 %v9572
      %v9711 = vpop.f32.mrb[0].mxu0
      %v9712 = vadd.f32 0.0, %v9711
      %v9713 = vpop.f32.mrb[0].mxu0
      %v9714 = vpop.f32.mrb[0].mxu0
      %v9715 = vadd.f32 0.0, %v9714
      %v9716 = vpop.f32.mrb[0].mxu0
      %9717 = vmatprep.mubr.bf16.mxu0 0
      %9718 = vmatmul.mubr.bf16.gmra.mrb[0].mxu0 %v9575
      %v9719 = vpop.f32.mrb[0].mxu0
      %v9720 = vadd.f32 0.0, %v9719
      %v9721 = vpop.f32.mrb[0].mxu0
      %v9722 = vpop.f32.mrb[0].mxu0
      %v9723 = vadd.f32 0.0, %v9722
      %v9724 = vpop.f32.mrb[0].mxu0
      %9725 = vmatprep.mubr.bf16.mxu0 0
      %9726 = vmatmul.mubr.bf16.gmra.mrb[0].mxu0 %v9578
      %v9727 = vpop.f32.mrb[0].mxu0
      %v9728 = vadd.f32 0.0, %v9727
      %v9729 = vpop.f32.mrb[0].mxu0
      %v9730 = vpop.f32.mrb[0].mxu0
      %v9731 = vadd.f32 0.0, %v9730
      %v9732 = vpop.f32.mrb[0].mxu0
      %9733 = vmatprep.mubr.bf16.mxu0 0
      %9734 = vmatmul.mubr.bf16.gmra.mrb[0].mxu0 %v9581
      %v9735 = vpop.f32.mrb[0].mxu0
      %v9736 = vadd.f32 0.0, %v9735
      %v9737 = vpop.f32.mrb[0].mxu0
      %v9738 = vpop.f32.mrb[0].mxu0
      %v9739 = vadd.f32 0.0, %v9738
      %v9740 = vpop.f32.mrb[0].mxu0
      %9741 = vmatprep.mubr.bf16.mxu0 0
      %9742 = vmatmul.mubr.bf16.gmra.mrb[0].mxu0 %v9584
      %v9743 = vpop.f32.mrb[0].mxu0
      %v9744 = vadd.f32 0.0, %v9743
      %v9745 = vpop.f32.mrb[0].mxu0
      %v9746 = vpop.f32.mrb[0].mxu0
      %v9747 = vadd.f32 0.0, %v9746
      %v9748 = vpop.f32.mrb[0].mxu0
      %9749 = vmatprep.mubr.bf16.mxu0 0
      %9750 = vmatmul.mubr.bf16.gmra.mrb[0].mxu0 %v9587
      %v9751 = vpop.f32.mrb[0].mxu0
      %v9752 = vadd.f32 0.0, %v9751
      %v9753 = vpop.f32.mrb[0].mxu0
      %v9754 = vpop.f32.mrb[0].mxu0
      %v9755 = vadd.f32 0.0, %v9754
      %v9756 = vpop.f32.mrb[0].mxu0
      %9757 = vmatprep.mubr.bf16.mxu0 0
      %9758 = vmatmul.mubr.bf16.gmra.mrb[0].mxu0 %v9590
      %v9759 = vpop.f32.mrb[0].mxu0
      %v9760 = vadd.f32 0.0, %v9759
      %v9761 = vpop.f32.mrb[0].mxu0
      %v9762 = vpop.f32.mrb[0].mxu0
      %v9763 = vadd.f32 0.0, %v9762
      %v9764 = vpop.f32.mrb[0].mxu0
      %9765 = vmatprep.mubr.bf16.mxu0 0
      %9766 = vmatmul.mubr.bf16.gmra.mrb[0].mxu0 %v9593
      %v9767 = vpop.f32.mrb[0].mxu0
      %v9768 = vadd.f32 0.0, %v9767
      %v9769 = vpop.f32.mrb[0].mxu0
      %v9770 = vpop.f32.mrb[0].mxu0
      %v9771 = vadd.f32 0.0, %v9770
      %v9772 = vpop.f32.mrb[0].mxu0
      %9773 = vmatprep.mubr.bf16.mxu0 0
      %9774 = vmatmul.mubr.bf16.gmra.mrb[0].mxu0 %v9596
      %v9775 = vpop.f32.mrb[0].mxu0
      %v9776 = vadd.f32 0.0, %v9775
      %v9777 = vpop.f32.mrb[0].mxu0
      %v9778 = vpop.f32.mrb[0].mxu0
      %v9779 = vadd.f32 0.0, %v9778
      %v9780 = vpop.f32.mrb[0].mxu0
      %9781 = vmatprep.mubr.bf16.mxu0 0
      %9782 = vmatmul.mubr.bf16.gmra.mrb[0].mxu0 %v9599
      %v9783 = vpop.f32.mrb[0].mxu0
      %v9784 = vadd.f32 0.0, %v9783
      %v9785 = vpop.f32.mrb[0].mxu0
      %v9786 = vpop.f32.mrb[0].mxu0
      %v9787 = vadd.f32 0.0, %v9786
      %v9788 = vpop.f32.mrb[0].mxu0
      %9789 = vmatprep.mubr.bf16.mxu0 0
      %9790 = vmatmul.mubr.bf16.gmra.mrb[0].mxu0 %v9602
      %v9791 = vpop.f32.mrb[0].mxu0
      %v9792 = vadd.f32 0.0, %v9791
      %v9793 = vpop.f32.mrb[0].mxu0
      %v9794 = vpop.f32.mrb[0].mxu0
      %v9795 = vadd.f32 0.0, %v9794
      %v9796 = vpop.f32.mrb[0].mxu0
      %9797 = vmatprep.mubr.bf16.mxu0 0
      %9798 = vmatmul.mubr.bf16.gmra.mrb[0].mxu0 %v9605
      %v9799 = vpop.f32.mrb[0].mxu0
      %v9800 = vadd.f32 0.0, %v9799
      %v9801 = vpop.f32.mrb[0].mxu0
      %v9802 = vpop.f32.mrb[0].mxu0
      %v9803 = vadd.f32 0.0, %v9802
      %v9804 = vpop.f32.mrb[0].mxu0
      %9805 = vmatprep.mubr.bf16.mxu0 0
      %9806 = vmatmul.mubr.bf16.gmra.mrb[0].mxu0 %v9608
      %v9807 = vpop.f32.mrb[0].mxu0
      %v9808 = vadd.f32 0.0, %v9807
      %v9809 = vpop.f32.mrb[0].mxu0
      %v9810 = vpop.f32.mrb[0].mxu0
      %v9811 = vadd.f32 0.0, %v9810
      %v9812 = vpop.f32.mrb[0].mxu0
      %9813 = vmatprep.mubr.bf16.mxu0 0
      %9814 = vmatmul.mubr.bf16.gmra.mrb[0].mxu0 %v9611
      %v9815 = vpop.f32.mrb[0].mxu0
      %v9816 = vadd.f32 0.0, %v9815
      %v9817 = vpop.f32.mrb[0].mxu0
      %v9818 = vpop.f32.mrb[0].mxu0
      %v9819 = vadd.f32 0.0, %v9818
      %v9820 = vpop.f32.mrb[0].mxu0
      %9821 = vmatprep.mubr.bf16.mxu0 0
      %9822 = vmatmul.mubr.bf16.gmra.mrb[0].mxu0 %v9614
      %v9823 = vpop.f32.mrb[0].mxu0
      %v9824 = vadd.f32 0.0, %v9823
      %v9825 = vpop.f32.mrb[0].mxu0
      %v9826 = vpop.f32.mrb[0].mxu0
      %v9827 = vadd.f32 0.0, %v9826
      %v9828 = vpop.f32.mrb[0].mxu0
      %9829 = vmatprep.mubr.bf16.mxu0 0
      %9830 = vmatmul.mubr.bf16.gmra.mrb[0].mxu0 %v9617
      %v9831 = vpop.f32.mrb[0].mxu0
      %v9832 = vadd.f32 0.0, %v9831
      %v9833 = vpop.f32.mrb[0].mxu0
      %v9834 = vpop.f32.mrb[0].mxu0
      %v9835 = vadd.f32 0.0, %v9834
      %v9836 = vpop.f32.mrb[0].mxu0
      %9837 = vmatprep.mubr.bf16.mxu0 0
      %9838 = vmatmul.mubr.bf16.gmra.mrb[0].mxu0 %v9620
      %v9839 = vpop.f32.mrb[0].mxu0
      %v9840 = vadd.f32 0.0, %v9839
      %v9841 = vpop.f32.mrb[0].mxu0
      %v9842 = vpop.f32.mrb[0].mxu0
      %v9843 = vadd.f32 0.0, %v9842
      %v9844 = vpop.f32.mrb[0].mxu0
      %9845 = vmatprep.mubr.bf16.mxu0 0
      %9846 = vmatmul.mubr.bf16.gmra.mrb[0].mxu0 %v9623
      %v9847 = vpop.f32.mrb[0].mxu0
      %v9848 = vadd.f32 0.0, %v9847
      %v9849 = vpop.f32.mrb[0].mxu0
      %v9850 = vpop.f32.mrb[0].mxu0
      %v9851 = vadd.f32 0.0, %v9850
      %v9852 = vpop.f32.mrb[0].mxu0
      %9853 = vmatprep.mubr.bf16.mxu0 0
      %9854 = vmatmul.mubr.bf16.gmra.mrb[0].mxu0 %v9626
      %v9855 = vpop.f32.mrb[0].mxu0
      %v9856 = vadd.f32 0.0, %v9855
      %v9857 = vpop.f32.mrb[0].mxu0
      %v9858 = vpop.f32.mrb[0].mxu0
      %v9859 = vadd.f32 0.0, %v9858
      %v9860 = vpop.f32.mrb[0].mxu0
      %9861 = vmatprep.mubr.bf16.mxu0 0
      %9862 = vmatmul.mubr.bf16.gmra.mrb[0].mxu0 %v9629
      %v9863 = vpop.f32.mrb[0].mxu0
      %v9864 = vadd.f32 0.0, %v9863
      %v9865 = vpop.f32.mrb[0].mxu0
      %v9866 = vpop.f32.mrb[0].mxu0
      %v9867 = vadd.f32 0.0, %v9866
      %v9868 = vpop.f32.mrb[0].mxu0
      %9869 = vmatprep.mubr.bf16.mxu0 0
      %9870 = vmatmul.mubr.bf16.gmra.mrb[0].mxu0 %v9632
      %v9871 = vpop.f32.mrb[0].mxu0
      %v9872 = vadd.f32 0.0, %v9871
      %v9873 = vpop.f32.mrb[0].mxu0
      %v9874 = vpop.f32.mrb[0].mxu0
      %v9875 = vadd.f32 0.0, %v9874
      %v9876 = vpop.f32.mrb[0].mxu0
      %9877 = vmatprep.mubr.bf16.mxu0 0
      %9878 = vmatmul.mubr.bf16.gmra.mrb[0].mxu0 %v9635
      %v9879 = vpop.f32.mrb[0].mxu0
      %v9880 = vadd.f32 0.0, %v9879
      %v9881 = vpop.f32.mrb[0].mxu0
      %v9882 = vpop.f32.mrb[0].mxu0
      %v9883 = vadd.f32 0.0, %v9882
      %v9884 = vpop.f32.mrb[0].mxu0
      %9885 = vmatprep.mubr.bf16.mxu0 0
      %9886 = vmatmul.mubr.bf16.gmra.mrb[0].mxu0 %v9638
      %v9887 = vpop.f32.mrb[0].mxu0
      %v9888 = vadd.f32 0.0, %v9887
      %v9889 = vpop.f32.mrb[0].mxu0
      %v9890 = vpop.f32.mrb[0].mxu0
      %v9891 = vadd.f32 0.0, %v9890
      %v9892 = vpop.f32.mrb[0].mxu0
      %9893 = vmatprep.mubr.bf16.mxu0 0
      %9894 = vmatmul.mubr.bf16.gmra.mrb[0].mxu0 %v9641
      %v9895 = vpop.f32.mrb[0].mxu0
      %v9896 = vadd.f32 0.0, %v9895
      %v9897 = vpop.f32.mrb[0].mxu0
      %v9898 = vpop.f32.mrb[0].mxu0
      %v9899 = vadd.f32 0.0, %v9898
      %v9900 = vpop.f32.mrb[0].mxu0
      %9901 = vmatprep.mubr.bf16.mxu0 0
      %9902 = vmatmul.mubr.bf16.gmra.mrb[0].mxu0 %v9644
      %v9903 = vpop.f32.mrb[0].mxu0
      %v9904 = vadd.f32 0.0, %v9903
      %v9905 = vpop.f32.mrb[0].mxu0
      %v9906 = vpop.f32.mrb[0].mxu0
      %v9907 = vadd.f32 0.0, %v9906
      %v9908 = vpop.f32.mrb[0].mxu0
      %9909 = vmatprep.mubr.bf16.mxu0 0
      %9910 = vmatmul.mubr.bf16.gmra.mrb[0].mxu0 %v9647
      %v9911 = vpop.f32.mrb[0].mxu0
      %v9912 = vadd.f32 0.0, %v9911
      %v9913 = vpop.f32.mrb[0].mxu0
      %v9914 = vpop.f32.mrb[0].mxu0
      %v9915 = vadd.f32 0.0, %v9914
      %v9916 = vpop.f32.mrb[0].mxu0
      %9917 = vmatprep.mubr.bf16.mxu0 0
      %9918 = vmatmul.mubr.bf16.gmra.mrb[0].mxu0 %v9650
      %v9919 = vpop.f32.mrb[0].mxu0
      %v9920 = vadd.f32 0.0, %v9919
      %v9921 = vpop.f32.mrb[0].mxu0
      %v9922 = vpop.f32.mrb[0].mxu0
      %v9923 = vadd.f32 0.0, %v9922
      %v9924 = vpop.f32.mrb[0].mxu0
      %9925 = vmatprep.mubr.bf16.mxu0 0
      %9926 = vmatmul.mubr.bf16.gmra.mrb[0].mxu0 %v9653
      %v9927 = vpop.f32.mrb[0].mxu0
      %v9928 = vadd.f32 0.0, %v9927
      %v9929 = vpop.f32.mrb[0].mxu0
      %v9930 = vpop.f32.mrb[0].mxu0
      %v9931 = vadd.f32 0.0, %v9930
      %v9932 = vpop.f32.mrb[0].mxu0
      %9933 = vmatprep.mubr.bf16.mxu0 0
      %9934 = vmatmul.mubr.bf16.gmra.mrb[0].mxu0 %v9656
      %v9935 = vpop.f32.mrb[0].mxu0
      %v9936 = vadd.f32 0.0, %v9935
      %v9937 = vpop.f32.mrb[0].mxu0
      %v9938 = vpop.f32.mrb[0].mxu0
      %v9939 = vadd.f32 0.0, %v9938
      %v9940 = vpop.f32.mrb[0].mxu0
      %9941 = vmatprep.mubr.bf16.mxu0 0
      %9942 = vmatmul.mubr.bf16.gmra.mrb[0].mxu0 %v9659
      %v9943 = vpop.f32.mrb[0].mxu0
      %v9944 = vadd.f32 0.0, %v9943
      %v9945 = vpop.f32.mrb[0].mxu0
      %v9946 = vpop.f32.mrb[0].mxu0
      %v9947 = vadd.f32 0.0, %v9946
      %v9948 = vpop.f32.mrb[0].mxu0
      %9949 = vdwg.mxu0
      %s9950 = scalar_lea.vmem %s3, 112
      %v9951 = vld [vmem:[%s9950] sm:$0xf]
      %v9952 = vld [vmem:[%s9950 + $0x4] sm:$0xf]
      %v9953 = vld [vmem:[%s9950 + $0x8] sm:$0xf]
      %v9954 = vld [vmem:[%s9950 + $0xc] sm:$0xf]
      %v9959 = vunpack.c.l.b16 %v9951
      %v9960 = vunpack.c.l.b16 %v9952
      %v9961 = vunpack.c.l.b16 %v9953
      %v9962 = vunpack.c.l.b16 %v9954
      %v9963 = vpack.c.b16 %v9960, %v9959
      %v9964 = vpack.c.b16 %v9962, %v9961
      %9967 = vmatprep.subr.bf16.mxu0 0
      %9968 = vmatpush1.bf16.msra.mxu0 %v9963
      %9969 = vmatprep.subr.bf16.mxu0 0
      %9970 = vmatpush1.bf16.msra.mxu0 %v9964
      %9971 = vmatprep.subr.bf16.mxu0 0
      %9972 = vmatpush1.bf16.msra.mxu0 0
      %9973 = vmatprep.subr.bf16.mxu0 0
      %9974 = vmatpush1.bf16.msra.mxu0 0
      %9975 = vmatprep.subr.bf16.mxu0 0
      %9976 = vmatpush1.bf16.msra.mxu0 0
      %9977 = vmatprep.subr.bf16.mxu0 0
      %9978 = vmatpush1.bf16.msra.mxu0 0
      %9979 = vmatprep.subr.bf16.mxu0 0
      %9980 = vmatpush1.bf16.msra.mxu0 0
      %9981 = vmatprep.subr.bf16.mxu0 0
      %9982 = vmatpush1.bf16.msra.mxu0 0
      %9983 = vmatprep.subr.bf16.mxu0 0
      %9984 = vmatpush1.bf16.msra.mxu0 0
      %9985 = vmatprep.subr.bf16.mxu0 0
      %9986 = vmatpush1.bf16.msra.mxu0 0
      %9987 = vmatprep.subr.bf16.mxu0 0
      %9988 = vmatpush1.bf16.msra.mxu0 0
      %9989 = vmatprep.subr.bf16.mxu0 0
      %9990 = vmatpush1.bf16.msra.mxu0 0
      %9991 = vmatprep.subr.bf16.mxu0 0
      %9992 = vmatpush1.bf16.msra.mxu0 0
      %9993 = vmatprep.subr.bf16.mxu0 0
      %9994 = vmatpush1.bf16.msra.mxu0 0
      %9995 = vmatprep.subr.bf16.mxu0 0
      %9996 = vmatpush1.bf16.msra.mxu0 0
      %9997 = vmatprep.subr.bf16.mxu0 0
      %9998 = vmatpush1.bf16.msra.mxu0 0
      %9999 = vmatprep.mubr.bf16.mxu0 0
      %10000 = vmatmul.mubr.bf16.gmra.mrb[0].mxu0 %v9566
      %v10001 = vpop.f32.mrb[0].mxu0
      %v10002 = vadd.f32 0.0, %v10001
      %v10003 = vpop.f32.mrb[0].mxu0
      %v10004 = vpop.f32.mrb[0].mxu0
      %v10005 = vadd.f32 0.0, %v10004
      %v10006 = vpop.f32.mrb[0].mxu0
      %10007 = vmatprep.mubr.bf16.mxu0 0
      %10008 = vmatmul.mubr.bf16.gmra.mrb[0].mxu0 %v9569
      %v10009 = vpop.f32.mrb[0].mxu0
      %v10010 = vadd.f32 0.0, %v10009
      %v10011 = vpop.f32.mrb[0].mxu0
      %v10012 = vpop.f32.mrb[0].mxu0
      %v10013 = vadd.f32 0.0, %v10012
      %v10014 = vpop.f32.mrb[0].mxu0
      %10015 = vmatprep.mubr.bf16.mxu0 0
      %10016 = vmatmul.mubr.bf16.gmra.mrb[0].mxu0 %v9572
      %v10017 = vpop.f32.mrb[0].mxu0
      %v10018 = vadd.f32 0.0, %v10017
      %v10019 = vpop.f32.mrb[0].mxu0
      %v10020 = vpop.f32.mrb[0].mxu0
      %v10021 = vadd.f32 0.0, %v10020
      %v10022 = vpop.f32.mrb[0].mxu0
      %10023 = vmatprep.mubr.bf16.mxu0 0
      %10024 = vmatmul.mubr.bf16.gmra.mrb[0].mxu0 %v9575
      %v10025 = vpop.f32.mrb[0].mxu0
      %v10026 = vadd.f32 0.0, %v10025
      %v10027 = vpop.f32.mrb[0].mxu0
      %v10028 = vpop.f32.mrb[0].mxu0
      %v10029 = vadd.f32 0.0, %v10028
      %v10030 = vpop.f32.mrb[0].mxu0
      %10031 = vmatprep.mubr.bf16.mxu0 0
      %10032 = vmatmul.mubr.bf16.gmra.mrb[0].mxu0 %v9578
      %v10033 = vpop.f32.mrb[0].mxu0
      %v10034 = vadd.f32 0.0, %v10033
      %v10035 = vpop.f32.mrb[0].mxu0
      %v10036 = vpop.f32.mrb[0].mxu0
      %v10037 = vadd.f32 0.0, %v10036
      %v10038 = vpop.f32.mrb[0].mxu0
      %10039 = vmatprep.mubr.bf16.mxu0 0
      %10040 = vmatmul.mubr.bf16.gmra.mrb[0].mxu0 %v9581
      %v10041 = vpop.f32.mrb[0].mxu0
      %v10042 = vadd.f32 0.0, %v10041
      %v10043 = vpop.f32.mrb[0].mxu0
      %v10044 = vpop.f32.mrb[0].mxu0
      %v10045 = vadd.f32 0.0, %v10044
      %v10046 = vpop.f32.mrb[0].mxu0
      %10047 = vmatprep.mubr.bf16.mxu0 0
      %10048 = vmatmul.mubr.bf16.gmra.mrb[0].mxu0 %v9584
      %v10049 = vpop.f32.mrb[0].mxu0
      %v10050 = vadd.f32 0.0, %v10049
      %v10051 = vpop.f32.mrb[0].mxu0
      %v10052 = vpop.f32.mrb[0].mxu0
      %v10053 = vadd.f32 0.0, %v10052
      %v10054 = vpop.f32.mrb[0].mxu0
      %10055 = vmatprep.mubr.bf16.mxu0 0
      %10056 = vmatmul.mubr.bf16.gmra.mrb[0].mxu0 %v9587
      %v10057 = vpop.f32.mrb[0].mxu0
      %v10058 = vadd.f32 0.0, %v10057
      %v10059 = vpop.f32.mrb[0].mxu0
      %v10060 = vpop.f32.mrb[0].mxu0
      %v10061 = vadd.f32 0.0, %v10060
      %v10062 = vpop.f32.mrb[0].mxu0
      %10063 = vmatprep.mubr.bf16.mxu0 0
      %10064 = vmatmul.mubr.bf16.gmra.mrb[0].mxu0 %v9590
      %v10065 = vpop.f32.mrb[0].mxu0
      %v10066 = vadd.f32 0.0, %v10065
      %v10067 = vpop.f32.mrb[0].mxu0
      %v10068 = vpop.f32.mrb[0].mxu0
      %v10069 = vadd.f32 0.0, %v10068
      %v10070 = vpop.f32.mrb[0].mxu0
      %10071 = vmatprep.mubr.bf16.mxu0 0
      %10072 = vmatmul.mubr.bf16.gmra.mrb[0].mxu0 %v9593
      %v10073 = vpop.f32.mrb[0].mxu0
      %v10074 = vadd.f32 0.0, %v10073
      %v10075 = vpop.f32.mrb[0].mxu0
      %v10076 = vpop.f32.mrb[0].mxu0
      %v10077 = vadd.f32 0.0, %v10076
      %v10078 = vpop.f32.mrb[0].mxu0
      %10079 = vmatprep.mubr.bf16.mxu0 0
      %10080 = vmatmul.mubr.bf16.gmra.mrb[0].mxu0 %v9596
      %v10081 = vpop.f32.mrb[0].mxu0
      %v10082 = vadd.f32 0.0, %v10081
      %v10083 = vpop.f32.mrb[0].mxu0
      %v10084 = vpop.f32.mrb[0].mxu0
      %v10085 = vadd.f32 0.0, %v10084
      %v10086 = vpop.f32.mrb[0].mxu0
      %10087 = vmatprep.mubr.bf16.mxu0 0
      %10088 = vmatmul.mubr.bf16.gmra.mrb[0].mxu0 %v9599
      %v10089 = vpop.f32.mrb[0].mxu0
      %v10090 = vadd.f32 0.0, %v10089
      %v10091 = vpop.f32.mrb[0].mxu0
      %v10092 = vpop.f32.mrb[0].mxu0
      %v10093 = vadd.f32 0.0, %v10092
      %v10094 = vpop.f32.mrb[0].mxu0
      %10095 = vmatprep.mubr.bf16.mxu0 0
      %10096 = vmatmul.mubr.bf16.gmra.mrb[0].mxu0 %v9602
      %v10097 = vpop.f32.mrb[0].mxu0
      %v10098 = vadd.f32 0.0, %v10097
      %v10099 = vpop.f32.mrb[0].mxu0
      %v10100 = vpop.f32.mrb[0].mxu0
      %v10101 = vadd.f32 0.0, %v10100
      %v10102 = vpop.f32.mrb[0].mxu0
      %10103 = vmatprep.mubr.bf16.mxu0 0
      %10104 = vmatmul.mubr.bf16.gmra.mrb[0].mxu0 %v9605
      %v10105 = vpop.f32.mrb[0].mxu0
      %v10106 = vadd.f32 0.0, %v10105
      %v10107 = vpop.f32.mrb[0].mxu0
      %v10108 = vpop.f32.mrb[0].mxu0
      %v10109 = vadd.f32 0.0, %v10108
      %v10110 = vpop.f32.mrb[0].mxu0
      %10111 = vmatprep.mubr.bf16.mxu0 0
      %10112 = vmatmul.mubr.bf16.gmra.mrb[0].mxu0 %v9608
      %v10113 = vpop.f32.mrb[0].mxu0
      %v10114 = vadd.f32 0.0, %v10113
      %v10115 = vpop.f32.mrb[0].mxu0
      %v10116 = vpop.f32.mrb[0].mxu0
      %v10117 = vadd.f32 0.0, %v10116
      %v10118 = vpop.f32.mrb[0].mxu0
      %10119 = vmatprep.mubr.bf16.mxu0 0
      %10120 = vmatmul.mubr.bf16.gmra.mrb[0].mxu0 %v9611
      %v10121 = vpop.f32.mrb[0].mxu0
      %v10122 = vadd.f32 0.0, %v10121
      %v10123 = vpop.f32.mrb[0].mxu0
      %v10124 = vpop.f32.mrb[0].mxu0
      %v10125 = vadd.f32 0.0, %v10124
      %v10126 = vpop.f32.mrb[0].mxu0
      %10127 = vmatprep.mubr.bf16.mxu0 0
      %10128 = vmatmul.mubr.bf16.gmra.mrb[0].mxu0 %v9614
      %v10129 = vpop.f32.mrb[0].mxu0
      %v10130 = vadd.f32 0.0, %v10129
      %v10131 = vpop.f32.mrb[0].mxu0
      %v10132 = vpop.f32.mrb[0].mxu0
      %v10133 = vadd.f32 0.0, %v10132
      %v10134 = vpop.f32.mrb[0].mxu0
      %10135 = vmatprep.mubr.bf16.mxu0 0
      %10136 = vmatmul.mubr.bf16.gmra.mrb[0].mxu0 %v9617
      %v10137 = vpop.f32.mrb[0].mxu0
      %v10138 = vadd.f32 0.0, %v10137
      %v10139 = vpop.f32.mrb[0].mxu0
      %v10140 = vpop.f32.mrb[0].mxu0
      %v10141 = vadd.f32 0.0, %v10140
      %v10142 = vpop.f32.mrb[0].mxu0
      %10143 = vmatprep.mubr.bf16.mxu0 0
      %10144 = vmatmul.mubr.bf16.gmra.mrb[0].mxu0 %v9620
      %v10145 = vpop.f32.mrb[0].mxu0
      %v10146 = vadd.f32 0.0, %v10145
      %v10147 = vpop.f32.mrb[0].mxu0
      %v10148 = vpop.f32.mrb[0].mxu0
      %v10149 = vadd.f32 0.0, %v10148
      %v10150 = vpop.f32.mrb[0].mxu0
      %10151 = vmatprep.mubr.bf16.mxu0 0
      %10152 = vmatmul.mubr.bf16.gmra.mrb[0].mxu0 %v9623
      %v10153 = vpop.f32.mrb[0].mxu0
      %v10154 = vadd.f32 0.0, %v10153
      %v10155 = vpop.f32.mrb[0].mxu0
      %v10156 = vpop.f32.mrb[0].mxu0
      %v10157 = vadd.f32 0.0, %v10156
      %v10158 = vpop.f32.mrb[0].mxu0
      %10159 = vmatprep.mubr.bf16.mxu0 0
      %10160 = vmatmul.mubr.bf16.gmra.mrb[0].mxu0 %v9626
      %v10161 = vpop.f32.mrb[0].mxu0
      %v10162 = vadd.f32 0.0, %v10161
      %v10163 = vpop.f32.mrb[0].mxu0
      %v10164 = vpop.f32.mrb[0].mxu0
      %v10165 = vadd.f32 0.0, %v10164
      %v10166 = vpop.f32.mrb[0].mxu0
      %10167 = vmatprep.mubr.bf16.mxu0 0
      %10168 = vmatmul.mubr.bf16.gmra.mrb[0].mxu0 %v9629
      %v10169 = vpop.f32.mrb[0].mxu0
      %v10170 = vadd.f32 0.0, %v10169
      %v10171 = vpop.f32.mrb[0].mxu0
      %v10172 = vpop.f32.mrb[0].mxu0
      %v10173 = vadd.f32 0.0, %v10172
      %v10174 = vpop.f32.mrb[0].mxu0
      %10175 = vmatprep.mubr.bf16.mxu0 0
      %10176 = vmatmul.mubr.bf16.gmra.mrb[0].mxu0 %v9632
      %v10177 = vpop.f32.mrb[0].mxu0
      %v10178 = vadd.f32 0.0, %v10177
      %v10179 = vpop.f32.mrb[0].mxu0
      %v10180 = vpop.f32.mrb[0].mxu0
      %v10181 = vadd.f32 0.0, %v10180
      %v10182 = vpop.f32.mrb[0].mxu0
      %10183 = vmatprep.mubr.bf16.mxu0 0
      %10184 = vmatmul.mubr.bf16.gmra.mrb[0].mxu0 %v9635
      %v10185 = vpop.f32.mrb[0].mxu0
      %v10186 = vadd.f32 0.0, %v10185
      %v10187 = vpop.f32.mrb[0].mxu0
      %v10188 = vpop.f32.mrb[0].mxu0
      %v10189 = vadd.f32 0.0, %v10188
      %v10190 = vpop.f32.mrb[0].mxu0
      %10191 = vmatprep.mubr.bf16.mxu0 0
      %10192 = vmatmul.mubr.bf16.gmra.mrb[0].mxu0 %v9638
      %v10193 = vpop.f32.mrb[0].mxu0
      %v10194 = vadd.f32 0.0, %v10193
      %v10195 = vpop.f32.mrb[0].mxu0
      %v10196 = vpop.f32.mrb[0].mxu0
      %v10197 = vadd.f32 0.0, %v10196
      %v10198 = vpop.f32.mrb[0].mxu0
      %10199 = vmatprep.mubr.bf16.mxu0 0
      %10200 = vmatmul.mubr.bf16.gmra.mrb[0].mxu0 %v9641
      %v10201 = vpop.f32.mrb[0].mxu0
      %v10202 = vadd.f32 0.0, %v10201
      %v10203 = vpop.f32.mrb[0].mxu0
      %v10204 = vpop.f32.mrb[0].mxu0
      %v10205 = vadd.f32 0.0, %v10204
      %v10206 = vpop.f32.mrb[0].mxu0
      %10207 = vmatprep.mubr.bf16.mxu0 0
      %10208 = vmatmul.mubr.bf16.gmra.mrb[0].mxu0 %v9644
      %v10209 = vpop.f32.mrb[0].mxu0
      %v10210 = vadd.f32 0.0, %v10209
      %v10211 = vpop.f32.mrb[0].mxu0
      %v10212 = vpop.f32.mrb[0].mxu0
      %v10213 = vadd.f32 0.0, %v10212
      %v10214 = vpop.f32.mrb[0].mxu0
      %10215 = vmatprep.mubr.bf16.mxu0 0
      %10216 = vmatmul.mubr.bf16.gmra.mrb[0].mxu0 %v9647
      %v10217 = vpop.f32.mrb[0].mxu0
      %v10218 = vadd.f32 0.0, %v10217
      %v10219 = vpop.f32.mrb[0].mxu0
      %v10220 = vpop.f32.mrb[0].mxu0
      %v10221 = vadd.f32 0.0, %v10220
      %v10222 = vpop.f32.mrb[0].mxu0
      %10223 = vmatprep.mubr.bf16.mxu0 0
      %10224 = vmatmul.mubr.bf16.gmra.mrb[0].mxu0 %v9650
      %v10225 = vpop.f32.mrb[0].mxu0
      %v10226 = vadd.f32 0.0, %v10225
      %v10227 = vpop.f32.mrb[0].mxu0
      %v10228 = vpop.f32.mrb[0].mxu0
      %v10229 = vadd.f32 0.0, %v10228
      %v10230 = vpop.f32.mrb[0].mxu0
      %10231 = vmatprep.mubr.bf16.mxu0 0
      %10232 = vmatmul.mubr.bf16.gmra.mrb[0].mxu0 %v9653
      %v10233 = vpop.f32.mrb[0].mxu0
      %v10234 = vadd.f32 0.0, %v10233
      %v10235 = vpop.f32.mrb[0].mxu0
      %v10236 = vpop.f32.mrb[0].mxu0
      %v10237 = vadd.f32 0.0, %v10236
      %v10238 = vpop.f32.mrb[0].mxu0
      %10239 = vmatprep.mubr.bf16.mxu0 0
      %10240 = vmatmul.mubr.bf16.gmra.mrb[0].mxu0 %v9656
      %v10241 = vpop.f32.mrb[0].mxu0
      %v10242 = vadd.f32 0.0, %v10241
      %v10243 = vpop.f32.mrb[0].mxu0
      %v10244 = vpop.f32.mrb[0].mxu0
      %v10245 = vadd.f32 0.0, %v10244
      %v10246 = vpop.f32.mrb[0].mxu0
      %10247 = vmatprep.mubr.bf16.mxu0 0
      %10248 = vmatmul.mubr.bf16.gmra.mrb[0].mxu0 %v9659
      %v10249 = vpop.f32.mrb[0].mxu0
      %v10250 = vadd.f32 0.0, %v10249
      %v10251 = vpop.f32.mrb[0].mxu0
      %v10252 = vpop.f32.mrb[0].mxu0
      %v10253 = vadd.f32 0.0, %v10252
      %v10254 = vpop.f32.mrb[0].mxu0
      %10255 = vdwg.mxu0
      %s10256 = scalar_lea.vmem %s3, 128
      %v10257 = vld [vmem:[%s10256] sm:$0xf]
      %v10258 = vld [vmem:[%s10256 + $0x4] sm:$0xf]
      %v10259 = vld [vmem:[%s10256 + $0x8] sm:$0xf]
      %v10260 = vld [vmem:[%s10256 + $0xc] sm:$0xf]
      %v10265 = vunpack.c.l.b16 %v10257
      %v10266 = vunpack.c.l.b16 %v10258
      %v10267 = vunpack.c.l.b16 %v10259
      %v10268 = vunpack.c.l.b16 %v10260
      %v10269 = vpack.c.b16 %v10266, %v10265
      %v10270 = vpack.c.b16 %v10268, %v10267
      %10273 = vmatprep.subr.bf16.mxu0 0
      %10274 = vmatpush1.bf16.msra.mxu0 %v10269
      %10275 = vmatprep.subr.bf16.mxu0 0
      %10276 = vmatpush1.bf16.msra.mxu0 %v10270
      %10277 = vmatprep.subr.bf16.mxu0 0
      %10278 = vmatpush1.bf16.msra.mxu0 0
      %10279 = vmatprep.subr.bf16.mxu0 0
      %10280 = vmatpush1.bf16.msra.mxu0 0
      %10281 = vmatprep.subr.bf16.mxu0 0
      %10282 = vmatpush1.bf16.msra.mxu0 0
      %10283 = vmatprep.subr.bf16.mxu0 0
      %10284 = vmatpush1.bf16.msra.mxu0 0
      %10285 = vmatprep.subr.bf16.mxu0 0
      %10286 = vmatpush1.bf16.msra.mxu0 0
      %10287 = vmatprep.subr.bf16.mxu0 0
      %10288 = vmatpush1.bf16.msra.mxu0 0
      %10289 = vmatprep.subr.bf16.mxu0 0
      %10290 = vmatpush1.bf16.msra.mxu0 0
      %10291 = vmatprep.subr.bf16.mxu0 0
      %10292 = vmatpush1.bf16.msra.mxu0 0
      %10293 = vmatprep.subr.bf16.mxu0 0
      %10294 = vmatpush1.bf16.msra.mxu0 0
      %10295 = vmatprep.subr.bf16.mxu0 0
      %10296 = vmatpush1.bf16.msra.mxu0 0
      %10297 = vmatprep.subr.bf16.mxu0 0
      %10298 = vmatpush1.bf16.msra.mxu0 0
      %10299 = vmatprep.subr.bf16.mxu0 0
      %10300 = vmatpush1.bf16.msra.mxu0 0
      %10301 = vmatprep.subr.bf16.mxu0 0
      %10302 = vmatpush1.bf16.msra.mxu0 0
      %10303 = vmatprep.subr.bf16.mxu0 0
      %10304 = vmatpush1.bf16.msra.mxu0 0
      %10305 = vmatprep.mubr.bf16.mxu0 0
      %10306 = vmatmul.mubr.bf16.gmra.mrb[0].mxu0 %v9566
      %v10307 = vpop.f32.mrb[0].mxu0
      %v10308 = vadd.f32 0.0, %v10307
      %v10309 = vpop.f32.mrb[0].mxu0
      %v10310 = vpop.f32.mrb[0].mxu0
      %v10311 = vadd.f32 0.0, %v10310
      %v10312 = vpop.f32.mrb[0].mxu0
      %10313 = vmatprep.mubr.bf16.mxu0 0
      %10314 = vmatmul.mubr.bf16.gmra.mrb[0].mxu0 %v9569
      %v10315 = vpop.f32.mrb[0].mxu0
      %v10316 = vadd.f32 0.0, %v10315
      %v10317 = vpop.f32.mrb[0].mxu0
      %v10318 = vpop.f32.mrb[0].mxu0
      %v10319 = vadd.f32 0.0, %v10318
      %v10320 = vpop.f32.mrb[0].mxu0
      %10321 = vmatprep.mubr.bf16.mxu0 0
      %10322 = vmatmul.mubr.bf16.gmra.mrb[0].mxu0 %v9572
      %v10323 = vpop.f32.mrb[0].mxu0
      %v10324 = vadd.f32 0.0, %v10323
      %v10325 = vpop.f32.mrb[0].mxu0
      %v10326 = vpop.f32.mrb[0].mxu0
      %v10327 = vadd.f32 0.0, %v10326
      %v10328 = vpop.f32.mrb[0].mxu0
      %10329 = vmatprep.mubr.bf16.mxu0 0
      %10330 = vmatmul.mubr.bf16.gmra.mrb[0].mxu0 %v9575
      %v10331 = vpop.f32.mrb[0].mxu0
      %v10332 = vadd.f32 0.0, %v10331
      %v10333 = vpop.f32.mrb[0].mxu0
      %v10334 = vpop.f32.mrb[0].mxu0
      %v10335 = vadd.f32 0.0, %v10334
      %v10336 = vpop.f32.mrb[0].mxu0
      %10337 = vmatprep.mubr.bf16.mxu0 0
      %10338 = vmatmul.mubr.bf16.gmra.mrb[0].mxu0 %v9578
      %v10339 = vpop.f32.mrb[0].mxu0
      %v10340 = vadd.f32 0.0, %v10339
      %v10341 = vpop.f32.mrb[0].mxu0
      %v10342 = vpop.f32.mrb[0].mxu0
      %v10343 = vadd.f32 0.0, %v10342
      %v10344 = vpop.f32.mrb[0].mxu0
      %10345 = vmatprep.mubr.bf16.mxu0 0
      %10346 = vmatmul.mubr.bf16.gmra.mrb[0].mxu0 %v9581
      %v10347 = vpop.f32.mrb[0].mxu0
      %v10348 = vadd.f32 0.0, %v10347
      %v10349 = vpop.f32.mrb[0].mxu0
      %v10350 = vpop.f32.mrb[0].mxu0
      %v10351 = vadd.f32 0.0, %v10350
      %v10352 = vpop.f32.mrb[0].mxu0
      %10353 = vmatprep.mubr.bf16.mxu0 0
      %10354 = vmatmul.mubr.bf16.gmra.mrb[0].mxu0 %v9584
      %v10355 = vpop.f32.mrb[0].mxu0
      %v10356 = vadd.f32 0.0, %v10355
      %v10357 = vpop.f32.mrb[0].mxu0
      %v10358 = vpop.f32.mrb[0].mxu0
      %v10359 = vadd.f32 0.0, %v10358
      %v10360 = vpop.f32.mrb[0].mxu0
      %10361 = vmatprep.mubr.bf16.mxu0 0
      %10362 = vmatmul.mubr.bf16.gmra.mrb[0].mxu0 %v9587
      %v10363 = vpop.f32.mrb[0].mxu0
      %v10364 = vadd.f32 0.0, %v10363
      %v10365 = vpop.f32.mrb[0].mxu0
      %v10366 = vpop.f32.mrb[0].mxu0
      %v10367 = vadd.f32 0.0, %v10366
      %v10368 = vpop.f32.mrb[0].mxu0
      %10369 = vmatprep.mubr.bf16.mxu0 0
      %10370 = vmatmul.mubr.bf16.gmra.mrb[0].mxu0 %v9590
      %v10371 = vpop.f32.mrb[0].mxu0
      %v10372 = vadd.f32 0.0, %v10371
      %v10373 = vpop.f32.mrb[0].mxu0
      %v10374 = vpop.f32.mrb[0].mxu0
      %v10375 = vadd.f32 0.0, %v10374
      %v10376 = vpop.f32.mrb[0].mxu0
      %10377 = vmatprep.mubr.bf16.mxu0 0
      %10378 = vmatmul.mubr.bf16.gmra.mrb[0].mxu0 %v9593
      %v10379 = vpop.f32.mrb[0].mxu0
      %v10380 = vadd.f32 0.0, %v10379
      %v10381 = vpop.f32.mrb[0].mxu0
      %v10382 = vpop.f32.mrb[0].mxu0
      %v10383 = vadd.f32 0.0, %v10382
      %v10384 = vpop.f32.mrb[0].mxu0
      %10385 = vmatprep.mubr.bf16.mxu0 0
      %10386 = vmatmul.mubr.bf16.gmra.mrb[0].mxu0 %v9596
      %v10387 = vpop.f32.mrb[0].mxu0
      %v10388 = vadd.f32 0.0, %v10387
      %v10389 = vpop.f32.mrb[0].mxu0
      %v10390 = vpop.f32.mrb[0].mxu0
      %v10391 = vadd.f32 0.0, %v10390
      %v10392 = vpop.f32.mrb[0].mxu0
      %10393 = vmatprep.mubr.bf16.mxu0 0
      %10394 = vmatmul.mubr.bf16.gmra.mrb[0].mxu0 %v9599
      %v10395 = vpop.f32.mrb[0].mxu0
      %v10396 = vadd.f32 0.0, %v10395
      %v10397 = vpop.f32.mrb[0].mxu0
      %v10398 = vpop.f32.mrb[0].mxu0
      %v10399 = vadd.f32 0.0, %v10398
      %v10400 = vpop.f32.mrb[0].mxu0
      %10401 = vmatprep.mubr.bf16.mxu0 0
      %10402 = vmatmul.mubr.bf16.gmra.mrb[0].mxu0 %v9602
      %v10403 = vpop.f32.mrb[0].mxu0
      %v10404 = vadd.f32 0.0, %v10403
      %v10405 = vpop.f32.mrb[0].mxu0
      %v10406 = vpop.f32.mrb[0].mxu0
      %v10407 = vadd.f32 0.0, %v10406
      %v10408 = vpop.f32.mrb[0].mxu0
      %10409 = vmatprep.mubr.bf16.mxu0 0
      %10410 = vmatmul.mubr.bf16.gmra.mrb[0].mxu0 %v9605
      %v10411 = vpop.f32.mrb[0].mxu0
      %v10412 = vadd.f32 0.0, %v10411
      %v10413 = vpop.f32.mrb[0].mxu0
      %v10414 = vpop.f32.mrb[0].mxu0
      %v10415 = vadd.f32 0.0, %v10414
      %v10416 = vpop.f32.mrb[0].mxu0
      %10417 = vmatprep.mubr.bf16.mxu0 0
      %10418 = vmatmul.mubr.bf16.gmra.mrb[0].mxu0 %v9608
      %v10419 = vpop.f32.mrb[0].mxu0
      %v10420 = vadd.f32 0.0, %v10419
      %v10421 = vpop.f32.mrb[0].mxu0
      %v10422 = vpop.f32.mrb[0].mxu0
      %v10423 = vadd.f32 0.0, %v10422
      %v10424 = vpop.f32.mrb[0].mxu0
      %10425 = vmatprep.mubr.bf16.mxu0 0
      %10426 = vmatmul.mubr.bf16.gmra.mrb[0].mxu0 %v9611
      %v10427 = vpop.f32.mrb[0].mxu0
      %v10428 = vadd.f32 0.0, %v10427
      %v10429 = vpop.f32.mrb[0].mxu0
      %v10430 = vpop.f32.mrb[0].mxu0
      %v10431 = vadd.f32 0.0, %v10430
      %v10432 = vpop.f32.mrb[0].mxu0
      %10433 = vmatprep.mubr.bf16.mxu0 0
      %10434 = vmatmul.mubr.bf16.gmra.mrb[0].mxu0 %v9614
      %v10435 = vpop.f32.mrb[0].mxu0
      %v10436 = vadd.f32 0.0, %v10435
      %v10437 = vpop.f32.mrb[0].mxu0
      %v10438 = vpop.f32.mrb[0].mxu0
      %v10439 = vadd.f32 0.0, %v10438
      %v10440 = vpop.f32.mrb[0].mxu0
      %10441 = vmatprep.mubr.bf16.mxu0 0
      %10442 = vmatmul.mubr.bf16.gmra.mrb[0].mxu0 %v9617
      %v10443 = vpop.f32.mrb[0].mxu0
      %v10444 = vadd.f32 0.0, %v10443
      %v10445 = vpop.f32.mrb[0].mxu0
      %v10446 = vpop.f32.mrb[0].mxu0
      %v10447 = vadd.f32 0.0, %v10446
      %v10448 = vpop.f32.mrb[0].mxu0
      %10449 = vmatprep.mubr.bf16.mxu0 0
      %10450 = vmatmul.mubr.bf16.gmra.mrb[0].mxu0 %v9620
      %v10451 = vpop.f32.mrb[0].mxu0
      %v10452 = vadd.f32 0.0, %v10451
      %v10453 = vpop.f32.mrb[0].mxu0
      %v10454 = vpop.f32.mrb[0].mxu0
      %v10455 = vadd.f32 0.0, %v10454
      %v10456 = vpop.f32.mrb[0].mxu0
      %10457 = vmatprep.mubr.bf16.mxu0 0
      %10458 = vmatmul.mubr.bf16.gmra.mrb[0].mxu0 %v9623
      %v10459 = vpop.f32.mrb[0].mxu0
      %v10460 = vadd.f32 0.0, %v10459
      %v10461 = vpop.f32.mrb[0].mxu0
      %v10462 = vpop.f32.mrb[0].mxu0
      %v10463 = vadd.f32 0.0, %v10462
      %v10464 = vpop.f32.mrb[0].mxu0
      %10465 = vmatprep.mubr.bf16.mxu0 0
      %10466 = vmatmul.mubr.bf16.gmra.mrb[0].mxu0 %v9626
      %v10467 = vpop.f32.mrb[0].mxu0
      %v10468 = vadd.f32 0.0, %v10467
      %v10469 = vpop.f32.mrb[0].mxu0
      %v10470 = vpop.f32.mrb[0].mxu0
      %v10471 = vadd.f32 0.0, %v10470
      %v10472 = vpop.f32.mrb[0].mxu0
      %10473 = vmatprep.mubr.bf16.mxu0 0
      %10474 = vmatmul.mubr.bf16.gmra.mrb[0].mxu0 %v9629
      %v10475 = vpop.f32.mrb[0].mxu0
      %v10476 = vadd.f32 0.0, %v10475
      %v10477 = vpop.f32.mrb[0].mxu0
      %v10478 = vpop.f32.mrb[0].mxu0
      %v10479 = vadd.f32 0.0, %v10478
      %v10480 = vpop.f32.mrb[0].mxu0
      %10481 = vmatprep.mubr.bf16.mxu0 0
      %10482 = vmatmul.mubr.bf16.gmra.mrb[0].mxu0 %v9632
      %v10483 = vpop.f32.mrb[0].mxu0
      %v10484 = vadd.f32 0.0, %v10483
      %v10485 = vpop.f32.mrb[0].mxu0
      %v10486 = vpop.f32.mrb[0].mxu0
      %v10487 = vadd.f32 0.0, %v10486
      %v10488 = vpop.f32.mrb[0].mxu0
      %10489 = vmatprep.mubr.bf16.mxu0 0
      %10490 = vmatmul.mubr.bf16.gmra.mrb[0].mxu0 %v9635
      %v10491 = vpop.f32.mrb[0].mxu0
      %v10492 = vadd.f32 0.0, %v10491
      %v10493 = vpop.f32.mrb[0].mxu0
      %v10494 = vpop.f32.mrb[0].mxu0
      %v10495 = vadd.f32 0.0, %v10494
      %v10496 = vpop.f32.mrb[0].mxu0
      %10497 = vmatprep.mubr.bf16.mxu0 0
      %10498 = vmatmul.mubr.bf16.gmra.mrb[0].mxu0 %v9638
      %v10499 = vpop.f32.mrb[0].mxu0
      %v10500 = vadd.f32 0.0, %v10499
      %v10501 = vpop.f32.mrb[0].mxu0
      %v10502 = vpop.f32.mrb[0].mxu0
      %v10503 = vadd.f32 0.0, %v10502
      %v10504 = vpop.f32.mrb[0].mxu0
      %10505 = vmatprep.mubr.bf16.mxu0 0
      %10506 = vmatmul.mubr.bf16.gmra.mrb[0].mxu0 %v9641
      %v10507 = vpop.f32.mrb[0].mxu0
      %v10508 = vadd.f32 0.0, %v10507
      %v10509 = vpop.f32.mrb[0].mxu0
      %v10510 = vpop.f32.mrb[0].mxu0
      %v10511 = vadd.f32 0.0, %v10510
      %v10512 = vpop.f32.mrb[0].mxu0
      %10513 = vmatprep.mubr.bf16.mxu0 0
      %10514 = vmatmul.mubr.bf16.gmra.mrb[0].mxu0 %v9644
      %v10515 = vpop.f32.mrb[0].mxu0
      %v10516 = vadd.f32 0.0, %v10515
      %v10517 = vpop.f32.mrb[0].mxu0
      %v10518 = vpop.f32.mrb[0].mxu0
      %v10519 = vadd.f32 0.0, %v10518
      %v10520 = vpop.f32.mrb[0].mxu0
      %10521 = vmatprep.mubr.bf16.mxu0 0
      %10522 = vmatmul.mubr.bf16.gmra.mrb[0].mxu0 %v9647
      %v10523 = vpop.f32.mrb[0].mxu0
      %v10524 = vadd.f32 0.0, %v10523
      %v10525 = vpop.f32.mrb[0].mxu0
      %v10526 = vpop.f32.mrb[0].mxu0
      %v10527 = vadd.f32 0.0, %v10526
      %v10528 = vpop.f32.mrb[0].mxu0
      %10529 = vmatprep.mubr.bf16.mxu0 0
      %10530 = vmatmul.mubr.bf16.gmra.mrb[0].mxu0 %v9650
      %v10531 = vpop.f32.mrb[0].mxu0
      %v10532 = vadd.f32 0.0, %v10531
      %v10533 = vpop.f32.mrb[0].mxu0
      %v10534 = vpop.f32.mrb[0].mxu0
      %v10535 = vadd.f32 0.0, %v10534
      %v10536 = vpop.f32.mrb[0].mxu0
      %10537 = vmatprep.mubr.bf16.mxu0 0
      %10538 = vmatmul.mubr.bf16.gmra.mrb[0].mxu0 %v9653
      %v10539 = vpop.f32.mrb[0].mxu0
      %v10540 = vadd.f32 0.0, %v10539
      %v10541 = vpop.f32.mrb[0].mxu0
      %v10542 = vpop.f32.mrb[0].mxu0
      %v10543 = vadd.f32 0.0, %v10542
      %v10544 = vpop.f32.mrb[0].mxu0
      %10545 = vmatprep.mubr.bf16.mxu0 0
      %10546 = vmatmul.mubr.bf16.gmra.mrb[0].mxu0 %v9656
      %v10547 = vpop.f32.mrb[0].mxu0
      %v10548 = vadd.f32 0.0, %v10547
      %v10549 = vpop.f32.mrb[0].mxu0
      %v10550 = vpop.f32.mrb[0].mxu0
      %v10551 = vadd.f32 0.0, %v10550
      %v10552 = vpop.f32.mrb[0].mxu0
      %10553 = vmatprep.mubr.bf16.mxu0 0
      %10554 = vmatmul.mubr.bf16.gmra.mrb[0].mxu0 %v9659
      %v10555 = vpop.f32.mrb[0].mxu0
      %v10556 = vadd.f32 0.0, %v10555
      %v10557 = vpop.f32.mrb[0].mxu0
      %v10558 = vpop.f32.mrb[0].mxu0
      %v10559 = vadd.f32 0.0, %v10558
      %v10560 = vpop.f32.mrb[0].mxu0
      %10561 = vdwg.mxu0
      %v10562 = vrot.slane %v9696, 7
      %v10563 = vrot.slane %v9699, 7
      %v10564 = vrot.slane %v9704, 7
      %v10565 = vrot.slane %v9707, 7
      %v10566 = vrot.slane %v9712, 7
      %v10567 = vrot.slane %v9715, 7
      %v10568 = vrot.slane %v9720, 7
      %v10569 = vrot.slane %v9723, 7
      %v10570 = vrot.slane %v9728, 7
      %v10571 = vrot.slane %v9731, 7
      %v10572 = vrot.slane %v9736, 7
      %v10573 = vrot.slane %v9739, 7
      %v10574 = vrot.slane %v9744, 7
      %v10575 = vrot.slane %v9747, 7
      %v10576 = vrot.slane %v9752, 7
      %v10577 = vrot.slane %v9755, 7
      %v10578 = vrot.slane %v9760, 7
      %v10579 = vrot.slane %v9763, 7
      %v10580 = vrot.slane %v9768, 7
      %v10581 = vrot.slane %v9771, 7
      %v10582 = vrot.slane %v9776, 7
      %v10583 = vrot.slane %v9779, 7
      %v10584 = vrot.slane %v9784, 7
      %v10585 = vrot.slane %v9787, 7
      %v10586 = vrot.slane %v9792, 7
      %v10587 = vrot.slane %v9795, 7
      %v10588 = vrot.slane %v9800, 7
      %v10589 = vrot.slane %v9803, 7
      %v10590 = vrot.slane %v9808, 7
      %v10591 = vrot.slane %v9811, 7
      %v10592 = vrot.slane %v9816, 7
      %v10593 = vrot.slane %v9819, 7
      %v10594 = vrot.slane %v9824, 7
      %v10595 = vrot.slane %v9827, 7
      %v10596 = vrot.slane %v9832, 7
      %v10597 = vrot.slane %v9835, 7
      %v10598 = vrot.slane %v9840, 7
      %v10599 = vrot.slane %v9843, 7
      %v10600 = vrot.slane %v9848, 7
      %v10601 = vrot.slane %v9851, 7
      %v10602 = vrot.slane %v9856, 7
      %v10603 = vrot.slane %v9859, 7
      %v10604 = vrot.slane %v9864, 7
      %v10605 = vrot.slane %v9867, 7
      %v10606 = vrot.slane %v9872, 7
      %v10607 = vrot.slane %v9875, 7
      %v10608 = vrot.slane %v9880, 7
      %v10609 = vrot.slane %v9883, 7
      %v10610 = vrot.slane %v9888, 7
      %v10611 = vrot.slane %v9891, 7
      %v10612 = vrot.slane %v9896, 7
      %v10613 = vrot.slane %v9899, 7
      %v10614 = vrot.slane %v9904, 7
      %v10615 = vrot.slane %v9907, 7
      %v10616 = vrot.slane %v9912, 7
      %v10617 = vrot.slane %v9915, 7
      %v10618 = vrot.slane %v9920, 7
      %v10619 = vrot.slane %v9923, 7
      %v10620 = vrot.slane %v9928, 7
      %v10621 = vrot.slane %v9931, 7
      %v10622 = vrot.slane %v9936, 7
      %v10623 = vrot.slane %v9939, 7
      %v10624 = vrot.slane %v9944, 7
      %v10625 = vrot.slane %v9947, 7
      %v10626 = vsel %vm1552, %v10624, %v10625
      %v10627 = vsel %vm1552, %v10623, %v10624
      %v10628 = vsel %vm1552, %v10622, %v10623
      %v10629 = vsel %vm1552, %v10621, %v10622
      %v10630 = vsel %vm1552, %v10620, %v10621
      %v10631 = vsel %vm1552, %v10619, %v10620
      %v10632 = vsel %vm1552, %v10618, %v10619
      %v10633 = vsel %vm1552, %v10617, %v10618
      %v10634 = vsel %vm1552, %v10616, %v10617
      %v10635 = vsel %vm1552, %v10615, %v10616
      %v10636 = vsel %vm1552, %v10614, %v10615
      %v10637 = vsel %vm1552, %v10613, %v10614
      %v10638 = vsel %vm1552, %v10612, %v10613
      %v10639 = vsel %vm1552, %v10611, %v10612
      %v10640 = vsel %vm1552, %v10610, %v10611
      %v10641 = vsel %vm1552, %v10609, %v10610
      %v10642 = vsel %vm1552, %v10608, %v10609
      %v10643 = vsel %vm1552, %v10607, %v10608
      %v10644 = vsel %vm1552, %v10606, %v10607
      %v10645 = vsel %vm1552, %v10605, %v10606
      %v10646 = vsel %vm1552, %v10604, %v10605
      %v10647 = vsel %vm1552, %v10603, %v10604
      %v10648 = vsel %vm1552, %v10602, %v10603
      %v10649 = vsel %vm1552, %v10601, %v10602
      %v10650 = vsel %vm1552, %v10600, %v10601
      %v10651 = vsel %vm1552, %v10599, %v10600
      %v10652 = vsel %vm1552, %v10598, %v10599
      %v10653 = vsel %vm1552, %v10597, %v10598
      %v10654 = vsel %vm1552, %v10596, %v10597
      %v10655 = vsel %vm1552, %v10595, %v10596
      %v10656 = vsel %vm1552, %v10594, %v10595
      %v10657 = vsel %vm1552, %v10593, %v10594
      %v10658 = vsel %vm1552, %v10592, %v10593
      %v10659 = vsel %vm1552, %v10591, %v10592
      %v10660 = vsel %vm1552, %v10590, %v10591
      %v10661 = vsel %vm1552, %v10589, %v10590
      %v10662 = vsel %vm1552, %v10588, %v10589
      %v10663 = vsel %vm1552, %v10587, %v10588
      %v10664 = vsel %vm1552, %v10586, %v10587
      %v10665 = vsel %vm1552, %v10585, %v10586
      %v10666 = vsel %vm1552, %v10584, %v10585
      %v10667 = vsel %vm1552, %v10583, %v10584
      %v10668 = vsel %vm1552, %v10582, %v10583
      %v10669 = vsel %vm1552, %v10581, %v10582
      %v10670 = vsel %vm1552, %v10580, %v10581
      %v10671 = vsel %vm1552, %v10579, %v10580
      %v10672 = vsel %vm1552, %v10578, %v10579
      %v10673 = vsel %vm1552, %v10577, %v10578
      %v10674 = vsel %vm1552, %v10576, %v10577
      %v10675 = vsel %vm1552, %v10575, %v10576
      %v10676 = vsel %vm1552, %v10574, %v10575
      %v10677 = vsel %vm1552, %v10573, %v10574
      %v10678 = vsel %vm1552, %v10572, %v10573
      %v10679 = vsel %vm1552, %v10571, %v10572
      %v10680 = vsel %vm1552, %v10570, %v10571
      %v10681 = vsel %vm1552, %v10569, %v10570
      %v10682 = vsel %vm1552, %v10568, %v10569
      %v10683 = vsel %vm1552, %v10567, %v10568
      %v10684 = vsel %vm1552, %v10566, %v10567
      %v10685 = vsel %vm1552, %v10565, %v10566
      %v10686 = vsel %vm1552, %v10564, %v10565
      %v10687 = vsel %vm1552, %v10563, %v10564
      %v10688 = vsel %vm1552, %v10562, %v10563
      %v10689 = vsel %vm1552, %v10625, %v10562
      %v10690 = vadd.f32 %v9452, %v10689
      %v10691 = vadd.f32 %v9453, %v10688
      %v10692 = vadd.f32 %v9454, %v10687
      %v10693 = vadd.f32 %v9455, %v10686
      %v10694 = vadd.f32 %v9456, %v10685
      %v10695 = vadd.f32 %v9457, %v10684
      %v10696 = vadd.f32 %v9458, %v10683
      %v10697 = vadd.f32 %v9459, %v10682
      %v10698 = vadd.f32 %v9460, %v10681
      %v10699 = vadd.f32 %v9461, %v10680
      %v10700 = vadd.f32 %v9462, %v10679
      %v10701 = vadd.f32 %v9463, %v10678
      %v10702 = vadd.f32 %v9464, %v10677
      %v10703 = vadd.f32 %v9465, %v10676
      %v10704 = vadd.f32 %v9466, %v10675
      %v10705 = vadd.f32 %v9467, %v10674
      %v10706 = vadd.f32 %v9468, %v10673
      %v10707 = vadd.f32 %v9469, %v10672
      %v10708 = vadd.f32 %v9470, %v10671
      %v10709 = vadd.f32 %v9471, %v10670
      %v10710 = vadd.f32 %v9472, %v10669
      %v10711 = vadd.f32 %v9473, %v10668
      %v10712 = vadd.f32 %v9474, %v10667
      %v10713 = vadd.f32 %v9475, %v10666
      %v10714 = vadd.f32 %v9476, %v10665
      %v10715 = vadd.f32 %v9477, %v10664
      %v10716 = vadd.f32 %v9478, %v10663
      %v10717 = vadd.f32 %v9479, %v10662
      %v10718 = vadd.f32 %v9480, %v10661
      %v10719 = vadd.f32 %v9481, %v10660
      %v10720 = vadd.f32 %v9482, %v10659
      %v10721 = vadd.f32 %v9483, %v10658
      %v10722 = vadd.f32 %v9484, %v10657
      %v10723 = vadd.f32 %v9485, %v10656
      %v10724 = vadd.f32 %v9486, %v10655
      %v10725 = vadd.f32 %v9487, %v10654
      %v10726 = vadd.f32 %v9488, %v10653
      %v10727 = vadd.f32 %v9489, %v10652
      %v10728 = vadd.f32 %v9490, %v10651
      %v10729 = vadd.f32 %v9491, %v10650
      %v10730 = vadd.f32 %v9492, %v10649
      %v10731 = vadd.f32 %v9493, %v10648
      %v10732 = vadd.f32 %v9494, %v10647
      %v10733 = vadd.f32 %v9495, %v10646
      %v10734 = vadd.f32 %v9496, %v10645
      %v10735 = vadd.f32 %v9497, %v10644
      %v10736 = vadd.f32 %v9498, %v10643
      %v10737 = vadd.f32 %v9499, %v10642
      %v10738 = vadd.f32 %v9500, %v10641
      %v10739 = vadd.f32 %v9501, %v10640
      %v10740 = vadd.f32 %v9502, %v10639
      %v10741 = vadd.f32 %v9503, %v10638
      %v10742 = vadd.f32 %v9504, %v10637
      %v10743 = vadd.f32 %v9505, %v10636
      %v10744 = vadd.f32 %v9506, %v10635
      %v10745 = vadd.f32 %v9507, %v10634
      %v10746 = vadd.f32 %v9508, %v10633
      %v10747 = vadd.f32 %v9509, %v10632
      %v10748 = vadd.f32 %v9510, %v10631
      %v10749 = vadd.f32 %v9511, %v10630
      %v10750 = vadd.f32 %v9512, %v10629
      %v10751 = vadd.f32 %v9513, %v10628
      %v10752 = vadd.f32 %v9514, %v10627
      %v10753 = vadd.f32 %v9515, %v10626
      %v10754 = vadd.f32 %v10690, %v10002
      %v10755 = vadd.f32 %v10691, %v10005
      %v10756 = vadd.f32 %v10692, %v10010
      %v10757 = vadd.f32 %v10693, %v10013
      %v10758 = vadd.f32 %v10694, %v10018
      %v10759 = vadd.f32 %v10695, %v10021
      %v10760 = vadd.f32 %v10696, %v10026
      %v10761 = vadd.f32 %v10697, %v10029
      %v10762 = vadd.f32 %v10698, %v10034
      %v10763 = vadd.f32 %v10699, %v10037
      %v10764 = vadd.f32 %v10700, %v10042
      %v10765 = vadd.f32 %v10701, %v10045
      %v10766 = vadd.f32 %v10702, %v10050
      %v10767 = vadd.f32 %v10703, %v10053
      %v10768 = vadd.f32 %v10704, %v10058
      %v10769 = vadd.f32 %v10705, %v10061
      %v10770 = vadd.f32 %v10706, %v10066
      %v10771 = vadd.f32 %v10707, %v10069
      %v10772 = vadd.f32 %v10708, %v10074
      %v10773 = vadd.f32 %v10709, %v10077
      %v10774 = vadd.f32 %v10710, %v10082
      %v10775 = vadd.f32 %v10711, %v10085
      %v10776 = vadd.f32 %v10712, %v10090
      %v10777 = vadd.f32 %v10713, %v10093
      %v10778 = vadd.f32 %v10714, %v10098
      %v10779 = vadd.f32 %v10715, %v10101
      %v10780 = vadd.f32 %v10716, %v10106
      %v10781 = vadd.f32 %v10717, %v10109
      %v10782 = vadd.f32 %v10718, %v10114
      %v10783 = vadd.f32 %v10719, %v10117
      %v10784 = vadd.f32 %v10720, %v10122
      %v10785 = vadd.f32 %v10721, %v10125
      %v10786 = vadd.f32 %v10722, %v10130
      %v10787 = vadd.f32 %v10723, %v10133
      %v10788 = vadd.f32 %v10724, %v10138
      %v10789 = vadd.f32 %v10725, %v10141
      %v10790 = vadd.f32 %v10726, %v10146
      %v10791 = vadd.f32 %v10727, %v10149
      %v10792 = vadd.f32 %v10728, %v10154
      %v10793 = vadd.f32 %v10729, %v10157
      %v10794 = vadd.f32 %v10730, %v10162
      %v10795 = vadd.f32 %v10731, %v10165
      %v10796 = vadd.f32 %v10732, %v10170
      %v10797 = vadd.f32 %v10733, %v10173
      %v10798 = vadd.f32 %v10734, %v10178
      %v10799 = vadd.f32 %v10735, %v10181
      %v10800 = vadd.f32 %v10736, %v10186
      %v10801 = vadd.f32 %v10737, %v10189
      %v10802 = vadd.f32 %v10738, %v10194
      %v10803 = vadd.f32 %v10739, %v10197
      %v10804 = vadd.f32 %v10740, %v10202
      %v10805 = vadd.f32 %v10741, %v10205
      %v10806 = vadd.f32 %v10742, %v10210
      %v10807 = vadd.f32 %v10743, %v10213
      %v10808 = vadd.f32 %v10744, %v10218
      %v10809 = vadd.f32 %v10745, %v10221
      %v10810 = vadd.f32 %v10746, %v10226
      %v10811 = vadd.f32 %v10747, %v10229
      %v10812 = vadd.f32 %v10748, %v10234
      %v10813 = vadd.f32 %v10749, %v10237
      %v10814 = vadd.f32 %v10750, %v10242
      %v10815 = vadd.f32 %v10751, %v10245
      %v10816 = vadd.f32 %v10752, %v10250
      %v10817 = vadd.f32 %v10753, %v10253
      %v10818 = vrot.slane %v10308, 1
      %v10819 = vrot.slane %v10311, 1
      %v10820 = vrot.slane %v10316, 1
      %v10821 = vrot.slane %v10319, 1
      %v10822 = vrot.slane %v10324, 1
      %v10823 = vrot.slane %v10327, 1
      %v10824 = vrot.slane %v10332, 1
      %v10825 = vrot.slane %v10335, 1
      %v10826 = vrot.slane %v10340, 1
      %v10827 = vrot.slane %v10343, 1
      %v10828 = vrot.slane %v10348, 1
      %v10829 = vrot.slane %v10351, 1
      %v10830 = vrot.slane %v10356, 1
      %v10831 = vrot.slane %v10359, 1
      %v10832 = vrot.slane %v10364, 1
      %v10833 = vrot.slane %v10367, 1
      %v10834 = vrot.slane %v10372, 1
      %v10835 = vrot.slane %v10375, 1
      %v10836 = vrot.slane %v10380, 1
      %v10837 = vrot.slane %v10383, 1
      %v10838 = vrot.slane %v10388, 1
      %v10839 = vrot.slane %v10391, 1
      %v10840 = vrot.slane %v10396, 1
      %v10841 = vrot.slane %v10399, 1
      %v10842 = vrot.slane %v10404, 1
      %v10843 = vrot.slane %v10407, 1
      %v10844 = vrot.slane %v10412, 1
      %v10845 = vrot.slane %v10415, 1
      %v10846 = vrot.slane %v10420, 1
      %v10847 = vrot.slane %v10423, 1
      %v10848 = vrot.slane %v10428, 1
      %v10849 = vrot.slane %v10431, 1
      %v10850 = vrot.slane %v10436, 1
      %v10851 = vrot.slane %v10439, 1
      %v10852 = vrot.slane %v10444, 1
      %v10853 = vrot.slane %v10447, 1
      %v10854 = vrot.slane %v10452, 1
      %v10855 = vrot.slane %v10455, 1
      %v10856 = vrot.slane %v10460, 1
      %v10857 = vrot.slane %v10463, 1
      %v10858 = vrot.slane %v10468, 1
      %v10859 = vrot.slane %v10471, 1
      %v10860 = vrot.slane %v10476, 1
      %v10861 = vrot.slane %v10479, 1
      %v10862 = vrot.slane %v10484, 1
      %v10863 = vrot.slane %v10487, 1
      %v10864 = vrot.slane %v10492, 1
      %v10865 = vrot.slane %v10495, 1
      %v10866 = vrot.slane %v10500, 1
      %v10867 = vrot.slane %v10503, 1
      %v10868 = vrot.slane %v10508, 1
      %v10869 = vrot.slane %v10511, 1
      %v10870 = vrot.slane %v10516, 1
      %v10871 = vrot.slane %v10519, 1
      %v10872 = vrot.slane %v10524, 1
      %v10873 = vrot.slane %v10527, 1
      %v10874 = vrot.slane %v10532, 1
      %v10875 = vrot.slane %v10535, 1
      %v10876 = vrot.slane %v10540, 1
      %v10877 = vrot.slane %v10543, 1
      %v10878 = vrot.slane %v10548, 1
      %v10879 = vrot.slane %v10551, 1
      %v10880 = vrot.slane %v10556, 1
      %v10881 = vrot.slane %v10559, 1
      %v10882 = vsel %vm1809, %v10880, %v10881
      %v10883 = vsel %vm1809, %v10879, %v10880
      %v10884 = vsel %vm1809, %v10878, %v10879
      %v10885 = vsel %vm1809, %v10877, %v10878
      %v10886 = vsel %vm1809, %v10876, %v10877
      %v10887 = vsel %vm1809, %v10875, %v10876
      %v10888 = vsel %vm1809, %v10874, %v10875
      %v10889 = vsel %vm1809, %v10873, %v10874
      %v10890 = vsel %vm1809, %v10872, %v10873
      %v10891 = vsel %vm1809, %v10871, %v10872
      %v10892 = vsel %vm1809, %v10870, %v10871
      %v10893 = vsel %vm1809, %v10869, %v10870
      %v10894 = vsel %vm1809, %v10868, %v10869
      %v10895 = vsel %vm1809, %v10867, %v10868
      %v10896 = vsel %vm1809, %v10866, %v10867
      %v10897 = vsel %vm1809, %v10865, %v10866
      %v10898 = vsel %vm1809, %v10864, %v10865
      %v10899 = vsel %vm1809, %v10863, %v10864
      %v10900 = vsel %vm1809, %v10862, %v10863
      %v10901 = vsel %vm1809, %v10861, %v10862
      %v10902 = vsel %vm1809, %v10860, %v10861
      %v10903 = vsel %vm1809, %v10859, %v10860
      %v10904 = vsel %vm1809, %v10858, %v10859
      %v10905 = vsel %vm1809, %v10857, %v10858
      %v10906 = vsel %vm1809, %v10856, %v10857
      %v10907 = vsel %vm1809, %v10855, %v10856
      %v10908 = vsel %vm1809, %v10854, %v10855
      %v10909 = vsel %vm1809, %v10853, %v10854
      %v10910 = vsel %vm1809, %v10852, %v10853
      %v10911 = vsel %vm1809, %v10851, %v10852
      %v10912 = vsel %vm1809, %v10850, %v10851
      %v10913 = vsel %vm1809, %v10849, %v10850
      %v10914 = vsel %vm1809, %v10848, %v10849
      %v10915 = vsel %vm1809, %v10847, %v10848
      %v10916 = vsel %vm1809, %v10846, %v10847
      %v10917 = vsel %vm1809, %v10845, %v10846
      %v10918 = vsel %vm1809, %v10844, %v10845
      %v10919 = vsel %vm1809, %v10843, %v10844
      %v10920 = vsel %vm1809, %v10842, %v10843
      %v10921 = vsel %vm1809, %v10841, %v10842
      %v10922 = vsel %vm1809, %v10840, %v10841
      %v10923 = vsel %vm1809, %v10839, %v10840
      %v10924 = vsel %vm1809, %v10838, %v10839
      %v10925 = vsel %vm1809, %v10837, %v10838
      %v10926 = vsel %vm1809, %v10836, %v10837
      %v10927 = vsel %vm1809, %v10835, %v10836
      %v10928 = vsel %vm1809, %v10834, %v10835
      %v10929 = vsel %vm1809, %v10833, %v10834
      %v10930 = vsel %vm1809, %v10832, %v10833
      %v10931 = vsel %vm1809, %v10831, %v10832
      %v10932 = vsel %vm1809, %v10830, %v10831
      %v10933 = vsel %vm1809, %v10829, %v10830
      %v10934 = vsel %vm1809, %v10828, %v10829
      %v10935 = vsel %vm1809, %v10827, %v10828
      %v10936 = vsel %vm1809, %v10826, %v10827
      %v10937 = vsel %vm1809, %v10825, %v10826
      %v10938 = vsel %vm1809, %v10824, %v10825
      %v10939 = vsel %vm1809, %v10823, %v10824
      %v10940 = vsel %vm1809, %v10822, %v10823
      %v10941 = vsel %vm1809, %v10821, %v10822
      %v10942 = vsel %vm1809, %v10820, %v10821
      %v10943 = vsel %vm1809, %v10819, %v10820
      %v10944 = vsel %vm1809, %v10818, %v10819
      %v10945 = vsel %vm1809, %v10881, %v10818
      %v10946 = vadd.f32 %v10754, %v10944
      %v10947 = vadd.f32 %v10755, %v10943
      %v10948 = vadd.f32 %v10756, %v10942
      %v10949 = vadd.f32 %v10757, %v10941
      %v10950 = vadd.f32 %v10758, %v10940
      %v10951 = vadd.f32 %v10759, %v10939
      %v10952 = vadd.f32 %v10760, %v10938
      %v10953 = vadd.f32 %v10761, %v10937
      %v10954 = vadd.f32 %v10762, %v10936
      %v10955 = vadd.f32 %v10763, %v10935
      %v10956 = vadd.f32 %v10764, %v10934
      %v10957 = vadd.f32 %v10765, %v10933
      %v10958 = vadd.f32 %v10766, %v10932
      %v10959 = vadd.f32 %v10767, %v10931
      %v10960 = vadd.f32 %v10768, %v10930
      %v10961 = vadd.f32 %v10769, %v10929
      %v10962 = vadd.f32 %v10770, %v10928
      %v10963 = vadd.f32 %v10771, %v10927
      %v10964 = vadd.f32 %v10772, %v10926
      %v10965 = vadd.f32 %v10773, %v10925
      %v10966 = vadd.f32 %v10774, %v10924
      %v10967 = vadd.f32 %v10775, %v10923
      %v10968 = vadd.f32 %v10776, %v10922
      %v10969 = vadd.f32 %v10777, %v10921
      %v10970 = vadd.f32 %v10778, %v10920
      %v10971 = vadd.f32 %v10779, %v10919
      %v10972 = vadd.f32 %v10780, %v10918
      %v10973 = vadd.f32 %v10781, %v10917
      %v10974 = vadd.f32 %v10782, %v10916
      %v10975 = vadd.f32 %v10783, %v10915
      %v10976 = vadd.f32 %v10784, %v10914
      %v10977 = vadd.f32 %v10785, %v10913
      %v10978 = vadd.f32 %v10786, %v10912
      %v10979 = vadd.f32 %v10787, %v10911
      %v10980 = vadd.f32 %v10788, %v10910
      %v10981 = vadd.f32 %v10789, %v10909
      %v10982 = vadd.f32 %v10790, %v10908
      %v10983 = vadd.f32 %v10791, %v10907
      %v10984 = vadd.f32 %v10792, %v10906
      %v10985 = vadd.f32 %v10793, %v10905
      %v10986 = vadd.f32 %v10794, %v10904
      %v10987 = vadd.f32 %v10795, %v10903
      %v10988 = vadd.f32 %v10796, %v10902
      %v10989 = vadd.f32 %v10797, %v10901
      %v10990 = vadd.f32 %v10798, %v10900
      %v10991 = vadd.f32 %v10799, %v10899
      %v10992 = vadd.f32 %v10800, %v10898
      %v10993 = vadd.f32 %v10801, %v10897
      %v10994 = vadd.f32 %v10802, %v10896
      %v10995 = vadd.f32 %v10803, %v10895
      %v10996 = vadd.f32 %v10804, %v10894
      %v10997 = vadd.f32 %v10805, %v10893
      %v10998 = vadd.f32 %v10806, %v10892
      %v10999 = vadd.f32 %v10807, %v10891
      %v11000 = vadd.f32 %v10808, %v10890
      %v11001 = vadd.f32 %v10809, %v10889
      %v11002 = vadd.f32 %v10810, %v10888
      %v11003 = vadd.f32 %v10811, %v10887
      %v11004 = vadd.f32 %v10812, %v10886
      %v11005 = vadd.f32 %v10813, %v10885
      %v11006 = vadd.f32 %v10814, %v10884
      %v11007 = vadd.f32 %v10815, %v10883
      %v11008 = vadd.f32 %v10816, %v10882
      %v11009 = vadd.f32 %v10817, %v10945
      %v11010 = vld [vmem:[%s4] sm:$0x1]
      %v11012 = vlaneseq
      %v11013 = vshrl.u32 %v11012, 7
      %v11014 = vsub.s32 0, %v11013
      %v11015 = vrot.slane %v11010, %v11014
      %v11017 = vadd.f32 %v10946, %v11015
      %v11018 = vadd.f32 %v10947, %v11015
      %v11019 = vadd.f32 %v10948, %v11015
      %v11020 = vadd.f32 %v10949, %v11015
      %v11021 = vadd.f32 %v10950, %v11015
      %v11022 = vadd.f32 %v10951, %v11015
      %v11023 = vadd.f32 %v10952, %v11015
      %v11024 = vadd.f32 %v10953, %v11015
      %v11025 = vadd.f32 %v10954, %v11015
      %v11026 = vadd.f32 %v10955, %v11015
      %v11027 = vadd.f32 %v10956, %v11015
      %v11028 = vadd.f32 %v10957, %v11015
      %v11029 = vadd.f32 %v10958, %v11015
      %v11030 = vadd.f32 %v10959, %v11015
      %v11031 = vadd.f32 %v10960, %v11015
      %v11032 = vadd.f32 %v10961, %v11015
      %v11033 = vadd.f32 %v10962, %v11015
      %v11034 = vadd.f32 %v10963, %v11015
      %v11035 = vadd.f32 %v10964, %v11015
      %v11036 = vadd.f32 %v10965, %v11015
      %v11037 = vadd.f32 %v10966, %v11015
      %v11038 = vadd.f32 %v10967, %v11015
      %v11039 = vadd.f32 %v10968, %v11015
      %v11040 = vadd.f32 %v10969, %v11015
      %v11041 = vadd.f32 %v10970, %v11015
      %v11042 = vadd.f32 %v10971, %v11015
      %v11043 = vadd.f32 %v10972, %v11015
      %v11044 = vadd.f32 %v10973, %v11015
      %v11045 = vadd.f32 %v10974, %v11015
      %v11046 = vadd.f32 %v10975, %v11015
      %v11047 = vadd.f32 %v10976, %v11015
      %v11048 = vadd.f32 %v10977, %v11015
      %v11049 = vadd.f32 %v10978, %v11015
      %v11050 = vadd.f32 %v10979, %v11015
      %v11051 = vadd.f32 %v10980, %v11015
      %v11052 = vadd.f32 %v10981, %v11015
      %v11053 = vadd.f32 %v10982, %v11015
      %v11054 = vadd.f32 %v10983, %v11015
      %v11055 = vadd.f32 %v10984, %v11015
      %v11056 = vadd.f32 %v10985, %v11015
      %v11057 = vadd.f32 %v10986, %v11015
      %v11058 = vadd.f32 %v10987, %v11015
      %v11059 = vadd.f32 %v10988, %v11015
      %v11060 = vadd.f32 %v10989, %v11015
      %v11061 = vadd.f32 %v10990, %v11015
      %v11062 = vadd.f32 %v10991, %v11015
      %v11063 = vadd.f32 %v10992, %v11015
      %v11064 = vadd.f32 %v10993, %v11015
      %v11065 = vadd.f32 %v10994, %v11015
      %v11066 = vadd.f32 %v10995, %v11015
      %v11067 = vadd.f32 %v10996, %v11015
      %v11068 = vadd.f32 %v10997, %v11015
      %v11069 = vadd.f32 %v10998, %v11015
      %v11070 = vadd.f32 %v10999, %v11015
      %v11071 = vadd.f32 %v11000, %v11015
      %v11072 = vadd.f32 %v11001, %v11015
      %v11073 = vadd.f32 %v11002, %v11015
      %v11074 = vadd.f32 %v11003, %v11015
      %v11075 = vadd.f32 %v11004, %v11015
      %v11076 = vadd.f32 %v11005, %v11015
      %v11077 = vadd.f32 %v11006, %v11015
      %v11078 = vadd.f32 %v11007, %v11015
      %v11079 = vadd.f32 %v11008, %v11015
      %v11080 = vadd.f32 %v11009, %v11015
      %v11081 = vmax.f32 %v11017, 0.0
      %v11082 = vmax.f32 %v11018, 0.0
      %v11083 = vmax.f32 %v11019, 0.0
      %v11084 = vmax.f32 %v11020, 0.0
      %v11085 = vmax.f32 %v11021, 0.0
      %v11086 = vmax.f32 %v11022, 0.0
      %v11087 = vmax.f32 %v11023, 0.0
      %v11088 = vmax.f32 %v11024, 0.0
      %v11089 = vmax.f32 %v11025, 0.0
      %v11090 = vmax.f32 %v11026, 0.0
      %v11091 = vmax.f32 %v11027, 0.0
      %v11092 = vmax.f32 %v11028, 0.0
      %v11093 = vmax.f32 %v11029, 0.0
      %v11094 = vmax.f32 %v11030, 0.0
      %v11095 = vmax.f32 %v11031, 0.0
      %v11096 = vmax.f32 %v11032, 0.0
      %v11097 = vmax.f32 %v11033, 0.0
      %v11098 = vmax.f32 %v11034, 0.0
      %v11099 = vmax.f32 %v11035, 0.0
      %v11100 = vmax.f32 %v11036, 0.0
      %v11101 = vmax.f32 %v11037, 0.0
      %v11102 = vmax.f32 %v11038, 0.0
      %v11103 = vmax.f32 %v11039, 0.0
      %v11104 = vmax.f32 %v11040, 0.0
      %v11105 = vmax.f32 %v11041, 0.0
      %v11106 = vmax.f32 %v11042, 0.0
      %v11107 = vmax.f32 %v11043, 0.0
      %v11108 = vmax.f32 %v11044, 0.0
      %v11109 = vmax.f32 %v11045, 0.0
      %v11110 = vmax.f32 %v11046, 0.0
      %v11111 = vmax.f32 %v11047, 0.0
      %v11112 = vmax.f32 %v11048, 0.0
      %v11113 = vmax.f32 %v11049, 0.0
      %v11114 = vmax.f32 %v11050, 0.0
      %v11115 = vmax.f32 %v11051, 0.0
      %v11116 = vmax.f32 %v11052, 0.0
      %v11117 = vmax.f32 %v11053, 0.0
      %v11118 = vmax.f32 %v11054, 0.0
      %v11119 = vmax.f32 %v11055, 0.0
      %v11120 = vmax.f32 %v11056, 0.0
      %v11121 = vmax.f32 %v11057, 0.0
      %v11122 = vmax.f32 %v11058, 0.0
      %v11123 = vmax.f32 %v11059, 0.0
      %v11124 = vmax.f32 %v11060, 0.0
      %v11125 = vmax.f32 %v11061, 0.0
      %v11126 = vmax.f32 %v11062, 0.0
      %v11127 = vmax.f32 %v11063, 0.0
      %v11128 = vmax.f32 %v11064, 0.0
      %v11129 = vmax.f32 %v11065, 0.0
      %v11130 = vmax.f32 %v11066, 0.0
      %v11131 = vmax.f32 %v11067, 0.0
      %v11132 = vmax.f32 %v11068, 0.0
      %v11133 = vmax.f32 %v11069, 0.0
      %v11134 = vmax.f32 %v11070, 0.0
      %v11135 = vmax.f32 %v11071, 0.0
      %v11136 = vmax.f32 %v11072, 0.0
      %v11137 = vmax.f32 %v11073, 0.0
      %v11138 = vmax.f32 %v11074, 0.0
      %v11139 = vmax.f32 %v11075, 0.0
      %v11140 = vmax.f32 %v11076, 0.0
      %v11141 = vmax.f32 %v11077, 0.0
      %v11142 = vmax.f32 %v11078, 0.0
      %v11143 = vmax.f32 %v11079, 0.0
      %v11144 = vmax.f32 %v11080, 0.0
      %v11145 = vpack.c.bf16 %v11082, %v11081
      %v11146 = vpack.c.bf16 %v11084, %v11083
      %v11147 = vpack.c.bf16 %v11086, %v11085
      %v11148 = vpack.c.bf16 %v11088, %v11087
      %v11149 = vpack.c.bf16 %v11090, %v11089
      %v11150 = vpack.c.bf16 %v11092, %v11091
      %v11151 = vpack.c.bf16 %v11094, %v11093
      %v11152 = vpack.c.bf16 %v11096, %v11095
      %v11153 = vpack.c.bf16 %v11098, %v11097
      %v11154 = vpack.c.bf16 %v11100, %v11099
      %v11155 = vpack.c.bf16 %v11102, %v11101
      %v11156 = vpack.c.bf16 %v11104, %v11103
      %v11157 = vpack.c.bf16 %v11106, %v11105
      %v11158 = vpack.c.bf16 %v11108, %v11107
      %v11159 = vpack.c.bf16 %v11110, %v11109
      %v11160 = vpack.c.bf16 %v11112, %v11111
      %v11161 = vpack.c.bf16 %v11114, %v11113
      %v11162 = vpack.c.bf16 %v11116, %v11115
      %v11163 = vpack.c.bf16 %v11118, %v11117
      %v11164 = vpack.c.bf16 %v11120, %v11119
      %v11165 = vpack.c.bf16 %v11122, %v11121
      %v11166 = vpack.c.bf16 %v11124, %v11123
      %v11167 = vpack.c.bf16 %v11126, %v11125
      %v11168 = vpack.c.bf16 %v11128, %v11127
      %v11169 = vpack.c.bf16 %v11130, %v11129
      %v11170 = vpack.c.bf16 %v11132, %v11131
      %v11171 = vpack.c.bf16 %v11134, %v11133
      %v11172 = vpack.c.bf16 %v11136, %v11135
      %v11173 = vpack.c.bf16 %v11138, %v11137
      %v11174 = vpack.c.bf16 %v11140, %v11139
      %v11175 = vpack.c.bf16 %v11142, %v11141
      %v11176 = vpack.c.bf16 %v11144, %v11143
      %v11177 = vld [vmem:[%s5] sm:$0xf]
      %v11178 = vld [vmem:[%s5 + $0x4] sm:$0xf]
      %v11179 = vld [vmem:[%s5 + $0x8] sm:$0xf]
      %v11180 = vld [vmem:[%s5 + $0xc] sm:$0xf]
      %v11181 = vld [vmem:[%s6] sm:$0x1]
      %v11183 = vlaneseq
      %v11184 = vshrl.u32 %v11183, 7
      %v11185 = vsub.s32 0, %v11184
      %v11186 = vrot.slane %v11181, %v11185
      %v11192 = vunpack.c.l.b16 %v11177
      %v11193 = vunpack.c.l.b16 %v11178
      %v11194 = vunpack.c.l.b16 %v11179
      %v11195 = vunpack.c.l.b16 %v11180
      %v11196 = vpack.c.b16 %v11193, %v11192
      %v11197 = vpack.c.b16 %v11195, %v11194
      %v11201 = vsel %vm6460, %v11145, 0
      %v11204 = vsel %vm6460, %v11146, 0
      %v11207 = vsel %vm6460, %v11147, 0
      %v11210 = vsel %vm6460, %v11148, 0
      %v11213 = vsel %vm6460, %v11149, 0
      %v11216 = vsel %vm6460, %v11150, 0
      %v11219 = vsel %vm6460, %v11151, 0
      %v11222 = vsel %vm6460, %v11152, 0
      %v11225 = vsel %vm6460, %v11153, 0
      %v11228 = vsel %vm6460, %v11154, 0
      %v11231 = vsel %vm6460, %v11155, 0
      %v11234 = vsel %vm6460, %v11156, 0
      %v11237 = vsel %vm6460, %v11157, 0
      %v11240 = vsel %vm6460, %v11158, 0
      %v11243 = vsel %vm6460, %v11159, 0
      %v11246 = vsel %vm6460, %v11160, 0
      %v11249 = vsel %vm6460, %v11161, 0
      %v11252 = vsel %vm6460, %v11162, 0
      %v11255 = vsel %vm6460, %v11163, 0
      %v11258 = vsel %vm6460, %v11164, 0
      %v11261 = vsel %vm6460, %v11165, 0
      %v11264 = vsel %vm6460, %v11166, 0
      %v11267 = vsel %vm6460, %v11167, 0
      %v11270 = vsel %vm6460, %v11168, 0
      %v11273 = vsel %vm6460, %v11169, 0
      %v11276 = vsel %vm6460, %v11170, 0
      %v11279 = vsel %vm6460, %v11171, 0
      %v11282 = vsel %vm6460, %v11172, 0
      %v11285 = vsel %vm6460, %v11173, 0
      %v11288 = vsel %vm6460, %v11174, 0
      %v11291 = vsel %vm6460, %v11175, 0
      %v11294 = vsel %vm6460, %v11176, 0
      %11296 = vmatprep.subr.bf16.mxu0 0
      %11297 = vmatpush1.bf16.msra.mxu0 %v11196
      %11298 = vmatprep.subr.bf16.mxu0 0
      %11299 = vmatpush1.bf16.msra.mxu0 %v11197
      %11300 = vmatprep.subr.bf16.mxu0 0
      %11301 = vmatpush1.bf16.msra.mxu0 0
      %11302 = vmatprep.subr.bf16.mxu0 0
      %11303 = vmatpush1.bf16.msra.mxu0 0
      %11304 = vmatprep.subr.bf16.mxu0 0
      %11305 = vmatpush1.bf16.msra.mxu0 0
      %11306 = vmatprep.subr.bf16.mxu0 0
      %11307 = vmatpush1.bf16.msra.mxu0 0
      %11308 = vmatprep.subr.bf16.mxu0 0
      %11309 = vmatpush1.bf16.msra.mxu0 0
      %11310 = vmatprep.subr.bf16.mxu0 0
      %11311 = vmatpush1.bf16.msra.mxu0 0
      %11312 = vmatprep.subr.bf16.mxu0 0
      %11313 = vmatpush1.bf16.msra.mxu0 0
      %11314 = vmatprep.subr.bf16.mxu0 0
      %11315 = vmatpush1.bf16.msra.mxu0 0
      %11316 = vmatprep.subr.bf16.mxu0 0
      %11317 = vmatpush1.bf16.msra.mxu0 0
      %11318 = vmatprep.subr.bf16.mxu0 0
      %11319 = vmatpush1.bf16.msra.mxu0 0
      %11320 = vmatprep.subr.bf16.mxu0 0
      %11321 = vmatpush1.bf16.msra.mxu0 0
      %11322 = vmatprep.subr.bf16.mxu0 0
      %11323 = vmatpush1.bf16.msra.mxu0 0
      %11324 = vmatprep.subr.bf16.mxu0 0
      %11325 = vmatpush1.bf16.msra.mxu0 0
      %11326 = vmatprep.subr.bf16.mxu0 0
      %11327 = vmatpush1.bf16.msra.mxu0 0
      %11328 = vmatprep.mubr.bf16.mxu0 0
      %11329 = vmatmul.mubr.bf16.gmra.mrb[0].mxu0 %v11201
      %v11330 = vpop.f32.mrb[0].mxu0
      %v11331 = vadd.f32 %v11186, %v11330
      %v11332 = vpop.f32.mrb[0].mxu0
      %v11333 = vpop.f32.mrb[0].mxu0
      %v11334 = vadd.f32 %v11186, %v11333
      %v11335 = vpop.f32.mrb[0].mxu0
      %11336 = vmatprep.mubr.bf16.mxu0 0
      %11337 = vmatmul.mubr.bf16.gmra.mrb[0].mxu0 %v11204
      %v11338 = vpop.f32.mrb[0].mxu0
      %v11339 = vadd.f32 %v11186, %v11338
      %v11340 = vpop.f32.mrb[0].mxu0
      %v11341 = vpop.f32.mrb[0].mxu0
      %v11342 = vadd.f32 %v11186, %v11341
      %v11343 = vpop.f32.mrb[0].mxu0
      %11344 = vmatprep.mubr.bf16.mxu0 0
      %11345 = vmatmul.mubr.bf16.gmra.mrb[0].mxu0 %v11207
      %v11346 = vpop.f32.mrb[0].mxu0
      %v11347 = vadd.f32 %v11186, %v11346
      %v11348 = vpop.f32.mrb[0].mxu0
      %v11349 = vpop.f32.mrb[0].mxu0
      %v11350 = vadd.f32 %v11186, %v11349
      %v11351 = vpop.f32.mrb[0].mxu0
      %11352 = vmatprep.mubr.bf16.mxu0 0
      %11353 = vmatmul.mubr.bf16.gmra.mrb[0].mxu0 %v11210
      %v11354 = vpop.f32.mrb[0].mxu0
      %v11355 = vadd.f32 %v11186, %v11354
      %v11356 = vpop.f32.mrb[0].mxu0
      %v11357 = vpop.f32.mrb[0].mxu0
      %v11358 = vadd.f32 %v11186, %v11357
      %v11359 = vpop.f32.mrb[0].mxu0
      %11360 = vmatprep.mubr.bf16.mxu0 0
      %11361 = vmatmul.mubr.bf16.gmra.mrb[0].mxu0 %v11213
      %v11362 = vpop.f32.mrb[0].mxu0
      %v11363 = vadd.f32 %v11186, %v11362
      %v11364 = vpop.f32.mrb[0].mxu0
      %v11365 = vpop.f32.mrb[0].mxu0
      %v11366 = vadd.f32 %v11186, %v11365
      %v11367 = vpop.f32.mrb[0].mxu0
      %11368 = vmatprep.mubr.bf16.mxu0 0
      %11369 = vmatmul.mubr.bf16.gmra.mrb[0].mxu0 %v11216
      %v11370 = vpop.f32.mrb[0].mxu0
      %v11371 = vadd.f32 %v11186, %v11370
      %v11372 = vpop.f32.mrb[0].mxu0
      %v11373 = vpop.f32.mrb[0].mxu0
      %v11374 = vadd.f32 %v11186, %v11373
      %v11375 = vpop.f32.mrb[0].mxu0
      %11376 = vmatprep.mubr.bf16.mxu0 0
      %11377 = vmatmul.mubr.bf16.gmra.mrb[0].mxu0 %v11219
      %v11378 = vpop.f32.mrb[0].mxu0
      %v11379 = vadd.f32 %v11186, %v11378
      %v11380 = vpop.f32.mrb[0].mxu0
      %v11381 = vpop.f32.mrb[0].mxu0
      %v11382 = vadd.f32 %v11186, %v11381
      %v11383 = vpop.f32.mrb[0].mxu0
      %11384 = vmatprep.mubr.bf16.mxu0 0
      %11385 = vmatmul.mubr.bf16.gmra.mrb[0].mxu0 %v11222
      %v11386 = vpop.f32.mrb[0].mxu0
      %v11387 = vadd.f32 %v11186, %v11386
      %v11388 = vpop.f32.mrb[0].mxu0
      %v11389 = vpop.f32.mrb[0].mxu0
      %v11390 = vadd.f32 %v11186, %v11389
      %v11391 = vpop.f32.mrb[0].mxu0
      %11392 = vmatprep.mubr.bf16.mxu0 0
      %11393 = vmatmul.mubr.bf16.gmra.mrb[0].mxu0 %v11225
      %v11394 = vpop.f32.mrb[0].mxu0
      %v11395 = vadd.f32 %v11186, %v11394
      %v11396 = vpop.f32.mrb[0].mxu0
      %v11397 = vpop.f32.mrb[0].mxu0
      %v11398 = vadd.f32 %v11186, %v11397
      %v11399 = vpop.f32.mrb[0].mxu0
      %11400 = vmatprep.mubr.bf16.mxu0 0
      %11401 = vmatmul.mubr.bf16.gmra.mrb[0].mxu0 %v11228
      %v11402 = vpop.f32.mrb[0].mxu0
      %v11403 = vadd.f32 %v11186, %v11402
      %v11404 = vpop.f32.mrb[0].mxu0
      %v11405 = vpop.f32.mrb[0].mxu0
      %v11406 = vadd.f32 %v11186, %v11405
      %v11407 = vpop.f32.mrb[0].mxu0
      %11408 = vmatprep.mubr.bf16.mxu0 0
      %11409 = vmatmul.mubr.bf16.gmra.mrb[0].mxu0 %v11231
      %v11410 = vpop.f32.mrb[0].mxu0
      %v11411 = vadd.f32 %v11186, %v11410
      %v11412 = vpop.f32.mrb[0].mxu0
      %v11413 = vpop.f32.mrb[0].mxu0
      %v11414 = vadd.f32 %v11186, %v11413
      %v11415 = vpop.f32.mrb[0].mxu0
      %11416 = vmatprep.mubr.bf16.mxu0 0
      %11417 = vmatmul.mubr.bf16.gmra.mrb[0].mxu0 %v11234
      %v11418 = vpop.f32.mrb[0].mxu0
      %v11419 = vadd.f32 %v11186, %v11418
      %v11420 = vpop.f32.mrb[0].mxu0
      %v11421 = vpop.f32.mrb[0].mxu0
      %v11422 = vadd.f32 %v11186, %v11421
      %v11423 = vpop.f32.mrb[0].mxu0
      %11424 = vmatprep.mubr.bf16.mxu0 0
      %11425 = vmatmul.mubr.bf16.gmra.mrb[0].mxu0 %v11237
      %v11426 = vpop.f32.mrb[0].mxu0
      %v11427 = vadd.f32 %v11186, %v11426
      %v11428 = vpop.f32.mrb[0].mxu0
      %v11429 = vpop.f32.mrb[0].mxu0
      %v11430 = vadd.f32 %v11186, %v11429
      %v11431 = vpop.f32.mrb[0].mxu0
      %11432 = vmatprep.mubr.bf16.mxu0 0
      %11433 = vmatmul.mubr.bf16.gmra.mrb[0].mxu0 %v11240
      %v11434 = vpop.f32.mrb[0].mxu0
      %v11435 = vadd.f32 %v11186, %v11434
      %v11436 = vpop.f32.mrb[0].mxu0
      %v11437 = vpop.f32.mrb[0].mxu0
      %v11438 = vadd.f32 %v11186, %v11437
      %v11439 = vpop.f32.mrb[0].mxu0
      %11440 = vmatprep.mubr.bf16.mxu0 0
      %11441 = vmatmul.mubr.bf16.gmra.mrb[0].mxu0 %v11243
      %v11442 = vpop.f32.mrb[0].mxu0
      %v11443 = vadd.f32 %v11186, %v11442
      %v11444 = vpop.f32.mrb[0].mxu0
      %v11445 = vpop.f32.mrb[0].mxu0
      %v11446 = vadd.f32 %v11186, %v11445
      %v11447 = vpop.f32.mrb[0].mxu0
      %11448 = vmatprep.mubr.bf16.mxu0 0
      %11449 = vmatmul.mubr.bf16.gmra.mrb[0].mxu0 %v11246
      %v11450 = vpop.f32.mrb[0].mxu0
      %v11451 = vadd.f32 %v11186, %v11450
      %v11452 = vpop.f32.mrb[0].mxu0
      %v11453 = vpop.f32.mrb[0].mxu0
      %v11454 = vadd.f32 %v11186, %v11453
      %v11455 = vpop.f32.mrb[0].mxu0
      %11456 = vmatprep.mubr.bf16.mxu0 0
      %11457 = vmatmul.mubr.bf16.gmra.mrb[0].mxu0 %v11249
      %v11458 = vpop.f32.mrb[0].mxu0
      %v11459 = vadd.f32 %v11186, %v11458
      %v11460 = vpop.f32.mrb[0].mxu0
      %v11461 = vpop.f32.mrb[0].mxu0
      %v11462 = vadd.f32 %v11186, %v11461
      %v11463 = vpop.f32.mrb[0].mxu0
      %11464 = vmatprep.mubr.bf16.mxu0 0
      %11465 = vmatmul.mubr.bf16.gmra.mrb[0].mxu0 %v11252
      %v11466 = vpop.f32.mrb[0].mxu0
      %v11467 = vadd.f32 %v11186, %v11466
      %v11468 = vpop.f32.mrb[0].mxu0
      %v11469 = vpop.f32.mrb[0].mxu0
      %v11470 = vadd.f32 %v11186, %v11469
      %v11471 = vpop.f32.mrb[0].mxu0
      %11472 = vmatprep.mubr.bf16.mxu0 0
      %11473 = vmatmul.mubr.bf16.gmra.mrb[0].mxu0 %v11255
      %v11474 = vpop.f32.mrb[0].mxu0
      %v11475 = vadd.f32 %v11186, %v11474
      %v11476 = vpop.f32.mrb[0].mxu0
      %v11477 = vpop.f32.mrb[0].mxu0
      %v11478 = vadd.f32 %v11186, %v11477
      %v11479 = vpop.f32.mrb[0].mxu0
      %11480 = vmatprep.mubr.bf16.mxu0 0
      %11481 = vmatmul.mubr.bf16.gmra.mrb[0].mxu0 %v11258
      %v11482 = vpop.f32.mrb[0].mxu0
      %v11483 = vadd.f32 %v11186, %v11482
      %v11484 = vpop.f32.mrb[0].mxu0
      %v11485 = vpop.f32.mrb[0].mxu0
      %v11486 = vadd.f32 %v11186, %v11485
      %v11487 = vpop.f32.mrb[0].mxu0
      %11488 = vmatprep.mubr.bf16.mxu0 0
      %11489 = vmatmul.mubr.bf16.gmra.mrb[0].mxu0 %v11261
      %v11490 = vpop.f32.mrb[0].mxu0
      %v11491 = vadd.f32 %v11186, %v11490
      %v11492 = vpop.f32.mrb[0].mxu0
      %v11493 = vpop.f32.mrb[0].mxu0
      %v11494 = vadd.f32 %v11186, %v11493
      %v11495 = vpop.f32.mrb[0].mxu0
      %11496 = vmatprep.mubr.bf16.mxu0 0
      %11497 = vmatmul.mubr.bf16.gmra.mrb[0].mxu0 %v11264
      %v11498 = vpop.f32.mrb[0].mxu0
      %v11499 = vadd.f32 %v11186, %v11498
      %v11500 = vpop.f32.mrb[0].mxu0
      %v11501 = vpop.f32.mrb[0].mxu0
      %v11502 = vadd.f32 %v11186, %v11501
      %v11503 = vpop.f32.mrb[0].mxu0
      %11504 = vmatprep.mubr.bf16.mxu0 0
      %11505 = vmatmul.mubr.bf16.gmra.mrb[0].mxu0 %v11267
      %v11506 = vpop.f32.mrb[0].mxu0
      %v11507 = vadd.f32 %v11186, %v11506
      %v11508 = vpop.f32.mrb[0].mxu0
      %v11509 = vpop.f32.mrb[0].mxu0
      %v11510 = vadd.f32 %v11186, %v11509
      %v11511 = vpop.f32.mrb[0].mxu0
      %11512 = vmatprep.mubr.bf16.mxu0 0
      %11513 = vmatmul.mubr.bf16.gmra.mrb[0].mxu0 %v11270
      %v11514 = vpop.f32.mrb[0].mxu0
      %v11515 = vadd.f32 %v11186, %v11514
      %v11516 = vpop.f32.mrb[0].mxu0
      %v11517 = vpop.f32.mrb[0].mxu0
      %v11518 = vadd.f32 %v11186, %v11517
      %v11519 = vpop.f32.mrb[0].mxu0
      %11520 = vmatprep.mubr.bf16.mxu0 0
      %11521 = vmatmul.mubr.bf16.gmra.mrb[0].mxu0 %v11273
      %v11522 = vpop.f32.mrb[0].mxu0
      %v11523 = vadd.f32 %v11186, %v11522
      %v11524 = vpop.f32.mrb[0].mxu0
      %v11525 = vpop.f32.mrb[0].mxu0
      %v11526 = vadd.f32 %v11186, %v11525
      %v11527 = vpop.f32.mrb[0].mxu0
      %11528 = vmatprep.mubr.bf16.mxu0 0
      %11529 = vmatmul.mubr.bf16.gmra.mrb[0].mxu0 %v11276
      %v11530 = vpop.f32.mrb[0].mxu0
      %v11531 = vadd.f32 %v11186, %v11530
      %v11532 = vpop.f32.mrb[0].mxu0
      %v11533 = vpop.f32.mrb[0].mxu0
      %v11534 = vadd.f32 %v11186, %v11533
      %v11535 = vpop.f32.mrb[0].mxu0
      %11536 = vmatprep.mubr.bf16.mxu0 0
      %11537 = vmatmul.mubr.bf16.gmra.mrb[0].mxu0 %v11279
      %v11538 = vpop.f32.mrb[0].mxu0
      %v11539 = vadd.f32 %v11186, %v11538
      %v11540 = vpop.f32.mrb[0].mxu0
      %v11541 = vpop.f32.mrb[0].mxu0
      %v11542 = vadd.f32 %v11186, %v11541
      %v11543 = vpop.f32.mrb[0].mxu0
      %11544 = vmatprep.mubr.bf16.mxu0 0
      %11545 = vmatmul.mubr.bf16.gmra.mrb[0].mxu0 %v11282
      %v11546 = vpop.f32.mrb[0].mxu0
      %v11547 = vadd.f32 %v11186, %v11546
      %v11548 = vpop.f32.mrb[0].mxu0
      %v11549 = vpop.f32.mrb[0].mxu0
      %v11550 = vadd.f32 %v11186, %v11549
      %v11551 = vpop.f32.mrb[0].mxu0
      %11552 = vmatprep.mubr.bf16.mxu0 0
      %11553 = vmatmul.mubr.bf16.gmra.mrb[0].mxu0 %v11285
      %v11554 = vpop.f32.mrb[0].mxu0
      %v11555 = vadd.f32 %v11186, %v11554
      %v11556 = vpop.f32.mrb[0].mxu0
      %v11557 = vpop.f32.mrb[0].mxu0
      %v11558 = vadd.f32 %v11186, %v11557
      %v11559 = vpop.f32.mrb[0].mxu0
      %11560 = vmatprep.mubr.bf16.mxu0 0
      %11561 = vmatmul.mubr.bf16.gmra.mrb[0].mxu0 %v11288
      %v11562 = vpop.f32.mrb[0].mxu0
      %v11563 = vadd.f32 %v11186, %v11562
      %v11564 = vpop.f32.mrb[0].mxu0
      %v11565 = vpop.f32.mrb[0].mxu0
      %v11566 = vadd.f32 %v11186, %v11565
      %v11567 = vpop.f32.mrb[0].mxu0
      %11568 = vmatprep.mubr.bf16.mxu0 0
      %11569 = vmatmul.mubr.bf16.gmra.mrb[0].mxu0 %v11291
      %v11570 = vpop.f32.mrb[0].mxu0
      %v11571 = vadd.f32 %v11186, %v11570
      %v11572 = vpop.f32.mrb[0].mxu0
      %v11573 = vpop.f32.mrb[0].mxu0
      %v11574 = vadd.f32 %v11186, %v11573
      %v11575 = vpop.f32.mrb[0].mxu0
      %11576 = vmatprep.mubr.bf16.mxu0 0
      %11577 = vmatmul.mubr.bf16.gmra.mrb[0].mxu0 %v11294
      %v11578 = vpop.f32.mrb[0].mxu0
      %v11579 = vadd.f32 %v11186, %v11578
      %v11580 = vpop.f32.mrb[0].mxu0
      %v11581 = vpop.f32.mrb[0].mxu0
      %v11582 = vadd.f32 %v11186, %v11581
      %v11583 = vpop.f32.mrb[0].mxu0
      %11584 = vdwg.mxu0
      %v11585 = vpack.c.bf16 %v11334, %v11331
      %v11586 = vpack.c.bf16 %v11342, %v11339
      %v11587 = vpack.c.bf16 %v11350, %v11347
      %v11588 = vpack.c.bf16 %v11358, %v11355
      %v11589 = vpack.c.bf16 %v11366, %v11363
      %v11590 = vpack.c.bf16 %v11374, %v11371
      %v11591 = vpack.c.bf16 %v11382, %v11379
      %v11592 = vpack.c.bf16 %v11390, %v11387
      %v11593 = vpack.c.bf16 %v11398, %v11395
      %v11594 = vpack.c.bf16 %v11406, %v11403
      %v11595 = vpack.c.bf16 %v11414, %v11411
      %v11596 = vpack.c.bf16 %v11422, %v11419
      %v11597 = vpack.c.bf16 %v11430, %v11427
      %v11598 = vpack.c.bf16 %v11438, %v11435
      %v11599 = vpack.c.bf16 %v11446, %v11443
      %v11600 = vpack.c.bf16 %v11454, %v11451
      %v11601 = vpack.c.bf16 %v11462, %v11459
      %v11602 = vpack.c.bf16 %v11470, %v11467
      %v11603 = vpack.c.bf16 %v11478, %v11475
      %v11604 = vpack.c.bf16 %v11486, %v11483
      %v11605 = vpack.c.bf16 %v11494, %v11491
      %v11606 = vpack.c.bf16 %v11502, %v11499
      %v11607 = vpack.c.bf16 %v11510, %v11507
      %v11608 = vpack.c.bf16 %v11518, %v11515
      %v11609 = vpack.c.bf16 %v11526, %v11523
      %v11610 = vpack.c.bf16 %v11534, %v11531
      %v11611 = vpack.c.bf16 %v11542, %v11539
      %v11612 = vpack.c.bf16 %v11550, %v11547
      %v11613 = vpack.c.bf16 %v11558, %v11555
      %v11614 = vpack.c.bf16 %v11566, %v11563
      %v11615 = vpack.c.bf16 %v11574, %v11571
      %v11616 = vpack.c.bf16 %v11582, %v11579
      %v11649 = vunpack.c.l.b16 %v11585
      %v11650 = vunpack.c.h.b16 %v11585
      %v11651 = vunpack.c.l.b16 %v11586
      %v11652 = vunpack.c.h.b16 %v11586
      %v11653 = vunpack.c.l.b16 %v11587
      %v11654 = vunpack.c.h.b16 %v11587
      %v11655 = vunpack.c.l.b16 %v11588
      %v11656 = vunpack.c.h.b16 %v11588
      %v11657 = vunpack.c.l.b16 %v11589
      %v11658 = vunpack.c.h.b16 %v11589
      %v11659 = vunpack.c.l.b16 %v11590
      %v11660 = vunpack.c.h.b16 %v11590
      %v11661 = vunpack.c.l.b16 %v11591
      %v11662 = vunpack.c.h.b16 %v11591
      %v11663 = vunpack.c.l.b16 %v11592
      %v11664 = vunpack.c.h.b16 %v11592
      %v11665 = vunpack.c.l.b16 %v11593
      %v11666 = vunpack.c.h.b16 %v11593
      %v11667 = vunpack.c.l.b16 %v11594
      %v11668 = vunpack.c.h.b16 %v11594
      %v11669 = vunpack.c.l.b16 %v11595
      %v11670 = vunpack.c.h.b16 %v11595
      %v11671 = vunpack.c.l.b16 %v11596
      %v11672 = vunpack.c.h.b16 %v11596
      %v11673 = vunpack.c.l.b16 %v11597
      %v11674 = vunpack.c.h.b16 %v11597
      %v11675 = vunpack.c.l.b16 %v11598
      %v11676 = vunpack.c.h.b16 %v11598
      %v11677 = vunpack.c.l.b16 %v11599
      %v11678 = vunpack.c.h.b16 %v11599
      %v11679 = vunpack.c.l.b16 %v11600
      %v11680 = vunpack.c.h.b16 %v11600
      %v11681 = vunpack.c.l.b16 %v11601
      %v11682 = vunpack.c.h.b16 %v11601
      %v11683 = vunpack.c.l.b16 %v11602
      %v11684 = vunpack.c.h.b16 %v11602
      %v11685 = vunpack.c.l.b16 %v11603
      %v11686 = vunpack.c.h.b16 %v11603
      %v11687 = vunpack.c.l.b16 %v11604
      %v11688 = vunpack.c.h.b16 %v11604
      %v11689 = vunpack.c.l.b16 %v11605
      %v11690 = vunpack.c.h.b16 %v11605
      %v11691 = vunpack.c.l.b16 %v11606
      %v11692 = vunpack.c.h.b16 %v11606
      %v11693 = vunpack.c.l.b16 %v11607
      %v11694 = vunpack.c.h.b16 %v11607
      %v11695 = vunpack.c.l.b16 %v11608
      %v11696 = vunpack.c.h.b16 %v11608
      %v11697 = vunpack.c.l.b16 %v11609
      %v11698 = vunpack.c.h.b16 %v11609
      %v11699 = vunpack.c.l.b16 %v11610
      %v11700 = vunpack.c.h.b16 %v11610
      %v11701 = vunpack.c.l.b16 %v11611
      %v11702 = vunpack.c.h.b16 %v11611
      %v11703 = vunpack.c.l.b16 %v11612
      %v11704 = vunpack.c.h.b16 %v11612
      %v11705 = vunpack.c.l.b16 %v11613
      %v11706 = vunpack.c.h.b16 %v11613
      %v11707 = vunpack.c.l.b16 %v11614
      %v11708 = vunpack.c.h.b16 %v11614
      %v11709 = vunpack.c.l.b16 %v11615
      %v11710 = vunpack.c.h.b16 %v11615
      %v11711 = vunpack.c.l.b16 %v11616
      %v11712 = vunpack.c.h.b16 %v11616
      %v11713 = vpack.c.b16 %v11649, %v11649
      %v11714 = vpack.c.b16 %v11650, %v11650
      %v11715 = vpack.c.b16 %v11651, %v11651
      %v11716 = vpack.c.b16 %v11652, %v11652
      %v11717 = vpack.c.b16 %v11653, %v11653
      %v11718 = vpack.c.b16 %v11654, %v11654
      %v11719 = vpack.c.b16 %v11655, %v11655
      %v11720 = vpack.c.b16 %v11656, %v11656
      %v11721 = vpack.c.b16 %v11657, %v11657
      %v11722 = vpack.c.b16 %v11658, %v11658
      %v11723 = vpack.c.b16 %v11659, %v11659
      %v11724 = vpack.c.b16 %v11660, %v11660
      %v11725 = vpack.c.b16 %v11661, %v11661
      %v11726 = vpack.c.b16 %v11662, %v11662
      %v11727 = vpack.c.b16 %v11663, %v11663
      %v11728 = vpack.c.b16 %v11664, %v11664
      %v11729 = vpack.c.b16 %v11665, %v11665
      %v11730 = vpack.c.b16 %v11666, %v11666
      %v11731 = vpack.c.b16 %v11667, %v11667
      %v11732 = vpack.c.b16 %v11668, %v11668
      %v11733 = vpack.c.b16 %v11669, %v11669
      %v11734 = vpack.c.b16 %v11670, %v11670
      %v11735 = vpack.c.b16 %v11671, %v11671
      %v11736 = vpack.c.b16 %v11672, %v11672
      %v11737 = vpack.c.b16 %v11673, %v11673
      %v11738 = vpack.c.b16 %v11674, %v11674
      %v11739 = vpack.c.b16 %v11675, %v11675
      %v11740 = vpack.c.b16 %v11676, %v11676
      %v11741 = vpack.c.b16 %v11677, %v11677
      %v11742 = vpack.c.b16 %v11678, %v11678
      %v11743 = vpack.c.b16 %v11679, %v11679
      %v11744 = vpack.c.b16 %v11680, %v11680
      %v11745 = vpack.c.b16 %v11681, %v11681
      %v11746 = vpack.c.b16 %v11682, %v11682
      %v11747 = vpack.c.b16 %v11683, %v11683
      %v11748 = vpack.c.b16 %v11684, %v11684
      %v11749 = vpack.c.b16 %v11685, %v11685
      %v11750 = vpack.c.b16 %v11686, %v11686
      %v11751 = vpack.c.b16 %v11687, %v11687
      %v11752 = vpack.c.b16 %v11688, %v11688
      %v11753 = vpack.c.b16 %v11689, %v11689
      %v11754 = vpack.c.b16 %v11690, %v11690
      %v11755 = vpack.c.b16 %v11691, %v11691
      %v11756 = vpack.c.b16 %v11692, %v11692
      %v11757 = vpack.c.b16 %v11693, %v11693
      %v11758 = vpack.c.b16 %v11694, %v11694
      %v11759 = vpack.c.b16 %v11695, %v11695
      %v11760 = vpack.c.b16 %v11696, %v11696
      %v11761 = vpack.c.b16 %v11697, %v11697
      %v11762 = vpack.c.b16 %v11698, %v11698
      %v11763 = vpack.c.b16 %v11699, %v11699
      %v11764 = vpack.c.b16 %v11700, %v11700
      %v11765 = vpack.c.b16 %v11701, %v11701
      %v11766 = vpack.c.b16 %v11702, %v11702
      %v11767 = vpack.c.b16 %v11703, %v11703
      %v11768 = vpack.c.b16 %v11704, %v11704
      %v11769 = vpack.c.b16 %v11705, %v11705
      %v11770 = vpack.c.b16 %v11706, %v11706
      %v11771 = vpack.c.b16 %v11707, %v11707
      %v11772 = vpack.c.b16 %v11708, %v11708
      %v11773 = vpack.c.b16 %v11709, %v11709
      %v11774 = vpack.c.b16 %v11710, %v11710
      %v11775 = vpack.c.b16 %v11711, %v11711
      %v11776 = vpack.c.b16 %v11712, %v11712
      %11841 = vst [vmem:[%s278] sm:$0xf] %v11713
      %11842 = vst [vmem:[%s278 + $0x4] sm:$0xf] %v11714
      %11843 = vst [vmem:[%s278 + $0x8] sm:$0xf] %v11715
      %11844 = vst [vmem:[%s278 + $0xc] sm:$0xf] %v11716
      %11845 = vst [vmem:[%s278 + $0x10] sm:$0xf] %v11717
      %11846 = vst [vmem:[%s278 + $0x14] sm:$0xf] %v11718
      %11847 = vst [vmem:[%s278 + $0x18] sm:$0xf] %v11719
      %11848 = vst [vmem:[%s278 + $0x1c] sm:$0xf] %v11720
      %11849 = vst [vmem:[%s278 + $0x20] sm:$0xf] %v11721
      %11850 = vst [vmem:[%s278 + $0x24] sm:$0xf] %v11722
      %11851 = vst [vmem:[%s278 + $0x28] sm:$0xf] %v11723
      %11852 = vst [vmem:[%s278 + $0x2c] sm:$0xf] %v11724
      %11853 = vst [vmem:[%s278 + $0x30] sm:$0xf] %v11725
      %11854 = vst [vmem:[%s278 + $0x34] sm:$0xf] %v11726
      %11855 = vst [vmem:[%s278 + $0x38] sm:$0xf] %v11727
      %11856 = vst [vmem:[%s278 + $0x3c] sm:$0xf] %v11728
      %11857 = vst [vmem:[%s278 + $0x40] sm:$0xf] %v11729
      %11858 = vst [vmem:[%s278 + $0x44] sm:$0xf] %v11730
      %11859 = vst [vmem:[%s278 + $0x48] sm:$0xf] %v11731
      %11860 = vst [vmem:[%s278 + $0x4c] sm:$0xf] %v11732
      %11861 = vst [vmem:[%s278 + $0x50] sm:$0xf] %v11733
      %11862 = vst [vmem:[%s278 + $0x54] sm:$0xf] %v11734
      %11863 = vst [vmem:[%s278 + $0x58] sm:$0xf] %v11735
      %11864 = vst [vmem:[%s278 + $0x5c] sm:$0xf] %v11736
      %11865 = vst [vmem:[%s278 + $0x60] sm:$0xf] %v11737
      %11866 = vst [vmem:[%s278 + $0x64] sm:$0xf] %v11738
      %11867 = vst [vmem:[%s278 + $0x68] sm:$0xf] %v11739
      %11868 = vst [vmem:[%s278 + $0x6c] sm:$0xf] %v11740
      %11869 = vst [vmem:[%s278 + $0x70] sm:$0xf] %v11741
      %11870 = vst [vmem:[%s278 + $0x74] sm:$0xf] %v11742
      %11871 = vst [vmem:[%s278 + $0x78] sm:$0xf] %v11743
      %11872 = vst [vmem:[%s278 + $0x7c] sm:$0xf] %v11744
      %11873 = vst [vmem:[%s278 + $0x80] sm:$0xf] %v11745
      %11874 = vst [vmem:[%s278 + $0x84] sm:$0xf] %v11746
      %11875 = vst [vmem:[%s278 + $0x88] sm:$0xf] %v11747
      %11876 = vst [vmem:[%s278 + $0x8c] sm:$0xf] %v11748
      %11877 = vst [vmem:[%s278 + $0x90] sm:$0xf] %v11749
      %11878 = vst [vmem:[%s278 + $0x94] sm:$0xf] %v11750
      %11879 = vst [vmem:[%s278 + $0x98] sm:$0xf] %v11751
      %11880 = vst [vmem:[%s278 + $0x9c] sm:$0xf] %v11752
      %11881 = vst [vmem:[%s278 + $0xa0] sm:$0xf] %v11753
      %11882 = vst [vmem:[%s278 + $0xa4] sm:$0xf] %v11754
      %11883 = vst [vmem:[%s278 + $0xa8] sm:$0xf] %v11755
      %11884 = vst [vmem:[%s278 + $0xac] sm:$0xf] %v11756
      %11885 = vst [vmem:[%s278 + $0xb0] sm:$0xf] %v11757
      %11886 = vst [vmem:[%s278 + $0xb4] sm:$0xf] %v11758
      %11887 = vst [vmem:[%s278 + $0xb8] sm:$0xf] %v11759
      %11888 = vst [vmem:[%s278 + $0xbc] sm:$0xf] %v11760
      %11889 = vst [vmem:[%s278 + $0xc0] sm:$0xf] %v11761
      %11890 = vst [vmem:[%s278 + $0xc4] sm:$0xf] %v11762
      %11891 = vst [vmem:[%s278 + $0xc8] sm:$0xf] %v11763
      %11892 = vst [vmem:[%s278 + $0xcc] sm:$0xf] %v11764
      %11893 = vst [vmem:[%s278 + $0xd0] sm:$0xf] %v11765
      %11894 = vst [vmem:[%s278 + $0xd4] sm:$0xf] %v11766
      %11895 = vst [vmem:[%s278 + $0xd8] sm:$0xf] %v11767
      %11896 = vst [vmem:[%s278 + $0xdc] sm:$0xf] %v11768
      %11897 = vst [vmem:[%s278 + $0xe0] sm:$0xf] %v11769
      %11898 = vst [vmem:[%s278 + $0xe4] sm:$0xf] %v11770
      %11899 = vst [vmem:[%s278 + $0xe8] sm:$0xf] %v11771
      %11900 = vst [vmem:[%s278 + $0xec] sm:$0xf] %v11772
      %11901 = vst [vmem:[%s278 + $0xf0] sm:$0xf] %v11773
      %11902 = vst [vmem:[%s278 + $0xf4] sm:$0xf] %v11774
      %11903 = vst [vmem:[%s278 + $0xf8] sm:$0xf] %v11775
      %11904 = vst [vmem:[%s278 + $0xfc] sm:$0xf] %v11776
      %p11905 = scmp.lt.s32.totalorder %s18, 1
      %s11906 = scalar_select %p11905, %s18, 1
      %s11907 = smul.addr %s11906, 64
      %s11908 = smul.addr %s11907, 4
      %s11909 = scalar_lea.vmem %s7, %s11908
      // Predicated region
      $region49: #{_proposal_forward.1} parent=47 // pred_check
        %p11910 = pneg %p188
      $region50: #{_proposal_forward.1} parent=47 // pred_check_branch
        %11912 = sbr.rel (%p11910) target = $region52
      $region51: #{_proposal_forward.1} parent=47 // pred_region
        _
      $region52: #{_proposal_forward.1} parent=47 // pred_fallthru
        _
    $region48: #{_proposal_forward.1} parent=5 // pred_fallthru
      _
    %p11913 = scmp.le.s32.totalorder 2, %s13
    // Predicated region
    $region53: #{_proposal_forward.1} parent=5 // pred_check
      %p11914 = pneg %p11913
    $region54: #{_proposal_forward.1} parent=5 // pred_check_branch
      %11916 = sbr.rel (%p11914) target = $region56
    $region55: #{_proposal_forward.1} parent=5 // pred_region
      %s11917 = ssub.s32 %s13, 2
      // Predicated region
      $region57: #{_proposal_forward.1} parent=55 // pred_check
        %p11918 = pneg %p194
      $region58: #{_proposal_forward.1} parent=55 // pred_check_branch
        %11920 = sbr.rel (%p11918) target = $region60
      $region59: #{_proposal_forward.1} parent=55 // pred_region
        %p11921 = scmp.lt.s32.totalorder %s19, 1
        %s11922 = scalar_select %p11921, %s19, 1
        %s11923 = smul.addr %s11922, 64
        %s11924 = smul.addr %s11923, 4
        %s11925 = scalar_lea.vmem %s7, %s11924
      $region60: #{_proposal_forward.1} parent=55 // pred_fallthru
        _
    $region56: #{_proposal_forward.1} parent=5 // pred_fallthru
      _
  $region6: #{_proposal_forward.1} parent=0 // loop_footer
    %s17 = sadd.s32 1, %s13
  $region7: #{_proposal_forward.1} parent=0 // loop_footer_branch
    %12 = sbr.rel target = $region3
  $region8: #{_proposal_forward.1} parent=0 // loop_exit
    _

</llo_original>
